<compile_context>
chip_gen: v7x
topology: tpu7x:2x2x1
jax: 0.10.0
libtpu: 0.0.40
codegen_flags: <defaults>
</compile_context>

<pallas_src>
import functools

import jax
import jax.numpy as jnp
from jax.experimental import pallas as pl
from jax.experimental.pallas import tpu as pltpu

IN_FEATURES = 2352   # 3 * 28 * 28
HIDDEN0 = 1024
HIDDEN1 = 128
NUM_CLASSES = 10
LANE = 128
SUBLANE = 8


def _round_up(n, m):
    return ((n + m - 1) // m) * m


def _device_config():
    """Generation-aware defaults (batch tile, VMEM limit, #TensorCores)."""
    kind = ""
    try:
        kind = jax.devices()[0].device_kind.lower()
    except Exception:
        pass
    if "v7" in kind:
        # 64 MiB VMEM per TC, 2 TCs/chip: cap the tile and keep >=2 grid steps.
        return {"batch_tile": 512, "vmem_limit": 48 << 20, "num_cores": 2}
    # v5e / v6e: 128 MiB VMEM, 1 TC: big tiles amortize per-step overhead.
    return {"batch_tile": 1024, "vmem_limit": 64 << 20, "num_cores": 1}


def _resident_spec(shape):
    """Constant-index block (VMEM-resident across grid steps), single-buffered
    when the installed JAX supports per-spec pipeline_mode."""
    index_map = lambda i: (0,) * len(shape)
    try:
        return pl.BlockSpec(shape, index_map, pipeline_mode=pl.Buffered(1))
    except TypeError:  # older JAX without pipeline_mode kwarg
        return pl.BlockSpec(shape, index_map)


def _mlp_kernel(x_ref, w0_ref, b0_ref, w1_ref, b1_ref, w2_ref, b2_ref, o_ref,
                *, n_valid):
    # x tile: (tm, 2352) f32 -> cast to bf16 on the VPU (MXU is the bottleneck).
    x = x_ref[...].astype(jnp.bfloat16)

    # fc0 + ReLU (bf16 operands, f32 MXU accumulation).
    h0 = jnp.dot(x, w0_ref[...], preferred_element_type=jnp.float32) + b0_ref[...]
    h0 = jnp.maximum(h0, 0.0).astype(jnp.bfloat16)

    # fc1 + ReLU.
    h1 = jnp.dot(h0, w1_ref[...], preferred_element_type=jnp.float32) + b1_ref[...]
    h1 = jnp.maximum(h1, 0.0)  # keep f32; fc2 is <1% of FLOPs

    # fc2 in f32 on a lane-padded (128) class axis.
    logits = jnp.dot(h1, w2_ref[...], preferred_element_type=jnp.float32) + b2_ref[...]

    # Mask the padded class lanes with -inf, then stable log-softmax.
    lane_id = jax.lax.broadcasted_iota(jnp.int32, logits.shape, 1)
    logits = jnp.where(lane_id < n_valid, logits, -jnp.inf)

    m = jnp.max(logits, axis=-1, keepdims=True)
    shifted = logits - m
    lse = jnp.log(jnp.sum(jnp.exp(shifted), axis=-1, keepdims=True))
    o_ref[...] = shifted - lse


def prepare_params(params):
    """One-time conversion of raw (f32) params into kernel layout.

    Call this ONCE (e.g. after loading/updating weights), not per forward.
    Raw params: (w0[2352,1024], b0[1,1024], w1[1024,128], b1[1,128],
                 w2[128,10], b2[1,10]) — weights already [in, out].
    """
    w0, b0, w1, b1, w2, b2 = params
    n_pad = _round_up(NUM_CLASSES, LANE)  # 10 -> 128 (lane-dense fc2 / store)

    w0_k = jnp.asarray(w0, jnp.bfloat16)                       # (2352, 1024)
    w1_k = jnp.asarray(w1, jnp.bfloat16)                       # (1024, 128)
    w2_k = (jnp.zeros((HIDDEN1, n_pad), jnp.float32)
            .at[:, :NUM_CLASSES].set(jnp.asarray(w2, jnp.float32)))
    b0_k = jnp.asarray(b0, jnp.float32).reshape(1, HIDDEN0)
    b1_k = jnp.asarray(b1, jnp.float32).reshape(1, HIDDEN1)
    b2_k = (jnp.zeros((1, n_pad), jnp.float32)
            .at[:, :NUM_CLASSES].set(jnp.asarray(b2, jnp.float32).reshape(1, -1)))
    return (w0_k, b0_k, w1_k, b1_k, w2_k, b2_k)


def fully_connected_net(x, prepared_params, *, batch_tile=None,
                        vmem_limit_bytes=None):
    """x: [B, 3, 28, 28] float32; prepared_params from prepare_params().
    Returns log-probabilities [B, 10] (float32)."""
    w0, b0, w1, b1, w2, b2 = prepared_params
    B = x.shape[0]
    n_pad = w2.shape[1]

    cfg = _device_config()
    if batch_tile is None:
        batch_tile = cfg["batch_tile"]
    if vmem_limit_bytes is None:
        vmem_limit_bytes = cfg["vmem_limit"]

    # Batch tile: multiple of 8; on v7x split so the grid has >= num_cores
    # steps and "parallel" can shard the batch axis across both TensorCores.
    per_core = pl.cdiv(B, cfg["num_cores"])
    tm = max(SUBLANE, min(batch_tile, _round_up(per_core, SUBLANE)))
    grid = (pl.cdiv(B, tm),)

    # Free reshape (row-major contiguous) — x is read from HBM exactly once.
    x_flat = x.reshape(B, IN_FEATURES)

    kernel = functools.partial(_mlp_kernel, n_valid=NUM_CLASSES)

    out_padded = pl.pallas_call(
        kernel,
        out_shape=jax.ShapeDtypeStruct((B, n_pad), jnp.float32),
        grid=grid,
        in_specs=[
            # x tile: last block dim == full array dim (2352) -> legal, no pad.
            pl.BlockSpec((tm, IN_FEATURES), lambda i: (i, 0)),
            _resident_spec((IN_FEATURES, HIDDEN0)),   # w0 (bf16)
            _resident_spec((1, HIDDEN0)),             # b0
            _resident_spec((HIDDEN0, HIDDEN1)),       # w1 (bf16)
            _resident_spec((1, HIDDEN1)),             # b1
            _resident_spec((HIDDEN1, n_pad)),         # w2 (f32, lane-padded)
            _resident_spec((1, n_pad)),               # b2
        ],
        out_specs=pl.BlockSpec((tm, n_pad), lambda i: (i, 0)),
        compiler_params=pltpu.CompilerParams(
            dimension_semantics=("parallel",),
            vmem_limit_bytes=vmem_limit_bytes,
        ),
    )(x_flat, w0, b0, w1, b1, w2, b2)

    return out_padded[:B, :NUM_CLASSES]


def init_params(key):
    """Deterministic init mimicking nn.Linear default (uniform +/- 1/sqrt(fan_in))."""
    dims = [(IN_FEATURES, HIDDEN0), (HIDDEN0, HIDDEN1), (HIDDEN1, NUM_CLASSES)]
    params = []
    for fan_in, fan_out in dims:
        kw, kb, key = jax.random.split(key, 3)
        bound = 1.0 / jnp.sqrt(fan_in)
        w = jax.random.uniform(kw, (fan_in, fan_out), jnp.float32, -bound, bound)
        b = jax.random.uniform(kb, (1, fan_out), jnp.float32, -bound, bound)
        params += [w, b]
    return tuple(params)


def _reference(x, params):
    """Pure-JAX f32 reference of the PyTorch forward pass."""
    w0, b0, w1, b1, w2, b2 = params
    h = x.reshape(x.shape[0], -1)
    h = jnp.maximum(h @ w0 + b0, 0.0)
    h = jnp.maximum(h @ w1 + b1, 0.0)
    logits = h @ w2 + b2
    return jax.nn.log_softmax(logits, axis=1)


if __name__ == "__main__":
    key = jax.random.PRNGKey(0)
    kx, kp = jax.random.split(key)
    # Small example input consistent with fc0's 2352 = 3*28*28 input features.
    x = jax.random.normal(kx, (2, 3, 28, 28), jnp.float32)
    raw_params = init_params(kp)

    # One-time layout conversion (outside the per-call path / serving loop).
    prepared = prepare_params(raw_params)

    fwd = jax.jit(fully_connected_net)
    out = jax.block_until_ready(fwd(x, prepared))

    ref = _reference(x, raw_params)
    assert out.shape == (2, NUM_CLASSES)
    assert bool(jnp.all(jnp.isfinite(out))), "non-finite output"
    # bf16 fc0/fc1 weights+activations with f32 accumulation -> loose tolerance.
    assert jnp.allclose(out, ref, atol=3e-2, rtol=3e-2), "mismatch vs reference"
    print("KERNEL_OK")
</pallas_src>

<mosaic_0001>
module attributes {stable_mosaic.version = 11 : i64} {
  func.func @_mlp_kernel(%arg0: i32, %arg1: memref<8x2352xf32, #tpu.memory_space<vmem>>, %arg2: memref<2352x1024xbf16, #tpu.memory_space<vmem>>, %arg3: memref<1x1024xf32, #tpu.memory_space<vmem>>, %arg4: memref<1024x128xbf16, #tpu.memory_space<vmem>>, %arg5: memref<1x128xf32, #tpu.memory_space<vmem>>, %arg6: memref<128x128xf32, #tpu.memory_space<vmem>>, %arg7: memref<1x128xf32, #tpu.memory_space<vmem>>, %arg8: memref<8x128xf32, #tpu.memory_space<vmem>>) attributes {dimension_semantics = [#tpu.dimension_semantics<parallel>], iteration_bounds = array<i64: 1>, scalar_prefetch = 0 : i64, scratch_operands = 0 : i64, tpu.core_type = #tpu.core_type<tc>, window_params = [{transform_indices = @transform_0, window_bounds = array<i64: 8, 2352>}, {pipeline_mode = #tpu.pipeline_mode<synchronous>, transform_indices = @transform_1, window_bounds = array<i64: 2352, 1024>}, {pipeline_mode = #tpu.pipeline_mode<synchronous>, transform_indices = @transform_2, window_bounds = array<i64: 1, 1024>}, {pipeline_mode = #tpu.pipeline_mode<synchronous>, transform_indices = @transform_3, window_bounds = array<i64: 1024, 128>}, {pipeline_mode = #tpu.pipeline_mode<synchronous>, transform_indices = @transform_4, window_bounds = array<i64: 1, 128>}, {pipeline_mode = #tpu.pipeline_mode<synchronous>, transform_indices = @transform_5, window_bounds = array<i64: 128, 128>}, {pipeline_mode = #tpu.pipeline_mode<synchronous>, transform_indices = @transform_6, window_bounds = array<i64: 1, 128>}, {transform_indices = @transform_7, window_bounds = array<i64: 8, 128>}]} {
    %c0 = arith.constant 0 : index
    %c0_0 = arith.constant 0 : index
    %0 = vector.load %arg1[%c0, %c0_0] : memref<8x2352xf32, #tpu.memory_space<vmem>>, vector<8x2352xf32>
    %1 = arith.truncf %0 : vector<8x2352xf32> to vector<8x2352xbf16>
    %c0_1 = arith.constant 0 : index
    %c0_2 = arith.constant 0 : index
    %2 = vector.load %arg2[%c0_1, %c0_2] : memref<2352x1024xbf16, #tpu.memory_space<vmem>>, vector<2352x1024xbf16>
    %cst = arith.constant dense<0.000000e+00> : vector<8x1024xf32>
    %3 = tpu.matmul %1, %2, %cst {dimension_numbers = #tpu.dot_dimension_numbers<[1], [0], [0], [1], [0, 0, 1, 1], [], []>} : vector<8x2352xbf16>, vector<2352x1024xbf16>, vector<8x1024xf32> -> vector<8x1024xf32>
    %c0_3 = arith.constant 0 : index
    %c0_4 = arith.constant 0 : index
    %4 = vector.load %arg3[%c0_3, %c0_4] : memref<1x1024xf32, #tpu.memory_space<vmem>>, vector<1x1024xf32>
    %5 = vector.broadcast %4 : vector<1x1024xf32> to vector<8x1024xf32>
    %6 = arith.addf %3, %5 : vector<8x1024xf32>
    %cst_5 = arith.constant 0.000000e+00 : f32
    %7 = vector.broadcast %cst_5 : f32 to vector<8x1024xf32>
    %8 = arith.maximumf %6, %7 : vector<8x1024xf32>
    %9 = arith.truncf %8 : vector<8x1024xf32> to vector<8x1024xbf16>
    %c0_6 = arith.constant 0 : index
    %c0_7 = arith.constant 0 : index
    %10 = vector.load %arg4[%c0_6, %c0_7] : memref<1024x128xbf16, #tpu.memory_space<vmem>>, vector<1024x128xbf16>
    %cst_8 = arith.constant dense<0.000000e+00> : vector<8x128xf32>
    %11 = tpu.matmul %9, %10, %cst_8 {dimension_numbers = #tpu.dot_dimension_numbers<[1], [0], [0], [1], [0, 0, 1, 1], [], []>} : vector<8x1024xbf16>, vector<1024x128xbf16>, vector<8x128xf32> -> vector<8x128xf32>
    %c0_9 = arith.constant 0 : index
    %c0_10 = arith.constant 0 : index
    %12 = vector.load %arg5[%c0_9, %c0_10] : memref<1x128xf32, #tpu.memory_space<vmem>>, vector<1x128xf32>
    %13 = vector.broadcast %12 : vector<1x128xf32> to vector<8x128xf32>
    %14 = arith.addf %11, %13 : vector<8x128xf32>
    %cst_11 = arith.constant 0.000000e+00 : f32
    %15 = vector.broadcast %cst_11 : f32 to vector<8x128xf32>
    %16 = arith.maximumf %14, %15 : vector<8x128xf32>
    %c0_12 = arith.constant 0 : index
    %c0_13 = arith.constant 0 : index
    %17 = vector.load %arg6[%c0_12, %c0_13] : memref<128x128xf32, #tpu.memory_space<vmem>>, vector<128x128xf32>
    %cst_14 = arith.constant dense<0.000000e+00> : vector<8x128xf32>
    %18 = tpu.matmul %16, %17, %cst_14 {dimension_numbers = #tpu.dot_dimension_numbers<[1], [0], [0], [1], [0, 0, 1, 1], [], []>} : vector<8x128xf32>, vector<128x128xf32>, vector<8x128xf32> -> vector<8x128xf32>
    %c0_15 = arith.constant 0 : index
    %c0_16 = arith.constant 0 : index
    %19 = vector.load %arg7[%c0_15, %c0_16] : memref<1x128xf32, #tpu.memory_space<vmem>>, vector<1x128xf32>
    %20 = vector.broadcast %19 : vector<1x128xf32> to vector<8x128xf32>
    %21 = arith.addf %18, %20 : vector<8x128xf32>
    %22 = tpu.iota {dimensions = array<i32: 1>} : vector<8x128xi32>
    %c10_i32 = arith.constant 10 : i32
    %23 = vector.broadcast %c10_i32 : i32 to vector<8x128xi32>
    %24 = arith.cmpi slt, %22, %23 : vector<8x128xi32>
    %cst_17 = arith.constant 0xFF800000 : f32
    %25 = vector.broadcast %cst_17 : f32 to vector<8x128xf32>
    %26 = arith.select %24, %21, %25 : vector<8x128xi1>, vector<8x128xf32>
    %cst_18 = arith.constant dense<0xFF800000> : vector<8xf32>
    %27 = vector.multi_reduction <maximumf>, %26, %cst_18 [1] : vector<8x128xf32> to vector<8xf32>
    %28 = vector.shape_cast %27 : vector<8xf32> to vector<8x1xf32>
    %29 = vector.broadcast %28 : vector<8x1xf32> to vector<8x128xf32>
    %30 = arith.subf %26, %29 : vector<8x128xf32>
    %31 = math.exp %30 : vector<8x128xf32>
    %cst_19 = arith.constant dense<0.000000e+00> : vector<8xf32>
    %32 = vector.multi_reduction <add>, %31, %cst_19 [1] : vector<8x128xf32> to vector<8xf32>
    %33 = vector.shape_cast %32 : vector<8xf32> to vector<8x1xf32>
    %34 = math.log %33 : vector<8x1xf32>
    %35 = vector.broadcast %34 : vector<8x1xf32> to vector<8x128xf32>
    %36 = arith.subf %30, %35 : vector<8x128xf32>
    %c0_20 = arith.constant 0 : index
    %c0_21 = arith.constant 0 : index
    %37 = vector.load %arg8[%c0_20, %c0_21] : memref<8x128xf32, #tpu.memory_space<vmem>>, vector<8x128xf32>
    tpu.vector_store %arg8[%c0_20, %c0_21], %36 {strides = array<i32>} : memref<8x128xf32, #tpu.memory_space<vmem>>, vector<8x128xf32>,
    return
  }
  func.func @transform_0(%arg0: i32) -> (i32, i32) {
    %c0_i32 = arith.constant 0 : i32
    %c0_i32_0 = arith.constant 0 : i32
    return %arg0, %c0_i32 : i32, i32
  }
  func.func @transform_1(%arg0: i32) -> (i32, i32) {
    %c0_i32 = arith.constant 0 : i32
    %c0_i32_0 = arith.constant 0 : i32
    %c0_i32_1 = arith.constant 0 : i32
    return %c0_i32, %c0_i32_0 : i32, i32
  }
  func.func @transform_2(%arg0: i32) -> (i32, i32) {
    %c0_i32 = arith.constant 0 : i32
    %c0_i32_0 = arith.constant 0 : i32
    %c0_i32_1 = arith.constant 0 : i32
    return %c0_i32, %c0_i32_0 : i32, i32
  }
  func.func @transform_3(%arg0: i32) -> (i32, i32) {
    %c0_i32 = arith.constant 0 : i32
    %c0_i32_0 = arith.constant 0 : i32
    %c0_i32_1 = arith.constant 0 : i32
    return %c0_i32, %c0_i32_0 : i32, i32
  }
  func.func @transform_4(%arg0: i32) -> (i32, i32) {
    %c0_i32 = arith.constant 0 : i32
    %c0_i32_0 = arith.constant 0 : i32
    %c0_i32_1 = arith.constant 0 : i32
    return %c0_i32, %c0_i32_0 : i32, i32
  }
  func.func @transform_5(%arg0: i32) -> (i32, i32) {
    %c0_i32 = arith.constant 0 : i32
    %c0_i32_0 = arith.constant 0 : i32
    %c0_i32_1 = arith.constant 0 : i32
    return %c0_i32, %c0_i32_0 : i32, i32
  }
  func.func @transform_6(%arg0: i32) -> (i32, i32) {
    %c0_i32 = arith.constant 0 : i32
    %c0_i32_0 = arith.constant 0 : i32
    %c0_i32_1 = arith.constant 0 : i32
    return %c0_i32, %c0_i32_0 : i32, i32
  }
  func.func @transform_7(%arg0: i32) -> (i32, i32) {
    %c0_i32 = arith.constant 0 : i32
    %c0_i32_0 = arith.constant 0 : i32
    return %arg0, %c0_i32 : i32, i32
  }
}

</mosaic_0001>

<llo_original>
// kernel: fully_connected_net.1
$region0: #{fully_connected_net.1}
  #allocation0 [shape = 'u32[]', space=smem, size = 0x4, offset = 0x4, fixed_abs, tag = 'smem constant byte address 0x4 - core index']
  #allocation1 [shape = 'u32[144,128]{1,0:T(1,128)}', space=vmem, size = 0x12000, scoped, tag = 'internal scratch']
  %s0 = inlined_call_operand.hbm [shape: f32[2,2352], index: 0, kind: input, shape index: {}]
  %s1 = inlined_call_operand.hbm [shape: bf16[2352,1024], index: 1, kind: input, shape index: {}]
  %s2 = inlined_call_operand.hbm [shape: f32[1,1024], index: 2, kind: input, shape index: {}]
  %s3 = inlined_call_operand.hbm [shape: bf16[1024,128], index: 3, kind: input, shape index: {}]
  %s4 = inlined_call_operand.hbm [shape: f32[1,128], index: 4, kind: input, shape index: {}]
  %s5 = inlined_call_operand.hbm [shape: f32[128,128], index: 5, kind: input, shape index: {}]
  %s6 = inlined_call_operand.hbm [shape: f32[1,128], index: 6, kind: input, shape index: {}]
  %s7 = inlined_call_operand.hbm [shape: f32[2,128], index: 7, kind: output, shape index: {}]
  %s8 = sld [smem:[#allocation0]]
  $region66: #{fully_connected_net.1} parent=0
    _
  %s10 = ssub.s32 1, %s8
  %s11 = scalar_select 0, %s10, %s8
  $region1: #{fully_connected_net.1} parent=0
    #allocation2 [shape = 'u8[77824]{0}', space=vmem, size = 0x13000, scoped, tag = 'input window, operand 0, single buffered']
    #allocation3 [shape = 's32[1]{0}', space=sflag, size = 0x4, scoped, tag = 'scoped memory for fully_connected_net.1']
    #allocation4 [shape = 's32[1]{0}', space=sflag, size = 0x4, scoped, tag = 'scoped memory for fully_connected_net.1']
    #allocation5 [shape = 'u8[4816896]{0}', space=vmem, size = 0x498000, scoped, tag = 'input window, operand 1, single buffered']
    #allocation6 [shape = 's32[1]{0}', space=sflag, size = 0x4, scoped, tag = 'scoped memory for fully_connected_net.1']
    #allocation7 [shape = 'u8[4096]{0}', space=vmem, size = 0x1000, scoped, tag = 'input window, operand 2, single buffered']
    #allocation8 [shape = 'u8[262144]{0}', space=vmem, size = 0x40000, scoped, tag = 'input window, operand 3, single buffered']
    #allocation9 [shape = 's32[1]{0}', space=sflag, size = 0x4, scoped, tag = 'scoped memory for fully_connected_net.1']
    #allocation10 [shape = 'u8[512]{0}', space=vmem, size = 0x400, scoped, tag = 'input window, operand 4, single buffered']
    #allocation11 [shape = 'u8[65536]{0}', space=vmem, size = 0x10000, scoped, tag = 'input window, operand 5, single buffered']
    #allocation12 [shape = 's32[1]{0}', space=sflag, size = 0x4, scoped, tag = 'scoped memory for fully_connected_net.1']
    #allocation13 [shape = 'u8[512]{0}', space=vmem, size = 0x400, scoped, tag = 'input window, operand 6, single buffered']
    #allocation14 [shape = 'u8[4096]{0}', space=vmem, size = 0x1000, scoped, tag = 'output window, operand 0, single buffered']
    %12 = vsyncpa [#allocation3], 0
    %13 = vsyncpa [#allocation6], 0
    %14 = vsyncpa [#allocation9], 0
    %15 = vsyncpa [#allocation12], 0
    %16 = vsyncpa [#allocation4], 0
    // Predicated region
    $region2: #{fully_connected_net.1} parent=1 // pred_check
      _
    $region3: #{fully_connected_net.1} parent=1 // pred_check_branch
      %18 = sbr.rel (0) target = $region5
    $region4: #{fully_connected_net.1} parent=1 // pred_region
      %s20 = ssub.s32 2432, 608
      %21 = vsyncadd [#allocation3], %s20
      %s22 = sshll.u32 [#allocation2], 4
      %s23 = int_to_ptr.vmem [resolvable:$true] %s22
      %28 = dma.hbm_to_vmem [thread:$0]  %s0, 608, %s23, [#allocation3], 608, 608, 38
    $region5: #{fully_connected_net.1} parent=1 // pred_fallthru
      _
    // Predicated region
    $region6: #{fully_connected_net.1} parent=1 // pred_check
      _
    $region7: #{fully_connected_net.1} parent=1 // pred_check_branch
      %30 = sbr.rel (0) target = $region9
    $region8: #{fully_connected_net.1} parent=1 // pred_region
      %s32 = ssub.s32 150528, 150528
      %33 = vsyncadd [#allocation6], %s32
      %s34 = sshll.u32 [#allocation5], 4
      %s35 = int_to_ptr.vmem [resolvable:$true] %s34
      %40 = dma.hbm_to_vmem [thread:$0]  %s1, 150528, %s35, [#allocation6], 512, 512, 32
    $region9: #{fully_connected_net.1} parent=1 // pred_fallthru
      _
    // Predicated region
    $region10: #{fully_connected_net.1} parent=1 // pred_check
      _
    $region11: #{fully_connected_net.1} parent=1 // pred_check_branch
      %42 = sbr.rel (0) target = $region13
    $region12: #{fully_connected_net.1} parent=1 // pred_region
      %s44 = ssub.s32 128, 128
      %45 = vsyncadd [#allocation6], %s44
      %s47 = sshll.u32 [#allocation7], 4
      %s48 = int_to_ptr.vmem [resolvable:$true] %s47
      %50 = dma.hbm_to_vmem [thread:$0]  %s2, 128, %s48, [#allocation6]
    $region13: #{fully_connected_net.1} parent=1 // pred_fallthru
      _
    // Predicated region
    $region14: #{fully_connected_net.1} parent=1 // pred_check
      _
    $region15: #{fully_connected_net.1} parent=1 // pred_check_branch
      %52 = sbr.rel (0) target = $region17
    $region16: #{fully_connected_net.1} parent=1 // pred_region
      %s54 = ssub.s32 8192, 8192
      %55 = vsyncadd [#allocation9], %s54
      %s56 = sshll.u32 [#allocation8], 4
      %s57 = int_to_ptr.vmem [resolvable:$true] %s56
      %62 = dma.hbm_to_vmem [thread:$0]  %s3, 8192, %s57, [#allocation9], 64, 64, 4
    $region17: #{fully_connected_net.1} parent=1 // pred_fallthru
      _
    // Predicated region
    $region18: #{fully_connected_net.1} parent=1 // pred_check
      _
    $region19: #{fully_connected_net.1} parent=1 // pred_check_branch
      %64 = sbr.rel (0) target = $region21
    $region20: #{fully_connected_net.1} parent=1 // pred_region
      %s66 = ssub.s32 16, 16
      %67 = vsyncadd [#allocation9], %s66
      %s69 = sshll.u32 [#allocation10], 4
      %s70 = int_to_ptr.vmem [resolvable:$true] %s69
      %72 = dma.hbm_to_vmem [thread:$0]  %s4, 16, %s70, [#allocation9]
    $region21: #{fully_connected_net.1} parent=1 // pred_fallthru
      _
    // Predicated region
    $region22: #{fully_connected_net.1} parent=1 // pred_check
      _
    $region23: #{fully_connected_net.1} parent=1 // pred_check_branch
      %74 = sbr.rel (0) target = $region25
    $region24: #{fully_connected_net.1} parent=1 // pred_region
      %s76 = ssub.s32 2048, 2048
      %77 = vsyncadd [#allocation12], %s76
      %s78 = sshll.u32 [#allocation11], 4
      %s79 = int_to_ptr.vmem [resolvable:$true] %s78
      %84 = dma.hbm_to_vmem [thread:$0]  %s5, 2048, %s79, [#allocation12], 128, 128, 8
    $region25: #{fully_connected_net.1} parent=1 // pred_fallthru
      _
    // Predicated region
    $region26: #{fully_connected_net.1} parent=1 // pred_check
      _
    $region27: #{fully_connected_net.1} parent=1 // pred_check_branch
      %86 = sbr.rel (0) target = $region29
    $region28: #{fully_connected_net.1} parent=1 // pred_region
      %s88 = ssub.s32 16, 16
      %89 = vsyncadd [#allocation12], %s88
      %s91 = sshll.u32 [#allocation13], 4
      %s92 = int_to_ptr.vmem [resolvable:$true] %s91
      %94 = dma.hbm_to_vmem [thread:$0]  %s6, 16, %s92, [#allocation12]
    $region29: #{fully_connected_net.1} parent=1 // pred_fallthru
      _
    // Predicated region
    $region30: #{fully_connected_net.1} parent=1 // pred_check
      _
    $region31: #{fully_connected_net.1} parent=1 // pred_check_branch
      %96 = sbr.rel (0) target = $region33
    $region32: #{fully_connected_net.1} parent=1 // pred_region
      %97 = dma.done [#allocation3], 2432
    $region33: #{fully_connected_net.1} parent=1 // pred_fallthru
      _
    // Predicated region
    $region34: #{fully_connected_net.1} parent=1 // pred_check
      _
    $region35: #{fully_connected_net.1} parent=1 // pred_check_branch
      %99 = sbr.rel (0) target = $region37
    $region36: #{fully_connected_net.1} parent=1 // pred_region
      %100 = dma.done [#allocation6], 150528
    $region37: #{fully_connected_net.1} parent=1 // pred_fallthru
      _
    // Predicated region
    $region38: #{fully_connected_net.1} parent=1 // pred_check
      _
    $region39: #{fully_connected_net.1} parent=1 // pred_check_branch
      %102 = sbr.rel (0) target = $region41
    $region40: #{fully_connected_net.1} parent=1 // pred_region
      %103 = dma.done [#allocation6], 128
    $region41: #{fully_connected_net.1} parent=1 // pred_fallthru
      _
    // Predicated region
    $region42: #{fully_connected_net.1} parent=1 // pred_check
      _
    $region43: #{fully_connected_net.1} parent=1 // pred_check_branch
      %105 = sbr.rel (0) target = $region45
    $region44: #{fully_connected_net.1} parent=1 // pred_region
      %106 = dma.done [#allocation9], 8192
    $region45: #{fully_connected_net.1} parent=1 // pred_fallthru
      _
    // Predicated region
    $region46: #{fully_connected_net.1} parent=1 // pred_check
      _
    $region47: #{fully_connected_net.1} parent=1 // pred_check_branch
      %108 = sbr.rel (0) target = $region49
    $region48: #{fully_connected_net.1} parent=1 // pred_region
      %109 = dma.done [#allocation9], 16
    $region49: #{fully_connected_net.1} parent=1 // pred_fallthru
      _
    // Predicated region
    $region50: #{fully_connected_net.1} parent=1 // pred_check
      _
    $region51: #{fully_connected_net.1} parent=1 // pred_check_branch
      %111 = sbr.rel (0) target = $region53
    $region52: #{fully_connected_net.1} parent=1 // pred_region
      %112 = dma.done [#allocation12], 2048
    $region53: #{fully_connected_net.1} parent=1 // pred_fallthru
      _
    // Predicated region
    $region54: #{fully_connected_net.1} parent=1 // pred_check
      _
    $region55: #{fully_connected_net.1} parent=1 // pred_check_branch
      %114 = sbr.rel (0) target = $region57
    $region56: #{fully_connected_net.1} parent=1 // pred_region
      %115 = dma.done [#allocation12], 16
    $region57: #{fully_connected_net.1} parent=1 // pred_fallthru
      _
    %v117 = vld [vmem:[#allocation2] sm:$0xff]
    %v118 = vld [vmem:[#allocation2 + $0x8] sm:$0xff]
    %v119 = vld [vmem:[#allocation2 + $0x10] sm:$0xff]
    %v120 = vld [vmem:[#allocation2 + $0x18] sm:$0xff]
    %v121 = vld [vmem:[#allocation2 + $0x20] sm:$0x3f]
    %v122 = vld [vmem:[#allocation2 + $0x26] sm:$0xff]
    %v123 = vld [vmem:[#allocation2 + $0x2e] sm:$0xff]
    %v124 = vld [vmem:[#allocation2 + $0x36] sm:$0xff]
    %v125 = vld [vmem:[#allocation2 + $0x3e] sm:$0xff]
    %v126 = vld [vmem:[#allocation2 + $0x46] sm:$0x3f]
    %v127 = vld [vmem:[#allocation2 + $0x4c] sm:$0xff]
    %v128 = vld [vmem:[#allocation2 + $0x54] sm:$0xff]
    %v129 = vld [vmem:[#allocation2 + $0x5c] sm:$0xff]
    %v130 = vld [vmem:[#allocation2 + $0x64] sm:$0xff]
    %v131 = vld [vmem:[#allocation2 + $0x6c] sm:$0x3f]
    %v132 = vld [vmem:[#allocation2 + $0x72] sm:$0xff]
    %v133 = vld [vmem:[#allocation2 + $0x7a] sm:$0xff]
    %v134 = vld [vmem:[#allocation2 + $0x82] sm:$0xff]
    %v135 = vld [vmem:[#allocation2 + $0x8a] sm:$0xff]
    %v136 = vld [vmem:[#allocation2 + $0x92] sm:$0x3f]
    %v157 = vcombine.low %v117, %v122
    %v158 = vcombine.high %v117, %v122
    %v159 = vcombine.low %v127, %v132
    %v160 = vcombine.high %v127, %v132
    %v162 = vunpack.c.l.s4 1983009808
    %v163 = vunpack.c.0.s8 %v162
    %v164 = vlaneseq
    %v165 = vshrl.u32 %v164, 7
    %v166 = vsub.s32 %v163, %v165
    %v167 = vrot.slane %v157, %v166
    %v169 = vunpack.c.l.s4 1983009808
    %v170 = vunpack.c.0.s8 %v169
    %v171 = vlaneseq
    %v172 = vshrl.u32 %v171, 7
    %v173 = vsub.s32 %v170, %v172
    %v174 = vrot.slane %v158, %v173
    %v176 = vunpack.c.l.s4 1983009808
    %v177 = vunpack.c.0.s8 %v176
    %v178 = vlaneseq
    %v179 = vshrl.u32 %v178, 7
    %v180 = vsub.s32 %v177, %v179
    %v181 = vrot.slane %v159, %v180
    %v183 = vunpack.c.l.s4 1983009808
    %v184 = vunpack.c.0.s8 %v183
    %v185 = vlaneseq
    %v186 = vshrl.u32 %v185, 7
    %v187 = vsub.s32 %v184, %v186
    %v188 = vrot.slane %v160, %v187
    %v189 = vcombine.low %v167, %v181
    %v190 = vcombine.high %v167, %v181
    %v191 = vcombine.low %v174, %v188
    %v192 = vcombine.high %v174, %v188
    %v193 = vcombine.low %v118, %v123
    %v194 = vcombine.high %v118, %v123
    %v195 = vcombine.low %v128, %v133
    %v196 = vcombine.high %v128, %v133
    %v198 = vunpack.c.l.s4 1983009808
    %v199 = vunpack.c.0.s8 %v198
    %v200 = vlaneseq
    %v201 = vshrl.u32 %v200, 7
    %v202 = vsub.s32 %v199, %v201
    %v203 = vrot.slane %v193, %v202
    %v205 = vunpack.c.l.s4 1983009808
    %v206 = vunpack.c.0.s8 %v205
    %v207 = vlaneseq
    %v208 = vshrl.u32 %v207, 7
    %v209 = vsub.s32 %v206, %v208
    %v210 = vrot.slane %v194, %v209
    %v212 = vunpack.c.l.s4 1983009808
    %v213 = vunpack.c.0.s8 %v212
    %v214 = vlaneseq
    %v215 = vshrl.u32 %v214, 7
    %v216 = vsub.s32 %v213, %v215
    %v217 = vrot.slane %v195, %v216
    %v219 = vunpack.c.l.s4 1983009808
    %v220 = vunpack.c.0.s8 %v219
    %v221 = vlaneseq
    %v222 = vshrl.u32 %v221, 7
    %v223 = vsub.s32 %v220, %v222
    %v224 = vrot.slane %v196, %v223
    %v225 = vcombine.low %v203, %v217
    %v226 = vcombine.high %v203, %v217
    %v227 = vcombine.low %v210, %v224
    %v228 = vcombine.high %v210, %v224
    %v229 = vcombine.low %v119, %v124
    %v230 = vcombine.high %v119, %v124
    %v231 = vcombine.low %v129, %v134
    %v232 = vcombine.high %v129, %v134
    %v234 = vunpack.c.l.s4 1983009808
    %v235 = vunpack.c.0.s8 %v234
    %v236 = vlaneseq
    %v237 = vshrl.u32 %v236, 7
    %v238 = vsub.s32 %v235, %v237
    %v239 = vrot.slane %v229, %v238
    %v241 = vunpack.c.l.s4 1983009808
    %v242 = vunpack.c.0.s8 %v241
    %v243 = vlaneseq
    %v244 = vshrl.u32 %v243, 7
    %v245 = vsub.s32 %v242, %v244
    %v246 = vrot.slane %v230, %v245
    %v248 = vunpack.c.l.s4 1983009808
    %v249 = vunpack.c.0.s8 %v248
    %v250 = vlaneseq
    %v251 = vshrl.u32 %v250, 7
    %v252 = vsub.s32 %v249, %v251
    %v253 = vrot.slane %v231, %v252
    %v255 = vunpack.c.l.s4 1983009808
    %v256 = vunpack.c.0.s8 %v255
    %v257 = vlaneseq
    %v258 = vshrl.u32 %v257, 7
    %v259 = vsub.s32 %v256, %v258
    %v260 = vrot.slane %v232, %v259
    %v261 = vcombine.low %v239, %v253
    %v262 = vcombine.high %v239, %v253
    %v263 = vcombine.low %v246, %v260
    %v264 = vcombine.high %v246, %v260
    %v265 = vcombine.low %v120, %v125
    %v266 = vcombine.high %v120, %v125
    %v267 = vcombine.low %v130, %v135
    %v268 = vcombine.high %v130, %v135
    %v270 = vunpack.c.l.s4 1983009808
    %v271 = vunpack.c.0.s8 %v270
    %v272 = vlaneseq
    %v273 = vshrl.u32 %v272, 7
    %v274 = vsub.s32 %v271, %v273
    %v275 = vrot.slane %v265, %v274
    %v277 = vunpack.c.l.s4 1983009808
    %v278 = vunpack.c.0.s8 %v277
    %v279 = vlaneseq
    %v280 = vshrl.u32 %v279, 7
    %v281 = vsub.s32 %v278, %v280
    %v282 = vrot.slane %v266, %v281
    %v284 = vunpack.c.l.s4 1983009808
    %v285 = vunpack.c.0.s8 %v284
    %v286 = vlaneseq
    %v287 = vshrl.u32 %v286, 7
    %v288 = vsub.s32 %v285, %v287
    %v289 = vrot.slane %v267, %v288
    %v291 = vunpack.c.l.s4 1983009808
    %v292 = vunpack.c.0.s8 %v291
    %v293 = vlaneseq
    %v294 = vshrl.u32 %v293, 7
    %v295 = vsub.s32 %v292, %v294
    %v296 = vrot.slane %v268, %v295
    %v297 = vcombine.low %v275, %v289
    %v298 = vcombine.high %v275, %v289
    %v299 = vcombine.low %v282, %v296
    %v300 = vcombine.high %v282, %v296
    %v301 = vcombine.low %v121, %v126
    %v302 = vcombine.high %v121, %v126
    %v303 = vcombine.low %v131, %v136
    %v304 = vcombine.high %v131, %v136
    %v306 = vunpack.c.l.s4 1983009808
    %v307 = vunpack.c.0.s8 %v306
    %v308 = vlaneseq
    %v309 = vshrl.u32 %v308, 7
    %v310 = vsub.s32 %v307, %v309
    %v311 = vrot.slane %v301, %v310
    %v313 = vunpack.c.l.s4 1983009808
    %v314 = vunpack.c.0.s8 %v313
    %v315 = vlaneseq
    %v316 = vshrl.u32 %v315, 7
    %v317 = vsub.s32 %v314, %v316
    %v318 = vrot.slane %v302, %v317
    %v320 = vunpack.c.l.s4 1983009808
    %v321 = vunpack.c.0.s8 %v320
    %v322 = vlaneseq
    %v323 = vshrl.u32 %v322, 7
    %v324 = vsub.s32 %v321, %v323
    %v325 = vrot.slane %v303, %v324
    %v327 = vunpack.c.l.s4 1983009808
    %v328 = vunpack.c.0.s8 %v327
    %v329 = vlaneseq
    %v330 = vshrl.u32 %v329, 7
    %v331 = vsub.s32 %v328, %v330
    %v332 = vrot.slane %v304, %v331
    %v333 = vcombine.low %v311, %v325
    %v334 = vcombine.high %v311, %v325
    %v335 = vcombine.low %v318, %v332
    %v355 = vpack.c.bf16 %v189, %v189
    %v356 = vpack.c.bf16 %v190, %v190
    %v357 = vpack.c.bf16 %v191, %v191
    %v358 = vpack.c.bf16 %v192, %v192
    %v359 = vpack.c.bf16 %v225, %v225
    %v360 = vpack.c.bf16 %v226, %v226
    %v361 = vpack.c.bf16 %v227, %v227
    %v362 = vpack.c.bf16 %v228, %v228
    %v363 = vpack.c.bf16 %v261, %v261
    %v364 = vpack.c.bf16 %v262, %v262
    %v365 = vpack.c.bf16 %v263, %v263
    %v366 = vpack.c.bf16 %v264, %v264
    %v367 = vpack.c.bf16 %v297, %v297
    %v368 = vpack.c.bf16 %v298, %v298
    %v369 = vpack.c.bf16 %v299, %v299
    %v370 = vpack.c.bf16 %v300, %v300
    %v371 = vpack.c.bf16 %v333, %v333
    %v372 = vpack.c.bf16 %v334, %v334
    %v373 = vpack.c.bf16 %v335, %v335
    %v374 = vld [vmem:[#allocation5] sm:$0xff]
    %v375 = vld [vmem:[#allocation5 + $0x8] sm:$0xff]
    %v376 = vld [vmem:[#allocation5 + $0x10] sm:$0xff]
    %v377 = vld [vmem:[#allocation5 + $0x18] sm:$0xff]
    %v378 = vld [vmem:[#allocation5 + $0x20] sm:$0xff]
    %v379 = vld [vmem:[#allocation5 + $0x28] sm:$0xff]
    %v380 = vld [vmem:[#allocation5 + $0x30] sm:$0xff]
    %v381 = vld [vmem:[#allocation5 + $0x38] sm:$0xff]
    %v382 = vld [vmem:[#allocation5 + $0x40] sm:$0xff]
    %v383 = vld [vmem:[#allocation5 + $0x48] sm:$0xff]
    %v384 = vld [vmem:[#allocation5 + $0x50] sm:$0xff]
    %v385 = vld [vmem:[#allocation5 + $0x58] sm:$0xff]
    %v386 = vld [vmem:[#allocation5 + $0x60] sm:$0xff]
    %v387 = vld [vmem:[#allocation5 + $0x68] sm:$0xff]
    %v388 = vld [vmem:[#allocation5 + $0x70] sm:$0xff]
    %v389 = vld [vmem:[#allocation5 + $0x78] sm:$0xff]
    %v390 = vld [vmem:[#allocation5 + $0x80] sm:$0xff]
    %v391 = vld [vmem:[#allocation5 + $0x88] sm:$0xff]
    %v392 = vld [vmem:[#allocation5 + $0x90] sm:$0xff]
    %v393 = vld [vmem:[#allocation5 + $0x98] sm:$0xff]
    %v394 = vld [vmem:[#allocation5 + $0xa0] sm:$0xff]
    %v395 = vld [vmem:[#allocation5 + $0xa8] sm:$0xff]
    %v396 = vld [vmem:[#allocation5 + $0xb0] sm:$0xff]
    %v397 = vld [vmem:[#allocation5 + $0xb8] sm:$0xff]
    %v398 = vld [vmem:[#allocation5 + $0xc0] sm:$0xff]
    %v399 = vld [vmem:[#allocation5 + $0xc8] sm:$0xff]
    %v400 = vld [vmem:[#allocation5 + $0xd0] sm:$0xff]
    %v401 = vld [vmem:[#allocation5 + $0xd8] sm:$0xff]
    %v402 = vld [vmem:[#allocation5 + $0xe0] sm:$0xff]
    %v403 = vld [vmem:[#allocation5 + $0xe8] sm:$0xff]
    %v404 = vld [vmem:[#allocation5 + $0xf0] sm:$0xff]
    %v405 = vld [vmem:[#allocation5 + $0xf8] sm:$0xff]
    %v406 = vld [vmem:[#allocation5 + $0x100] sm:$0xff]
    %v407 = vld [vmem:[#allocation5 + $0x108] sm:$0xff]
    %v408 = vld [vmem:[#allocation5 + $0x110] sm:$0xff]
    %v409 = vld [vmem:[#allocation5 + $0x118] sm:$0xff]
    %v410 = vld [vmem:[#allocation5 + $0x120] sm:$0xff]
    %v411 = vld [vmem:[#allocation5 + $0x128] sm:$0xff]
    %v412 = vld [vmem:[#allocation5 + $0x130] sm:$0xff]
    %v413 = vld [vmem:[#allocation5 + $0x138] sm:$0xff]
    %v414 = vld [vmem:[#allocation5 + $0x140] sm:$0xff]
    %v415 = vld [vmem:[#allocation5 + $0x148] sm:$0xff]
    %v416 = vld [vmem:[#allocation5 + $0x150] sm:$0xff]
    %v417 = vld [vmem:[#allocation5 + $0x158] sm:$0xff]
    %v418 = vld [vmem:[#allocation5 + $0x160] sm:$0xff]
    %v419 = vld [vmem:[#allocation5 + $0x168] sm:$0xff]
    %v420 = vld [vmem:[#allocation5 + $0x170] sm:$0xff]
    %v421 = vld [vmem:[#allocation5 + $0x178] sm:$0xff]
    %v422 = vld [vmem:[#allocation5 + $0x180] sm:$0xff]
    %v423 = vld [vmem:[#allocation5 + $0x188] sm:$0xff]
    %v424 = vld [vmem:[#allocation5 + $0x190] sm:$0xff]
    %v425 = vld [vmem:[#allocation5 + $0x198] sm:$0xff]
    %v426 = vld [vmem:[#allocation5 + $0x1a0] sm:$0xff]
    %v427 = vld [vmem:[#allocation5 + $0x1a8] sm:$0xff]
    %v428 = vld [vmem:[#allocation5 + $0x1b0] sm:$0xff]
    %v429 = vld [vmem:[#allocation5 + $0x1b8] sm:$0xff]
    %v430 = vld [vmem:[#allocation5 + $0x1c0] sm:$0xff]
    %v431 = vld [vmem:[#allocation5 + $0x1c8] sm:$0xff]
    %v432 = vld [vmem:[#allocation5 + $0x1d0] sm:$0xff]
    %v433 = vld [vmem:[#allocation5 + $0x1d8] sm:$0xff]
    %v434 = vld [vmem:[#allocation5 + $0x1e0] sm:$0xff]
    %v435 = vld [vmem:[#allocation5 + $0x1e8] sm:$0xff]
    %v436 = vld [vmem:[#allocation5 + $0x1f0] sm:$0xff]
    %v437 = vld [vmem:[#allocation5 + $0x1f8] sm:$0xff]
    %v438 = vld [vmem:[#allocation5 + $0x200] sm:$0xff]
    %v439 = vld [vmem:[#allocation5 + $0x208] sm:$0xff]
    %v440 = vld [vmem:[#allocation5 + $0x210] sm:$0xff]
    %v441 = vld [vmem:[#allocation5 + $0x218] sm:$0xff]
    %v442 = vld [vmem:[#allocation5 + $0x220] sm:$0xff]
    %v443 = vld [vmem:[#allocation5 + $0x228] sm:$0xff]
    %v444 = vld [vmem:[#allocation5 + $0x230] sm:$0xff]
    %v445 = vld [vmem:[#allocation5 + $0x238] sm:$0xff]
    %v446 = vld [vmem:[#allocation5 + $0x240] sm:$0xff]
    %v447 = vld [vmem:[#allocation5 + $0x248] sm:$0xff]
    %v448 = vld [vmem:[#allocation5 + $0x250] sm:$0xff]
    %v449 = vld [vmem:[#allocation5 + $0x258] sm:$0xff]
    %v450 = vld [vmem:[#allocation5 + $0x260] sm:$0xff]
    %v451 = vld [vmem:[#allocation5 + $0x268] sm:$0xff]
    %v452 = vld [vmem:[#allocation5 + $0x270] sm:$0xff]
    %v453 = vld [vmem:[#allocation5 + $0x278] sm:$0xff]
    %v454 = vld [vmem:[#allocation5 + $0x280] sm:$0xff]
    %v455 = vld [vmem:[#allocation5 + $0x288] sm:$0xff]
    %v456 = vld [vmem:[#allocation5 + $0x290] sm:$0xff]
    %v457 = vld [vmem:[#allocation5 + $0x298] sm:$0xff]
    %v458 = vld [vmem:[#allocation5 + $0x2a0] sm:$0xff]
    %v459 = vld [vmem:[#allocation5 + $0x2a8] sm:$0xff]
    %v460 = vld [vmem:[#allocation5 + $0x2b0] sm:$0xff]
    %v461 = vld [vmem:[#allocation5 + $0x2b8] sm:$0xff]
    %v462 = vld [vmem:[#allocation5 + $0x2c0] sm:$0xff]
    %v463 = vld [vmem:[#allocation5 + $0x2c8] sm:$0xff]
    %v464 = vld [vmem:[#allocation5 + $0x2d0] sm:$0xff]
    %v465 = vld [vmem:[#allocation5 + $0x2d8] sm:$0xff]
    %v466 = vld [vmem:[#allocation5 + $0x2e0] sm:$0xff]
    %v467 = vld [vmem:[#allocation5 + $0x2e8] sm:$0xff]
    %v468 = vld [vmem:[#allocation5 + $0x2f0] sm:$0xff]
    %v469 = vld [vmem:[#allocation5 + $0x2f8] sm:$0xff]
    %v470 = vld [vmem:[#allocation5 + $0x300] sm:$0xff]
    %v471 = vld [vmem:[#allocation5 + $0x308] sm:$0xff]
    %v472 = vld [vmem:[#allocation5 + $0x310] sm:$0xff]
    %v473 = vld [vmem:[#allocation5 + $0x318] sm:$0xff]
    %v474 = vld [vmem:[#allocation5 + $0x320] sm:$0xff]
    %v475 = vld [vmem:[#allocation5 + $0x328] sm:$0xff]
    %v476 = vld [vmem:[#allocation5 + $0x330] sm:$0xff]
    %v477 = vld [vmem:[#allocation5 + $0x338] sm:$0xff]
    %v478 = vld [vmem:[#allocation5 + $0x340] sm:$0xff]
    %v479 = vld [vmem:[#allocation5 + $0x348] sm:$0xff]
    %v480 = vld [vmem:[#allocation5 + $0x350] sm:$0xff]
    %v481 = vld [vmem:[#allocation5 + $0x358] sm:$0xff]
    %v482 = vld [vmem:[#allocation5 + $0x360] sm:$0xff]
    %v483 = vld [vmem:[#allocation5 + $0x368] sm:$0xff]
    %v484 = vld [vmem:[#allocation5 + $0x370] sm:$0xff]
    %v485 = vld [vmem:[#allocation5 + $0x378] sm:$0xff]
    %v486 = vld [vmem:[#allocation5 + $0x380] sm:$0xff]
    %v487 = vld [vmem:[#allocation5 + $0x388] sm:$0xff]
    %v488 = vld [vmem:[#allocation5 + $0x390] sm:$0xff]
    %v489 = vld [vmem:[#allocation5 + $0x398] sm:$0xff]
    %v490 = vld [vmem:[#allocation5 + $0x3a0] sm:$0xff]
    %v491 = vld [vmem:[#allocation5 + $0x3a8] sm:$0xff]
    %v492 = vld [vmem:[#allocation5 + $0x3b0] sm:$0xff]
    %v493 = vld [vmem:[#allocation5 + $0x3b8] sm:$0xff]
    %v494 = vld [vmem:[#allocation5 + $0x3c0] sm:$0xff]
    %v495 = vld [vmem:[#allocation5 + $0x3c8] sm:$0xff]
    %v496 = vld [vmem:[#allocation5 + $0x3d0] sm:$0xff]
    %v497 = vld [vmem:[#allocation5 + $0x3d8] sm:$0xff]
    %v498 = vld [vmem:[#allocation5 + $0x3e0] sm:$0xff]
    %v499 = vld [vmem:[#allocation5 + $0x3e8] sm:$0xff]
    %v500 = vld [vmem:[#allocation5 + $0x3f0] sm:$0xff]
    %v501 = vld [vmem:[#allocation5 + $0x3f8] sm:$0xff]
    %v502 = vld [vmem:[#allocation5 + $0x400] sm:$0xff]
    %v503 = vld [vmem:[#allocation5 + $0x408] sm:$0xff]
    %v504 = vld [vmem:[#allocation5 + $0x410] sm:$0xff]
    %v505 = vld [vmem:[#allocation5 + $0x418] sm:$0xff]
    %v506 = vld [vmem:[#allocation5 + $0x420] sm:$0xff]
    %v507 = vld [vmem:[#allocation5 + $0x428] sm:$0xff]
    %v508 = vld [vmem:[#allocation5 + $0x430] sm:$0xff]
    %v509 = vld [vmem:[#allocation5 + $0x438] sm:$0xff]
    %v510 = vld [vmem:[#allocation5 + $0x440] sm:$0xff]
    %v511 = vld [vmem:[#allocation5 + $0x448] sm:$0xff]
    %v512 = vld [vmem:[#allocation5 + $0x450] sm:$0xff]
    %v513 = vld [vmem:[#allocation5 + $0x458] sm:$0xff]
    %v514 = vld [vmem:[#allocation5 + $0x460] sm:$0xff]
    %v515 = vld [vmem:[#allocation5 + $0x468] sm:$0xff]
    %v516 = vld [vmem:[#allocation5 + $0x470] sm:$0xff]
    %v517 = vld [vmem:[#allocation5 + $0x478] sm:$0xff]
    %v518 = vld [vmem:[#allocation5 + $0x480] sm:$0xff]
    %v519 = vld [vmem:[#allocation5 + $0x488] sm:$0xff]
    %v520 = vld [vmem:[#allocation5 + $0x490] sm:$0xff]
    %v521 = vld [vmem:[#allocation5 + $0x498] sm:$0xff]
    %v522 = vld [vmem:[#allocation5 + $0x4a0] sm:$0xff]
    %v523 = vld [vmem:[#allocation5 + $0x4a8] sm:$0xff]
    %v524 = vld [vmem:[#allocation5 + $0x4b0] sm:$0xff]
    %v525 = vld [vmem:[#allocation5 + $0x4b8] sm:$0xff]
    %v526 = vld [vmem:[#allocation5 + $0x4c0] sm:$0xff]
    %v527 = vld [vmem:[#allocation5 + $0x4c8] sm:$0xff]
    %v528 = vld [vmem:[#allocation5 + $0x4d0] sm:$0xff]
    %v529 = vld [vmem:[#allocation5 + $0x4d8] sm:$0xff]
    %v530 = vld [vmem:[#allocation5 + $0x4e0] sm:$0xff]
    %v531 = vld [vmem:[#allocation5 + $0x4e8] sm:$0xff]
    %v532 = vld [vmem:[#allocation5 + $0x4f0] sm:$0xff]
    %v533 = vld [vmem:[#allocation5 + $0x4f8] sm:$0xff]
    %v534 = vld [vmem:[#allocation5 + $0x500] sm:$0xff]
    %v535 = vld [vmem:[#allocation5 + $0x508] sm:$0xff]
    %v536 = vld [vmem:[#allocation5 + $0x510] sm:$0xff]
    %v537 = vld [vmem:[#allocation5 + $0x518] sm:$0xff]
    %v538 = vld [vmem:[#allocation5 + $0x520] sm:$0xff]
    %v539 = vld [vmem:[#allocation5 + $0x528] sm:$0xff]
    %v540 = vld [vmem:[#allocation5 + $0x530] sm:$0xff]
    %v541 = vld [vmem:[#allocation5 + $0x538] sm:$0xff]
    %v542 = vld [vmem:[#allocation5 + $0x540] sm:$0xff]
    %v543 = vld [vmem:[#allocation5 + $0x548] sm:$0xff]
    %v544 = vld [vmem:[#allocation5 + $0x550] sm:$0xff]
    %v545 = vld [vmem:[#allocation5 + $0x558] sm:$0xff]
    %v546 = vld [vmem:[#allocation5 + $0x560] sm:$0xff]
    %v547 = vld [vmem:[#allocation5 + $0x568] sm:$0xff]
    %v548 = vld [vmem:[#allocation5 + $0x570] sm:$0xff]
    %v549 = vld [vmem:[#allocation5 + $0x578] sm:$0xff]
    %v550 = vld [vmem:[#allocation5 + $0x580] sm:$0xff]
    %v551 = vld [vmem:[#allocation5 + $0x588] sm:$0xff]
    %v552 = vld [vmem:[#allocation5 + $0x590] sm:$0xff]
    %v553 = vld [vmem:[#allocation5 + $0x598] sm:$0xff]
    %v554 = vld [vmem:[#allocation5 + $0x5a0] sm:$0xff]
    %v555 = vld [vmem:[#allocation5 + $0x5a8] sm:$0xff]
    %v556 = vld [vmem:[#allocation5 + $0x5b0] sm:$0xff]
    %v557 = vld [vmem:[#allocation5 + $0x5b8] sm:$0xff]
    %v558 = vld [vmem:[#allocation5 + $0x5c0] sm:$0xff]
    %v559 = vld [vmem:[#allocation5 + $0x5c8] sm:$0xff]
    %v560 = vld [vmem:[#allocation5 + $0x5d0] sm:$0xff]
    %v561 = vld [vmem:[#allocation5 + $0x5d8] sm:$0xff]
    %v562 = vld [vmem:[#allocation5 + $0x5e0] sm:$0xff]
    %v563 = vld [vmem:[#allocation5 + $0x5e8] sm:$0xff]
    %v564 = vld [vmem:[#allocation5 + $0x5f0] sm:$0xff]
    %v565 = vld [vmem:[#allocation5 + $0x5f8] sm:$0xff]
    %v566 = vld [vmem:[#allocation5 + $0x600] sm:$0xff]
    %v567 = vld [vmem:[#allocation5 + $0x608] sm:$0xff]
    %v568 = vld [vmem:[#allocation5 + $0x610] sm:$0xff]
    %v569 = vld [vmem:[#allocation5 + $0x618] sm:$0xff]
    %v570 = vld [vmem:[#allocation5 + $0x620] sm:$0xff]
    %v571 = vld [vmem:[#allocation5 + $0x628] sm:$0xff]
    %v572 = vld [vmem:[#allocation5 + $0x630] sm:$0xff]
    %v573 = vld [vmem:[#allocation5 + $0x638] sm:$0xff]
    %v574 = vld [vmem:[#allocation5 + $0x640] sm:$0xff]
    %v575 = vld [vmem:[#allocation5 + $0x648] sm:$0xff]
    %v576 = vld [vmem:[#allocation5 + $0x650] sm:$0xff]
    %v577 = vld [vmem:[#allocation5 + $0x658] sm:$0xff]
    %v578 = vld [vmem:[#allocation5 + $0x660] sm:$0xff]
    %v579 = vld [vmem:[#allocation5 + $0x668] sm:$0xff]
    %v580 = vld [vmem:[#allocation5 + $0x670] sm:$0xff]
    %v581 = vld [vmem:[#allocation5 + $0x678] sm:$0xff]
    %v582 = vld [vmem:[#allocation5 + $0x680] sm:$0xff]
    %v583 = vld [vmem:[#allocation5 + $0x688] sm:$0xff]
    %v584 = vld [vmem:[#allocation5 + $0x690] sm:$0xff]
    %v585 = vld [vmem:[#allocation5 + $0x698] sm:$0xff]
    %v586 = vld [vmem:[#allocation5 + $0x6a0] sm:$0xff]
    %v587 = vld [vmem:[#allocation5 + $0x6a8] sm:$0xff]
    %v588 = vld [vmem:[#allocation5 + $0x6b0] sm:$0xff]
    %v589 = vld [vmem:[#allocation5 + $0x6b8] sm:$0xff]
    %v590 = vld [vmem:[#allocation5 + $0x6c0] sm:$0xff]
    %v591 = vld [vmem:[#allocation5 + $0x6c8] sm:$0xff]
    %v592 = vld [vmem:[#allocation5 + $0x6d0] sm:$0xff]
    %v593 = vld [vmem:[#allocation5 + $0x6d8] sm:$0xff]
    %v594 = vld [vmem:[#allocation5 + $0x6e0] sm:$0xff]
    %v595 = vld [vmem:[#allocation5 + $0x6e8] sm:$0xff]
    %v596 = vld [vmem:[#allocation5 + $0x6f0] sm:$0xff]
    %v597 = vld [vmem:[#allocation5 + $0x6f8] sm:$0xff]
    %v598 = vld [vmem:[#allocation5 + $0x700] sm:$0xff]
    %v599 = vld [vmem:[#allocation5 + $0x708] sm:$0xff]
    %v600 = vld [vmem:[#allocation5 + $0x710] sm:$0xff]
    %v601 = vld [vmem:[#allocation5 + $0x718] sm:$0xff]
    %v602 = vld [vmem:[#allocation5 + $0x720] sm:$0xff]
    %v603 = vld [vmem:[#allocation5 + $0x728] sm:$0xff]
    %v604 = vld [vmem:[#allocation5 + $0x730] sm:$0xff]
    %v605 = vld [vmem:[#allocation5 + $0x738] sm:$0xff]
    %v606 = vld [vmem:[#allocation5 + $0x740] sm:$0xff]
    %v607 = vld [vmem:[#allocation5 + $0x748] sm:$0xff]
    %v608 = vld [vmem:[#allocation5 + $0x750] sm:$0xff]
    %v609 = vld [vmem:[#allocation5 + $0x758] sm:$0xff]
    %v610 = vld [vmem:[#allocation5 + $0x760] sm:$0xff]
    %v611 = vld [vmem:[#allocation5 + $0x768] sm:$0xff]
    %v612 = vld [vmem:[#allocation5 + $0x770] sm:$0xff]
    %v613 = vld [vmem:[#allocation5 + $0x778] sm:$0xff]
    %v614 = vld [vmem:[#allocation5 + $0x780] sm:$0xff]
    %v615 = vld [vmem:[#allocation5 + $0x788] sm:$0xff]
    %v616 = vld [vmem:[#allocation5 + $0x790] sm:$0xff]
    %v617 = vld [vmem:[#allocation5 + $0x798] sm:$0xff]
    %v618 = vld [vmem:[#allocation5 + $0x7a0] sm:$0xff]
    %v619 = vld [vmem:[#allocation5 + $0x7a8] sm:$0xff]
    %v620 = vld [vmem:[#allocation5 + $0x7b0] sm:$0xff]
    %v621 = vld [vmem:[#allocation5 + $0x7b8] sm:$0xff]
    %v622 = vld [vmem:[#allocation5 + $0x7c0] sm:$0xff]
    %v623 = vld [vmem:[#allocation5 + $0x7c8] sm:$0xff]
    %v624 = vld [vmem:[#allocation5 + $0x7d0] sm:$0xff]
    %v625 = vld [vmem:[#allocation5 + $0x7d8] sm:$0xff]
    %v626 = vld [vmem:[#allocation5 + $0x7e0] sm:$0xff]
    %v627 = vld [vmem:[#allocation5 + $0x7e8] sm:$0xff]
    %v628 = vld [vmem:[#allocation5 + $0x7f0] sm:$0xff]
    %v629 = vld [vmem:[#allocation5 + $0x7f8] sm:$0xff]
    %v630 = vld [vmem:[#allocation5 + $0x800] sm:$0xff]
    %v631 = vld [vmem:[#allocation5 + $0x808] sm:$0xff]
    %v632 = vld [vmem:[#allocation5 + $0x810] sm:$0xff]
    %v633 = vld [vmem:[#allocation5 + $0x818] sm:$0xff]
    %v634 = vld [vmem:[#allocation5 + $0x820] sm:$0xff]
    %v635 = vld [vmem:[#allocation5 + $0x828] sm:$0xff]
    %v636 = vld [vmem:[#allocation5 + $0x830] sm:$0xff]
    %v637 = vld [vmem:[#allocation5 + $0x838] sm:$0xff]
    %v638 = vld [vmem:[#allocation5 + $0x840] sm:$0xff]
    %v639 = vld [vmem:[#allocation5 + $0x848] sm:$0xff]
    %v640 = vld [vmem:[#allocation5 + $0x850] sm:$0xff]
    %v641 = vld [vmem:[#allocation5 + $0x858] sm:$0xff]
    %v642 = vld [vmem:[#allocation5 + $0x860] sm:$0xff]
    %v643 = vld [vmem:[#allocation5 + $0x868] sm:$0xff]
    %v644 = vld [vmem:[#allocation5 + $0x870] sm:$0xff]
    %v645 = vld [vmem:[#allocation5 + $0x878] sm:$0xff]
    %v646 = vld [vmem:[#allocation5 + $0x880] sm:$0xff]
    %v647 = vld [vmem:[#allocation5 + $0x888] sm:$0xff]
    %v648 = vld [vmem:[#allocation5 + $0x890] sm:$0xff]
    %v649 = vld [vmem:[#allocation5 + $0x898] sm:$0xff]
    %v650 = vld [vmem:[#allocation5 + $0x8a0] sm:$0xff]
    %v651 = vld [vmem:[#allocation5 + $0x8a8] sm:$0xff]
    %v652 = vld [vmem:[#allocation5 + $0x8b0] sm:$0xff]
    %v653 = vld [vmem:[#allocation5 + $0x8b8] sm:$0xff]
    %v654 = vld [vmem:[#allocation5 + $0x8c0] sm:$0xff]
    %v655 = vld [vmem:[#allocation5 + $0x8c8] sm:$0xff]
    %v656 = vld [vmem:[#allocation5 + $0x8d0] sm:$0xff]
    %v657 = vld [vmem:[#allocation5 + $0x8d8] sm:$0xff]
    %v658 = vld [vmem:[#allocation5 + $0x8e0] sm:$0xff]
    %v659 = vld [vmem:[#allocation5 + $0x8e8] sm:$0xff]
    %v660 = vld [vmem:[#allocation5 + $0x8f0] sm:$0xff]
    %v661 = vld [vmem:[#allocation5 + $0x8f8] sm:$0xff]
    %v662 = vld [vmem:[#allocation5 + $0x900] sm:$0xff]
    %v663 = vld [vmem:[#allocation5 + $0x908] sm:$0xff]
    %v664 = vld [vmem:[#allocation5 + $0x910] sm:$0xff]
    %v665 = vld [vmem:[#allocation5 + $0x918] sm:$0xff]
    %v666 = vld [vmem:[#allocation5 + $0x920] sm:$0xff]
    %v667 = vld [vmem:[#allocation5 + $0x928] sm:$0xff]
    %v668 = vld [vmem:[#allocation5 + $0x930] sm:$0xff]
    %v669 = vld [vmem:[#allocation5 + $0x938] sm:$0xff]
    %v670 = vld [vmem:[#allocation5 + $0x940] sm:$0xff]
    %v671 = vld [vmem:[#allocation5 + $0x948] sm:$0xff]
    %v672 = vld [vmem:[#allocation5 + $0x950] sm:$0xff]
    %v673 = vld [vmem:[#allocation5 + $0x958] sm:$0xff]
    %v674 = vld [vmem:[#allocation5 + $0x960] sm:$0xff]
    %v675 = vld [vmem:[#allocation5 + $0x968] sm:$0xff]
    %v676 = vld [vmem:[#allocation5 + $0x970] sm:$0xff]
    %v677 = vld [vmem:[#allocation5 + $0x978] sm:$0xff]
    %v678 = vld [vmem:[#allocation5 + $0x980] sm:$0xff]
    %v679 = vld [vmem:[#allocation5 + $0x988] sm:$0xff]
    %v680 = vld [vmem:[#allocation5 + $0x990] sm:$0xff]
    %v681 = vld [vmem:[#allocation5 + $0x998] sm:$0xff]
    %v682 = vld [vmem:[#allocation5 + $0x9a0] sm:$0xff]
    %v683 = vld [vmem:[#allocation5 + $0x9a8] sm:$0xff]
    %v684 = vld [vmem:[#allocation5 + $0x9b0] sm:$0xff]
    %v685 = vld [vmem:[#allocation5 + $0x9b8] sm:$0xff]
    %v686 = vld [vmem:[#allocation5 + $0x9c0] sm:$0xff]
    %v687 = vld [vmem:[#allocation5 + $0x9c8] sm:$0xff]
    %v688 = vld [vmem:[#allocation5 + $0x9d0] sm:$0xff]
    %v689 = vld [vmem:[#allocation5 + $0x9d8] sm:$0xff]
    %v690 = vld [vmem:[#allocation5 + $0x9e0] sm:$0xff]
    %v691 = vld [vmem:[#allocation5 + $0x9e8] sm:$0xff]
    %v692 = vld [vmem:[#allocation5 + $0x9f0] sm:$0xff]
    %v693 = vld [vmem:[#allocation5 + $0x9f8] sm:$0xff]
    %v694 = vld [vmem:[#allocation5 + $0xa00] sm:$0xff]
    %v695 = vld [vmem:[#allocation5 + $0xa08] sm:$0xff]
    %v696 = vld [vmem:[#allocation5 + $0xa10] sm:$0xff]
    %v697 = vld [vmem:[#allocation5 + $0xa18] sm:$0xff]
    %v698 = vld [vmem:[#allocation5 + $0xa20] sm:$0xff]
    %v699 = vld [vmem:[#allocation5 + $0xa28] sm:$0xff]
    %v700 = vld [vmem:[#allocation5 + $0xa30] sm:$0xff]
    %v701 = vld [vmem:[#allocation5 + $0xa38] sm:$0xff]
    %v702 = vld [vmem:[#allocation5 + $0xa40] sm:$0xff]
    %v703 = vld [vmem:[#allocation5 + $0xa48] sm:$0xff]
    %v704 = vld [vmem:[#allocation5 + $0xa50] sm:$0xff]
    %v705 = vld [vmem:[#allocation5 + $0xa58] sm:$0xff]
    %v706 = vld [vmem:[#allocation5 + $0xa60] sm:$0xff]
    %v707 = vld [vmem:[#allocation5 + $0xa68] sm:$0xff]
    %v708 = vld [vmem:[#allocation5 + $0xa70] sm:$0xff]
    %v709 = vld [vmem:[#allocation5 + $0xa78] sm:$0xff]
    %v710 = vld [vmem:[#allocation5 + $0xa80] sm:$0xff]
    %v711 = vld [vmem:[#allocation5 + $0xa88] sm:$0xff]
    %v712 = vld [vmem:[#allocation5 + $0xa90] sm:$0xff]
    %v713 = vld [vmem:[#allocation5 + $0xa98] sm:$0xff]
    %v714 = vld [vmem:[#allocation5 + $0xaa0] sm:$0xff]
    %v715 = vld [vmem:[#allocation5 + $0xaa8] sm:$0xff]
    %v716 = vld [vmem:[#allocation5 + $0xab0] sm:$0xff]
    %v717 = vld [vmem:[#allocation5 + $0xab8] sm:$0xff]
    %v718 = vld [vmem:[#allocation5 + $0xac0] sm:$0xff]
    %v719 = vld [vmem:[#allocation5 + $0xac8] sm:$0xff]
    %v720 = vld [vmem:[#allocation5 + $0xad0] sm:$0xff]
    %v721 = vld [vmem:[#allocation5 + $0xad8] sm:$0xff]
    %v722 = vld [vmem:[#allocation5 + $0xae0] sm:$0xff]
    %v723 = vld [vmem:[#allocation5 + $0xae8] sm:$0xff]
    %v724 = vld [vmem:[#allocation5 + $0xaf0] sm:$0xff]
    %v725 = vld [vmem:[#allocation5 + $0xaf8] sm:$0xff]
    %v726 = vld [vmem:[#allocation5 + $0xb00] sm:$0xff]
    %v727 = vld [vmem:[#allocation5 + $0xb08] sm:$0xff]
    %v728 = vld [vmem:[#allocation5 + $0xb10] sm:$0xff]
    %v729 = vld [vmem:[#allocation5 + $0xb18] sm:$0xff]
    %v730 = vld [vmem:[#allocation5 + $0xb20] sm:$0xff]
    %v731 = vld [vmem:[#allocation5 + $0xb28] sm:$0xff]
    %v732 = vld [vmem:[#allocation5 + $0xb30] sm:$0xff]
    %v733 = vld [vmem:[#allocation5 + $0xb38] sm:$0xff]
    %v734 = vld [vmem:[#allocation5 + $0xb40] sm:$0xff]
    %v735 = vld [vmem:[#allocation5 + $0xb48] sm:$0xff]
    %v736 = vld [vmem:[#allocation5 + $0xb50] sm:$0xff]
    %v737 = vld [vmem:[#allocation5 + $0xb58] sm:$0xff]
    %v738 = vld [vmem:[#allocation5 + $0xb60] sm:$0xff]
    %v739 = vld [vmem:[#allocation5 + $0xb68] sm:$0xff]
    %v740 = vld [vmem:[#allocation5 + $0xb70] sm:$0xff]
    %v741 = vld [vmem:[#allocation5 + $0xb78] sm:$0xff]
    %v742 = vld [vmem:[#allocation5 + $0xb80] sm:$0xff]
    %v743 = vld [vmem:[#allocation5 + $0xb88] sm:$0xff]
    %v744 = vld [vmem:[#allocation5 + $0xb90] sm:$0xff]
    %v745 = vld [vmem:[#allocation5 + $0xb98] sm:$0xff]
    %v746 = vld [vmem:[#allocation5 + $0xba0] sm:$0xff]
    %v747 = vld [vmem:[#allocation5 + $0xba8] sm:$0xff]
    %v748 = vld [vmem:[#allocation5 + $0xbb0] sm:$0xff]
    %v749 = vld [vmem:[#allocation5 + $0xbb8] sm:$0xff]
    %v750 = vld [vmem:[#allocation5 + $0xbc0] sm:$0xff]
    %v751 = vld [vmem:[#allocation5 + $0xbc8] sm:$0xff]
    %v752 = vld [vmem:[#allocation5 + $0xbd0] sm:$0xff]
    %v753 = vld [vmem:[#allocation5 + $0xbd8] sm:$0xff]
    %v754 = vld [vmem:[#allocation5 + $0xbe0] sm:$0xff]
    %v755 = vld [vmem:[#allocation5 + $0xbe8] sm:$0xff]
    %v756 = vld [vmem:[#allocation5 + $0xbf0] sm:$0xff]
    %v757 = vld [vmem:[#allocation5 + $0xbf8] sm:$0xff]
    %v758 = vld [vmem:[#allocation5 + $0xc00] sm:$0xff]
    %v759 = vld [vmem:[#allocation5 + $0xc08] sm:$0xff]
    %v760 = vld [vmem:[#allocation5 + $0xc10] sm:$0xff]
    %v761 = vld [vmem:[#allocation5 + $0xc18] sm:$0xff]
    %v762 = vld [vmem:[#allocation5 + $0xc20] sm:$0xff]
    %v763 = vld [vmem:[#allocation5 + $0xc28] sm:$0xff]
    %v764 = vld [vmem:[#allocation5 + $0xc30] sm:$0xff]
    %v765 = vld [vmem:[#allocation5 + $0xc38] sm:$0xff]
    %v766 = vld [vmem:[#allocation5 + $0xc40] sm:$0xff]
    %v767 = vld [vmem:[#allocation5 + $0xc48] sm:$0xff]
    %v768 = vld [vmem:[#allocation5 + $0xc50] sm:$0xff]
    %v769 = vld [vmem:[#allocation5 + $0xc58] sm:$0xff]
    %v770 = vld [vmem:[#allocation5 + $0xc60] sm:$0xff]
    %v771 = vld [vmem:[#allocation5 + $0xc68] sm:$0xff]
    %v772 = vld [vmem:[#allocation5 + $0xc70] sm:$0xff]
    %v773 = vld [vmem:[#allocation5 + $0xc78] sm:$0xff]
    %v774 = vld [vmem:[#allocation5 + $0xc80] sm:$0xff]
    %v775 = vld [vmem:[#allocation5 + $0xc88] sm:$0xff]
    %v776 = vld [vmem:[#allocation5 + $0xc90] sm:$0xff]
    %v777 = vld [vmem:[#allocation5 + $0xc98] sm:$0xff]
    %v778 = vld [vmem:[#allocation5 + $0xca0] sm:$0xff]
    %v779 = vld [vmem:[#allocation5 + $0xca8] sm:$0xff]
    %v780 = vld [vmem:[#allocation5 + $0xcb0] sm:$0xff]
    %v781 = vld [vmem:[#allocation5 + $0xcb8] sm:$0xff]
    %v782 = vld [vmem:[#allocation5 + $0xcc0] sm:$0xff]
    %v783 = vld [vmem:[#allocation5 + $0xcc8] sm:$0xff]
    %v784 = vld [vmem:[#allocation5 + $0xcd0] sm:$0xff]
    %v785 = vld [vmem:[#allocation5 + $0xcd8] sm:$0xff]
    %v786 = vld [vmem:[#allocation5 + $0xce0] sm:$0xff]
    %v787 = vld [vmem:[#allocation5 + $0xce8] sm:$0xff]
    %v788 = vld [vmem:[#allocation5 + $0xcf0] sm:$0xff]
    %v789 = vld [vmem:[#allocation5 + $0xcf8] sm:$0xff]
    %v790 = vld [vmem:[#allocation5 + $0xd00] sm:$0xff]
    %v791 = vld [vmem:[#allocation5 + $0xd08] sm:$0xff]
    %v792 = vld [vmem:[#allocation5 + $0xd10] sm:$0xff]
    %v793 = vld [vmem:[#allocation5 + $0xd18] sm:$0xff]
    %v794 = vld [vmem:[#allocation5 + $0xd20] sm:$0xff]
    %v795 = vld [vmem:[#allocation5 + $0xd28] sm:$0xff]
    %v796 = vld [vmem:[#allocation5 + $0xd30] sm:$0xff]
    %v797 = vld [vmem:[#allocation5 + $0xd38] sm:$0xff]
    %v798 = vld [vmem:[#allocation5 + $0xd40] sm:$0xff]
    %v799 = vld [vmem:[#allocation5 + $0xd48] sm:$0xff]
    %v800 = vld [vmem:[#allocation5 + $0xd50] sm:$0xff]
    %v801 = vld [vmem:[#allocation5 + $0xd58] sm:$0xff]
    %v802 = vld [vmem:[#allocation5 + $0xd60] sm:$0xff]
    %v803 = vld [vmem:[#allocation5 + $0xd68] sm:$0xff]
    %v804 = vld [vmem:[#allocation5 + $0xd70] sm:$0xff]
    %v805 = vld [vmem:[#allocation5 + $0xd78] sm:$0xff]
    %v806 = vld [vmem:[#allocation5 + $0xd80] sm:$0xff]
    %v807 = vld [vmem:[#allocation5 + $0xd88] sm:$0xff]
    %v808 = vld [vmem:[#allocation5 + $0xd90] sm:$0xff]
    %v809 = vld [vmem:[#allocation5 + $0xd98] sm:$0xff]
    %v810 = vld [vmem:[#allocation5 + $0xda0] sm:$0xff]
    %v811 = vld [vmem:[#allocation5 + $0xda8] sm:$0xff]
    %v812 = vld [vmem:[#allocation5 + $0xdb0] sm:$0xff]
    %v813 = vld [vmem:[#allocation5 + $0xdb8] sm:$0xff]
    %v814 = vld [vmem:[#allocation5 + $0xdc0] sm:$0xff]
    %v815 = vld [vmem:[#allocation5 + $0xdc8] sm:$0xff]
    %v816 = vld [vmem:[#allocation5 + $0xdd0] sm:$0xff]
    %v817 = vld [vmem:[#allocation5 + $0xdd8] sm:$0xff]
    %v818 = vld [vmem:[#allocation5 + $0xde0] sm:$0xff]
    %v819 = vld [vmem:[#allocation5 + $0xde8] sm:$0xff]
    %v820 = vld [vmem:[#allocation5 + $0xdf0] sm:$0xff]
    %v821 = vld [vmem:[#allocation5 + $0xdf8] sm:$0xff]
    %v822 = vld [vmem:[#allocation5 + $0xe00] sm:$0xff]
    %v823 = vld [vmem:[#allocation5 + $0xe08] sm:$0xff]
    %v824 = vld [vmem:[#allocation5 + $0xe10] sm:$0xff]
    %v825 = vld [vmem:[#allocation5 + $0xe18] sm:$0xff]
    %v826 = vld [vmem:[#allocation5 + $0xe20] sm:$0xff]
    %v827 = vld [vmem:[#allocation5 + $0xe28] sm:$0xff]
    %v828 = vld [vmem:[#allocation5 + $0xe30] sm:$0xff]
    %v829 = vld [vmem:[#allocation5 + $0xe38] sm:$0xff]
    %v830 = vld [vmem:[#allocation5 + $0xe40] sm:$0xff]
    %v831 = vld [vmem:[#allocation5 + $0xe48] sm:$0xff]
    %v832 = vld [vmem:[#allocation5 + $0xe50] sm:$0xff]
    %v833 = vld [vmem:[#allocation5 + $0xe58] sm:$0xff]
    %v834 = vld [vmem:[#allocation5 + $0xe60] sm:$0xff]
    %v835 = vld [vmem:[#allocation5 + $0xe68] sm:$0xff]
    %v836 = vld [vmem:[#allocation5 + $0xe70] sm:$0xff]
    %v837 = vld [vmem:[#allocation5 + $0xe78] sm:$0xff]
    %v838 = vld [vmem:[#allocation5 + $0xe80] sm:$0xff]
    %v839 = vld [vmem:[#allocation5 + $0xe88] sm:$0xff]
    %v840 = vld [vmem:[#allocation5 + $0xe90] sm:$0xff]
    %v841 = vld [vmem:[#allocation5 + $0xe98] sm:$0xff]
    %v842 = vld [vmem:[#allocation5 + $0xea0] sm:$0xff]
    %v843 = vld [vmem:[#allocation5 + $0xea8] sm:$0xff]
    %v844 = vld [vmem:[#allocation5 + $0xeb0] sm:$0xff]
    %v845 = vld [vmem:[#allocation5 + $0xeb8] sm:$0xff]
    %v846 = vld [vmem:[#allocation5 + $0xec0] sm:$0xff]
    %v847 = vld [vmem:[#allocation5 + $0xec8] sm:$0xff]
    %v848 = vld [vmem:[#allocation5 + $0xed0] sm:$0xff]
    %v849 = vld [vmem:[#allocation5 + $0xed8] sm:$0xff]
    %v850 = vld [vmem:[#allocation5 + $0xee0] sm:$0xff]
    %v851 = vld [vmem:[#allocation5 + $0xee8] sm:$0xff]
    %v852 = vld [vmem:[#allocation5 + $0xef0] sm:$0xff]
    %v853 = vld [vmem:[#allocation5 + $0xef8] sm:$0xff]
    %v854 = vld [vmem:[#allocation5 + $0xf00] sm:$0xff]
    %v855 = vld [vmem:[#allocation5 + $0xf08] sm:$0xff]
    %v856 = vld [vmem:[#allocation5 + $0xf10] sm:$0xff]
    %v857 = vld [vmem:[#allocation5 + $0xf18] sm:$0xff]
    %v858 = vld [vmem:[#allocation5 + $0xf20] sm:$0xff]
    %v859 = vld [vmem:[#allocation5 + $0xf28] sm:$0xff]
    %v860 = vld [vmem:[#allocation5 + $0xf30] sm:$0xff]
    %v861 = vld [vmem:[#allocation5 + $0xf38] sm:$0xff]
    %v862 = vld [vmem:[#allocation5 + $0xf40] sm:$0xff]
    %v863 = vld [vmem:[#allocation5 + $0xf48] sm:$0xff]
    %v864 = vld [vmem:[#allocation5 + $0xf50] sm:$0xff]
    %v865 = vld [vmem:[#allocation5 + $0xf58] sm:$0xff]
    %v866 = vld [vmem:[#allocation5 + $0xf60] sm:$0xff]
    %v867 = vld [vmem:[#allocation5 + $0xf68] sm:$0xff]
    %v868 = vld [vmem:[#allocation5 + $0xf70] sm:$0xff]
    %v869 = vld [vmem:[#allocation5 + $0xf78] sm:$0xff]
    %v870 = vld [vmem:[#allocation5 + $0xf80] sm:$0xff]
    %v871 = vld [vmem:[#allocation5 + $0xf88] sm:$0xff]
    %v872 = vld [vmem:[#allocation5 + $0xf90] sm:$0xff]
    %v873 = vld [vmem:[#allocation5 + $0xf98] sm:$0xff]
    %v874 = vld [vmem:[#allocation5 + $0xfa0] sm:$0xff]
    %v875 = vld [vmem:[#allocation5 + $0xfa8] sm:$0xff]
    %v876 = vld [vmem:[#allocation5 + $0xfb0] sm:$0xff]
    %v877 = vld [vmem:[#allocation5 + $0xfb8] sm:$0xff]
    %v878 = vld [vmem:[#allocation5 + $0xfc0] sm:$0xff]
    %v879 = vld [vmem:[#allocation5 + $0xfc8] sm:$0xff]
    %v880 = vld [vmem:[#allocation5 + $0xfd0] sm:$0xff]
    %v881 = vld [vmem:[#allocation5 + $0xfd8] sm:$0xff]
    %v882 = vld [vmem:[#allocation5 + $0xfe0] sm:$0xff]
    %v883 = vld [vmem:[#allocation5 + $0xfe8] sm:$0xff]
    %v884 = vld [vmem:[#allocation5 + $0xff0] sm:$0xff]
    %v885 = vld [vmem:[#allocation5 + $0xff8] sm:$0xff]
    %v886 = vld [vmem:[#allocation5 + $0x1000] sm:$0xff]
    %v887 = vld [vmem:[#allocation5 + $0x1008] sm:$0xff]
    %v888 = vld [vmem:[#allocation5 + $0x1010] sm:$0xff]
    %v889 = vld [vmem:[#allocation5 + $0x1018] sm:$0xff]
    %v890 = vld [vmem:[#allocation5 + $0x1020] sm:$0xff]
    %v891 = vld [vmem:[#allocation5 + $0x1028] sm:$0xff]
    %v892 = vld [vmem:[#allocation5 + $0x1030] sm:$0xff]
    %v893 = vld [vmem:[#allocation5 + $0x1038] sm:$0xff]
    %v894 = vld [vmem:[#allocation5 + $0x1040] sm:$0xff]
    %v895 = vld [vmem:[#allocation5 + $0x1048] sm:$0xff]
    %v896 = vld [vmem:[#allocation5 + $0x1050] sm:$0xff]
    %v897 = vld [vmem:[#allocation5 + $0x1058] sm:$0xff]
    %v898 = vld [vmem:[#allocation5 + $0x1060] sm:$0xff]
    %v899 = vld [vmem:[#allocation5 + $0x1068] sm:$0xff]
    %v900 = vld [vmem:[#allocation5 + $0x1070] sm:$0xff]
    %v901 = vld [vmem:[#allocation5 + $0x1078] sm:$0xff]
    %v902 = vld [vmem:[#allocation5 + $0x1080] sm:$0xff]
    %v903 = vld [vmem:[#allocation5 + $0x1088] sm:$0xff]
    %v904 = vld [vmem:[#allocation5 + $0x1090] sm:$0xff]
    %v905 = vld [vmem:[#allocation5 + $0x1098] sm:$0xff]
    %v906 = vld [vmem:[#allocation5 + $0x10a0] sm:$0xff]
    %v907 = vld [vmem:[#allocation5 + $0x10a8] sm:$0xff]
    %v908 = vld [vmem:[#allocation5 + $0x10b0] sm:$0xff]
    %v909 = vld [vmem:[#allocation5 + $0x10b8] sm:$0xff]
    %v910 = vld [vmem:[#allocation5 + $0x10c0] sm:$0xff]
    %v911 = vld [vmem:[#allocation5 + $0x10c8] sm:$0xff]
    %v912 = vld [vmem:[#allocation5 + $0x10d0] sm:$0xff]
    %v913 = vld [vmem:[#allocation5 + $0x10d8] sm:$0xff]
    %v914 = vld [vmem:[#allocation5 + $0x10e0] sm:$0xff]
    %v915 = vld [vmem:[#allocation5 + $0x10e8] sm:$0xff]
    %v916 = vld [vmem:[#allocation5 + $0x10f0] sm:$0xff]
    %v917 = vld [vmem:[#allocation5 + $0x10f8] sm:$0xff]
    %v918 = vld [vmem:[#allocation5 + $0x1100] sm:$0xff]
    %v919 = vld [vmem:[#allocation5 + $0x1108] sm:$0xff]
    %v920 = vld [vmem:[#allocation5 + $0x1110] sm:$0xff]
    %v921 = vld [vmem:[#allocation5 + $0x1118] sm:$0xff]
    %v922 = vld [vmem:[#allocation5 + $0x1120] sm:$0xff]
    %v923 = vld [vmem:[#allocation5 + $0x1128] sm:$0xff]
    %v924 = vld [vmem:[#allocation5 + $0x1130] sm:$0xff]
    %v925 = vld [vmem:[#allocation5 + $0x1138] sm:$0xff]
    %v926 = vld [vmem:[#allocation5 + $0x1140] sm:$0xff]
    %v927 = vld [vmem:[#allocation5 + $0x1148] sm:$0xff]
    %v928 = vld [vmem:[#allocation5 + $0x1150] sm:$0xff]
    %v929 = vld [vmem:[#allocation5 + $0x1158] sm:$0xff]
    %v930 = vld [vmem:[#allocation5 + $0x1160] sm:$0xff]
    %v931 = vld [vmem:[#allocation5 + $0x1168] sm:$0xff]
    %v932 = vld [vmem:[#allocation5 + $0x1170] sm:$0xff]
    %v933 = vld [vmem:[#allocation5 + $0x1178] sm:$0xff]
    %v934 = vld [vmem:[#allocation5 + $0x1180] sm:$0xff]
    %v935 = vld [vmem:[#allocation5 + $0x1188] sm:$0xff]
    %v936 = vld [vmem:[#allocation5 + $0x1190] sm:$0xff]
    %v937 = vld [vmem:[#allocation5 + $0x1198] sm:$0xff]
    %v938 = vld [vmem:[#allocation5 + $0x11a0] sm:$0xff]
    %v939 = vld [vmem:[#allocation5 + $0x11a8] sm:$0xff]
    %v940 = vld [vmem:[#allocation5 + $0x11b0] sm:$0xff]
    %v941 = vld [vmem:[#allocation5 + $0x11b8] sm:$0xff]
    %v942 = vld [vmem:[#allocation5 + $0x11c0] sm:$0xff]
    %v943 = vld [vmem:[#allocation5 + $0x11c8] sm:$0xff]
    %v944 = vld [vmem:[#allocation5 + $0x11d0] sm:$0xff]
    %v945 = vld [vmem:[#allocation5 + $0x11d8] sm:$0xff]
    %v946 = vld [vmem:[#allocation5 + $0x11e0] sm:$0xff]
    %v947 = vld [vmem:[#allocation5 + $0x11e8] sm:$0xff]
    %v948 = vld [vmem:[#allocation5 + $0x11f0] sm:$0xff]
    %v949 = vld [vmem:[#allocation5 + $0x11f8] sm:$0xff]
    %v950 = vld [vmem:[#allocation5 + $0x1200] sm:$0xff]
    %v951 = vld [vmem:[#allocation5 + $0x1208] sm:$0xff]
    %v952 = vld [vmem:[#allocation5 + $0x1210] sm:$0xff]
    %v953 = vld [vmem:[#allocation5 + $0x1218] sm:$0xff]
    %v954 = vld [vmem:[#allocation5 + $0x1220] sm:$0xff]
    %v955 = vld [vmem:[#allocation5 + $0x1228] sm:$0xff]
    %v956 = vld [vmem:[#allocation5 + $0x1230] sm:$0xff]
    %v957 = vld [vmem:[#allocation5 + $0x1238] sm:$0xff]
    %v958 = vld [vmem:[#allocation5 + $0x1240] sm:$0xff]
    %v959 = vld [vmem:[#allocation5 + $0x1248] sm:$0xff]
    %v960 = vld [vmem:[#allocation5 + $0x1250] sm:$0xff]
    %v961 = vld [vmem:[#allocation5 + $0x1258] sm:$0xff]
    %v962 = vld [vmem:[#allocation5 + $0x1260] sm:$0xff]
    %v963 = vld [vmem:[#allocation5 + $0x1268] sm:$0xff]
    %v964 = vld [vmem:[#allocation5 + $0x1270] sm:$0xff]
    %v965 = vld [vmem:[#allocation5 + $0x1278] sm:$0xff]
    %v966 = vld [vmem:[#allocation5 + $0x1280] sm:$0xff]
    %v967 = vld [vmem:[#allocation5 + $0x1288] sm:$0xff]
    %v968 = vld [vmem:[#allocation5 + $0x1290] sm:$0xff]
    %v969 = vld [vmem:[#allocation5 + $0x1298] sm:$0xff]
    %v970 = vld [vmem:[#allocation5 + $0x12a0] sm:$0xff]
    %v971 = vld [vmem:[#allocation5 + $0x12a8] sm:$0xff]
    %v972 = vld [vmem:[#allocation5 + $0x12b0] sm:$0xff]
    %v973 = vld [vmem:[#allocation5 + $0x12b8] sm:$0xff]
    %v974 = vld [vmem:[#allocation5 + $0x12c0] sm:$0xff]
    %v975 = vld [vmem:[#allocation5 + $0x12c8] sm:$0xff]
    %v976 = vld [vmem:[#allocation5 + $0x12d0] sm:$0xff]
    %v977 = vld [vmem:[#allocation5 + $0x12d8] sm:$0xff]
    %v978 = vld [vmem:[#allocation5 + $0x12e0] sm:$0xff]
    %v979 = vld [vmem:[#allocation5 + $0x12e8] sm:$0xff]
    %v980 = vld [vmem:[#allocation5 + $0x12f0] sm:$0xff]
    %v981 = vld [vmem:[#allocation5 + $0x12f8] sm:$0xff]
    %v982 = vld [vmem:[#allocation5 + $0x1300] sm:$0xff]
    %v983 = vld [vmem:[#allocation5 + $0x1308] sm:$0xff]
    %v984 = vld [vmem:[#allocation5 + $0x1310] sm:$0xff]
    %v985 = vld [vmem:[#allocation5 + $0x1318] sm:$0xff]
    %v986 = vld [vmem:[#allocation5 + $0x1320] sm:$0xff]
    %v987 = vld [vmem:[#allocation5 + $0x1328] sm:$0xff]
    %v988 = vld [vmem:[#allocation5 + $0x1330] sm:$0xff]
    %v989 = vld [vmem:[#allocation5 + $0x1338] sm:$0xff]
    %v990 = vld [vmem:[#allocation5 + $0x1340] sm:$0xff]
    %v991 = vld [vmem:[#allocation5 + $0x1348] sm:$0xff]
    %v992 = vld [vmem:[#allocation5 + $0x1350] sm:$0xff]
    %v993 = vld [vmem:[#allocation5 + $0x1358] sm:$0xff]
    %v994 = vld [vmem:[#allocation5 + $0x1360] sm:$0xff]
    %v995 = vld [vmem:[#allocation5 + $0x1368] sm:$0xff]
    %v996 = vld [vmem:[#allocation5 + $0x1370] sm:$0xff]
    %v997 = vld [vmem:[#allocation5 + $0x1378] sm:$0xff]
    %v998 = vld [vmem:[#allocation5 + $0x1380] sm:$0xff]
    %v999 = vld [vmem:[#allocation5 + $0x1388] sm:$0xff]
    %v1000 = vld [vmem:[#allocation5 + $0x1390] sm:$0xff]
    %v1001 = vld [vmem:[#allocation5 + $0x1398] sm:$0xff]
    %v1002 = vld [vmem:[#allocation5 + $0x13a0] sm:$0xff]
    %v1003 = vld [vmem:[#allocation5 + $0x13a8] sm:$0xff]
    %v1004 = vld [vmem:[#allocation5 + $0x13b0] sm:$0xff]
    %v1005 = vld [vmem:[#allocation5 + $0x13b8] sm:$0xff]
    %v1006 = vld [vmem:[#allocation5 + $0x13c0] sm:$0xff]
    %v1007 = vld [vmem:[#allocation5 + $0x13c8] sm:$0xff]
    %v1008 = vld [vmem:[#allocation5 + $0x13d0] sm:$0xff]
    %v1009 = vld [vmem:[#allocation5 + $0x13d8] sm:$0xff]
    %v1010 = vld [vmem:[#allocation5 + $0x13e0] sm:$0xff]
    %v1011 = vld [vmem:[#allocation5 + $0x13e8] sm:$0xff]
    %v1012 = vld [vmem:[#allocation5 + $0x13f0] sm:$0xff]
    %v1013 = vld [vmem:[#allocation5 + $0x13f8] sm:$0xff]
    %v1014 = vld [vmem:[#allocation5 + $0x1400] sm:$0xff]
    %v1015 = vld [vmem:[#allocation5 + $0x1408] sm:$0xff]
    %v1016 = vld [vmem:[#allocation5 + $0x1410] sm:$0xff]
    %v1017 = vld [vmem:[#allocation5 + $0x1418] sm:$0xff]
    %v1018 = vld [vmem:[#allocation5 + $0x1420] sm:$0xff]
    %v1019 = vld [vmem:[#allocation5 + $0x1428] sm:$0xff]
    %v1020 = vld [vmem:[#allocation5 + $0x1430] sm:$0xff]
    %v1021 = vld [vmem:[#allocation5 + $0x1438] sm:$0xff]
    %v1022 = vld [vmem:[#allocation5 + $0x1440] sm:$0xff]
    %v1023 = vld [vmem:[#allocation5 + $0x1448] sm:$0xff]
    %v1024 = vld [vmem:[#allocation5 + $0x1450] sm:$0xff]
    %v1025 = vld [vmem:[#allocation5 + $0x1458] sm:$0xff]
    %v1026 = vld [vmem:[#allocation5 + $0x1460] sm:$0xff]
    %v1027 = vld [vmem:[#allocation5 + $0x1468] sm:$0xff]
    %v1028 = vld [vmem:[#allocation5 + $0x1470] sm:$0xff]
    %v1029 = vld [vmem:[#allocation5 + $0x1478] sm:$0xff]
    %v1030 = vld [vmem:[#allocation5 + $0x1480] sm:$0xff]
    %v1031 = vld [vmem:[#allocation5 + $0x1488] sm:$0xff]
    %v1032 = vld [vmem:[#allocation5 + $0x1490] sm:$0xff]
    %v1033 = vld [vmem:[#allocation5 + $0x1498] sm:$0xff]
    %v1034 = vld [vmem:[#allocation5 + $0x14a0] sm:$0xff]
    %v1035 = vld [vmem:[#allocation5 + $0x14a8] sm:$0xff]
    %v1036 = vld [vmem:[#allocation5 + $0x14b0] sm:$0xff]
    %v1037 = vld [vmem:[#allocation5 + $0x14b8] sm:$0xff]
    %v1038 = vld [vmem:[#allocation5 + $0x14c0] sm:$0xff]
    %v1039 = vld [vmem:[#allocation5 + $0x14c8] sm:$0xff]
    %v1040 = vld [vmem:[#allocation5 + $0x14d0] sm:$0xff]
    %v1041 = vld [vmem:[#allocation5 + $0x14d8] sm:$0xff]
    %v1042 = vld [vmem:[#allocation5 + $0x14e0] sm:$0xff]
    %v1043 = vld [vmem:[#allocation5 + $0x14e8] sm:$0xff]
    %v1044 = vld [vmem:[#allocation5 + $0x14f0] sm:$0xff]
    %v1045 = vld [vmem:[#allocation5 + $0x14f8] sm:$0xff]
    %v1046 = vld [vmem:[#allocation5 + $0x1500] sm:$0xff]
    %v1047 = vld [vmem:[#allocation5 + $0x1508] sm:$0xff]
    %v1048 = vld [vmem:[#allocation5 + $0x1510] sm:$0xff]
    %v1049 = vld [vmem:[#allocation5 + $0x1518] sm:$0xff]
    %v1050 = vld [vmem:[#allocation5 + $0x1520] sm:$0xff]
    %v1051 = vld [vmem:[#allocation5 + $0x1528] sm:$0xff]
    %v1052 = vld [vmem:[#allocation5 + $0x1530] sm:$0xff]
    %v1053 = vld [vmem:[#allocation5 + $0x1538] sm:$0xff]
    %v1054 = vld [vmem:[#allocation5 + $0x1540] sm:$0xff]
    %v1055 = vld [vmem:[#allocation5 + $0x1548] sm:$0xff]
    %v1056 = vld [vmem:[#allocation5 + $0x1550] sm:$0xff]
    %v1057 = vld [vmem:[#allocation5 + $0x1558] sm:$0xff]
    %v1058 = vld [vmem:[#allocation5 + $0x1560] sm:$0xff]
    %v1059 = vld [vmem:[#allocation5 + $0x1568] sm:$0xff]
    %v1060 = vld [vmem:[#allocation5 + $0x1570] sm:$0xff]
    %v1061 = vld [vmem:[#allocation5 + $0x1578] sm:$0xff]
    %v1062 = vld [vmem:[#allocation5 + $0x1580] sm:$0xff]
    %v1063 = vld [vmem:[#allocation5 + $0x1588] sm:$0xff]
    %v1064 = vld [vmem:[#allocation5 + $0x1590] sm:$0xff]
    %v1065 = vld [vmem:[#allocation5 + $0x1598] sm:$0xff]
    %v1066 = vld [vmem:[#allocation5 + $0x15a0] sm:$0xff]
    %v1067 = vld [vmem:[#allocation5 + $0x15a8] sm:$0xff]
    %v1068 = vld [vmem:[#allocation5 + $0x15b0] sm:$0xff]
    %v1069 = vld [vmem:[#allocation5 + $0x15b8] sm:$0xff]
    %v1070 = vld [vmem:[#allocation5 + $0x15c0] sm:$0xff]
    %v1071 = vld [vmem:[#allocation5 + $0x15c8] sm:$0xff]
    %v1072 = vld [vmem:[#allocation5 + $0x15d0] sm:$0xff]
    %v1073 = vld [vmem:[#allocation5 + $0x15d8] sm:$0xff]
    %v1074 = vld [vmem:[#allocation5 + $0x15e0] sm:$0xff]
    %v1075 = vld [vmem:[#allocation5 + $0x15e8] sm:$0xff]
    %v1076 = vld [vmem:[#allocation5 + $0x15f0] sm:$0xff]
    %v1077 = vld [vmem:[#allocation5 + $0x15f8] sm:$0xff]
    %v1078 = vld [vmem:[#allocation5 + $0x1600] sm:$0xff]
    %v1079 = vld [vmem:[#allocation5 + $0x1608] sm:$0xff]
    %v1080 = vld [vmem:[#allocation5 + $0x1610] sm:$0xff]
    %v1081 = vld [vmem:[#allocation5 + $0x1618] sm:$0xff]
    %v1082 = vld [vmem:[#allocation5 + $0x1620] sm:$0xff]
    %v1083 = vld [vmem:[#allocation5 + $0x1628] sm:$0xff]
    %v1084 = vld [vmem:[#allocation5 + $0x1630] sm:$0xff]
    %v1085 = vld [vmem:[#allocation5 + $0x1638] sm:$0xff]
    %v1086 = vld [vmem:[#allocation5 + $0x1640] sm:$0xff]
    %v1087 = vld [vmem:[#allocation5 + $0x1648] sm:$0xff]
    %v1088 = vld [vmem:[#allocation5 + $0x1650] sm:$0xff]
    %v1089 = vld [vmem:[#allocation5 + $0x1658] sm:$0xff]
    %v1090 = vld [vmem:[#allocation5 + $0x1660] sm:$0xff]
    %v1091 = vld [vmem:[#allocation5 + $0x1668] sm:$0xff]
    %v1092 = vld [vmem:[#allocation5 + $0x1670] sm:$0xff]
    %v1093 = vld [vmem:[#allocation5 + $0x1678] sm:$0xff]
    %v1094 = vld [vmem:[#allocation5 + $0x1680] sm:$0xff]
    %v1095 = vld [vmem:[#allocation5 + $0x1688] sm:$0xff]
    %v1096 = vld [vmem:[#allocation5 + $0x1690] sm:$0xff]
    %v1097 = vld [vmem:[#allocation5 + $0x1698] sm:$0xff]
    %v1098 = vld [vmem:[#allocation5 + $0x16a0] sm:$0xff]
    %v1099 = vld [vmem:[#allocation5 + $0x16a8] sm:$0xff]
    %v1100 = vld [vmem:[#allocation5 + $0x16b0] sm:$0xff]
    %v1101 = vld [vmem:[#allocation5 + $0x16b8] sm:$0xff]
    %v1102 = vld [vmem:[#allocation5 + $0x16c0] sm:$0xff]
    %v1103 = vld [vmem:[#allocation5 + $0x16c8] sm:$0xff]
    %v1104 = vld [vmem:[#allocation5 + $0x16d0] sm:$0xff]
    %v1105 = vld [vmem:[#allocation5 + $0x16d8] sm:$0xff]
    %v1106 = vld [vmem:[#allocation5 + $0x16e0] sm:$0xff]
    %v1107 = vld [vmem:[#allocation5 + $0x16e8] sm:$0xff]
    %v1108 = vld [vmem:[#allocation5 + $0x16f0] sm:$0xff]
    %v1109 = vld [vmem:[#allocation5 + $0x16f8] sm:$0xff]
    %v1110 = vld [vmem:[#allocation5 + $0x1700] sm:$0xff]
    %v1111 = vld [vmem:[#allocation5 + $0x1708] sm:$0xff]
    %v1112 = vld [vmem:[#allocation5 + $0x1710] sm:$0xff]
    %v1113 = vld [vmem:[#allocation5 + $0x1718] sm:$0xff]
    %v1114 = vld [vmem:[#allocation5 + $0x1720] sm:$0xff]
    %v1115 = vld [vmem:[#allocation5 + $0x1728] sm:$0xff]
    %v1116 = vld [vmem:[#allocation5 + $0x1730] sm:$0xff]
    %v1117 = vld [vmem:[#allocation5 + $0x1738] sm:$0xff]
    %v1118 = vld [vmem:[#allocation5 + $0x1740] sm:$0xff]
    %v1119 = vld [vmem:[#allocation5 + $0x1748] sm:$0xff]
    %v1120 = vld [vmem:[#allocation5 + $0x1750] sm:$0xff]
    %v1121 = vld [vmem:[#allocation5 + $0x1758] sm:$0xff]
    %v1122 = vld [vmem:[#allocation5 + $0x1760] sm:$0xff]
    %v1123 = vld [vmem:[#allocation5 + $0x1768] sm:$0xff]
    %v1124 = vld [vmem:[#allocation5 + $0x1770] sm:$0xff]
    %v1125 = vld [vmem:[#allocation5 + $0x1778] sm:$0xff]
    %v1126 = vld [vmem:[#allocation5 + $0x1780] sm:$0xff]
    %v1127 = vld [vmem:[#allocation5 + $0x1788] sm:$0xff]
    %v1128 = vld [vmem:[#allocation5 + $0x1790] sm:$0xff]
    %v1129 = vld [vmem:[#allocation5 + $0x1798] sm:$0xff]
    %v1130 = vld [vmem:[#allocation5 + $0x17a0] sm:$0xff]
    %v1131 = vld [vmem:[#allocation5 + $0x17a8] sm:$0xff]
    %v1132 = vld [vmem:[#allocation5 + $0x17b0] sm:$0xff]
    %v1133 = vld [vmem:[#allocation5 + $0x17b8] sm:$0xff]
    %v1134 = vld [vmem:[#allocation5 + $0x17c0] sm:$0xff]
    %v1135 = vld [vmem:[#allocation5 + $0x17c8] sm:$0xff]
    %v1136 = vld [vmem:[#allocation5 + $0x17d0] sm:$0xff]
    %v1137 = vld [vmem:[#allocation5 + $0x17d8] sm:$0xff]
    %v1138 = vld [vmem:[#allocation5 + $0x17e0] sm:$0xff]
    %v1139 = vld [vmem:[#allocation5 + $0x17e8] sm:$0xff]
    %v1140 = vld [vmem:[#allocation5 + $0x17f0] sm:$0xff]
    %v1141 = vld [vmem:[#allocation5 + $0x17f8] sm:$0xff]
    %v1142 = vld [vmem:[#allocation5 + $0x1800] sm:$0xff]
    %v1143 = vld [vmem:[#allocation5 + $0x1808] sm:$0xff]
    %v1144 = vld [vmem:[#allocation5 + $0x1810] sm:$0xff]
    %v1145 = vld [vmem:[#allocation5 + $0x1818] sm:$0xff]
    %v1146 = vld [vmem:[#allocation5 + $0x1820] sm:$0xff]
    %v1147 = vld [vmem:[#allocation5 + $0x1828] sm:$0xff]
    %v1148 = vld [vmem:[#allocation5 + $0x1830] sm:$0xff]
    %v1149 = vld [vmem:[#allocation5 + $0x1838] sm:$0xff]
    %v1150 = vld [vmem:[#allocation5 + $0x1840] sm:$0xff]
    %v1151 = vld [vmem:[#allocation5 + $0x1848] sm:$0xff]
    %v1152 = vld [vmem:[#allocation5 + $0x1850] sm:$0xff]
    %v1153 = vld [vmem:[#allocation5 + $0x1858] sm:$0xff]
    %v1154 = vld [vmem:[#allocation5 + $0x1860] sm:$0xff]
    %v1155 = vld [vmem:[#allocation5 + $0x1868] sm:$0xff]
    %v1156 = vld [vmem:[#allocation5 + $0x1870] sm:$0xff]
    %v1157 = vld [vmem:[#allocation5 + $0x1878] sm:$0xff]
    %v1158 = vld [vmem:[#allocation5 + $0x1880] sm:$0xff]
    %v1159 = vld [vmem:[#allocation5 + $0x1888] sm:$0xff]
    %v1160 = vld [vmem:[#allocation5 + $0x1890] sm:$0xff]
    %v1161 = vld [vmem:[#allocation5 + $0x1898] sm:$0xff]
    %v1162 = vld [vmem:[#allocation5 + $0x18a0] sm:$0xff]
    %v1163 = vld [vmem:[#allocation5 + $0x18a8] sm:$0xff]
    %v1164 = vld [vmem:[#allocation5 + $0x18b0] sm:$0xff]
    %v1165 = vld [vmem:[#allocation5 + $0x18b8] sm:$0xff]
    %v1166 = vld [vmem:[#allocation5 + $0x18c0] sm:$0xff]
    %v1167 = vld [vmem:[#allocation5 + $0x18c8] sm:$0xff]
    %v1168 = vld [vmem:[#allocation5 + $0x18d0] sm:$0xff]
    %v1169 = vld [vmem:[#allocation5 + $0x18d8] sm:$0xff]
    %v1170 = vld [vmem:[#allocation5 + $0x18e0] sm:$0xff]
    %v1171 = vld [vmem:[#allocation5 + $0x18e8] sm:$0xff]
    %v1172 = vld [vmem:[#allocation5 + $0x18f0] sm:$0xff]
    %v1173 = vld [vmem:[#allocation5 + $0x18f8] sm:$0xff]
    %v1174 = vld [vmem:[#allocation5 + $0x1900] sm:$0xff]
    %v1175 = vld [vmem:[#allocation5 + $0x1908] sm:$0xff]
    %v1176 = vld [vmem:[#allocation5 + $0x1910] sm:$0xff]
    %v1177 = vld [vmem:[#allocation5 + $0x1918] sm:$0xff]
    %v1178 = vld [vmem:[#allocation5 + $0x1920] sm:$0xff]
    %v1179 = vld [vmem:[#allocation5 + $0x1928] sm:$0xff]
    %v1180 = vld [vmem:[#allocation5 + $0x1930] sm:$0xff]
    %v1181 = vld [vmem:[#allocation5 + $0x1938] sm:$0xff]
    %v1182 = vld [vmem:[#allocation5 + $0x1940] sm:$0xff]
    %v1183 = vld [vmem:[#allocation5 + $0x1948] sm:$0xff]
    %v1184 = vld [vmem:[#allocation5 + $0x1950] sm:$0xff]
    %v1185 = vld [vmem:[#allocation5 + $0x1958] sm:$0xff]
    %v1186 = vld [vmem:[#allocation5 + $0x1960] sm:$0xff]
    %v1187 = vld [vmem:[#allocation5 + $0x1968] sm:$0xff]
    %v1188 = vld [vmem:[#allocation5 + $0x1970] sm:$0xff]
    %v1189 = vld [vmem:[#allocation5 + $0x1978] sm:$0xff]
    %v1190 = vld [vmem:[#allocation5 + $0x1980] sm:$0xff]
    %v1191 = vld [vmem:[#allocation5 + $0x1988] sm:$0xff]
    %v1192 = vld [vmem:[#allocation5 + $0x1990] sm:$0xff]
    %v1193 = vld [vmem:[#allocation5 + $0x1998] sm:$0xff]
    %v1194 = vld [vmem:[#allocation5 + $0x19a0] sm:$0xff]
    %v1195 = vld [vmem:[#allocation5 + $0x19a8] sm:$0xff]
    %v1196 = vld [vmem:[#allocation5 + $0x19b0] sm:$0xff]
    %v1197 = vld [vmem:[#allocation5 + $0x19b8] sm:$0xff]
    %v1198 = vld [vmem:[#allocation5 + $0x19c0] sm:$0xff]
    %v1199 = vld [vmem:[#allocation5 + $0x19c8] sm:$0xff]
    %v1200 = vld [vmem:[#allocation5 + $0x19d0] sm:$0xff]
    %v1201 = vld [vmem:[#allocation5 + $0x19d8] sm:$0xff]
    %v1202 = vld [vmem:[#allocation5 + $0x19e0] sm:$0xff]
    %v1203 = vld [vmem:[#allocation5 + $0x19e8] sm:$0xff]
    %v1204 = vld [vmem:[#allocation5 + $0x19f0] sm:$0xff]
    %v1205 = vld [vmem:[#allocation5 + $0x19f8] sm:$0xff]
    %v1206 = vld [vmem:[#allocation5 + $0x1a00] sm:$0xff]
    %v1207 = vld [vmem:[#allocation5 + $0x1a08] sm:$0xff]
    %v1208 = vld [vmem:[#allocation5 + $0x1a10] sm:$0xff]
    %v1209 = vld [vmem:[#allocation5 + $0x1a18] sm:$0xff]
    %v1210 = vld [vmem:[#allocation5 + $0x1a20] sm:$0xff]
    %v1211 = vld [vmem:[#allocation5 + $0x1a28] sm:$0xff]
    %v1212 = vld [vmem:[#allocation5 + $0x1a30] sm:$0xff]
    %v1213 = vld [vmem:[#allocation5 + $0x1a38] sm:$0xff]
    %v1214 = vld [vmem:[#allocation5 + $0x1a40] sm:$0xff]
    %v1215 = vld [vmem:[#allocation5 + $0x1a48] sm:$0xff]
    %v1216 = vld [vmem:[#allocation5 + $0x1a50] sm:$0xff]
    %v1217 = vld [vmem:[#allocation5 + $0x1a58] sm:$0xff]
    %v1218 = vld [vmem:[#allocation5 + $0x1a60] sm:$0xff]
    %v1219 = vld [vmem:[#allocation5 + $0x1a68] sm:$0xff]
    %v1220 = vld [vmem:[#allocation5 + $0x1a70] sm:$0xff]
    %v1221 = vld [vmem:[#allocation5 + $0x1a78] sm:$0xff]
    %v1222 = vld [vmem:[#allocation5 + $0x1a80] sm:$0xff]
    %v1223 = vld [vmem:[#allocation5 + $0x1a88] sm:$0xff]
    %v1224 = vld [vmem:[#allocation5 + $0x1a90] sm:$0xff]
    %v1225 = vld [vmem:[#allocation5 + $0x1a98] sm:$0xff]
    %v1226 = vld [vmem:[#allocation5 + $0x1aa0] sm:$0xff]
    %v1227 = vld [vmem:[#allocation5 + $0x1aa8] sm:$0xff]
    %v1228 = vld [vmem:[#allocation5 + $0x1ab0] sm:$0xff]
    %v1229 = vld [vmem:[#allocation5 + $0x1ab8] sm:$0xff]
    %v1230 = vld [vmem:[#allocation5 + $0x1ac0] sm:$0xff]
    %v1231 = vld [vmem:[#allocation5 + $0x1ac8] sm:$0xff]
    %v1232 = vld [vmem:[#allocation5 + $0x1ad0] sm:$0xff]
    %v1233 = vld [vmem:[#allocation5 + $0x1ad8] sm:$0xff]
    %v1234 = vld [vmem:[#allocation5 + $0x1ae0] sm:$0xff]
    %v1235 = vld [vmem:[#allocation5 + $0x1ae8] sm:$0xff]
    %v1236 = vld [vmem:[#allocation5 + $0x1af0] sm:$0xff]
    %v1237 = vld [vmem:[#allocation5 + $0x1af8] sm:$0xff]
    %v1238 = vld [vmem:[#allocation5 + $0x1b00] sm:$0xff]
    %v1239 = vld [vmem:[#allocation5 + $0x1b08] sm:$0xff]
    %v1240 = vld [vmem:[#allocation5 + $0x1b10] sm:$0xff]
    %v1241 = vld [vmem:[#allocation5 + $0x1b18] sm:$0xff]
    %v1242 = vld [vmem:[#allocation5 + $0x1b20] sm:$0xff]
    %v1243 = vld [vmem:[#allocation5 + $0x1b28] sm:$0xff]
    %v1244 = vld [vmem:[#allocation5 + $0x1b30] sm:$0xff]
    %v1245 = vld [vmem:[#allocation5 + $0x1b38] sm:$0xff]
    %v1246 = vld [vmem:[#allocation5 + $0x1b40] sm:$0xff]
    %v1247 = vld [vmem:[#allocation5 + $0x1b48] sm:$0xff]
    %v1248 = vld [vmem:[#allocation5 + $0x1b50] sm:$0xff]
    %v1249 = vld [vmem:[#allocation5 + $0x1b58] sm:$0xff]
    %v1250 = vld [vmem:[#allocation5 + $0x1b60] sm:$0xff]
    %v1251 = vld [vmem:[#allocation5 + $0x1b68] sm:$0xff]
    %v1252 = vld [vmem:[#allocation5 + $0x1b70] sm:$0xff]
    %v1253 = vld [vmem:[#allocation5 + $0x1b78] sm:$0xff]
    %v1254 = vld [vmem:[#allocation5 + $0x1b80] sm:$0xff]
    %v1255 = vld [vmem:[#allocation5 + $0x1b88] sm:$0xff]
    %v1256 = vld [vmem:[#allocation5 + $0x1b90] sm:$0xff]
    %v1257 = vld [vmem:[#allocation5 + $0x1b98] sm:$0xff]
    %v1258 = vld [vmem:[#allocation5 + $0x1ba0] sm:$0xff]
    %v1259 = vld [vmem:[#allocation5 + $0x1ba8] sm:$0xff]
    %v1260 = vld [vmem:[#allocation5 + $0x1bb0] sm:$0xff]
    %v1261 = vld [vmem:[#allocation5 + $0x1bb8] sm:$0xff]
    %v1262 = vld [vmem:[#allocation5 + $0x1bc0] sm:$0xff]
    %v1263 = vld [vmem:[#allocation5 + $0x1bc8] sm:$0xff]
    %v1264 = vld [vmem:[#allocation5 + $0x1bd0] sm:$0xff]
    %v1265 = vld [vmem:[#allocation5 + $0x1bd8] sm:$0xff]
    %v1266 = vld [vmem:[#allocation5 + $0x1be0] sm:$0xff]
    %v1267 = vld [vmem:[#allocation5 + $0x1be8] sm:$0xff]
    %v1268 = vld [vmem:[#allocation5 + $0x1bf0] sm:$0xff]
    %v1269 = vld [vmem:[#allocation5 + $0x1bf8] sm:$0xff]
    %v1270 = vld [vmem:[#allocation5 + $0x1c00] sm:$0xff]
    %v1271 = vld [vmem:[#allocation5 + $0x1c08] sm:$0xff]
    %v1272 = vld [vmem:[#allocation5 + $0x1c10] sm:$0xff]
    %v1273 = vld [vmem:[#allocation5 + $0x1c18] sm:$0xff]
    %v1274 = vld [vmem:[#allocation5 + $0x1c20] sm:$0xff]
    %v1275 = vld [vmem:[#allocation5 + $0x1c28] sm:$0xff]
    %v1276 = vld [vmem:[#allocation5 + $0x1c30] sm:$0xff]
    %v1277 = vld [vmem:[#allocation5 + $0x1c38] sm:$0xff]
    %v1278 = vld [vmem:[#allocation5 + $0x1c40] sm:$0xff]
    %v1279 = vld [vmem:[#allocation5 + $0x1c48] sm:$0xff]
    %v1280 = vld [vmem:[#allocation5 + $0x1c50] sm:$0xff]
    %v1281 = vld [vmem:[#allocation5 + $0x1c58] sm:$0xff]
    %v1282 = vld [vmem:[#allocation5 + $0x1c60] sm:$0xff]
    %v1283 = vld [vmem:[#allocation5 + $0x1c68] sm:$0xff]
    %v1284 = vld [vmem:[#allocation5 + $0x1c70] sm:$0xff]
    %v1285 = vld [vmem:[#allocation5 + $0x1c78] sm:$0xff]
    %v1286 = vld [vmem:[#allocation5 + $0x1c80] sm:$0xff]
    %v1287 = vld [vmem:[#allocation5 + $0x1c88] sm:$0xff]
    %v1288 = vld [vmem:[#allocation5 + $0x1c90] sm:$0xff]
    %v1289 = vld [vmem:[#allocation5 + $0x1c98] sm:$0xff]
    %v1290 = vld [vmem:[#allocation5 + $0x1ca0] sm:$0xff]
    %v1291 = vld [vmem:[#allocation5 + $0x1ca8] sm:$0xff]
    %v1292 = vld [vmem:[#allocation5 + $0x1cb0] sm:$0xff]
    %v1293 = vld [vmem:[#allocation5 + $0x1cb8] sm:$0xff]
    %v1294 = vld [vmem:[#allocation5 + $0x1cc0] sm:$0xff]
    %v1295 = vld [vmem:[#allocation5 + $0x1cc8] sm:$0xff]
    %v1296 = vld [vmem:[#allocation5 + $0x1cd0] sm:$0xff]
    %v1297 = vld [vmem:[#allocation5 + $0x1cd8] sm:$0xff]
    %v1298 = vld [vmem:[#allocation5 + $0x1ce0] sm:$0xff]
    %v1299 = vld [vmem:[#allocation5 + $0x1ce8] sm:$0xff]
    %v1300 = vld [vmem:[#allocation5 + $0x1cf0] sm:$0xff]
    %v1301 = vld [vmem:[#allocation5 + $0x1cf8] sm:$0xff]
    %v1302 = vld [vmem:[#allocation5 + $0x1d00] sm:$0xff]
    %v1303 = vld [vmem:[#allocation5 + $0x1d08] sm:$0xff]
    %v1304 = vld [vmem:[#allocation5 + $0x1d10] sm:$0xff]
    %v1305 = vld [vmem:[#allocation5 + $0x1d18] sm:$0xff]
    %v1306 = vld [vmem:[#allocation5 + $0x1d20] sm:$0xff]
    %v1307 = vld [vmem:[#allocation5 + $0x1d28] sm:$0xff]
    %v1308 = vld [vmem:[#allocation5 + $0x1d30] sm:$0xff]
    %v1309 = vld [vmem:[#allocation5 + $0x1d38] sm:$0xff]
    %v1310 = vld [vmem:[#allocation5 + $0x1d40] sm:$0xff]
    %v1311 = vld [vmem:[#allocation5 + $0x1d48] sm:$0xff]
    %v1312 = vld [vmem:[#allocation5 + $0x1d50] sm:$0xff]
    %v1313 = vld [vmem:[#allocation5 + $0x1d58] sm:$0xff]
    %v1314 = vld [vmem:[#allocation5 + $0x1d60] sm:$0xff]
    %v1315 = vld [vmem:[#allocation5 + $0x1d68] sm:$0xff]
    %v1316 = vld [vmem:[#allocation5 + $0x1d70] sm:$0xff]
    %v1317 = vld [vmem:[#allocation5 + $0x1d78] sm:$0xff]
    %v1318 = vld [vmem:[#allocation5 + $0x1d80] sm:$0xff]
    %v1319 = vld [vmem:[#allocation5 + $0x1d88] sm:$0xff]
    %v1320 = vld [vmem:[#allocation5 + $0x1d90] sm:$0xff]
    %v1321 = vld [vmem:[#allocation5 + $0x1d98] sm:$0xff]
    %v1322 = vld [vmem:[#allocation5 + $0x1da0] sm:$0xff]
    %v1323 = vld [vmem:[#allocation5 + $0x1da8] sm:$0xff]
    %v1324 = vld [vmem:[#allocation5 + $0x1db0] sm:$0xff]
    %v1325 = vld [vmem:[#allocation5 + $0x1db8] sm:$0xff]
    %v1326 = vld [vmem:[#allocation5 + $0x1dc0] sm:$0xff]
    %v1327 = vld [vmem:[#allocation5 + $0x1dc8] sm:$0xff]
    %v1328 = vld [vmem:[#allocation5 + $0x1dd0] sm:$0xff]
    %v1329 = vld [vmem:[#allocation5 + $0x1dd8] sm:$0xff]
    %v1330 = vld [vmem:[#allocation5 + $0x1de0] sm:$0xff]
    %v1331 = vld [vmem:[#allocation5 + $0x1de8] sm:$0xff]
    %v1332 = vld [vmem:[#allocation5 + $0x1df0] sm:$0xff]
    %v1333 = vld [vmem:[#allocation5 + $0x1df8] sm:$0xff]
    %v1334 = vld [vmem:[#allocation5 + $0x1e00] sm:$0xff]
    %v1335 = vld [vmem:[#allocation5 + $0x1e08] sm:$0xff]
    %v1336 = vld [vmem:[#allocation5 + $0x1e10] sm:$0xff]
    %v1337 = vld [vmem:[#allocation5 + $0x1e18] sm:$0xff]
    %v1338 = vld [vmem:[#allocation5 + $0x1e20] sm:$0xff]
    %v1339 = vld [vmem:[#allocation5 + $0x1e28] sm:$0xff]
    %v1340 = vld [vmem:[#allocation5 + $0x1e30] sm:$0xff]
    %v1341 = vld [vmem:[#allocation5 + $0x1e38] sm:$0xff]
    %v1342 = vld [vmem:[#allocation5 + $0x1e40] sm:$0xff]
    %v1343 = vld [vmem:[#allocation5 + $0x1e48] sm:$0xff]
    %v1344 = vld [vmem:[#allocation5 + $0x1e50] sm:$0xff]
    %v1345 = vld [vmem:[#allocation5 + $0x1e58] sm:$0xff]
    %v1346 = vld [vmem:[#allocation5 + $0x1e60] sm:$0xff]
    %v1347 = vld [vmem:[#allocation5 + $0x1e68] sm:$0xff]
    %v1348 = vld [vmem:[#allocation5 + $0x1e70] sm:$0xff]
    %v1349 = vld [vmem:[#allocation5 + $0x1e78] sm:$0xff]
    %v1350 = vld [vmem:[#allocation5 + $0x1e80] sm:$0xff]
    %v1351 = vld [vmem:[#allocation5 + $0x1e88] sm:$0xff]
    %v1352 = vld [vmem:[#allocation5 + $0x1e90] sm:$0xff]
    %v1353 = vld [vmem:[#allocation5 + $0x1e98] sm:$0xff]
    %v1354 = vld [vmem:[#allocation5 + $0x1ea0] sm:$0xff]
    %v1355 = vld [vmem:[#allocation5 + $0x1ea8] sm:$0xff]
    %v1356 = vld [vmem:[#allocation5 + $0x1eb0] sm:$0xff]
    %v1357 = vld [vmem:[#allocation5 + $0x1eb8] sm:$0xff]
    %v1358 = vld [vmem:[#allocation5 + $0x1ec0] sm:$0xff]
    %v1359 = vld [vmem:[#allocation5 + $0x1ec8] sm:$0xff]
    %v1360 = vld [vmem:[#allocation5 + $0x1ed0] sm:$0xff]
    %v1361 = vld [vmem:[#allocation5 + $0x1ed8] sm:$0xff]
    %v1362 = vld [vmem:[#allocation5 + $0x1ee0] sm:$0xff]
    %v1363 = vld [vmem:[#allocation5 + $0x1ee8] sm:$0xff]
    %v1364 = vld [vmem:[#allocation5 + $0x1ef0] sm:$0xff]
    %v1365 = vld [vmem:[#allocation5 + $0x1ef8] sm:$0xff]
    %v1366 = vld [vmem:[#allocation5 + $0x1f00] sm:$0xff]
    %v1367 = vld [vmem:[#allocation5 + $0x1f08] sm:$0xff]
    %v1368 = vld [vmem:[#allocation5 + $0x1f10] sm:$0xff]
    %v1369 = vld [vmem:[#allocation5 + $0x1f18] sm:$0xff]
    %v1370 = vld [vmem:[#allocation5 + $0x1f20] sm:$0xff]
    %v1371 = vld [vmem:[#allocation5 + $0x1f28] sm:$0xff]
    %v1372 = vld [vmem:[#allocation5 + $0x1f30] sm:$0xff]
    %v1373 = vld [vmem:[#allocation5 + $0x1f38] sm:$0xff]
    %v1374 = vld [vmem:[#allocation5 + $0x1f40] sm:$0xff]
    %v1375 = vld [vmem:[#allocation5 + $0x1f48] sm:$0xff]
    %v1376 = vld [vmem:[#allocation5 + $0x1f50] sm:$0xff]
    %v1377 = vld [vmem:[#allocation5 + $0x1f58] sm:$0xff]
    %v1378 = vld [vmem:[#allocation5 + $0x1f60] sm:$0xff]
    %v1379 = vld [vmem:[#allocation5 + $0x1f68] sm:$0xff]
    %v1380 = vld [vmem:[#allocation5 + $0x1f70] sm:$0xff]
    %v1381 = vld [vmem:[#allocation5 + $0x1f78] sm:$0xff]
    %v1382 = vld [vmem:[#allocation5 + $0x1f80] sm:$0xff]
    %v1383 = vld [vmem:[#allocation5 + $0x1f88] sm:$0xff]
    %v1384 = vld [vmem:[#allocation5 + $0x1f90] sm:$0xff]
    %v1385 = vld [vmem:[#allocation5 + $0x1f98] sm:$0xff]
    %v1386 = vld [vmem:[#allocation5 + $0x1fa0] sm:$0xff]
    %v1387 = vld [vmem:[#allocation5 + $0x1fa8] sm:$0xff]
    %v1388 = vld [vmem:[#allocation5 + $0x1fb0] sm:$0xff]
    %v1389 = vld [vmem:[#allocation5 + $0x1fb8] sm:$0xff]
    %v1390 = vld [vmem:[#allocation5 + $0x1fc0] sm:$0xff]
    %v1391 = vld [vmem:[#allocation5 + $0x1fc8] sm:$0xff]
    %v1392 = vld [vmem:[#allocation5 + $0x1fd0] sm:$0xff]
    %v1393 = vld [vmem:[#allocation5 + $0x1fd8] sm:$0xff]
    %v1394 = vld [vmem:[#allocation5 + $0x1fe0] sm:$0xff]
    %v1395 = vld [vmem:[#allocation5 + $0x1fe8] sm:$0xff]
    %v1396 = vld [vmem:[#allocation5 + $0x1ff0] sm:$0xff]
    %v1397 = vld [vmem:[#allocation5 + $0x1ff8] sm:$0xff]
    %v1398 = vld [vmem:[#allocation5 + $0x2000] sm:$0xff]
    %v1399 = vld [vmem:[#allocation5 + $0x2008] sm:$0xff]
    %v1400 = vld [vmem:[#allocation5 + $0x2010] sm:$0xff]
    %v1401 = vld [vmem:[#allocation5 + $0x2018] sm:$0xff]
    %v1402 = vld [vmem:[#allocation5 + $0x2020] sm:$0xff]
    %v1403 = vld [vmem:[#allocation5 + $0x2028] sm:$0xff]
    %v1404 = vld [vmem:[#allocation5 + $0x2030] sm:$0xff]
    %v1405 = vld [vmem:[#allocation5 + $0x2038] sm:$0xff]
    %v1406 = vld [vmem:[#allocation5 + $0x2040] sm:$0xff]
    %v1407 = vld [vmem:[#allocation5 + $0x2048] sm:$0xff]
    %v1408 = vld [vmem:[#allocation5 + $0x2050] sm:$0xff]
    %v1409 = vld [vmem:[#allocation5 + $0x2058] sm:$0xff]
    %v1410 = vld [vmem:[#allocation5 + $0x2060] sm:$0xff]
    %v1411 = vld [vmem:[#allocation5 + $0x2068] sm:$0xff]
    %v1412 = vld [vmem:[#allocation5 + $0x2070] sm:$0xff]
    %v1413 = vld [vmem:[#allocation5 + $0x2078] sm:$0xff]
    %v1414 = vld [vmem:[#allocation5 + $0x2080] sm:$0xff]
    %v1415 = vld [vmem:[#allocation5 + $0x2088] sm:$0xff]
    %v1416 = vld [vmem:[#allocation5 + $0x2090] sm:$0xff]
    %v1417 = vld [vmem:[#allocation5 + $0x2098] sm:$0xff]
    %v1418 = vld [vmem:[#allocation5 + $0x20a0] sm:$0xff]
    %v1419 = vld [vmem:[#allocation5 + $0x20a8] sm:$0xff]
    %v1420 = vld [vmem:[#allocation5 + $0x20b0] sm:$0xff]
    %v1421 = vld [vmem:[#allocation5 + $0x20b8] sm:$0xff]
    %v1422 = vld [vmem:[#allocation5 + $0x20c0] sm:$0xff]
    %v1423 = vld [vmem:[#allocation5 + $0x20c8] sm:$0xff]
    %v1424 = vld [vmem:[#allocation5 + $0x20d0] sm:$0xff]
    %v1425 = vld [vmem:[#allocation5 + $0x20d8] sm:$0xff]
    %v1426 = vld [vmem:[#allocation5 + $0x20e0] sm:$0xff]
    %v1427 = vld [vmem:[#allocation5 + $0x20e8] sm:$0xff]
    %v1428 = vld [vmem:[#allocation5 + $0x20f0] sm:$0xff]
    %v1429 = vld [vmem:[#allocation5 + $0x20f8] sm:$0xff]
    %v1430 = vld [vmem:[#allocation5 + $0x2100] sm:$0xff]
    %v1431 = vld [vmem:[#allocation5 + $0x2108] sm:$0xff]
    %v1432 = vld [vmem:[#allocation5 + $0x2110] sm:$0xff]
    %v1433 = vld [vmem:[#allocation5 + $0x2118] sm:$0xff]
    %v1434 = vld [vmem:[#allocation5 + $0x2120] sm:$0xff]
    %v1435 = vld [vmem:[#allocation5 + $0x2128] sm:$0xff]
    %v1436 = vld [vmem:[#allocation5 + $0x2130] sm:$0xff]
    %v1437 = vld [vmem:[#allocation5 + $0x2138] sm:$0xff]
    %v1438 = vld [vmem:[#allocation5 + $0x2140] sm:$0xff]
    %v1439 = vld [vmem:[#allocation5 + $0x2148] sm:$0xff]
    %v1440 = vld [vmem:[#allocation5 + $0x2150] sm:$0xff]
    %v1441 = vld [vmem:[#allocation5 + $0x2158] sm:$0xff]
    %v1442 = vld [vmem:[#allocation5 + $0x2160] sm:$0xff]
    %v1443 = vld [vmem:[#allocation5 + $0x2168] sm:$0xff]
    %v1444 = vld [vmem:[#allocation5 + $0x2170] sm:$0xff]
    %v1445 = vld [vmem:[#allocation5 + $0x2178] sm:$0xff]
    %v1446 = vld [vmem:[#allocation5 + $0x2180] sm:$0xff]
    %v1447 = vld [vmem:[#allocation5 + $0x2188] sm:$0xff]
    %v1448 = vld [vmem:[#allocation5 + $0x2190] sm:$0xff]
    %v1449 = vld [vmem:[#allocation5 + $0x2198] sm:$0xff]
    %v1450 = vld [vmem:[#allocation5 + $0x21a0] sm:$0xff]
    %v1451 = vld [vmem:[#allocation5 + $0x21a8] sm:$0xff]
    %v1452 = vld [vmem:[#allocation5 + $0x21b0] sm:$0xff]
    %v1453 = vld [vmem:[#allocation5 + $0x21b8] sm:$0xff]
    %v1454 = vld [vmem:[#allocation5 + $0x21c0] sm:$0xff]
    %v1455 = vld [vmem:[#allocation5 + $0x21c8] sm:$0xff]
    %v1456 = vld [vmem:[#allocation5 + $0x21d0] sm:$0xff]
    %v1457 = vld [vmem:[#allocation5 + $0x21d8] sm:$0xff]
    %v1458 = vld [vmem:[#allocation5 + $0x21e0] sm:$0xff]
    %v1459 = vld [vmem:[#allocation5 + $0x21e8] sm:$0xff]
    %v1460 = vld [vmem:[#allocation5 + $0x21f0] sm:$0xff]
    %v1461 = vld [vmem:[#allocation5 + $0x21f8] sm:$0xff]
    %v1462 = vld [vmem:[#allocation5 + $0x2200] sm:$0xff]
    %v1463 = vld [vmem:[#allocation5 + $0x2208] sm:$0xff]
    %v1464 = vld [vmem:[#allocation5 + $0x2210] sm:$0xff]
    %v1465 = vld [vmem:[#allocation5 + $0x2218] sm:$0xff]
    %v1466 = vld [vmem:[#allocation5 + $0x2220] sm:$0xff]
    %v1467 = vld [vmem:[#allocation5 + $0x2228] sm:$0xff]
    %v1468 = vld [vmem:[#allocation5 + $0x2230] sm:$0xff]
    %v1469 = vld [vmem:[#allocation5 + $0x2238] sm:$0xff]
    %v1470 = vld [vmem:[#allocation5 + $0x2240] sm:$0xff]
    %v1471 = vld [vmem:[#allocation5 + $0x2248] sm:$0xff]
    %v1472 = vld [vmem:[#allocation5 + $0x2250] sm:$0xff]
    %v1473 = vld [vmem:[#allocation5 + $0x2258] sm:$0xff]
    %v1474 = vld [vmem:[#allocation5 + $0x2260] sm:$0xff]
    %v1475 = vld [vmem:[#allocation5 + $0x2268] sm:$0xff]
    %v1476 = vld [vmem:[#allocation5 + $0x2270] sm:$0xff]
    %v1477 = vld [vmem:[#allocation5 + $0x2278] sm:$0xff]
    %v1478 = vld [vmem:[#allocation5 + $0x2280] sm:$0xff]
    %v1479 = vld [vmem:[#allocation5 + $0x2288] sm:$0xff]
    %v1480 = vld [vmem:[#allocation5 + $0x2290] sm:$0xff]
    %v1481 = vld [vmem:[#allocation5 + $0x2298] sm:$0xff]
    %v1482 = vld [vmem:[#allocation5 + $0x22a0] sm:$0xff]
    %v1483 = vld [vmem:[#allocation5 + $0x22a8] sm:$0xff]
    %v1484 = vld [vmem:[#allocation5 + $0x22b0] sm:$0xff]
    %v1485 = vld [vmem:[#allocation5 + $0x22b8] sm:$0xff]
    %v1486 = vld [vmem:[#allocation5 + $0x22c0] sm:$0xff]
    %v1487 = vld [vmem:[#allocation5 + $0x22c8] sm:$0xff]
    %v1488 = vld [vmem:[#allocation5 + $0x22d0] sm:$0xff]
    %v1489 = vld [vmem:[#allocation5 + $0x22d8] sm:$0xff]
    %v1490 = vld [vmem:[#allocation5 + $0x22e0] sm:$0xff]
    %v1491 = vld [vmem:[#allocation5 + $0x22e8] sm:$0xff]
    %v1492 = vld [vmem:[#allocation5 + $0x22f0] sm:$0xff]
    %v1493 = vld [vmem:[#allocation5 + $0x22f8] sm:$0xff]
    %v1494 = vld [vmem:[#allocation5 + $0x2300] sm:$0xff]
    %v1495 = vld [vmem:[#allocation5 + $0x2308] sm:$0xff]
    %v1496 = vld [vmem:[#allocation5 + $0x2310] sm:$0xff]
    %v1497 = vld [vmem:[#allocation5 + $0x2318] sm:$0xff]
    %v1498 = vld [vmem:[#allocation5 + $0x2320] sm:$0xff]
    %v1499 = vld [vmem:[#allocation5 + $0x2328] sm:$0xff]
    %v1500 = vld [vmem:[#allocation5 + $0x2330] sm:$0xff]
    %v1501 = vld [vmem:[#allocation5 + $0x2338] sm:$0xff]
    %v1502 = vld [vmem:[#allocation5 + $0x2340] sm:$0xff]
    %v1503 = vld [vmem:[#allocation5 + $0x2348] sm:$0xff]
    %v1504 = vld [vmem:[#allocation5 + $0x2350] sm:$0xff]
    %v1505 = vld [vmem:[#allocation5 + $0x2358] sm:$0xff]
    %v1506 = vld [vmem:[#allocation5 + $0x2360] sm:$0xff]
    %v1507 = vld [vmem:[#allocation5 + $0x2368] sm:$0xff]
    %v1508 = vld [vmem:[#allocation5 + $0x2370] sm:$0xff]
    %v1509 = vld [vmem:[#allocation5 + $0x2378] sm:$0xff]
    %v1510 = vld [vmem:[#allocation5 + $0x2380] sm:$0xff]
    %v1511 = vld [vmem:[#allocation5 + $0x2388] sm:$0xff]
    %v1512 = vld [vmem:[#allocation5 + $0x2390] sm:$0xff]
    %v1513 = vld [vmem:[#allocation5 + $0x2398] sm:$0xff]
    %v1514 = vld [vmem:[#allocation5 + $0x23a0] sm:$0xff]
    %v1515 = vld [vmem:[#allocation5 + $0x23a8] sm:$0xff]
    %v1516 = vld [vmem:[#allocation5 + $0x23b0] sm:$0xff]
    %v1517 = vld [vmem:[#allocation5 + $0x23b8] sm:$0xff]
    %v1518 = vld [vmem:[#allocation5 + $0x23c0] sm:$0xff]
    %v1519 = vld [vmem:[#allocation5 + $0x23c8] sm:$0xff]
    %v1520 = vld [vmem:[#allocation5 + $0x23d0] sm:$0xff]
    %v1521 = vld [vmem:[#allocation5 + $0x23d8] sm:$0xff]
    %v1522 = vld [vmem:[#allocation5 + $0x23e0] sm:$0xff]
    %v1523 = vld [vmem:[#allocation5 + $0x23e8] sm:$0xff]
    %v1524 = vld [vmem:[#allocation5 + $0x23f0] sm:$0xff]
    %v1525 = vld [vmem:[#allocation5 + $0x23f8] sm:$0xff]
    %v1526 = vld [vmem:[#allocation5 + $0x2400] sm:$0xff]
    %v1527 = vld [vmem:[#allocation5 + $0x2408] sm:$0xff]
    %v1528 = vld [vmem:[#allocation5 + $0x2410] sm:$0xff]
    %v1529 = vld [vmem:[#allocation5 + $0x2418] sm:$0xff]
    %v1530 = vld [vmem:[#allocation5 + $0x2420] sm:$0xff]
    %v1531 = vld [vmem:[#allocation5 + $0x2428] sm:$0xff]
    %v1532 = vld [vmem:[#allocation5 + $0x2430] sm:$0xff]
    %v1533 = vld [vmem:[#allocation5 + $0x2438] sm:$0xff]
    %v1534 = vld [vmem:[#allocation5 + $0x2440] sm:$0xff]
    %v1535 = vld [vmem:[#allocation5 + $0x2448] sm:$0xff]
    %v1536 = vld [vmem:[#allocation5 + $0x2450] sm:$0xff]
    %v1537 = vld [vmem:[#allocation5 + $0x2458] sm:$0xff]
    %v1538 = vld [vmem:[#allocation5 + $0x2460] sm:$0xff]
    %v1539 = vld [vmem:[#allocation5 + $0x2468] sm:$0xff]
    %v1540 = vld [vmem:[#allocation5 + $0x2470] sm:$0xff]
    %v1541 = vld [vmem:[#allocation5 + $0x2478] sm:$0xff]
    %v1542 = vld [vmem:[#allocation5 + $0x2480] sm:$0xff]
    %v1543 = vld [vmem:[#allocation5 + $0x2488] sm:$0xff]
    %v1544 = vld [vmem:[#allocation5 + $0x2490] sm:$0xff]
    %v1545 = vld [vmem:[#allocation5 + $0x2498] sm:$0xff]
    %v1546 = vld [vmem:[#allocation5 + $0x24a0] sm:$0xff]
    %v1547 = vld [vmem:[#allocation5 + $0x24a8] sm:$0xff]
    %v1548 = vld [vmem:[#allocation5 + $0x24b0] sm:$0xff]
    %v1549 = vld [vmem:[#allocation5 + $0x24b8] sm:$0xff]
    %v1550 = vld [vmem:[#allocation7] sm:$0xff]
    %v1552 = vlaneseq
    %v1553 = vshrl.u32 %v1552, 7
    %v1554 = vsub.s32 0, %v1553
    %v1555 = vrot.slane %v1550, %v1554
    %v1556 = vlaneseq
    %v1557 = vshrl.u32 %v1556, 7
    %v1558 = vsub.s32 1, %v1557
    %v1559 = vrot.slane %v1550, %v1558
    %v1560 = vlaneseq
    %v1561 = vshrl.u32 %v1560, 7
    %v1562 = vsub.s32 2, %v1561
    %v1563 = vrot.slane %v1550, %v1562
    %v1564 = vlaneseq
    %v1565 = vshrl.u32 %v1564, 7
    %v1566 = vsub.s32 3, %v1565
    %v1567 = vrot.slane %v1550, %v1566
    %v1568 = vlaneseq
    %v1569 = vshrl.u32 %v1568, 7
    %v1570 = vsub.s32 4, %v1569
    %v1571 = vrot.slane %v1550, %v1570
    %v1572 = vlaneseq
    %v1573 = vshrl.u32 %v1572, 7
    %v1574 = vsub.s32 5, %v1573
    %v1575 = vrot.slane %v1550, %v1574
    %v1576 = vlaneseq
    %v1577 = vshrl.u32 %v1576, 7
    %v1578 = vsub.s32 6, %v1577
    %v1579 = vrot.slane %v1550, %v1578
    %v1580 = vlaneseq
    %v1581 = vshrl.u32 %v1580, 7
    %v1582 = vsub.s32 7, %v1581
    %v1583 = vrot.slane %v1550, %v1582
    %v2768 = vunpack.c.l.b16 %v374
    %v2769 = vunpack.c.h.b16 %v374
    %v2770 = vunpack.c.l.b16 %v375
    %v2771 = vunpack.c.h.b16 %v375
    %v2772 = vunpack.c.l.b16 %v376
    %v2773 = vunpack.c.h.b16 %v376
    %v2774 = vunpack.c.l.b16 %v377
    %v2775 = vunpack.c.h.b16 %v377
    %v2776 = vunpack.c.l.b16 %v378
    %v2777 = vunpack.c.h.b16 %v378
    %v2778 = vunpack.c.l.b16 %v379
    %v2779 = vunpack.c.h.b16 %v379
    %v2780 = vunpack.c.l.b16 %v380
    %v2781 = vunpack.c.h.b16 %v380
    %v2782 = vunpack.c.l.b16 %v381
    %v2783 = vunpack.c.h.b16 %v381
    %v2784 = vunpack.c.l.b16 %v382
    %v2785 = vunpack.c.h.b16 %v382
    %v2786 = vunpack.c.l.b16 %v383
    %v2787 = vunpack.c.h.b16 %v383
    %v2788 = vunpack.c.l.b16 %v384
    %v2789 = vunpack.c.h.b16 %v384
    %v2790 = vunpack.c.l.b16 %v385
    %v2791 = vunpack.c.h.b16 %v385
    %v2792 = vunpack.c.l.b16 %v386
    %v2793 = vunpack.c.h.b16 %v386
    %v2794 = vunpack.c.l.b16 %v387
    %v2795 = vunpack.c.h.b16 %v387
    %v2796 = vunpack.c.l.b16 %v388
    %v2797 = vunpack.c.h.b16 %v388
    %v2798 = vunpack.c.l.b16 %v389
    %v2799 = vunpack.c.h.b16 %v389
    %v2800 = vunpack.c.l.b16 %v390
    %v2801 = vunpack.c.h.b16 %v390
    %v2802 = vunpack.c.l.b16 %v391
    %v2803 = vunpack.c.h.b16 %v391
    %v2804 = vunpack.c.l.b16 %v392
    %v2805 = vunpack.c.h.b16 %v392
    %v2806 = vunpack.c.l.b16 %v393
    %v2807 = vunpack.c.h.b16 %v393
    %v2808 = vunpack.c.l.b16 %v394
    %v2809 = vunpack.c.h.b16 %v394
    %v2810 = vunpack.c.l.b16 %v395
    %v2811 = vunpack.c.h.b16 %v395
    %v2812 = vunpack.c.l.b16 %v396
    %v2813 = vunpack.c.h.b16 %v396
    %v2814 = vunpack.c.l.b16 %v397
    %v2815 = vunpack.c.h.b16 %v397
    %v2816 = vunpack.c.l.b16 %v398
    %v2817 = vunpack.c.h.b16 %v398
    %v2818 = vunpack.c.l.b16 %v399
    %v2819 = vunpack.c.h.b16 %v399
    %v2820 = vunpack.c.l.b16 %v400
    %v2821 = vunpack.c.h.b16 %v400
    %v2822 = vunpack.c.l.b16 %v401
    %v2823 = vunpack.c.h.b16 %v401
    %v2824 = vunpack.c.l.b16 %v402
    %v2825 = vunpack.c.h.b16 %v402
    %v2826 = vunpack.c.l.b16 %v403
    %v2827 = vunpack.c.h.b16 %v403
    %v2828 = vunpack.c.l.b16 %v404
    %v2829 = vunpack.c.h.b16 %v404
    %v2830 = vunpack.c.l.b16 %v405
    %v2831 = vunpack.c.h.b16 %v405
    %v2832 = vunpack.c.l.b16 %v406
    %v2833 = vunpack.c.h.b16 %v406
    %v2834 = vunpack.c.l.b16 %v407
    %v2835 = vunpack.c.h.b16 %v407
    %v2836 = vunpack.c.l.b16 %v408
    %v2837 = vunpack.c.h.b16 %v408
    %v2838 = vunpack.c.l.b16 %v409
    %v2839 = vunpack.c.h.b16 %v409
    %v2840 = vunpack.c.l.b16 %v410
    %v2841 = vunpack.c.h.b16 %v410
    %v2842 = vunpack.c.l.b16 %v411
    %v2843 = vunpack.c.h.b16 %v411
    %v2844 = vunpack.c.l.b16 %v412
    %v2845 = vunpack.c.h.b16 %v412
    %v2846 = vunpack.c.l.b16 %v413
    %v2847 = vunpack.c.h.b16 %v413
    %v2848 = vunpack.c.l.b16 %v414
    %v2849 = vunpack.c.h.b16 %v414
    %v2850 = vunpack.c.l.b16 %v415
    %v2851 = vunpack.c.h.b16 %v415
    %v2852 = vunpack.c.l.b16 %v416
    %v2853 = vunpack.c.h.b16 %v416
    %v2854 = vunpack.c.l.b16 %v417
    %v2855 = vunpack.c.h.b16 %v417
    %v2856 = vunpack.c.l.b16 %v418
    %v2857 = vunpack.c.h.b16 %v418
    %v2858 = vunpack.c.l.b16 %v419
    %v2859 = vunpack.c.h.b16 %v419
    %v2860 = vunpack.c.l.b16 %v420
    %v2861 = vunpack.c.h.b16 %v420
    %v2862 = vunpack.c.l.b16 %v421
    %v2863 = vunpack.c.h.b16 %v421
    %v2864 = vunpack.c.l.b16 %v422
    %v2865 = vunpack.c.h.b16 %v422
    %v2866 = vunpack.c.l.b16 %v423
    %v2867 = vunpack.c.h.b16 %v423
    %v2868 = vunpack.c.l.b16 %v424
    %v2869 = vunpack.c.h.b16 %v424
    %v2870 = vunpack.c.l.b16 %v425
    %v2871 = vunpack.c.h.b16 %v425
    %v2872 = vunpack.c.l.b16 %v426
    %v2873 = vunpack.c.h.b16 %v426
    %v2874 = vunpack.c.l.b16 %v427
    %v2875 = vunpack.c.h.b16 %v427
    %v2876 = vunpack.c.l.b16 %v428
    %v2877 = vunpack.c.h.b16 %v428
    %v2878 = vunpack.c.l.b16 %v429
    %v2879 = vunpack.c.h.b16 %v429
    %v2880 = vunpack.c.l.b16 %v430
    %v2881 = vunpack.c.h.b16 %v430
    %v2882 = vunpack.c.l.b16 %v431
    %v2883 = vunpack.c.h.b16 %v431
    %v2884 = vunpack.c.l.b16 %v432
    %v2885 = vunpack.c.h.b16 %v432
    %v2886 = vunpack.c.l.b16 %v433
    %v2887 = vunpack.c.h.b16 %v433
    %v2888 = vunpack.c.l.b16 %v434
    %v2889 = vunpack.c.h.b16 %v434
    %v2890 = vunpack.c.l.b16 %v435
    %v2891 = vunpack.c.h.b16 %v435
    %v2892 = vunpack.c.l.b16 %v436
    %v2893 = vunpack.c.h.b16 %v436
    %v2894 = vunpack.c.l.b16 %v437
    %v2895 = vunpack.c.h.b16 %v437
    %v2896 = vunpack.c.l.b16 %v438
    %v2897 = vunpack.c.h.b16 %v438
    %v2898 = vunpack.c.l.b16 %v439
    %v2899 = vunpack.c.h.b16 %v439
    %v2900 = vunpack.c.l.b16 %v440
    %v2901 = vunpack.c.h.b16 %v440
    %v2902 = vunpack.c.l.b16 %v441
    %v2903 = vunpack.c.h.b16 %v441
    %v2904 = vunpack.c.l.b16 %v442
    %v2905 = vunpack.c.h.b16 %v442
    %v2906 = vunpack.c.l.b16 %v443
    %v2907 = vunpack.c.h.b16 %v443
    %v2908 = vunpack.c.l.b16 %v444
    %v2909 = vunpack.c.h.b16 %v444
    %v2910 = vunpack.c.l.b16 %v445
    %v2911 = vunpack.c.h.b16 %v445
    %v2912 = vunpack.c.l.b16 %v446
    %v2913 = vunpack.c.h.b16 %v446
    %v2914 = vunpack.c.l.b16 %v447
    %v2915 = vunpack.c.h.b16 %v447
    %v2916 = vunpack.c.l.b16 %v448
    %v2917 = vunpack.c.h.b16 %v448
    %v2918 = vunpack.c.l.b16 %v449
    %v2919 = vunpack.c.h.b16 %v449
    %v2920 = vunpack.c.l.b16 %v450
    %v2921 = vunpack.c.h.b16 %v450
    %v2922 = vunpack.c.l.b16 %v451
    %v2923 = vunpack.c.h.b16 %v451
    %v2924 = vunpack.c.l.b16 %v452
    %v2925 = vunpack.c.h.b16 %v452
    %v2926 = vunpack.c.l.b16 %v453
    %v2927 = vunpack.c.h.b16 %v453
    %v2928 = vunpack.c.l.b16 %v454
    %v2929 = vunpack.c.h.b16 %v454
    %v2930 = vunpack.c.l.b16 %v455
    %v2931 = vunpack.c.h.b16 %v455
    %v2932 = vunpack.c.l.b16 %v456
    %v2933 = vunpack.c.h.b16 %v456
    %v2934 = vunpack.c.l.b16 %v457
    %v2935 = vunpack.c.h.b16 %v457
    %v2936 = vunpack.c.l.b16 %v458
    %v2937 = vunpack.c.h.b16 %v458
    %v2938 = vunpack.c.l.b16 %v459
    %v2939 = vunpack.c.h.b16 %v459
    %v2940 = vunpack.c.l.b16 %v460
    %v2941 = vunpack.c.h.b16 %v460
    %v2942 = vunpack.c.l.b16 %v461
    %v2943 = vunpack.c.h.b16 %v461
    %v2944 = vunpack.c.l.b16 %v462
    %v2945 = vunpack.c.h.b16 %v462
    %v2946 = vunpack.c.l.b16 %v463
    %v2947 = vunpack.c.h.b16 %v463
    %v2948 = vunpack.c.l.b16 %v464
    %v2949 = vunpack.c.h.b16 %v464
    %v2950 = vunpack.c.l.b16 %v465
    %v2951 = vunpack.c.h.b16 %v465
    %v2952 = vunpack.c.l.b16 %v466
    %v2953 = vunpack.c.h.b16 %v466
    %v2954 = vunpack.c.l.b16 %v467
    %v2955 = vunpack.c.h.b16 %v467
    %v2956 = vunpack.c.l.b16 %v468
    %v2957 = vunpack.c.h.b16 %v468
    %v2958 = vunpack.c.l.b16 %v469
    %v2959 = vunpack.c.h.b16 %v469
    %v2960 = vunpack.c.l.b16 %v470
    %v2961 = vunpack.c.h.b16 %v470
    %v2962 = vunpack.c.l.b16 %v471
    %v2963 = vunpack.c.h.b16 %v471
    %v2964 = vunpack.c.l.b16 %v472
    %v2965 = vunpack.c.h.b16 %v472
    %v2966 = vunpack.c.l.b16 %v473
    %v2967 = vunpack.c.h.b16 %v473
    %v2968 = vunpack.c.l.b16 %v474
    %v2969 = vunpack.c.h.b16 %v474
    %v2970 = vunpack.c.l.b16 %v475
    %v2971 = vunpack.c.h.b16 %v475
    %v2972 = vunpack.c.l.b16 %v476
    %v2973 = vunpack.c.h.b16 %v476
    %v2974 = vunpack.c.l.b16 %v477
    %v2975 = vunpack.c.h.b16 %v477
    %v2976 = vunpack.c.l.b16 %v478
    %v2977 = vunpack.c.h.b16 %v478
    %v2978 = vunpack.c.l.b16 %v479
    %v2979 = vunpack.c.h.b16 %v479
    %v2980 = vunpack.c.l.b16 %v480
    %v2981 = vunpack.c.h.b16 %v480
    %v2982 = vunpack.c.l.b16 %v481
    %v2983 = vunpack.c.h.b16 %v481
    %v2984 = vunpack.c.l.b16 %v482
    %v2985 = vunpack.c.h.b16 %v482
    %v2986 = vunpack.c.l.b16 %v483
    %v2987 = vunpack.c.h.b16 %v483
    %v2988 = vunpack.c.l.b16 %v484
    %v2989 = vunpack.c.h.b16 %v484
    %v2990 = vunpack.c.l.b16 %v485
    %v2991 = vunpack.c.h.b16 %v485
    %v2992 = vunpack.c.l.b16 %v486
    %v2993 = vunpack.c.h.b16 %v486
    %v2994 = vunpack.c.l.b16 %v487
    %v2995 = vunpack.c.h.b16 %v487
    %v2996 = vunpack.c.l.b16 %v488
    %v2997 = vunpack.c.h.b16 %v488
    %v2998 = vunpack.c.l.b16 %v489
    %v2999 = vunpack.c.h.b16 %v489
    %v3000 = vunpack.c.l.b16 %v490
    %v3001 = vunpack.c.h.b16 %v490
    %v3002 = vunpack.c.l.b16 %v491
    %v3003 = vunpack.c.h.b16 %v491
    %v3004 = vunpack.c.l.b16 %v492
    %v3005 = vunpack.c.h.b16 %v492
    %v3006 = vunpack.c.l.b16 %v493
    %v3007 = vunpack.c.h.b16 %v493
    %v3008 = vunpack.c.l.b16 %v494
    %v3009 = vunpack.c.h.b16 %v494
    %v3010 = vunpack.c.l.b16 %v495
    %v3011 = vunpack.c.h.b16 %v495
    %v3012 = vunpack.c.l.b16 %v496
    %v3013 = vunpack.c.h.b16 %v496
    %v3014 = vunpack.c.l.b16 %v497
    %v3015 = vunpack.c.h.b16 %v497
    %v3016 = vunpack.c.l.b16 %v498
    %v3017 = vunpack.c.h.b16 %v498
    %v3018 = vunpack.c.l.b16 %v499
    %v3019 = vunpack.c.h.b16 %v499
    %v3020 = vunpack.c.l.b16 %v500
    %v3021 = vunpack.c.h.b16 %v500
    %v3022 = vunpack.c.l.b16 %v501
    %v3023 = vunpack.c.h.b16 %v501
    %v3024 = vunpack.c.l.b16 %v502
    %v3025 = vunpack.c.h.b16 %v502
    %v3026 = vunpack.c.l.b16 %v503
    %v3027 = vunpack.c.h.b16 %v503
    %v3028 = vunpack.c.l.b16 %v504
    %v3029 = vunpack.c.h.b16 %v504
    %v3030 = vunpack.c.l.b16 %v505
    %v3031 = vunpack.c.h.b16 %v505
    %v3032 = vunpack.c.l.b16 %v506
    %v3033 = vunpack.c.h.b16 %v506
    %v3034 = vunpack.c.l.b16 %v507
    %v3035 = vunpack.c.h.b16 %v507
    %v3036 = vunpack.c.l.b16 %v508
    %v3037 = vunpack.c.h.b16 %v508
    %v3038 = vunpack.c.l.b16 %v509
    %v3039 = vunpack.c.h.b16 %v509
    %v3040 = vunpack.c.l.b16 %v510
    %v3041 = vunpack.c.h.b16 %v510
    %v3042 = vunpack.c.l.b16 %v511
    %v3043 = vunpack.c.h.b16 %v511
    %v3044 = vunpack.c.l.b16 %v512
    %v3045 = vunpack.c.h.b16 %v512
    %v3046 = vunpack.c.l.b16 %v513
    %v3047 = vunpack.c.h.b16 %v513
    %v3048 = vunpack.c.l.b16 %v514
    %v3049 = vunpack.c.h.b16 %v514
    %v3050 = vunpack.c.l.b16 %v515
    %v3051 = vunpack.c.h.b16 %v515
    %v3052 = vunpack.c.l.b16 %v516
    %v3053 = vunpack.c.h.b16 %v516
    %v3054 = vunpack.c.l.b16 %v517
    %v3055 = vunpack.c.h.b16 %v517
    %v3056 = vunpack.c.l.b16 %v518
    %v3057 = vunpack.c.h.b16 %v518
    %v3058 = vunpack.c.l.b16 %v519
    %v3059 = vunpack.c.h.b16 %v519
    %v3060 = vunpack.c.l.b16 %v520
    %v3061 = vunpack.c.h.b16 %v520
    %v3062 = vunpack.c.l.b16 %v521
    %v3063 = vunpack.c.h.b16 %v521
    %v3064 = vunpack.c.l.b16 %v522
    %v3065 = vunpack.c.h.b16 %v522
    %v3066 = vunpack.c.l.b16 %v523
    %v3067 = vunpack.c.h.b16 %v523
    %v3068 = vunpack.c.l.b16 %v524
    %v3069 = vunpack.c.h.b16 %v524
    %v3070 = vunpack.c.l.b16 %v525
    %v3071 = vunpack.c.h.b16 %v525
    %v3072 = vunpack.c.l.b16 %v526
    %v3073 = vunpack.c.h.b16 %v526
    %v3074 = vunpack.c.l.b16 %v527
    %v3075 = vunpack.c.h.b16 %v527
    %v3076 = vunpack.c.l.b16 %v528
    %v3077 = vunpack.c.h.b16 %v528
    %v3078 = vunpack.c.l.b16 %v529
    %v3079 = vunpack.c.h.b16 %v529
    %v3080 = vunpack.c.l.b16 %v530
    %v3081 = vunpack.c.h.b16 %v530
    %v3082 = vunpack.c.l.b16 %v531
    %v3083 = vunpack.c.h.b16 %v531
    %v3084 = vunpack.c.l.b16 %v532
    %v3085 = vunpack.c.h.b16 %v532
    %v3086 = vunpack.c.l.b16 %v533
    %v3087 = vunpack.c.h.b16 %v533
    %v3088 = vunpack.c.l.b16 %v534
    %v3089 = vunpack.c.h.b16 %v534
    %v3090 = vunpack.c.l.b16 %v535
    %v3091 = vunpack.c.h.b16 %v535
    %v3092 = vunpack.c.l.b16 %v536
    %v3093 = vunpack.c.h.b16 %v536
    %v3094 = vunpack.c.l.b16 %v537
    %v3095 = vunpack.c.h.b16 %v537
    %v3096 = vunpack.c.l.b16 %v538
    %v3097 = vunpack.c.h.b16 %v538
    %v3098 = vunpack.c.l.b16 %v539
    %v3099 = vunpack.c.h.b16 %v539
    %v3100 = vunpack.c.l.b16 %v540
    %v3101 = vunpack.c.h.b16 %v540
    %v3102 = vunpack.c.l.b16 %v541
    %v3103 = vunpack.c.h.b16 %v541
    %v3104 = vunpack.c.l.b16 %v542
    %v3105 = vunpack.c.h.b16 %v542
    %v3106 = vunpack.c.l.b16 %v543
    %v3107 = vunpack.c.h.b16 %v543
    %v3108 = vunpack.c.l.b16 %v544
    %v3109 = vunpack.c.h.b16 %v544
    %v3110 = vunpack.c.l.b16 %v545
    %v3111 = vunpack.c.h.b16 %v545
    %v3112 = vunpack.c.l.b16 %v546
    %v3113 = vunpack.c.h.b16 %v546
    %v3114 = vunpack.c.l.b16 %v547
    %v3115 = vunpack.c.h.b16 %v547
    %v3116 = vunpack.c.l.b16 %v548
    %v3117 = vunpack.c.h.b16 %v548
    %v3118 = vunpack.c.l.b16 %v549
    %v3119 = vunpack.c.h.b16 %v549
    %v3120 = vunpack.c.l.b16 %v550
    %v3121 = vunpack.c.h.b16 %v550
    %v3122 = vunpack.c.l.b16 %v551
    %v3123 = vunpack.c.h.b16 %v551
    %v3124 = vunpack.c.l.b16 %v552
    %v3125 = vunpack.c.h.b16 %v552
    %v3126 = vunpack.c.l.b16 %v553
    %v3127 = vunpack.c.h.b16 %v553
    %v3128 = vunpack.c.l.b16 %v554
    %v3129 = vunpack.c.h.b16 %v554
    %v3130 = vunpack.c.l.b16 %v555
    %v3131 = vunpack.c.h.b16 %v555
    %v3132 = vunpack.c.l.b16 %v556
    %v3133 = vunpack.c.h.b16 %v556
    %v3134 = vunpack.c.l.b16 %v557
    %v3135 = vunpack.c.h.b16 %v557
    %v3136 = vunpack.c.l.b16 %v558
    %v3137 = vunpack.c.h.b16 %v558
    %v3138 = vunpack.c.l.b16 %v559
    %v3139 = vunpack.c.h.b16 %v559
    %v3140 = vunpack.c.l.b16 %v560
    %v3141 = vunpack.c.h.b16 %v560
    %v3142 = vunpack.c.l.b16 %v561
    %v3143 = vunpack.c.h.b16 %v561
    %v3144 = vunpack.c.l.b16 %v562
    %v3145 = vunpack.c.h.b16 %v562
    %v3146 = vunpack.c.l.b16 %v563
    %v3147 = vunpack.c.h.b16 %v563
    %v3148 = vunpack.c.l.b16 %v564
    %v3149 = vunpack.c.h.b16 %v564
    %v3150 = vunpack.c.l.b16 %v565
    %v3151 = vunpack.c.h.b16 %v565
    %v3152 = vunpack.c.l.b16 %v566
    %v3153 = vunpack.c.h.b16 %v566
    %v3154 = vunpack.c.l.b16 %v567
    %v3155 = vunpack.c.h.b16 %v567
    %v3156 = vunpack.c.l.b16 %v568
    %v3157 = vunpack.c.h.b16 %v568
    %v3158 = vunpack.c.l.b16 %v569
    %v3159 = vunpack.c.h.b16 %v569
    %v3160 = vunpack.c.l.b16 %v570
    %v3161 = vunpack.c.h.b16 %v570
    %v3162 = vunpack.c.l.b16 %v571
    %v3163 = vunpack.c.h.b16 %v571
    %v3164 = vunpack.c.l.b16 %v572
    %v3165 = vunpack.c.h.b16 %v572
    %v3166 = vunpack.c.l.b16 %v573
    %v3167 = vunpack.c.h.b16 %v573
    %v3168 = vunpack.c.l.b16 %v574
    %v3169 = vunpack.c.h.b16 %v574
    %v3170 = vunpack.c.l.b16 %v575
    %v3171 = vunpack.c.h.b16 %v575
    %v3172 = vunpack.c.l.b16 %v576
    %v3173 = vunpack.c.h.b16 %v576
    %v3174 = vunpack.c.l.b16 %v577
    %v3175 = vunpack.c.h.b16 %v577
    %v3176 = vunpack.c.l.b16 %v578
    %v3177 = vunpack.c.h.b16 %v578
    %v3178 = vunpack.c.l.b16 %v579
    %v3179 = vunpack.c.h.b16 %v579
    %v3180 = vunpack.c.l.b16 %v580
    %v3181 = vunpack.c.h.b16 %v580
    %v3182 = vunpack.c.l.b16 %v581
    %v3183 = vunpack.c.h.b16 %v581
    %v3184 = vunpack.c.l.b16 %v582
    %v3185 = vunpack.c.h.b16 %v582
    %v3186 = vunpack.c.l.b16 %v583
    %v3187 = vunpack.c.h.b16 %v583
    %v3188 = vunpack.c.l.b16 %v584
    %v3189 = vunpack.c.h.b16 %v584
    %v3190 = vunpack.c.l.b16 %v585
    %v3191 = vunpack.c.h.b16 %v585
    %v3192 = vunpack.c.l.b16 %v586
    %v3193 = vunpack.c.h.b16 %v586
    %v3194 = vunpack.c.l.b16 %v587
    %v3195 = vunpack.c.h.b16 %v587
    %v3196 = vunpack.c.l.b16 %v588
    %v3197 = vunpack.c.h.b16 %v588
    %v3198 = vunpack.c.l.b16 %v589
    %v3199 = vunpack.c.h.b16 %v589
    %v3200 = vunpack.c.l.b16 %v590
    %v3201 = vunpack.c.h.b16 %v590
    %v3202 = vunpack.c.l.b16 %v591
    %v3203 = vunpack.c.h.b16 %v591
    %v3204 = vunpack.c.l.b16 %v592
    %v3205 = vunpack.c.h.b16 %v592
    %v3206 = vunpack.c.l.b16 %v593
    %v3207 = vunpack.c.h.b16 %v593
    %v3208 = vunpack.c.l.b16 %v594
    %v3209 = vunpack.c.h.b16 %v594
    %v3210 = vunpack.c.l.b16 %v595
    %v3211 = vunpack.c.h.b16 %v595
    %v3212 = vunpack.c.l.b16 %v596
    %v3213 = vunpack.c.h.b16 %v596
    %v3214 = vunpack.c.l.b16 %v597
    %v3215 = vunpack.c.h.b16 %v597
    %v3216 = vunpack.c.l.b16 %v598
    %v3217 = vunpack.c.h.b16 %v598
    %v3218 = vunpack.c.l.b16 %v599
    %v3219 = vunpack.c.h.b16 %v599
    %v3220 = vunpack.c.l.b16 %v600
    %v3221 = vunpack.c.h.b16 %v600
    %v3222 = vunpack.c.l.b16 %v601
    %v3223 = vunpack.c.h.b16 %v601
    %v3224 = vunpack.c.l.b16 %v602
    %v3225 = vunpack.c.h.b16 %v602
    %v3226 = vunpack.c.l.b16 %v603
    %v3227 = vunpack.c.h.b16 %v603
    %v3228 = vunpack.c.l.b16 %v604
    %v3229 = vunpack.c.h.b16 %v604
    %v3230 = vunpack.c.l.b16 %v605
    %v3231 = vunpack.c.h.b16 %v605
    %v3232 = vunpack.c.l.b16 %v606
    %v3233 = vunpack.c.h.b16 %v606
    %v3234 = vunpack.c.l.b16 %v607
    %v3235 = vunpack.c.h.b16 %v607
    %v3236 = vunpack.c.l.b16 %v608
    %v3237 = vunpack.c.h.b16 %v608
    %v3238 = vunpack.c.l.b16 %v609
    %v3239 = vunpack.c.h.b16 %v609
    %v3240 = vunpack.c.l.b16 %v610
    %v3241 = vunpack.c.h.b16 %v610
    %v3242 = vunpack.c.l.b16 %v611
    %v3243 = vunpack.c.h.b16 %v611
    %v3244 = vunpack.c.l.b16 %v612
    %v3245 = vunpack.c.h.b16 %v612
    %v3246 = vunpack.c.l.b16 %v613
    %v3247 = vunpack.c.h.b16 %v613
    %v3248 = vunpack.c.l.b16 %v614
    %v3249 = vunpack.c.h.b16 %v614
    %v3250 = vunpack.c.l.b16 %v615
    %v3251 = vunpack.c.h.b16 %v615
    %v3252 = vunpack.c.l.b16 %v616
    %v3253 = vunpack.c.h.b16 %v616
    %v3254 = vunpack.c.l.b16 %v617
    %v3255 = vunpack.c.h.b16 %v617
    %v3256 = vunpack.c.l.b16 %v618
    %v3257 = vunpack.c.h.b16 %v618
    %v3258 = vunpack.c.l.b16 %v619
    %v3259 = vunpack.c.h.b16 %v619
    %v3260 = vunpack.c.l.b16 %v620
    %v3261 = vunpack.c.h.b16 %v620
    %v3262 = vunpack.c.l.b16 %v621
    %v3263 = vunpack.c.h.b16 %v621
    %v3264 = vunpack.c.l.b16 %v622
    %v3265 = vunpack.c.h.b16 %v622
    %v3266 = vunpack.c.l.b16 %v623
    %v3267 = vunpack.c.h.b16 %v623
    %v3268 = vunpack.c.l.b16 %v624
    %v3269 = vunpack.c.h.b16 %v624
    %v3270 = vunpack.c.l.b16 %v625
    %v3271 = vunpack.c.h.b16 %v625
    %v3272 = vunpack.c.l.b16 %v626
    %v3273 = vunpack.c.h.b16 %v626
    %v3274 = vunpack.c.l.b16 %v627
    %v3275 = vunpack.c.h.b16 %v627
    %v3276 = vunpack.c.l.b16 %v628
    %v3277 = vunpack.c.h.b16 %v628
    %v3278 = vunpack.c.l.b16 %v629
    %v3279 = vunpack.c.h.b16 %v629
    %v3280 = vunpack.c.l.b16 %v630
    %v3281 = vunpack.c.h.b16 %v630
    %v3282 = vunpack.c.l.b16 %v631
    %v3283 = vunpack.c.h.b16 %v631
    %v3284 = vunpack.c.l.b16 %v632
    %v3285 = vunpack.c.h.b16 %v632
    %v3286 = vunpack.c.l.b16 %v633
    %v3287 = vunpack.c.h.b16 %v633
    %v3288 = vunpack.c.l.b16 %v634
    %v3289 = vunpack.c.h.b16 %v634
    %v3290 = vunpack.c.l.b16 %v635
    %v3291 = vunpack.c.h.b16 %v635
    %v3292 = vunpack.c.l.b16 %v636
    %v3293 = vunpack.c.h.b16 %v636
    %v3294 = vunpack.c.l.b16 %v637
    %v3295 = vunpack.c.h.b16 %v637
    %v3296 = vunpack.c.l.b16 %v638
    %v3297 = vunpack.c.h.b16 %v638
    %v3298 = vunpack.c.l.b16 %v639
    %v3299 = vunpack.c.h.b16 %v639
    %v3300 = vunpack.c.l.b16 %v640
    %v3301 = vunpack.c.h.b16 %v640
    %v3302 = vunpack.c.l.b16 %v641
    %v3303 = vunpack.c.h.b16 %v641
    %v3304 = vunpack.c.l.b16 %v642
    %v3305 = vunpack.c.h.b16 %v642
    %v3306 = vunpack.c.l.b16 %v643
    %v3307 = vunpack.c.h.b16 %v643
    %v3308 = vunpack.c.l.b16 %v644
    %v3309 = vunpack.c.h.b16 %v644
    %v3310 = vunpack.c.l.b16 %v645
    %v3311 = vunpack.c.h.b16 %v645
    %v3312 = vunpack.c.l.b16 %v646
    %v3313 = vunpack.c.h.b16 %v646
    %v3314 = vunpack.c.l.b16 %v647
    %v3315 = vunpack.c.h.b16 %v647
    %v3316 = vunpack.c.l.b16 %v648
    %v3317 = vunpack.c.h.b16 %v648
    %v3318 = vunpack.c.l.b16 %v649
    %v3319 = vunpack.c.h.b16 %v649
    %v3320 = vunpack.c.l.b16 %v650
    %v3321 = vunpack.c.h.b16 %v650
    %v3322 = vunpack.c.l.b16 %v651
    %v3323 = vunpack.c.h.b16 %v651
    %v3324 = vunpack.c.l.b16 %v652
    %v3325 = vunpack.c.h.b16 %v652
    %v3326 = vunpack.c.l.b16 %v653
    %v3327 = vunpack.c.h.b16 %v653
    %v3328 = vunpack.c.l.b16 %v654
    %v3329 = vunpack.c.h.b16 %v654
    %v3330 = vunpack.c.l.b16 %v655
    %v3331 = vunpack.c.h.b16 %v655
    %v3332 = vunpack.c.l.b16 %v656
    %v3333 = vunpack.c.h.b16 %v656
    %v3334 = vunpack.c.l.b16 %v657
    %v3335 = vunpack.c.h.b16 %v657
    %v3336 = vunpack.c.l.b16 %v658
    %v3337 = vunpack.c.h.b16 %v658
    %v3338 = vunpack.c.l.b16 %v659
    %v3339 = vunpack.c.h.b16 %v659
    %v3340 = vunpack.c.l.b16 %v660
    %v3341 = vunpack.c.h.b16 %v660
    %v3342 = vunpack.c.l.b16 %v661
    %v3343 = vunpack.c.h.b16 %v661
    %v3344 = vunpack.c.l.b16 %v662
    %v3345 = vunpack.c.h.b16 %v662
    %v3346 = vunpack.c.l.b16 %v663
    %v3347 = vunpack.c.h.b16 %v663
    %v3348 = vunpack.c.l.b16 %v664
    %v3349 = vunpack.c.h.b16 %v664
    %v3350 = vunpack.c.l.b16 %v665
    %v3351 = vunpack.c.h.b16 %v665
    %v3352 = vunpack.c.l.b16 %v666
    %v3353 = vunpack.c.h.b16 %v666
    %v3354 = vunpack.c.l.b16 %v667
    %v3355 = vunpack.c.h.b16 %v667
    %v3356 = vunpack.c.l.b16 %v668
    %v3357 = vunpack.c.h.b16 %v668
    %v3358 = vunpack.c.l.b16 %v669
    %v3359 = vunpack.c.h.b16 %v669
    %v3360 = vunpack.c.l.b16 %v670
    %v3361 = vunpack.c.h.b16 %v670
    %v3362 = vunpack.c.l.b16 %v671
    %v3363 = vunpack.c.h.b16 %v671
    %v3364 = vunpack.c.l.b16 %v672
    %v3365 = vunpack.c.h.b16 %v672
    %v3366 = vunpack.c.l.b16 %v673
    %v3367 = vunpack.c.h.b16 %v673
    %v3368 = vunpack.c.l.b16 %v674
    %v3369 = vunpack.c.h.b16 %v674
    %v3370 = vunpack.c.l.b16 %v675
    %v3371 = vunpack.c.h.b16 %v675
    %v3372 = vunpack.c.l.b16 %v676
    %v3373 = vunpack.c.h.b16 %v676
    %v3374 = vunpack.c.l.b16 %v677
    %v3375 = vunpack.c.h.b16 %v677
    %v3376 = vunpack.c.l.b16 %v678
    %v3377 = vunpack.c.h.b16 %v678
    %v3378 = vunpack.c.l.b16 %v679
    %v3379 = vunpack.c.h.b16 %v679
    %v3380 = vunpack.c.l.b16 %v680
    %v3381 = vunpack.c.h.b16 %v680
    %v3382 = vunpack.c.l.b16 %v681
    %v3383 = vunpack.c.h.b16 %v681
    %v3384 = vunpack.c.l.b16 %v682
    %v3385 = vunpack.c.h.b16 %v682
    %v3386 = vunpack.c.l.b16 %v683
    %v3387 = vunpack.c.h.b16 %v683
    %v3388 = vunpack.c.l.b16 %v684
    %v3389 = vunpack.c.h.b16 %v684
    %v3390 = vunpack.c.l.b16 %v685
    %v3391 = vunpack.c.h.b16 %v685
    %v3392 = vunpack.c.l.b16 %v686
    %v3393 = vunpack.c.h.b16 %v686
    %v3394 = vunpack.c.l.b16 %v687
    %v3395 = vunpack.c.h.b16 %v687
    %v3396 = vunpack.c.l.b16 %v688
    %v3397 = vunpack.c.h.b16 %v688
    %v3398 = vunpack.c.l.b16 %v689
    %v3399 = vunpack.c.h.b16 %v689
    %v3400 = vunpack.c.l.b16 %v690
    %v3401 = vunpack.c.h.b16 %v690
    %v3402 = vunpack.c.l.b16 %v691
    %v3403 = vunpack.c.h.b16 %v691
    %v3404 = vunpack.c.l.b16 %v692
    %v3405 = vunpack.c.h.b16 %v692
    %v3406 = vunpack.c.l.b16 %v693
    %v3407 = vunpack.c.h.b16 %v693
    %v3408 = vunpack.c.l.b16 %v694
    %v3409 = vunpack.c.h.b16 %v694
    %v3410 = vunpack.c.l.b16 %v695
    %v3411 = vunpack.c.h.b16 %v695
    %v3412 = vunpack.c.l.b16 %v696
    %v3413 = vunpack.c.h.b16 %v696
    %v3414 = vunpack.c.l.b16 %v697
    %v3415 = vunpack.c.h.b16 %v697
    %v3416 = vunpack.c.l.b16 %v698
    %v3417 = vunpack.c.h.b16 %v698
    %v3418 = vunpack.c.l.b16 %v699
    %v3419 = vunpack.c.h.b16 %v699
    %v3420 = vunpack.c.l.b16 %v700
    %v3421 = vunpack.c.h.b16 %v700
    %v3422 = vunpack.c.l.b16 %v701
    %v3423 = vunpack.c.h.b16 %v701
    %v3424 = vunpack.c.l.b16 %v702
    %v3425 = vunpack.c.h.b16 %v702
    %v3426 = vunpack.c.l.b16 %v703
    %v3427 = vunpack.c.h.b16 %v703
    %v3428 = vunpack.c.l.b16 %v704
    %v3429 = vunpack.c.h.b16 %v704
    %v3430 = vunpack.c.l.b16 %v705
    %v3431 = vunpack.c.h.b16 %v705
    %v3432 = vunpack.c.l.b16 %v706
    %v3433 = vunpack.c.h.b16 %v706
    %v3434 = vunpack.c.l.b16 %v707
    %v3435 = vunpack.c.h.b16 %v707
    %v3436 = vunpack.c.l.b16 %v708
    %v3437 = vunpack.c.h.b16 %v708
    %v3438 = vunpack.c.l.b16 %v709
    %v3439 = vunpack.c.h.b16 %v709
    %v3440 = vunpack.c.l.b16 %v710
    %v3441 = vunpack.c.h.b16 %v710
    %v3442 = vunpack.c.l.b16 %v711
    %v3443 = vunpack.c.h.b16 %v711
    %v3444 = vunpack.c.l.b16 %v712
    %v3445 = vunpack.c.h.b16 %v712
    %v3446 = vunpack.c.l.b16 %v713
    %v3447 = vunpack.c.h.b16 %v713
    %v3448 = vunpack.c.l.b16 %v714
    %v3449 = vunpack.c.h.b16 %v714
    %v3450 = vunpack.c.l.b16 %v715
    %v3451 = vunpack.c.h.b16 %v715
    %v3452 = vunpack.c.l.b16 %v716
    %v3453 = vunpack.c.h.b16 %v716
    %v3454 = vunpack.c.l.b16 %v717
    %v3455 = vunpack.c.h.b16 %v717
    %v3456 = vunpack.c.l.b16 %v718
    %v3457 = vunpack.c.h.b16 %v718
    %v3458 = vunpack.c.l.b16 %v719
    %v3459 = vunpack.c.h.b16 %v719
    %v3460 = vunpack.c.l.b16 %v720
    %v3461 = vunpack.c.h.b16 %v720
    %v3462 = vunpack.c.l.b16 %v721
    %v3463 = vunpack.c.h.b16 %v721
    %v3464 = vunpack.c.l.b16 %v722
    %v3465 = vunpack.c.h.b16 %v722
    %v3466 = vunpack.c.l.b16 %v723
    %v3467 = vunpack.c.h.b16 %v723
    %v3468 = vunpack.c.l.b16 %v724
    %v3469 = vunpack.c.h.b16 %v724
    %v3470 = vunpack.c.l.b16 %v725
    %v3471 = vunpack.c.h.b16 %v725
    %v3472 = vunpack.c.l.b16 %v726
    %v3473 = vunpack.c.h.b16 %v726
    %v3474 = vunpack.c.l.b16 %v727
    %v3475 = vunpack.c.h.b16 %v727
    %v3476 = vunpack.c.l.b16 %v728
    %v3477 = vunpack.c.h.b16 %v728
    %v3478 = vunpack.c.l.b16 %v729
    %v3479 = vunpack.c.h.b16 %v729
    %v3480 = vunpack.c.l.b16 %v730
    %v3481 = vunpack.c.h.b16 %v730
    %v3482 = vunpack.c.l.b16 %v731
    %v3483 = vunpack.c.h.b16 %v731
    %v3484 = vunpack.c.l.b16 %v732
    %v3485 = vunpack.c.h.b16 %v732
    %v3486 = vunpack.c.l.b16 %v733
    %v3487 = vunpack.c.h.b16 %v733
    %v3488 = vunpack.c.l.b16 %v734
    %v3489 = vunpack.c.h.b16 %v734
    %v3490 = vunpack.c.l.b16 %v735
    %v3491 = vunpack.c.h.b16 %v735
    %v3492 = vunpack.c.l.b16 %v736
    %v3493 = vunpack.c.h.b16 %v736
    %v3494 = vunpack.c.l.b16 %v737
    %v3495 = vunpack.c.h.b16 %v737
    %v3496 = vunpack.c.l.b16 %v738
    %v3497 = vunpack.c.h.b16 %v738
    %v3498 = vunpack.c.l.b16 %v739
    %v3499 = vunpack.c.h.b16 %v739
    %v3500 = vunpack.c.l.b16 %v740
    %v3501 = vunpack.c.h.b16 %v740
    %v3502 = vunpack.c.l.b16 %v741
    %v3503 = vunpack.c.h.b16 %v741
    %v3504 = vunpack.c.l.b16 %v742
    %v3505 = vunpack.c.h.b16 %v742
    %v3506 = vunpack.c.l.b16 %v743
    %v3507 = vunpack.c.h.b16 %v743
    %v3508 = vunpack.c.l.b16 %v744
    %v3509 = vunpack.c.h.b16 %v744
    %v3510 = vunpack.c.l.b16 %v745
    %v3511 = vunpack.c.h.b16 %v745
    %v3512 = vunpack.c.l.b16 %v746
    %v3513 = vunpack.c.h.b16 %v746
    %v3514 = vunpack.c.l.b16 %v747
    %v3515 = vunpack.c.h.b16 %v747
    %v3516 = vunpack.c.l.b16 %v748
    %v3517 = vunpack.c.h.b16 %v748
    %v3518 = vunpack.c.l.b16 %v749
    %v3519 = vunpack.c.h.b16 %v749
    %v3520 = vunpack.c.l.b16 %v750
    %v3521 = vunpack.c.h.b16 %v750
    %v3522 = vunpack.c.l.b16 %v751
    %v3523 = vunpack.c.h.b16 %v751
    %v3524 = vunpack.c.l.b16 %v752
    %v3525 = vunpack.c.h.b16 %v752
    %v3526 = vunpack.c.l.b16 %v753
    %v3527 = vunpack.c.h.b16 %v753
    %v3528 = vunpack.c.l.b16 %v754
    %v3529 = vunpack.c.h.b16 %v754
    %v3530 = vunpack.c.l.b16 %v755
    %v3531 = vunpack.c.h.b16 %v755
    %v3532 = vunpack.c.l.b16 %v756
    %v3533 = vunpack.c.h.b16 %v756
    %v3534 = vunpack.c.l.b16 %v757
    %v3535 = vunpack.c.h.b16 %v757
    %v3536 = vunpack.c.l.b16 %v758
    %v3537 = vunpack.c.h.b16 %v758
    %v3538 = vunpack.c.l.b16 %v759
    %v3539 = vunpack.c.h.b16 %v759
    %v3540 = vunpack.c.l.b16 %v760
    %v3541 = vunpack.c.h.b16 %v760
    %v3542 = vunpack.c.l.b16 %v761
    %v3543 = vunpack.c.h.b16 %v761
    %v3544 = vunpack.c.l.b16 %v762
    %v3545 = vunpack.c.h.b16 %v762
    %v3546 = vunpack.c.l.b16 %v763
    %v3547 = vunpack.c.h.b16 %v763
    %v3548 = vunpack.c.l.b16 %v764
    %v3549 = vunpack.c.h.b16 %v764
    %v3550 = vunpack.c.l.b16 %v765
    %v3551 = vunpack.c.h.b16 %v765
    %v3552 = vunpack.c.l.b16 %v766
    %v3553 = vunpack.c.h.b16 %v766
    %v3554 = vunpack.c.l.b16 %v767
    %v3555 = vunpack.c.h.b16 %v767
    %v3556 = vunpack.c.l.b16 %v768
    %v3557 = vunpack.c.h.b16 %v768
    %v3558 = vunpack.c.l.b16 %v769
    %v3559 = vunpack.c.h.b16 %v769
    %v3560 = vunpack.c.l.b16 %v770
    %v3561 = vunpack.c.h.b16 %v770
    %v3562 = vunpack.c.l.b16 %v771
    %v3563 = vunpack.c.h.b16 %v771
    %v3564 = vunpack.c.l.b16 %v772
    %v3565 = vunpack.c.h.b16 %v772
    %v3566 = vunpack.c.l.b16 %v773
    %v3567 = vunpack.c.h.b16 %v773
    %v3568 = vunpack.c.l.b16 %v774
    %v3569 = vunpack.c.h.b16 %v774
    %v3570 = vunpack.c.l.b16 %v775
    %v3571 = vunpack.c.h.b16 %v775
    %v3572 = vunpack.c.l.b16 %v776
    %v3573 = vunpack.c.h.b16 %v776
    %v3574 = vunpack.c.l.b16 %v777
    %v3575 = vunpack.c.h.b16 %v777
    %v3576 = vunpack.c.l.b16 %v778
    %v3577 = vunpack.c.h.b16 %v778
    %v3578 = vunpack.c.l.b16 %v779
    %v3579 = vunpack.c.h.b16 %v779
    %v3580 = vunpack.c.l.b16 %v780
    %v3581 = vunpack.c.h.b16 %v780
    %v3582 = vunpack.c.l.b16 %v781
    %v3583 = vunpack.c.h.b16 %v781
    %v3584 = vunpack.c.l.b16 %v782
    %v3585 = vunpack.c.h.b16 %v782
    %v3586 = vunpack.c.l.b16 %v783
    %v3587 = vunpack.c.h.b16 %v783
    %v3588 = vunpack.c.l.b16 %v784
    %v3589 = vunpack.c.h.b16 %v784
    %v3590 = vunpack.c.l.b16 %v785
    %v3591 = vunpack.c.h.b16 %v785
    %v3592 = vunpack.c.l.b16 %v786
    %v3593 = vunpack.c.h.b16 %v786
    %v3594 = vunpack.c.l.b16 %v787
    %v3595 = vunpack.c.h.b16 %v787
    %v3596 = vunpack.c.l.b16 %v788
    %v3597 = vunpack.c.h.b16 %v788
    %v3598 = vunpack.c.l.b16 %v789
    %v3599 = vunpack.c.h.b16 %v789
    %v3600 = vunpack.c.l.b16 %v790
    %v3601 = vunpack.c.h.b16 %v790
    %v3602 = vunpack.c.l.b16 %v791
    %v3603 = vunpack.c.h.b16 %v791
    %v3604 = vunpack.c.l.b16 %v792
    %v3605 = vunpack.c.h.b16 %v792
    %v3606 = vunpack.c.l.b16 %v793
    %v3607 = vunpack.c.h.b16 %v793
    %v3608 = vunpack.c.l.b16 %v794
    %v3609 = vunpack.c.h.b16 %v794
    %v3610 = vunpack.c.l.b16 %v795
    %v3611 = vunpack.c.h.b16 %v795
    %v3612 = vunpack.c.l.b16 %v796
    %v3613 = vunpack.c.h.b16 %v796
    %v3614 = vunpack.c.l.b16 %v797
    %v3615 = vunpack.c.h.b16 %v797
    %v3616 = vunpack.c.l.b16 %v798
    %v3617 = vunpack.c.h.b16 %v798
    %v3618 = vunpack.c.l.b16 %v799
    %v3619 = vunpack.c.h.b16 %v799
    %v3620 = vunpack.c.l.b16 %v800
    %v3621 = vunpack.c.h.b16 %v800
    %v3622 = vunpack.c.l.b16 %v801
    %v3623 = vunpack.c.h.b16 %v801
    %v3624 = vunpack.c.l.b16 %v802
    %v3625 = vunpack.c.h.b16 %v802
    %v3626 = vunpack.c.l.b16 %v803
    %v3627 = vunpack.c.h.b16 %v803
    %v3628 = vunpack.c.l.b16 %v804
    %v3629 = vunpack.c.h.b16 %v804
    %v3630 = vunpack.c.l.b16 %v805
    %v3631 = vunpack.c.h.b16 %v805
    %v3632 = vunpack.c.l.b16 %v806
    %v3633 = vunpack.c.h.b16 %v806
    %v3634 = vunpack.c.l.b16 %v807
    %v3635 = vunpack.c.h.b16 %v807
    %v3636 = vunpack.c.l.b16 %v808
    %v3637 = vunpack.c.h.b16 %v808
    %v3638 = vunpack.c.l.b16 %v809
    %v3639 = vunpack.c.h.b16 %v809
    %v3640 = vunpack.c.l.b16 %v810
    %v3641 = vunpack.c.h.b16 %v810
    %v3642 = vunpack.c.l.b16 %v811
    %v3643 = vunpack.c.h.b16 %v811
    %v3644 = vunpack.c.l.b16 %v812
    %v3645 = vunpack.c.h.b16 %v812
    %v3646 = vunpack.c.l.b16 %v813
    %v3647 = vunpack.c.h.b16 %v813
    %v3648 = vunpack.c.l.b16 %v814
    %v3649 = vunpack.c.h.b16 %v814
    %v3650 = vunpack.c.l.b16 %v815
    %v3651 = vunpack.c.h.b16 %v815
    %v3652 = vunpack.c.l.b16 %v816
    %v3653 = vunpack.c.h.b16 %v816
    %v3654 = vunpack.c.l.b16 %v817
    %v3655 = vunpack.c.h.b16 %v817
    %v3656 = vunpack.c.l.b16 %v818
    %v3657 = vunpack.c.h.b16 %v818
    %v3658 = vunpack.c.l.b16 %v819
    %v3659 = vunpack.c.h.b16 %v819
    %v3660 = vunpack.c.l.b16 %v820
    %v3661 = vunpack.c.h.b16 %v820
    %v3662 = vunpack.c.l.b16 %v821
    %v3663 = vunpack.c.h.b16 %v821
    %v3664 = vunpack.c.l.b16 %v822
    %v3665 = vunpack.c.h.b16 %v822
    %v3666 = vunpack.c.l.b16 %v823
    %v3667 = vunpack.c.h.b16 %v823
    %v3668 = vunpack.c.l.b16 %v824
    %v3669 = vunpack.c.h.b16 %v824
    %v3670 = vunpack.c.l.b16 %v825
    %v3671 = vunpack.c.h.b16 %v825
    %v3672 = vunpack.c.l.b16 %v826
    %v3673 = vunpack.c.h.b16 %v826
    %v3674 = vunpack.c.l.b16 %v827
    %v3675 = vunpack.c.h.b16 %v827
    %v3676 = vunpack.c.l.b16 %v828
    %v3677 = vunpack.c.h.b16 %v828
    %v3678 = vunpack.c.l.b16 %v829
    %v3679 = vunpack.c.h.b16 %v829
    %v3680 = vunpack.c.l.b16 %v830
    %v3681 = vunpack.c.h.b16 %v830
    %v3682 = vunpack.c.l.b16 %v831
    %v3683 = vunpack.c.h.b16 %v831
    %v3684 = vunpack.c.l.b16 %v832
    %v3685 = vunpack.c.h.b16 %v832
    %v3686 = vunpack.c.l.b16 %v833
    %v3687 = vunpack.c.h.b16 %v833
    %v3688 = vunpack.c.l.b16 %v834
    %v3689 = vunpack.c.h.b16 %v834
    %v3690 = vunpack.c.l.b16 %v835
    %v3691 = vunpack.c.h.b16 %v835
    %v3692 = vunpack.c.l.b16 %v836
    %v3693 = vunpack.c.h.b16 %v836
    %v3694 = vunpack.c.l.b16 %v837
    %v3695 = vunpack.c.h.b16 %v837
    %v3696 = vunpack.c.l.b16 %v838
    %v3697 = vunpack.c.h.b16 %v838
    %v3698 = vunpack.c.l.b16 %v839
    %v3699 = vunpack.c.h.b16 %v839
    %v3700 = vunpack.c.l.b16 %v840
    %v3701 = vunpack.c.h.b16 %v840
    %v3702 = vunpack.c.l.b16 %v841
    %v3703 = vunpack.c.h.b16 %v841
    %v3704 = vunpack.c.l.b16 %v842
    %v3705 = vunpack.c.h.b16 %v842
    %v3706 = vunpack.c.l.b16 %v843
    %v3707 = vunpack.c.h.b16 %v843
    %v3708 = vunpack.c.l.b16 %v844
    %v3709 = vunpack.c.h.b16 %v844
    %v3710 = vunpack.c.l.b16 %v845
    %v3711 = vunpack.c.h.b16 %v845
    %v3712 = vunpack.c.l.b16 %v846
    %v3713 = vunpack.c.h.b16 %v846
    %v3714 = vunpack.c.l.b16 %v847
    %v3715 = vunpack.c.h.b16 %v847
    %v3716 = vunpack.c.l.b16 %v848
    %v3717 = vunpack.c.h.b16 %v848
    %v3718 = vunpack.c.l.b16 %v849
    %v3719 = vunpack.c.h.b16 %v849
    %v3720 = vunpack.c.l.b16 %v850
    %v3721 = vunpack.c.h.b16 %v850
    %v3722 = vunpack.c.l.b16 %v851
    %v3723 = vunpack.c.h.b16 %v851
    %v3724 = vunpack.c.l.b16 %v852
    %v3725 = vunpack.c.h.b16 %v852
    %v3726 = vunpack.c.l.b16 %v853
    %v3727 = vunpack.c.h.b16 %v853
    %v3728 = vunpack.c.l.b16 %v854
    %v3729 = vunpack.c.h.b16 %v854
    %v3730 = vunpack.c.l.b16 %v855
    %v3731 = vunpack.c.h.b16 %v855
    %v3732 = vunpack.c.l.b16 %v856
    %v3733 = vunpack.c.h.b16 %v856
    %v3734 = vunpack.c.l.b16 %v857
    %v3735 = vunpack.c.h.b16 %v857
    %v3736 = vunpack.c.l.b16 %v858
    %v3737 = vunpack.c.h.b16 %v858
    %v3738 = vunpack.c.l.b16 %v859
    %v3739 = vunpack.c.h.b16 %v859
    %v3740 = vunpack.c.l.b16 %v860
    %v3741 = vunpack.c.h.b16 %v860
    %v3742 = vunpack.c.l.b16 %v861
    %v3743 = vunpack.c.h.b16 %v861
    %v3744 = vunpack.c.l.b16 %v862
    %v3745 = vunpack.c.h.b16 %v862
    %v3746 = vunpack.c.l.b16 %v863
    %v3747 = vunpack.c.h.b16 %v863
    %v3748 = vunpack.c.l.b16 %v864
    %v3749 = vunpack.c.h.b16 %v864
    %v3750 = vunpack.c.l.b16 %v865
    %v3751 = vunpack.c.h.b16 %v865
    %v3752 = vunpack.c.l.b16 %v866
    %v3753 = vunpack.c.h.b16 %v866
    %v3754 = vunpack.c.l.b16 %v867
    %v3755 = vunpack.c.h.b16 %v867
    %v3756 = vunpack.c.l.b16 %v868
    %v3757 = vunpack.c.h.b16 %v868
    %v3758 = vunpack.c.l.b16 %v869
    %v3759 = vunpack.c.h.b16 %v869
    %v3760 = vunpack.c.l.b16 %v870
    %v3761 = vunpack.c.h.b16 %v870
    %v3762 = vunpack.c.l.b16 %v871
    %v3763 = vunpack.c.h.b16 %v871
    %v3764 = vunpack.c.l.b16 %v872
    %v3765 = vunpack.c.h.b16 %v872
    %v3766 = vunpack.c.l.b16 %v873
    %v3767 = vunpack.c.h.b16 %v873
    %v3768 = vunpack.c.l.b16 %v874
    %v3769 = vunpack.c.h.b16 %v874
    %v3770 = vunpack.c.l.b16 %v875
    %v3771 = vunpack.c.h.b16 %v875
    %v3772 = vunpack.c.l.b16 %v876
    %v3773 = vunpack.c.h.b16 %v876
    %v3774 = vunpack.c.l.b16 %v877
    %v3775 = vunpack.c.h.b16 %v877
    %v3776 = vunpack.c.l.b16 %v878
    %v3777 = vunpack.c.h.b16 %v878
    %v3778 = vunpack.c.l.b16 %v879
    %v3779 = vunpack.c.h.b16 %v879
    %v3780 = vunpack.c.l.b16 %v880
    %v3781 = vunpack.c.h.b16 %v880
    %v3782 = vunpack.c.l.b16 %v881
    %v3783 = vunpack.c.h.b16 %v881
    %v3784 = vunpack.c.l.b16 %v882
    %v3785 = vunpack.c.h.b16 %v882
    %v3786 = vunpack.c.l.b16 %v883
    %v3787 = vunpack.c.h.b16 %v883
    %v3788 = vunpack.c.l.b16 %v884
    %v3789 = vunpack.c.h.b16 %v884
    %v3790 = vunpack.c.l.b16 %v885
    %v3791 = vunpack.c.h.b16 %v885
    %v3792 = vunpack.c.l.b16 %v886
    %v3793 = vunpack.c.h.b16 %v886
    %v3794 = vunpack.c.l.b16 %v887
    %v3795 = vunpack.c.h.b16 %v887
    %v3796 = vunpack.c.l.b16 %v888
    %v3797 = vunpack.c.h.b16 %v888
    %v3798 = vunpack.c.l.b16 %v889
    %v3799 = vunpack.c.h.b16 %v889
    %v3800 = vunpack.c.l.b16 %v890
    %v3801 = vunpack.c.h.b16 %v890
    %v3802 = vunpack.c.l.b16 %v891
    %v3803 = vunpack.c.h.b16 %v891
    %v3804 = vunpack.c.l.b16 %v892
    %v3805 = vunpack.c.h.b16 %v892
    %v3806 = vunpack.c.l.b16 %v893
    %v3807 = vunpack.c.h.b16 %v893
    %v3808 = vunpack.c.l.b16 %v894
    %v3809 = vunpack.c.h.b16 %v894
    %v3810 = vunpack.c.l.b16 %v895
    %v3811 = vunpack.c.h.b16 %v895
    %v3812 = vunpack.c.l.b16 %v896
    %v3813 = vunpack.c.h.b16 %v896
    %v3814 = vunpack.c.l.b16 %v897
    %v3815 = vunpack.c.h.b16 %v897
    %v3816 = vunpack.c.l.b16 %v898
    %v3817 = vunpack.c.h.b16 %v898
    %v3818 = vunpack.c.l.b16 %v899
    %v3819 = vunpack.c.h.b16 %v899
    %v3820 = vunpack.c.l.b16 %v900
    %v3821 = vunpack.c.h.b16 %v900
    %v3822 = vunpack.c.l.b16 %v901
    %v3823 = vunpack.c.h.b16 %v901
    %v3824 = vunpack.c.l.b16 %v902
    %v3825 = vunpack.c.h.b16 %v902
    %v3826 = vunpack.c.l.b16 %v903
    %v3827 = vunpack.c.h.b16 %v903
    %v3828 = vunpack.c.l.b16 %v904
    %v3829 = vunpack.c.h.b16 %v904
    %v3830 = vunpack.c.l.b16 %v905
    %v3831 = vunpack.c.h.b16 %v905
    %v3832 = vunpack.c.l.b16 %v906
    %v3833 = vunpack.c.h.b16 %v906
    %v3834 = vunpack.c.l.b16 %v907
    %v3835 = vunpack.c.h.b16 %v907
    %v3836 = vunpack.c.l.b16 %v908
    %v3837 = vunpack.c.h.b16 %v908
    %v3838 = vunpack.c.l.b16 %v909
    %v3839 = vunpack.c.h.b16 %v909
    %v3840 = vunpack.c.l.b16 %v910
    %v3841 = vunpack.c.h.b16 %v910
    %v3842 = vunpack.c.l.b16 %v911
    %v3843 = vunpack.c.h.b16 %v911
    %v3844 = vunpack.c.l.b16 %v912
    %v3845 = vunpack.c.h.b16 %v912
    %v3846 = vunpack.c.l.b16 %v913
    %v3847 = vunpack.c.h.b16 %v913
    %v3848 = vunpack.c.l.b16 %v914
    %v3849 = vunpack.c.h.b16 %v914
    %v3850 = vunpack.c.l.b16 %v915
    %v3851 = vunpack.c.h.b16 %v915
    %v3852 = vunpack.c.l.b16 %v916
    %v3853 = vunpack.c.h.b16 %v916
    %v3854 = vunpack.c.l.b16 %v917
    %v3855 = vunpack.c.h.b16 %v917
    %v3856 = vunpack.c.l.b16 %v918
    %v3857 = vunpack.c.h.b16 %v918
    %v3858 = vunpack.c.l.b16 %v919
    %v3859 = vunpack.c.h.b16 %v919
    %v3860 = vunpack.c.l.b16 %v920
    %v3861 = vunpack.c.h.b16 %v920
    %v3862 = vunpack.c.l.b16 %v921
    %v3863 = vunpack.c.h.b16 %v921
    %v3864 = vunpack.c.l.b16 %v922
    %v3865 = vunpack.c.h.b16 %v922
    %v3866 = vunpack.c.l.b16 %v923
    %v3867 = vunpack.c.h.b16 %v923
    %v3868 = vunpack.c.l.b16 %v924
    %v3869 = vunpack.c.h.b16 %v924
    %v3870 = vunpack.c.l.b16 %v925
    %v3871 = vunpack.c.h.b16 %v925
    %v3872 = vunpack.c.l.b16 %v926
    %v3873 = vunpack.c.h.b16 %v926
    %v3874 = vunpack.c.l.b16 %v927
    %v3875 = vunpack.c.h.b16 %v927
    %v3876 = vunpack.c.l.b16 %v928
    %v3877 = vunpack.c.h.b16 %v928
    %v3878 = vunpack.c.l.b16 %v929
    %v3879 = vunpack.c.h.b16 %v929
    %v3880 = vunpack.c.l.b16 %v930
    %v3881 = vunpack.c.h.b16 %v930
    %v3882 = vunpack.c.l.b16 %v931
    %v3883 = vunpack.c.h.b16 %v931
    %v3884 = vunpack.c.l.b16 %v932
    %v3885 = vunpack.c.h.b16 %v932
    %v3886 = vunpack.c.l.b16 %v933
    %v3887 = vunpack.c.h.b16 %v933
    %v3888 = vunpack.c.l.b16 %v934
    %v3889 = vunpack.c.h.b16 %v934
    %v3890 = vunpack.c.l.b16 %v935
    %v3891 = vunpack.c.h.b16 %v935
    %v3892 = vunpack.c.l.b16 %v936
    %v3893 = vunpack.c.h.b16 %v936
    %v3894 = vunpack.c.l.b16 %v937
    %v3895 = vunpack.c.h.b16 %v937
    %v3896 = vunpack.c.l.b16 %v938
    %v3897 = vunpack.c.h.b16 %v938
    %v3898 = vunpack.c.l.b16 %v939
    %v3899 = vunpack.c.h.b16 %v939
    %v3900 = vunpack.c.l.b16 %v940
    %v3901 = vunpack.c.h.b16 %v940
    %v3902 = vunpack.c.l.b16 %v941
    %v3903 = vunpack.c.h.b16 %v941
    %v3904 = vunpack.c.l.b16 %v942
    %v3905 = vunpack.c.h.b16 %v942
    %v3906 = vunpack.c.l.b16 %v943
    %v3907 = vunpack.c.h.b16 %v943
    %v3908 = vunpack.c.l.b16 %v944
    %v3909 = vunpack.c.h.b16 %v944
    %v3910 = vunpack.c.l.b16 %v945
    %v3911 = vunpack.c.h.b16 %v945
    %v3912 = vunpack.c.l.b16 %v946
    %v3913 = vunpack.c.h.b16 %v946
    %v3914 = vunpack.c.l.b16 %v947
    %v3915 = vunpack.c.h.b16 %v947
    %v3916 = vunpack.c.l.b16 %v948
    %v3917 = vunpack.c.h.b16 %v948
    %v3918 = vunpack.c.l.b16 %v949
    %v3919 = vunpack.c.h.b16 %v949
    %v3920 = vunpack.c.l.b16 %v950
    %v3921 = vunpack.c.h.b16 %v950
    %v3922 = vunpack.c.l.b16 %v951
    %v3923 = vunpack.c.h.b16 %v951
    %v3924 = vunpack.c.l.b16 %v952
    %v3925 = vunpack.c.h.b16 %v952
    %v3926 = vunpack.c.l.b16 %v953
    %v3927 = vunpack.c.h.b16 %v953
    %v3928 = vunpack.c.l.b16 %v954
    %v3929 = vunpack.c.h.b16 %v954
    %v3930 = vunpack.c.l.b16 %v955
    %v3931 = vunpack.c.h.b16 %v955
    %v3932 = vunpack.c.l.b16 %v956
    %v3933 = vunpack.c.h.b16 %v956
    %v3934 = vunpack.c.l.b16 %v957
    %v3935 = vunpack.c.h.b16 %v957
    %v3936 = vunpack.c.l.b16 %v958
    %v3937 = vunpack.c.h.b16 %v958
    %v3938 = vunpack.c.l.b16 %v959
    %v3939 = vunpack.c.h.b16 %v959
    %v3940 = vunpack.c.l.b16 %v960
    %v3941 = vunpack.c.h.b16 %v960
    %v3942 = vunpack.c.l.b16 %v961
    %v3943 = vunpack.c.h.b16 %v961
    %v3944 = vunpack.c.l.b16 %v962
    %v3945 = vunpack.c.h.b16 %v962
    %v3946 = vunpack.c.l.b16 %v963
    %v3947 = vunpack.c.h.b16 %v963
    %v3948 = vunpack.c.l.b16 %v964
    %v3949 = vunpack.c.h.b16 %v964
    %v3950 = vunpack.c.l.b16 %v965
    %v3951 = vunpack.c.h.b16 %v965
    %v3952 = vunpack.c.l.b16 %v966
    %v3953 = vunpack.c.h.b16 %v966
    %v3954 = vunpack.c.l.b16 %v967
    %v3955 = vunpack.c.h.b16 %v967
    %v3956 = vunpack.c.l.b16 %v968
    %v3957 = vunpack.c.h.b16 %v968
    %v3958 = vunpack.c.l.b16 %v969
    %v3959 = vunpack.c.h.b16 %v969
    %v3960 = vunpack.c.l.b16 %v970
    %v3961 = vunpack.c.h.b16 %v970
    %v3962 = vunpack.c.l.b16 %v971
    %v3963 = vunpack.c.h.b16 %v971
    %v3964 = vunpack.c.l.b16 %v972
    %v3965 = vunpack.c.h.b16 %v972
    %v3966 = vunpack.c.l.b16 %v973
    %v3967 = vunpack.c.h.b16 %v973
    %v3968 = vunpack.c.l.b16 %v974
    %v3969 = vunpack.c.h.b16 %v974
    %v3970 = vunpack.c.l.b16 %v975
    %v3971 = vunpack.c.h.b16 %v975
    %v3972 = vunpack.c.l.b16 %v976
    %v3973 = vunpack.c.h.b16 %v976
    %v3974 = vunpack.c.l.b16 %v977
    %v3975 = vunpack.c.h.b16 %v977
    %v3976 = vunpack.c.l.b16 %v978
    %v3977 = vunpack.c.h.b16 %v978
    %v3978 = vunpack.c.l.b16 %v979
    %v3979 = vunpack.c.h.b16 %v979
    %v3980 = vunpack.c.l.b16 %v980
    %v3981 = vunpack.c.h.b16 %v980
    %v3982 = vunpack.c.l.b16 %v981
    %v3983 = vunpack.c.h.b16 %v981
    %v3984 = vunpack.c.l.b16 %v982
    %v3985 = vunpack.c.h.b16 %v982
    %v3986 = vunpack.c.l.b16 %v983
    %v3987 = vunpack.c.h.b16 %v983
    %v3988 = vunpack.c.l.b16 %v984
    %v3989 = vunpack.c.h.b16 %v984
    %v3990 = vunpack.c.l.b16 %v985
    %v3991 = vunpack.c.h.b16 %v985
    %v3992 = vunpack.c.l.b16 %v986
    %v3993 = vunpack.c.h.b16 %v986
    %v3994 = vunpack.c.l.b16 %v987
    %v3995 = vunpack.c.h.b16 %v987
    %v3996 = vunpack.c.l.b16 %v988
    %v3997 = vunpack.c.h.b16 %v988
    %v3998 = vunpack.c.l.b16 %v989
    %v3999 = vunpack.c.h.b16 %v989
    %v4000 = vunpack.c.l.b16 %v990
    %v4001 = vunpack.c.h.b16 %v990
    %v4002 = vunpack.c.l.b16 %v991
    %v4003 = vunpack.c.h.b16 %v991
    %v4004 = vunpack.c.l.b16 %v992
    %v4005 = vunpack.c.h.b16 %v992
    %v4006 = vunpack.c.l.b16 %v993
    %v4007 = vunpack.c.h.b16 %v993
    %v4008 = vunpack.c.l.b16 %v994
    %v4009 = vunpack.c.h.b16 %v994
    %v4010 = vunpack.c.l.b16 %v995
    %v4011 = vunpack.c.h.b16 %v995
    %v4012 = vunpack.c.l.b16 %v996
    %v4013 = vunpack.c.h.b16 %v996
    %v4014 = vunpack.c.l.b16 %v997
    %v4015 = vunpack.c.h.b16 %v997
    %v4016 = vunpack.c.l.b16 %v998
    %v4017 = vunpack.c.h.b16 %v998
    %v4018 = vunpack.c.l.b16 %v999
    %v4019 = vunpack.c.h.b16 %v999
    %v4020 = vunpack.c.l.b16 %v1000
    %v4021 = vunpack.c.h.b16 %v1000
    %v4022 = vunpack.c.l.b16 %v1001
    %v4023 = vunpack.c.h.b16 %v1001
    %v4024 = vunpack.c.l.b16 %v1002
    %v4025 = vunpack.c.h.b16 %v1002
    %v4026 = vunpack.c.l.b16 %v1003
    %v4027 = vunpack.c.h.b16 %v1003
    %v4028 = vunpack.c.l.b16 %v1004
    %v4029 = vunpack.c.h.b16 %v1004
    %v4030 = vunpack.c.l.b16 %v1005
    %v4031 = vunpack.c.h.b16 %v1005
    %v4032 = vunpack.c.l.b16 %v1006
    %v4033 = vunpack.c.h.b16 %v1006
    %v4034 = vunpack.c.l.b16 %v1007
    %v4035 = vunpack.c.h.b16 %v1007
    %v4036 = vunpack.c.l.b16 %v1008
    %v4037 = vunpack.c.h.b16 %v1008
    %v4038 = vunpack.c.l.b16 %v1009
    %v4039 = vunpack.c.h.b16 %v1009
    %v4040 = vunpack.c.l.b16 %v1010
    %v4041 = vunpack.c.h.b16 %v1010
    %v4042 = vunpack.c.l.b16 %v1011
    %v4043 = vunpack.c.h.b16 %v1011
    %v4044 = vunpack.c.l.b16 %v1012
    %v4045 = vunpack.c.h.b16 %v1012
    %v4046 = vunpack.c.l.b16 %v1013
    %v4047 = vunpack.c.h.b16 %v1013
    %v4048 = vunpack.c.l.b16 %v1014
    %v4049 = vunpack.c.h.b16 %v1014
    %v4050 = vunpack.c.l.b16 %v1015
    %v4051 = vunpack.c.h.b16 %v1015
    %v4052 = vunpack.c.l.b16 %v1016
    %v4053 = vunpack.c.h.b16 %v1016
    %v4054 = vunpack.c.l.b16 %v1017
    %v4055 = vunpack.c.h.b16 %v1017
    %v4056 = vunpack.c.l.b16 %v1018
    %v4057 = vunpack.c.h.b16 %v1018
    %v4058 = vunpack.c.l.b16 %v1019
    %v4059 = vunpack.c.h.b16 %v1019
    %v4060 = vunpack.c.l.b16 %v1020
    %v4061 = vunpack.c.h.b16 %v1020
    %v4062 = vunpack.c.l.b16 %v1021
    %v4063 = vunpack.c.h.b16 %v1021
    %v4064 = vunpack.c.l.b16 %v1022
    %v4065 = vunpack.c.h.b16 %v1022
    %v4066 = vunpack.c.l.b16 %v1023
    %v4067 = vunpack.c.h.b16 %v1023
    %v4068 = vunpack.c.l.b16 %v1024
    %v4069 = vunpack.c.h.b16 %v1024
    %v4070 = vunpack.c.l.b16 %v1025
    %v4071 = vunpack.c.h.b16 %v1025
    %v4072 = vunpack.c.l.b16 %v1026
    %v4073 = vunpack.c.h.b16 %v1026
    %v4074 = vunpack.c.l.b16 %v1027
    %v4075 = vunpack.c.h.b16 %v1027
    %v4076 = vunpack.c.l.b16 %v1028
    %v4077 = vunpack.c.h.b16 %v1028
    %v4078 = vunpack.c.l.b16 %v1029
    %v4079 = vunpack.c.h.b16 %v1029
    %v4080 = vunpack.c.l.b16 %v1030
    %v4081 = vunpack.c.h.b16 %v1030
    %v4082 = vunpack.c.l.b16 %v1031
    %v4083 = vunpack.c.h.b16 %v1031
    %v4084 = vunpack.c.l.b16 %v1032
    %v4085 = vunpack.c.h.b16 %v1032
    %v4086 = vunpack.c.l.b16 %v1033
    %v4087 = vunpack.c.h.b16 %v1033
    %v4088 = vunpack.c.l.b16 %v1034
    %v4089 = vunpack.c.h.b16 %v1034
    %v4090 = vunpack.c.l.b16 %v1035
    %v4091 = vunpack.c.h.b16 %v1035
    %v4092 = vunpack.c.l.b16 %v1036
    %v4093 = vunpack.c.h.b16 %v1036
    %v4094 = vunpack.c.l.b16 %v1037
    %v4095 = vunpack.c.h.b16 %v1037
    %v4096 = vunpack.c.l.b16 %v1038
    %v4097 = vunpack.c.h.b16 %v1038
    %v4098 = vunpack.c.l.b16 %v1039
    %v4099 = vunpack.c.h.b16 %v1039
    %v4100 = vunpack.c.l.b16 %v1040
    %v4101 = vunpack.c.h.b16 %v1040
    %v4102 = vunpack.c.l.b16 %v1041
    %v4103 = vunpack.c.h.b16 %v1041
    %v4104 = vunpack.c.l.b16 %v1042
    %v4105 = vunpack.c.h.b16 %v1042
    %v4106 = vunpack.c.l.b16 %v1043
    %v4107 = vunpack.c.h.b16 %v1043
    %v4108 = vunpack.c.l.b16 %v1044
    %v4109 = vunpack.c.h.b16 %v1044
    %v4110 = vunpack.c.l.b16 %v1045
    %v4111 = vunpack.c.h.b16 %v1045
    %v4112 = vunpack.c.l.b16 %v1046
    %v4113 = vunpack.c.h.b16 %v1046
    %v4114 = vunpack.c.l.b16 %v1047
    %v4115 = vunpack.c.h.b16 %v1047
    %v4116 = vunpack.c.l.b16 %v1048
    %v4117 = vunpack.c.h.b16 %v1048
    %v4118 = vunpack.c.l.b16 %v1049
    %v4119 = vunpack.c.h.b16 %v1049
    %v4120 = vunpack.c.l.b16 %v1050
    %v4121 = vunpack.c.h.b16 %v1050
    %v4122 = vunpack.c.l.b16 %v1051
    %v4123 = vunpack.c.h.b16 %v1051
    %v4124 = vunpack.c.l.b16 %v1052
    %v4125 = vunpack.c.h.b16 %v1052
    %v4126 = vunpack.c.l.b16 %v1053
    %v4127 = vunpack.c.h.b16 %v1053
    %v4128 = vunpack.c.l.b16 %v1054
    %v4129 = vunpack.c.h.b16 %v1054
    %v4130 = vunpack.c.l.b16 %v1055
    %v4131 = vunpack.c.h.b16 %v1055
    %v4132 = vunpack.c.l.b16 %v1056
    %v4133 = vunpack.c.h.b16 %v1056
    %v4134 = vunpack.c.l.b16 %v1057
    %v4135 = vunpack.c.h.b16 %v1057
    %v4136 = vunpack.c.l.b16 %v1058
    %v4137 = vunpack.c.h.b16 %v1058
    %v4138 = vunpack.c.l.b16 %v1059
    %v4139 = vunpack.c.h.b16 %v1059
    %v4140 = vunpack.c.l.b16 %v1060
    %v4141 = vunpack.c.h.b16 %v1060
    %v4142 = vunpack.c.l.b16 %v1061
    %v4143 = vunpack.c.h.b16 %v1061
    %v4144 = vunpack.c.l.b16 %v1062
    %v4145 = vunpack.c.h.b16 %v1062
    %v4146 = vunpack.c.l.b16 %v1063
    %v4147 = vunpack.c.h.b16 %v1063
    %v4148 = vunpack.c.l.b16 %v1064
    %v4149 = vunpack.c.h.b16 %v1064
    %v4150 = vunpack.c.l.b16 %v1065
    %v4151 = vunpack.c.h.b16 %v1065
    %v4152 = vunpack.c.l.b16 %v1066
    %v4153 = vunpack.c.h.b16 %v1066
    %v4154 = vunpack.c.l.b16 %v1067
    %v4155 = vunpack.c.h.b16 %v1067
    %v4156 = vunpack.c.l.b16 %v1068
    %v4157 = vunpack.c.h.b16 %v1068
    %v4158 = vunpack.c.l.b16 %v1069
    %v4159 = vunpack.c.h.b16 %v1069
    %v4160 = vunpack.c.l.b16 %v1070
    %v4161 = vunpack.c.h.b16 %v1070
    %v4162 = vunpack.c.l.b16 %v1071
    %v4163 = vunpack.c.h.b16 %v1071
    %v4164 = vunpack.c.l.b16 %v1072
    %v4165 = vunpack.c.h.b16 %v1072
    %v4166 = vunpack.c.l.b16 %v1073
    %v4167 = vunpack.c.h.b16 %v1073
    %v4168 = vunpack.c.l.b16 %v1074
    %v4169 = vunpack.c.h.b16 %v1074
    %v4170 = vunpack.c.l.b16 %v1075
    %v4171 = vunpack.c.h.b16 %v1075
    %v4172 = vunpack.c.l.b16 %v1076
    %v4173 = vunpack.c.h.b16 %v1076
    %v4174 = vunpack.c.l.b16 %v1077
    %v4175 = vunpack.c.h.b16 %v1077
    %v4176 = vunpack.c.l.b16 %v1078
    %v4177 = vunpack.c.h.b16 %v1078
    %v4178 = vunpack.c.l.b16 %v1079
    %v4179 = vunpack.c.h.b16 %v1079
    %v4180 = vunpack.c.l.b16 %v1080
    %v4181 = vunpack.c.h.b16 %v1080
    %v4182 = vunpack.c.l.b16 %v1081
    %v4183 = vunpack.c.h.b16 %v1081
    %v4184 = vunpack.c.l.b16 %v1082
    %v4185 = vunpack.c.h.b16 %v1082
    %v4186 = vunpack.c.l.b16 %v1083
    %v4187 = vunpack.c.h.b16 %v1083
    %v4188 = vunpack.c.l.b16 %v1084
    %v4189 = vunpack.c.h.b16 %v1084
    %v4190 = vunpack.c.l.b16 %v1085
    %v4191 = vunpack.c.h.b16 %v1085
    %v4192 = vunpack.c.l.b16 %v1086
    %v4193 = vunpack.c.h.b16 %v1086
    %v4194 = vunpack.c.l.b16 %v1087
    %v4195 = vunpack.c.h.b16 %v1087
    %v4196 = vunpack.c.l.b16 %v1088
    %v4197 = vunpack.c.h.b16 %v1088
    %v4198 = vunpack.c.l.b16 %v1089
    %v4199 = vunpack.c.h.b16 %v1089
    %v4200 = vunpack.c.l.b16 %v1090
    %v4201 = vunpack.c.h.b16 %v1090
    %v4202 = vunpack.c.l.b16 %v1091
    %v4203 = vunpack.c.h.b16 %v1091
    %v4204 = vunpack.c.l.b16 %v1092
    %v4205 = vunpack.c.h.b16 %v1092
    %v4206 = vunpack.c.l.b16 %v1093
    %v4207 = vunpack.c.h.b16 %v1093
    %v4208 = vunpack.c.l.b16 %v1094
    %v4209 = vunpack.c.h.b16 %v1094
    %v4210 = vunpack.c.l.b16 %v1095
    %v4211 = vunpack.c.h.b16 %v1095
    %v4212 = vunpack.c.l.b16 %v1096
    %v4213 = vunpack.c.h.b16 %v1096
    %v4214 = vunpack.c.l.b16 %v1097
    %v4215 = vunpack.c.h.b16 %v1097
    %v4216 = vunpack.c.l.b16 %v1098
    %v4217 = vunpack.c.h.b16 %v1098
    %v4218 = vunpack.c.l.b16 %v1099
    %v4219 = vunpack.c.h.b16 %v1099
    %v4220 = vunpack.c.l.b16 %v1100
    %v4221 = vunpack.c.h.b16 %v1100
    %v4222 = vunpack.c.l.b16 %v1101
    %v4223 = vunpack.c.h.b16 %v1101
    %v4224 = vunpack.c.l.b16 %v1102
    %v4225 = vunpack.c.h.b16 %v1102
    %v4226 = vunpack.c.l.b16 %v1103
    %v4227 = vunpack.c.h.b16 %v1103
    %v4228 = vunpack.c.l.b16 %v1104
    %v4229 = vunpack.c.h.b16 %v1104
    %v4230 = vunpack.c.l.b16 %v1105
    %v4231 = vunpack.c.h.b16 %v1105
    %v4232 = vunpack.c.l.b16 %v1106
    %v4233 = vunpack.c.h.b16 %v1106
    %v4234 = vunpack.c.l.b16 %v1107
    %v4235 = vunpack.c.h.b16 %v1107
    %v4236 = vunpack.c.l.b16 %v1108
    %v4237 = vunpack.c.h.b16 %v1108
    %v4238 = vunpack.c.l.b16 %v1109
    %v4239 = vunpack.c.h.b16 %v1109
    %v4240 = vunpack.c.l.b16 %v1110
    %v4241 = vunpack.c.h.b16 %v1110
    %v4242 = vunpack.c.l.b16 %v1111
    %v4243 = vunpack.c.h.b16 %v1111
    %v4244 = vunpack.c.l.b16 %v1112
    %v4245 = vunpack.c.h.b16 %v1112
    %v4246 = vunpack.c.l.b16 %v1113
    %v4247 = vunpack.c.h.b16 %v1113
    %v4248 = vunpack.c.l.b16 %v1114
    %v4249 = vunpack.c.h.b16 %v1114
    %v4250 = vunpack.c.l.b16 %v1115
    %v4251 = vunpack.c.h.b16 %v1115
    %v4252 = vunpack.c.l.b16 %v1116
    %v4253 = vunpack.c.h.b16 %v1116
    %v4254 = vunpack.c.l.b16 %v1117
    %v4255 = vunpack.c.h.b16 %v1117
    %v4256 = vunpack.c.l.b16 %v1118
    %v4257 = vunpack.c.h.b16 %v1118
    %v4258 = vunpack.c.l.b16 %v1119
    %v4259 = vunpack.c.h.b16 %v1119
    %v4260 = vunpack.c.l.b16 %v1120
    %v4261 = vunpack.c.h.b16 %v1120
    %v4262 = vunpack.c.l.b16 %v1121
    %v4263 = vunpack.c.h.b16 %v1121
    %v4264 = vunpack.c.l.b16 %v1122
    %v4265 = vunpack.c.h.b16 %v1122
    %v4266 = vunpack.c.l.b16 %v1123
    %v4267 = vunpack.c.h.b16 %v1123
    %v4268 = vunpack.c.l.b16 %v1124
    %v4269 = vunpack.c.h.b16 %v1124
    %v4270 = vunpack.c.l.b16 %v1125
    %v4271 = vunpack.c.h.b16 %v1125
    %v4272 = vunpack.c.l.b16 %v1126
    %v4273 = vunpack.c.h.b16 %v1126
    %v4274 = vunpack.c.l.b16 %v1127
    %v4275 = vunpack.c.h.b16 %v1127
    %v4276 = vunpack.c.l.b16 %v1128
    %v4277 = vunpack.c.h.b16 %v1128
    %v4278 = vunpack.c.l.b16 %v1129
    %v4279 = vunpack.c.h.b16 %v1129
    %v4280 = vunpack.c.l.b16 %v1130
    %v4281 = vunpack.c.h.b16 %v1130
    %v4282 = vunpack.c.l.b16 %v1131
    %v4283 = vunpack.c.h.b16 %v1131
    %v4284 = vunpack.c.l.b16 %v1132
    %v4285 = vunpack.c.h.b16 %v1132
    %v4286 = vunpack.c.l.b16 %v1133
    %v4287 = vunpack.c.h.b16 %v1133
    %v4288 = vunpack.c.l.b16 %v1134
    %v4289 = vunpack.c.h.b16 %v1134
    %v4290 = vunpack.c.l.b16 %v1135
    %v4291 = vunpack.c.h.b16 %v1135
    %v4292 = vunpack.c.l.b16 %v1136
    %v4293 = vunpack.c.h.b16 %v1136
    %v4294 = vunpack.c.l.b16 %v1137
    %v4295 = vunpack.c.h.b16 %v1137
    %v4296 = vunpack.c.l.b16 %v1138
    %v4297 = vunpack.c.h.b16 %v1138
    %v4298 = vunpack.c.l.b16 %v1139
    %v4299 = vunpack.c.h.b16 %v1139
    %v4300 = vunpack.c.l.b16 %v1140
    %v4301 = vunpack.c.h.b16 %v1140
    %v4302 = vunpack.c.l.b16 %v1141
    %v4303 = vunpack.c.h.b16 %v1141
    %v4304 = vunpack.c.l.b16 %v1142
    %v4305 = vunpack.c.h.b16 %v1142
    %v4306 = vunpack.c.l.b16 %v1143
    %v4307 = vunpack.c.h.b16 %v1143
    %v4308 = vunpack.c.l.b16 %v1144
    %v4309 = vunpack.c.h.b16 %v1144
    %v4310 = vunpack.c.l.b16 %v1145
    %v4311 = vunpack.c.h.b16 %v1145
    %v4312 = vunpack.c.l.b16 %v1146
    %v4313 = vunpack.c.h.b16 %v1146
    %v4314 = vunpack.c.l.b16 %v1147
    %v4315 = vunpack.c.h.b16 %v1147
    %v4316 = vunpack.c.l.b16 %v1148
    %v4317 = vunpack.c.h.b16 %v1148
    %v4318 = vunpack.c.l.b16 %v1149
    %v4319 = vunpack.c.h.b16 %v1149
    %v4320 = vunpack.c.l.b16 %v1150
    %v4321 = vunpack.c.h.b16 %v1150
    %v4322 = vunpack.c.l.b16 %v1151
    %v4323 = vunpack.c.h.b16 %v1151
    %v4324 = vunpack.c.l.b16 %v1152
    %v4325 = vunpack.c.h.b16 %v1152
    %v4326 = vunpack.c.l.b16 %v1153
    %v4327 = vunpack.c.h.b16 %v1153
    %v4328 = vunpack.c.l.b16 %v1154
    %v4329 = vunpack.c.h.b16 %v1154
    %v4330 = vunpack.c.l.b16 %v1155
    %v4331 = vunpack.c.h.b16 %v1155
    %v4332 = vunpack.c.l.b16 %v1156
    %v4333 = vunpack.c.h.b16 %v1156
    %v4334 = vunpack.c.l.b16 %v1157
    %v4335 = vunpack.c.h.b16 %v1157
    %v4336 = vunpack.c.l.b16 %v1158
    %v4337 = vunpack.c.h.b16 %v1158
    %v4338 = vunpack.c.l.b16 %v1159
    %v4339 = vunpack.c.h.b16 %v1159
    %v4340 = vunpack.c.l.b16 %v1160
    %v4341 = vunpack.c.h.b16 %v1160
    %v4342 = vunpack.c.l.b16 %v1161
    %v4343 = vunpack.c.h.b16 %v1161
    %v4344 = vunpack.c.l.b16 %v1162
    %v4345 = vunpack.c.h.b16 %v1162
    %v4346 = vunpack.c.l.b16 %v1163
    %v4347 = vunpack.c.h.b16 %v1163
    %v4348 = vunpack.c.l.b16 %v1164
    %v4349 = vunpack.c.h.b16 %v1164
    %v4350 = vunpack.c.l.b16 %v1165
    %v4351 = vunpack.c.h.b16 %v1165
    %v4352 = vunpack.c.l.b16 %v1166
    %v4353 = vunpack.c.h.b16 %v1166
    %v4354 = vunpack.c.l.b16 %v1167
    %v4355 = vunpack.c.h.b16 %v1167
    %v4356 = vunpack.c.l.b16 %v1168
    %v4357 = vunpack.c.h.b16 %v1168
    %v4358 = vunpack.c.l.b16 %v1169
    %v4359 = vunpack.c.h.b16 %v1169
    %v4360 = vunpack.c.l.b16 %v1170
    %v4361 = vunpack.c.h.b16 %v1170
    %v4362 = vunpack.c.l.b16 %v1171
    %v4363 = vunpack.c.h.b16 %v1171
    %v4364 = vunpack.c.l.b16 %v1172
    %v4365 = vunpack.c.h.b16 %v1172
    %v4366 = vunpack.c.l.b16 %v1173
    %v4367 = vunpack.c.h.b16 %v1173
    %v4368 = vunpack.c.l.b16 %v1174
    %v4369 = vunpack.c.h.b16 %v1174
    %v4370 = vunpack.c.l.b16 %v1175
    %v4371 = vunpack.c.h.b16 %v1175
    %v4372 = vunpack.c.l.b16 %v1176
    %v4373 = vunpack.c.h.b16 %v1176
    %v4374 = vunpack.c.l.b16 %v1177
    %v4375 = vunpack.c.h.b16 %v1177
    %v4376 = vunpack.c.l.b16 %v1178
    %v4377 = vunpack.c.h.b16 %v1178
    %v4378 = vunpack.c.l.b16 %v1179
    %v4379 = vunpack.c.h.b16 %v1179
    %v4380 = vunpack.c.l.b16 %v1180
    %v4381 = vunpack.c.h.b16 %v1180
    %v4382 = vunpack.c.l.b16 %v1181
    %v4383 = vunpack.c.h.b16 %v1181
    %v4384 = vunpack.c.l.b16 %v1182
    %v4385 = vunpack.c.h.b16 %v1182
    %v4386 = vunpack.c.l.b16 %v1183
    %v4387 = vunpack.c.h.b16 %v1183
    %v4388 = vunpack.c.l.b16 %v1184
    %v4389 = vunpack.c.h.b16 %v1184
    %v4390 = vunpack.c.l.b16 %v1185
    %v4391 = vunpack.c.h.b16 %v1185
    %v4392 = vunpack.c.l.b16 %v1186
    %v4393 = vunpack.c.h.b16 %v1186
    %v4394 = vunpack.c.l.b16 %v1187
    %v4395 = vunpack.c.h.b16 %v1187
    %v4396 = vunpack.c.l.b16 %v1188
    %v4397 = vunpack.c.h.b16 %v1188
    %v4398 = vunpack.c.l.b16 %v1189
    %v4399 = vunpack.c.h.b16 %v1189
    %v4400 = vunpack.c.l.b16 %v1190
    %v4401 = vunpack.c.h.b16 %v1190
    %v4402 = vunpack.c.l.b16 %v1191
    %v4403 = vunpack.c.h.b16 %v1191
    %v4404 = vunpack.c.l.b16 %v1192
    %v4405 = vunpack.c.h.b16 %v1192
    %v4406 = vunpack.c.l.b16 %v1193
    %v4407 = vunpack.c.h.b16 %v1193
    %v4408 = vunpack.c.l.b16 %v1194
    %v4409 = vunpack.c.h.b16 %v1194
    %v4410 = vunpack.c.l.b16 %v1195
    %v4411 = vunpack.c.h.b16 %v1195
    %v4412 = vunpack.c.l.b16 %v1196
    %v4413 = vunpack.c.h.b16 %v1196
    %v4414 = vunpack.c.l.b16 %v1197
    %v4415 = vunpack.c.h.b16 %v1197
    %v4416 = vunpack.c.l.b16 %v1198
    %v4417 = vunpack.c.h.b16 %v1198
    %v4418 = vunpack.c.l.b16 %v1199
    %v4419 = vunpack.c.h.b16 %v1199
    %v4420 = vunpack.c.l.b16 %v1200
    %v4421 = vunpack.c.h.b16 %v1200
    %v4422 = vunpack.c.l.b16 %v1201
    %v4423 = vunpack.c.h.b16 %v1201
    %v4424 = vunpack.c.l.b16 %v1202
    %v4425 = vunpack.c.h.b16 %v1202
    %v4426 = vunpack.c.l.b16 %v1203
    %v4427 = vunpack.c.h.b16 %v1203
    %v4428 = vunpack.c.l.b16 %v1204
    %v4429 = vunpack.c.h.b16 %v1204
    %v4430 = vunpack.c.l.b16 %v1205
    %v4431 = vunpack.c.h.b16 %v1205
    %v4432 = vunpack.c.l.b16 %v1206
    %v4433 = vunpack.c.h.b16 %v1206
    %v4434 = vunpack.c.l.b16 %v1207
    %v4435 = vunpack.c.h.b16 %v1207
    %v4436 = vunpack.c.l.b16 %v1208
    %v4437 = vunpack.c.h.b16 %v1208
    %v4438 = vunpack.c.l.b16 %v1209
    %v4439 = vunpack.c.h.b16 %v1209
    %v4440 = vunpack.c.l.b16 %v1210
    %v4441 = vunpack.c.h.b16 %v1210
    %v4442 = vunpack.c.l.b16 %v1211
    %v4443 = vunpack.c.h.b16 %v1211
    %v4444 = vunpack.c.l.b16 %v1212
    %v4445 = vunpack.c.h.b16 %v1212
    %v4446 = vunpack.c.l.b16 %v1213
    %v4447 = vunpack.c.h.b16 %v1213
    %v4448 = vunpack.c.l.b16 %v1214
    %v4449 = vunpack.c.h.b16 %v1214
    %v4450 = vunpack.c.l.b16 %v1215
    %v4451 = vunpack.c.h.b16 %v1215
    %v4452 = vunpack.c.l.b16 %v1216
    %v4453 = vunpack.c.h.b16 %v1216
    %v4454 = vunpack.c.l.b16 %v1217
    %v4455 = vunpack.c.h.b16 %v1217
    %v4456 = vunpack.c.l.b16 %v1218
    %v4457 = vunpack.c.h.b16 %v1218
    %v4458 = vunpack.c.l.b16 %v1219
    %v4459 = vunpack.c.h.b16 %v1219
    %v4460 = vunpack.c.l.b16 %v1220
    %v4461 = vunpack.c.h.b16 %v1220
    %v4462 = vunpack.c.l.b16 %v1221
    %v4463 = vunpack.c.h.b16 %v1221
    %v4464 = vunpack.c.l.b16 %v1222
    %v4465 = vunpack.c.h.b16 %v1222
    %v4466 = vunpack.c.l.b16 %v1223
    %v4467 = vunpack.c.h.b16 %v1223
    %v4468 = vunpack.c.l.b16 %v1224
    %v4469 = vunpack.c.h.b16 %v1224
    %v4470 = vunpack.c.l.b16 %v1225
    %v4471 = vunpack.c.h.b16 %v1225
    %v4472 = vunpack.c.l.b16 %v1226
    %v4473 = vunpack.c.h.b16 %v1226
    %v4474 = vunpack.c.l.b16 %v1227
    %v4475 = vunpack.c.h.b16 %v1227
    %v4476 = vunpack.c.l.b16 %v1228
    %v4477 = vunpack.c.h.b16 %v1228
    %v4478 = vunpack.c.l.b16 %v1229
    %v4479 = vunpack.c.h.b16 %v1229
    %v4480 = vunpack.c.l.b16 %v1230
    %v4481 = vunpack.c.h.b16 %v1230
    %v4482 = vunpack.c.l.b16 %v1231
    %v4483 = vunpack.c.h.b16 %v1231
    %v4484 = vunpack.c.l.b16 %v1232
    %v4485 = vunpack.c.h.b16 %v1232
    %v4486 = vunpack.c.l.b16 %v1233
    %v4487 = vunpack.c.h.b16 %v1233
    %v4488 = vunpack.c.l.b16 %v1234
    %v4489 = vunpack.c.h.b16 %v1234
    %v4490 = vunpack.c.l.b16 %v1235
    %v4491 = vunpack.c.h.b16 %v1235
    %v4492 = vunpack.c.l.b16 %v1236
    %v4493 = vunpack.c.h.b16 %v1236
    %v4494 = vunpack.c.l.b16 %v1237
    %v4495 = vunpack.c.h.b16 %v1237
    %v4496 = vunpack.c.l.b16 %v1238
    %v4497 = vunpack.c.h.b16 %v1238
    %v4498 = vunpack.c.l.b16 %v1239
    %v4499 = vunpack.c.h.b16 %v1239
    %v4500 = vunpack.c.l.b16 %v1240
    %v4501 = vunpack.c.h.b16 %v1240
    %v4502 = vunpack.c.l.b16 %v1241
    %v4503 = vunpack.c.h.b16 %v1241
    %v4504 = vunpack.c.l.b16 %v1242
    %v4505 = vunpack.c.h.b16 %v1242
    %v4506 = vunpack.c.l.b16 %v1243
    %v4507 = vunpack.c.h.b16 %v1243
    %v4508 = vunpack.c.l.b16 %v1244
    %v4509 = vunpack.c.h.b16 %v1244
    %v4510 = vunpack.c.l.b16 %v1245
    %v4511 = vunpack.c.h.b16 %v1245
    %v4512 = vunpack.c.l.b16 %v1246
    %v4513 = vunpack.c.h.b16 %v1246
    %v4514 = vunpack.c.l.b16 %v1247
    %v4515 = vunpack.c.h.b16 %v1247
    %v4516 = vunpack.c.l.b16 %v1248
    %v4517 = vunpack.c.h.b16 %v1248
    %v4518 = vunpack.c.l.b16 %v1249
    %v4519 = vunpack.c.h.b16 %v1249
    %v4520 = vunpack.c.l.b16 %v1250
    %v4521 = vunpack.c.h.b16 %v1250
    %v4522 = vunpack.c.l.b16 %v1251
    %v4523 = vunpack.c.h.b16 %v1251
    %v4524 = vunpack.c.l.b16 %v1252
    %v4525 = vunpack.c.h.b16 %v1252
    %v4526 = vunpack.c.l.b16 %v1253
    %v4527 = vunpack.c.h.b16 %v1253
    %v4528 = vunpack.c.l.b16 %v1254
    %v4529 = vunpack.c.h.b16 %v1254
    %v4530 = vunpack.c.l.b16 %v1255
    %v4531 = vunpack.c.h.b16 %v1255
    %v4532 = vunpack.c.l.b16 %v1256
    %v4533 = vunpack.c.h.b16 %v1256
    %v4534 = vunpack.c.l.b16 %v1257
    %v4535 = vunpack.c.h.b16 %v1257
    %v4536 = vunpack.c.l.b16 %v1258
    %v4537 = vunpack.c.h.b16 %v1258
    %v4538 = vunpack.c.l.b16 %v1259
    %v4539 = vunpack.c.h.b16 %v1259
    %v4540 = vunpack.c.l.b16 %v1260
    %v4541 = vunpack.c.h.b16 %v1260
    %v4542 = vunpack.c.l.b16 %v1261
    %v4543 = vunpack.c.h.b16 %v1261
    %v4544 = vunpack.c.l.b16 %v1262
    %v4545 = vunpack.c.h.b16 %v1262
    %v4546 = vunpack.c.l.b16 %v1263
    %v4547 = vunpack.c.h.b16 %v1263
    %v4548 = vunpack.c.l.b16 %v1264
    %v4549 = vunpack.c.h.b16 %v1264
    %v4550 = vunpack.c.l.b16 %v1265
    %v4551 = vunpack.c.h.b16 %v1265
    %v4552 = vunpack.c.l.b16 %v1266
    %v4553 = vunpack.c.h.b16 %v1266
    %v4554 = vunpack.c.l.b16 %v1267
    %v4555 = vunpack.c.h.b16 %v1267
    %v4556 = vunpack.c.l.b16 %v1268
    %v4557 = vunpack.c.h.b16 %v1268
    %v4558 = vunpack.c.l.b16 %v1269
    %v4559 = vunpack.c.h.b16 %v1269
    %v4560 = vunpack.c.l.b16 %v1270
    %v4561 = vunpack.c.h.b16 %v1270
    %v4562 = vunpack.c.l.b16 %v1271
    %v4563 = vunpack.c.h.b16 %v1271
    %v4564 = vunpack.c.l.b16 %v1272
    %v4565 = vunpack.c.h.b16 %v1272
    %v4566 = vunpack.c.l.b16 %v1273
    %v4567 = vunpack.c.h.b16 %v1273
    %v4568 = vunpack.c.l.b16 %v1274
    %v4569 = vunpack.c.h.b16 %v1274
    %v4570 = vunpack.c.l.b16 %v1275
    %v4571 = vunpack.c.h.b16 %v1275
    %v4572 = vunpack.c.l.b16 %v1276
    %v4573 = vunpack.c.h.b16 %v1276
    %v4574 = vunpack.c.l.b16 %v1277
    %v4575 = vunpack.c.h.b16 %v1277
    %v4576 = vunpack.c.l.b16 %v1278
    %v4577 = vunpack.c.h.b16 %v1278
    %v4578 = vunpack.c.l.b16 %v1279
    %v4579 = vunpack.c.h.b16 %v1279
    %v4580 = vunpack.c.l.b16 %v1280
    %v4581 = vunpack.c.h.b16 %v1280
    %v4582 = vunpack.c.l.b16 %v1281
    %v4583 = vunpack.c.h.b16 %v1281
    %v4584 = vunpack.c.l.b16 %v1282
    %v4585 = vunpack.c.h.b16 %v1282
    %v4586 = vunpack.c.l.b16 %v1283
    %v4587 = vunpack.c.h.b16 %v1283
    %v4588 = vunpack.c.l.b16 %v1284
    %v4589 = vunpack.c.h.b16 %v1284
    %v4590 = vunpack.c.l.b16 %v1285
    %v4591 = vunpack.c.h.b16 %v1285
    %v4592 = vunpack.c.l.b16 %v1286
    %v4593 = vunpack.c.h.b16 %v1286
    %v4594 = vunpack.c.l.b16 %v1287
    %v4595 = vunpack.c.h.b16 %v1287
    %v4596 = vunpack.c.l.b16 %v1288
    %v4597 = vunpack.c.h.b16 %v1288
    %v4598 = vunpack.c.l.b16 %v1289
    %v4599 = vunpack.c.h.b16 %v1289
    %v4600 = vunpack.c.l.b16 %v1290
    %v4601 = vunpack.c.h.b16 %v1290
    %v4602 = vunpack.c.l.b16 %v1291
    %v4603 = vunpack.c.h.b16 %v1291
    %v4604 = vunpack.c.l.b16 %v1292
    %v4605 = vunpack.c.h.b16 %v1292
    %v4606 = vunpack.c.l.b16 %v1293
    %v4607 = vunpack.c.h.b16 %v1293
    %v4608 = vunpack.c.l.b16 %v1294
    %v4609 = vunpack.c.h.b16 %v1294
    %v4610 = vunpack.c.l.b16 %v1295
    %v4611 = vunpack.c.h.b16 %v1295
    %v4612 = vunpack.c.l.b16 %v1296
    %v4613 = vunpack.c.h.b16 %v1296
    %v4614 = vunpack.c.l.b16 %v1297
    %v4615 = vunpack.c.h.b16 %v1297
    %v4616 = vunpack.c.l.b16 %v1298
    %v4617 = vunpack.c.h.b16 %v1298
    %v4618 = vunpack.c.l.b16 %v1299
    %v4619 = vunpack.c.h.b16 %v1299
    %v4620 = vunpack.c.l.b16 %v1300
    %v4621 = vunpack.c.h.b16 %v1300
    %v4622 = vunpack.c.l.b16 %v1301
    %v4623 = vunpack.c.h.b16 %v1301
    %v4624 = vunpack.c.l.b16 %v1302
    %v4625 = vunpack.c.h.b16 %v1302
    %v4626 = vunpack.c.l.b16 %v1303
    %v4627 = vunpack.c.h.b16 %v1303
    %v4628 = vunpack.c.l.b16 %v1304
    %v4629 = vunpack.c.h.b16 %v1304
    %v4630 = vunpack.c.l.b16 %v1305
    %v4631 = vunpack.c.h.b16 %v1305
    %v4632 = vunpack.c.l.b16 %v1306
    %v4633 = vunpack.c.h.b16 %v1306
    %v4634 = vunpack.c.l.b16 %v1307
    %v4635 = vunpack.c.h.b16 %v1307
    %v4636 = vunpack.c.l.b16 %v1308
    %v4637 = vunpack.c.h.b16 %v1308
    %v4638 = vunpack.c.l.b16 %v1309
    %v4639 = vunpack.c.h.b16 %v1309
    %v4640 = vunpack.c.l.b16 %v1310
    %v4641 = vunpack.c.h.b16 %v1310
    %v4642 = vunpack.c.l.b16 %v1311
    %v4643 = vunpack.c.h.b16 %v1311
    %v4644 = vunpack.c.l.b16 %v1312
    %v4645 = vunpack.c.h.b16 %v1312
    %v4646 = vunpack.c.l.b16 %v1313
    %v4647 = vunpack.c.h.b16 %v1313
    %v4648 = vunpack.c.l.b16 %v1314
    %v4649 = vunpack.c.h.b16 %v1314
    %v4650 = vunpack.c.l.b16 %v1315
    %v4651 = vunpack.c.h.b16 %v1315
    %v4652 = vunpack.c.l.b16 %v1316
    %v4653 = vunpack.c.h.b16 %v1316
    %v4654 = vunpack.c.l.b16 %v1317
    %v4655 = vunpack.c.h.b16 %v1317
    %v4656 = vunpack.c.l.b16 %v1318
    %v4657 = vunpack.c.h.b16 %v1318
    %v4658 = vunpack.c.l.b16 %v1319
    %v4659 = vunpack.c.h.b16 %v1319
    %v4660 = vunpack.c.l.b16 %v1320
    %v4661 = vunpack.c.h.b16 %v1320
    %v4662 = vunpack.c.l.b16 %v1321
    %v4663 = vunpack.c.h.b16 %v1321
    %v4664 = vunpack.c.l.b16 %v1322
    %v4665 = vunpack.c.h.b16 %v1322
    %v4666 = vunpack.c.l.b16 %v1323
    %v4667 = vunpack.c.h.b16 %v1323
    %v4668 = vunpack.c.l.b16 %v1324
    %v4669 = vunpack.c.h.b16 %v1324
    %v4670 = vunpack.c.l.b16 %v1325
    %v4671 = vunpack.c.h.b16 %v1325
    %v4672 = vunpack.c.l.b16 %v1326
    %v4673 = vunpack.c.h.b16 %v1326
    %v4674 = vunpack.c.l.b16 %v1327
    %v4675 = vunpack.c.h.b16 %v1327
    %v4676 = vunpack.c.l.b16 %v1328
    %v4677 = vunpack.c.h.b16 %v1328
    %v4678 = vunpack.c.l.b16 %v1329
    %v4679 = vunpack.c.h.b16 %v1329
    %v4680 = vunpack.c.l.b16 %v1330
    %v4681 = vunpack.c.h.b16 %v1330
    %v4682 = vunpack.c.l.b16 %v1331
    %v4683 = vunpack.c.h.b16 %v1331
    %v4684 = vunpack.c.l.b16 %v1332
    %v4685 = vunpack.c.h.b16 %v1332
    %v4686 = vunpack.c.l.b16 %v1333
    %v4687 = vunpack.c.h.b16 %v1333
    %v4688 = vunpack.c.l.b16 %v1334
    %v4689 = vunpack.c.h.b16 %v1334
    %v4690 = vunpack.c.l.b16 %v1335
    %v4691 = vunpack.c.h.b16 %v1335
    %v4692 = vunpack.c.l.b16 %v1336
    %v4693 = vunpack.c.h.b16 %v1336
    %v4694 = vunpack.c.l.b16 %v1337
    %v4695 = vunpack.c.h.b16 %v1337
    %v4696 = vunpack.c.l.b16 %v1338
    %v4697 = vunpack.c.h.b16 %v1338
    %v4698 = vunpack.c.l.b16 %v1339
    %v4699 = vunpack.c.h.b16 %v1339
    %v4700 = vunpack.c.l.b16 %v1340
    %v4701 = vunpack.c.h.b16 %v1340
    %v4702 = vunpack.c.l.b16 %v1341
    %v4703 = vunpack.c.h.b16 %v1341
    %v4704 = vunpack.c.l.b16 %v1342
    %v4705 = vunpack.c.h.b16 %v1342
    %v4706 = vunpack.c.l.b16 %v1343
    %v4707 = vunpack.c.h.b16 %v1343
    %v4708 = vunpack.c.l.b16 %v1344
    %v4709 = vunpack.c.h.b16 %v1344
    %v4710 = vunpack.c.l.b16 %v1345
    %v4711 = vunpack.c.h.b16 %v1345
    %v4712 = vunpack.c.l.b16 %v1346
    %v4713 = vunpack.c.h.b16 %v1346
    %v4714 = vunpack.c.l.b16 %v1347
    %v4715 = vunpack.c.h.b16 %v1347
    %v4716 = vunpack.c.l.b16 %v1348
    %v4717 = vunpack.c.h.b16 %v1348
    %v4718 = vunpack.c.l.b16 %v1349
    %v4719 = vunpack.c.h.b16 %v1349
    %v4720 = vunpack.c.l.b16 %v1350
    %v4721 = vunpack.c.h.b16 %v1350
    %v4722 = vunpack.c.l.b16 %v1351
    %v4723 = vunpack.c.h.b16 %v1351
    %v4724 = vunpack.c.l.b16 %v1352
    %v4725 = vunpack.c.h.b16 %v1352
    %v4726 = vunpack.c.l.b16 %v1353
    %v4727 = vunpack.c.h.b16 %v1353
    %v4728 = vunpack.c.l.b16 %v1354
    %v4729 = vunpack.c.h.b16 %v1354
    %v4730 = vunpack.c.l.b16 %v1355
    %v4731 = vunpack.c.h.b16 %v1355
    %v4732 = vunpack.c.l.b16 %v1356
    %v4733 = vunpack.c.h.b16 %v1356
    %v4734 = vunpack.c.l.b16 %v1357
    %v4735 = vunpack.c.h.b16 %v1357
    %v4736 = vunpack.c.l.b16 %v1358
    %v4737 = vunpack.c.h.b16 %v1358
    %v4738 = vunpack.c.l.b16 %v1359
    %v4739 = vunpack.c.h.b16 %v1359
    %v4740 = vunpack.c.l.b16 %v1360
    %v4741 = vunpack.c.h.b16 %v1360
    %v4742 = vunpack.c.l.b16 %v1361
    %v4743 = vunpack.c.h.b16 %v1361
    %v4744 = vunpack.c.l.b16 %v1362
    %v4745 = vunpack.c.h.b16 %v1362
    %v4746 = vunpack.c.l.b16 %v1363
    %v4747 = vunpack.c.h.b16 %v1363
    %v4748 = vunpack.c.l.b16 %v1364
    %v4749 = vunpack.c.h.b16 %v1364
    %v4750 = vunpack.c.l.b16 %v1365
    %v4751 = vunpack.c.h.b16 %v1365
    %v4752 = vunpack.c.l.b16 %v1366
    %v4753 = vunpack.c.h.b16 %v1366
    %v4754 = vunpack.c.l.b16 %v1367
    %v4755 = vunpack.c.h.b16 %v1367
    %v4756 = vunpack.c.l.b16 %v1368
    %v4757 = vunpack.c.h.b16 %v1368
    %v4758 = vunpack.c.l.b16 %v1369
    %v4759 = vunpack.c.h.b16 %v1369
    %v4760 = vunpack.c.l.b16 %v1370
    %v4761 = vunpack.c.h.b16 %v1370
    %v4762 = vunpack.c.l.b16 %v1371
    %v4763 = vunpack.c.h.b16 %v1371
    %v4764 = vunpack.c.l.b16 %v1372
    %v4765 = vunpack.c.h.b16 %v1372
    %v4766 = vunpack.c.l.b16 %v1373
    %v4767 = vunpack.c.h.b16 %v1373
    %v4768 = vunpack.c.l.b16 %v1374
    %v4769 = vunpack.c.h.b16 %v1374
    %v4770 = vunpack.c.l.b16 %v1375
    %v4771 = vunpack.c.h.b16 %v1375
    %v4772 = vunpack.c.l.b16 %v1376
    %v4773 = vunpack.c.h.b16 %v1376
    %v4774 = vunpack.c.l.b16 %v1377
    %v4775 = vunpack.c.h.b16 %v1377
    %v4776 = vunpack.c.l.b16 %v1378
    %v4777 = vunpack.c.h.b16 %v1378
    %v4778 = vunpack.c.l.b16 %v1379
    %v4779 = vunpack.c.h.b16 %v1379
    %v4780 = vunpack.c.l.b16 %v1380
    %v4781 = vunpack.c.h.b16 %v1380
    %v4782 = vunpack.c.l.b16 %v1381
    %v4783 = vunpack.c.h.b16 %v1381
    %v4784 = vunpack.c.l.b16 %v1382
    %v4785 = vunpack.c.h.b16 %v1382
    %v4786 = vunpack.c.l.b16 %v1383
    %v4787 = vunpack.c.h.b16 %v1383
    %v4788 = vunpack.c.l.b16 %v1384
    %v4789 = vunpack.c.h.b16 %v1384
    %v4790 = vunpack.c.l.b16 %v1385
    %v4791 = vunpack.c.h.b16 %v1385
    %v4792 = vunpack.c.l.b16 %v1386
    %v4793 = vunpack.c.h.b16 %v1386
    %v4794 = vunpack.c.l.b16 %v1387
    %v4795 = vunpack.c.h.b16 %v1387
    %v4796 = vunpack.c.l.b16 %v1388
    %v4797 = vunpack.c.h.b16 %v1388
    %v4798 = vunpack.c.l.b16 %v1389
    %v4799 = vunpack.c.h.b16 %v1389
    %v4800 = vunpack.c.l.b16 %v1390
    %v4801 = vunpack.c.h.b16 %v1390
    %v4802 = vunpack.c.l.b16 %v1391
    %v4803 = vunpack.c.h.b16 %v1391
    %v4804 = vunpack.c.l.b16 %v1392
    %v4805 = vunpack.c.h.b16 %v1392
    %v4806 = vunpack.c.l.b16 %v1393
    %v4807 = vunpack.c.h.b16 %v1393
    %v4808 = vunpack.c.l.b16 %v1394
    %v4809 = vunpack.c.h.b16 %v1394
    %v4810 = vunpack.c.l.b16 %v1395
    %v4811 = vunpack.c.h.b16 %v1395
    %v4812 = vunpack.c.l.b16 %v1396
    %v4813 = vunpack.c.h.b16 %v1396
    %v4814 = vunpack.c.l.b16 %v1397
    %v4815 = vunpack.c.h.b16 %v1397
    %v4816 = vunpack.c.l.b16 %v1398
    %v4817 = vunpack.c.h.b16 %v1398
    %v4818 = vunpack.c.l.b16 %v1399
    %v4819 = vunpack.c.h.b16 %v1399
    %v4820 = vunpack.c.l.b16 %v1400
    %v4821 = vunpack.c.h.b16 %v1400
    %v4822 = vunpack.c.l.b16 %v1401
    %v4823 = vunpack.c.h.b16 %v1401
    %v4824 = vunpack.c.l.b16 %v1402
    %v4825 = vunpack.c.h.b16 %v1402
    %v4826 = vunpack.c.l.b16 %v1403
    %v4827 = vunpack.c.h.b16 %v1403
    %v4828 = vunpack.c.l.b16 %v1404
    %v4829 = vunpack.c.h.b16 %v1404
    %v4830 = vunpack.c.l.b16 %v1405
    %v4831 = vunpack.c.h.b16 %v1405
    %v4832 = vunpack.c.l.b16 %v1406
    %v4833 = vunpack.c.h.b16 %v1406
    %v4834 = vunpack.c.l.b16 %v1407
    %v4835 = vunpack.c.h.b16 %v1407
    %v4836 = vunpack.c.l.b16 %v1408
    %v4837 = vunpack.c.h.b16 %v1408
    %v4838 = vunpack.c.l.b16 %v1409
    %v4839 = vunpack.c.h.b16 %v1409
    %v4840 = vunpack.c.l.b16 %v1410
    %v4841 = vunpack.c.h.b16 %v1410
    %v4842 = vunpack.c.l.b16 %v1411
    %v4843 = vunpack.c.h.b16 %v1411
    %v4844 = vunpack.c.l.b16 %v1412
    %v4845 = vunpack.c.h.b16 %v1412
    %v4846 = vunpack.c.l.b16 %v1413
    %v4847 = vunpack.c.h.b16 %v1413
    %v4848 = vunpack.c.l.b16 %v1414
    %v4849 = vunpack.c.h.b16 %v1414
    %v4850 = vunpack.c.l.b16 %v1415
    %v4851 = vunpack.c.h.b16 %v1415
    %v4852 = vunpack.c.l.b16 %v1416
    %v4853 = vunpack.c.h.b16 %v1416
    %v4854 = vunpack.c.l.b16 %v1417
    %v4855 = vunpack.c.h.b16 %v1417
    %v4856 = vunpack.c.l.b16 %v1418
    %v4857 = vunpack.c.h.b16 %v1418
    %v4858 = vunpack.c.l.b16 %v1419
    %v4859 = vunpack.c.h.b16 %v1419
    %v4860 = vunpack.c.l.b16 %v1420
    %v4861 = vunpack.c.h.b16 %v1420
    %v4862 = vunpack.c.l.b16 %v1421
    %v4863 = vunpack.c.h.b16 %v1421
    %v4864 = vunpack.c.l.b16 %v1422
    %v4865 = vunpack.c.h.b16 %v1422
    %v4866 = vunpack.c.l.b16 %v1423
    %v4867 = vunpack.c.h.b16 %v1423
    %v4868 = vunpack.c.l.b16 %v1424
    %v4869 = vunpack.c.h.b16 %v1424
    %v4870 = vunpack.c.l.b16 %v1425
    %v4871 = vunpack.c.h.b16 %v1425
    %v4872 = vunpack.c.l.b16 %v1426
    %v4873 = vunpack.c.h.b16 %v1426
    %v4874 = vunpack.c.l.b16 %v1427
    %v4875 = vunpack.c.h.b16 %v1427
    %v4876 = vunpack.c.l.b16 %v1428
    %v4877 = vunpack.c.h.b16 %v1428
    %v4878 = vunpack.c.l.b16 %v1429
    %v4879 = vunpack.c.h.b16 %v1429
    %v4880 = vunpack.c.l.b16 %v1430
    %v4881 = vunpack.c.h.b16 %v1430
    %v4882 = vunpack.c.l.b16 %v1431
    %v4883 = vunpack.c.h.b16 %v1431
    %v4884 = vunpack.c.l.b16 %v1432
    %v4885 = vunpack.c.h.b16 %v1432
    %v4886 = vunpack.c.l.b16 %v1433
    %v4887 = vunpack.c.h.b16 %v1433
    %v4888 = vunpack.c.l.b16 %v1434
    %v4889 = vunpack.c.h.b16 %v1434
    %v4890 = vunpack.c.l.b16 %v1435
    %v4891 = vunpack.c.h.b16 %v1435
    %v4892 = vunpack.c.l.b16 %v1436
    %v4893 = vunpack.c.h.b16 %v1436
    %v4894 = vunpack.c.l.b16 %v1437
    %v4895 = vunpack.c.h.b16 %v1437
    %v4896 = vunpack.c.l.b16 %v1438
    %v4897 = vunpack.c.h.b16 %v1438
    %v4898 = vunpack.c.l.b16 %v1439
    %v4899 = vunpack.c.h.b16 %v1439
    %v4900 = vunpack.c.l.b16 %v1440
    %v4901 = vunpack.c.h.b16 %v1440
    %v4902 = vunpack.c.l.b16 %v1441
    %v4903 = vunpack.c.h.b16 %v1441
    %v4904 = vunpack.c.l.b16 %v1442
    %v4905 = vunpack.c.h.b16 %v1442
    %v4906 = vunpack.c.l.b16 %v1443
    %v4907 = vunpack.c.h.b16 %v1443
    %v4908 = vunpack.c.l.b16 %v1444
    %v4909 = vunpack.c.h.b16 %v1444
    %v4910 = vunpack.c.l.b16 %v1445
    %v4911 = vunpack.c.h.b16 %v1445
    %v4912 = vunpack.c.l.b16 %v1446
    %v4913 = vunpack.c.h.b16 %v1446
    %v4914 = vunpack.c.l.b16 %v1447
    %v4915 = vunpack.c.h.b16 %v1447
    %v4916 = vunpack.c.l.b16 %v1448
    %v4917 = vunpack.c.h.b16 %v1448
    %v4918 = vunpack.c.l.b16 %v1449
    %v4919 = vunpack.c.h.b16 %v1449
    %v4920 = vunpack.c.l.b16 %v1450
    %v4921 = vunpack.c.h.b16 %v1450
    %v4922 = vunpack.c.l.b16 %v1451
    %v4923 = vunpack.c.h.b16 %v1451
    %v4924 = vunpack.c.l.b16 %v1452
    %v4925 = vunpack.c.h.b16 %v1452
    %v4926 = vunpack.c.l.b16 %v1453
    %v4927 = vunpack.c.h.b16 %v1453
    %v4928 = vunpack.c.l.b16 %v1454
    %v4929 = vunpack.c.h.b16 %v1454
    %v4930 = vunpack.c.l.b16 %v1455
    %v4931 = vunpack.c.h.b16 %v1455
    %v4932 = vunpack.c.l.b16 %v1456
    %v4933 = vunpack.c.h.b16 %v1456
    %v4934 = vunpack.c.l.b16 %v1457
    %v4935 = vunpack.c.h.b16 %v1457
    %v4936 = vunpack.c.l.b16 %v1458
    %v4937 = vunpack.c.h.b16 %v1458
    %v4938 = vunpack.c.l.b16 %v1459
    %v4939 = vunpack.c.h.b16 %v1459
    %v4940 = vunpack.c.l.b16 %v1460
    %v4941 = vunpack.c.h.b16 %v1460
    %v4942 = vunpack.c.l.b16 %v1461
    %v4943 = vunpack.c.h.b16 %v1461
    %v4944 = vunpack.c.l.b16 %v1462
    %v4945 = vunpack.c.h.b16 %v1462
    %v4946 = vunpack.c.l.b16 %v1463
    %v4947 = vunpack.c.h.b16 %v1463
    %v4948 = vunpack.c.l.b16 %v1464
    %v4949 = vunpack.c.h.b16 %v1464
    %v4950 = vunpack.c.l.b16 %v1465
    %v4951 = vunpack.c.h.b16 %v1465
    %v4952 = vunpack.c.l.b16 %v1466
    %v4953 = vunpack.c.h.b16 %v1466
    %v4954 = vunpack.c.l.b16 %v1467
    %v4955 = vunpack.c.h.b16 %v1467
    %v4956 = vunpack.c.l.b16 %v1468
    %v4957 = vunpack.c.h.b16 %v1468
    %v4958 = vunpack.c.l.b16 %v1469
    %v4959 = vunpack.c.h.b16 %v1469
    %v4960 = vunpack.c.l.b16 %v1470
    %v4961 = vunpack.c.h.b16 %v1470
    %v4962 = vunpack.c.l.b16 %v1471
    %v4963 = vunpack.c.h.b16 %v1471
    %v4964 = vunpack.c.l.b16 %v1472
    %v4965 = vunpack.c.h.b16 %v1472
    %v4966 = vunpack.c.l.b16 %v1473
    %v4967 = vunpack.c.h.b16 %v1473
    %v4968 = vunpack.c.l.b16 %v1474
    %v4969 = vunpack.c.h.b16 %v1474
    %v4970 = vunpack.c.l.b16 %v1475
    %v4971 = vunpack.c.h.b16 %v1475
    %v4972 = vunpack.c.l.b16 %v1476
    %v4973 = vunpack.c.h.b16 %v1476
    %v4974 = vunpack.c.l.b16 %v1477
    %v4975 = vunpack.c.h.b16 %v1477
    %v4976 = vunpack.c.l.b16 %v1478
    %v4977 = vunpack.c.h.b16 %v1478
    %v4978 = vunpack.c.l.b16 %v1479
    %v4979 = vunpack.c.h.b16 %v1479
    %v4980 = vunpack.c.l.b16 %v1480
    %v4981 = vunpack.c.h.b16 %v1480
    %v4982 = vunpack.c.l.b16 %v1481
    %v4983 = vunpack.c.h.b16 %v1481
    %v4984 = vunpack.c.l.b16 %v1482
    %v4985 = vunpack.c.h.b16 %v1482
    %v4986 = vunpack.c.l.b16 %v1483
    %v4987 = vunpack.c.h.b16 %v1483
    %v4988 = vunpack.c.l.b16 %v1484
    %v4989 = vunpack.c.h.b16 %v1484
    %v4990 = vunpack.c.l.b16 %v1485
    %v4991 = vunpack.c.h.b16 %v1485
    %v4992 = vunpack.c.l.b16 %v1486
    %v4993 = vunpack.c.h.b16 %v1486
    %v4994 = vunpack.c.l.b16 %v1487
    %v4995 = vunpack.c.h.b16 %v1487
    %v4996 = vunpack.c.l.b16 %v1488
    %v4997 = vunpack.c.h.b16 %v1488
    %v4998 = vunpack.c.l.b16 %v1489
    %v4999 = vunpack.c.h.b16 %v1489
    %v5000 = vunpack.c.l.b16 %v1490
    %v5001 = vunpack.c.h.b16 %v1490
    %v5002 = vunpack.c.l.b16 %v1491
    %v5003 = vunpack.c.h.b16 %v1491
    %v5004 = vunpack.c.l.b16 %v1492
    %v5005 = vunpack.c.h.b16 %v1492
    %v5006 = vunpack.c.l.b16 %v1493
    %v5007 = vunpack.c.h.b16 %v1493
    %v5008 = vunpack.c.l.b16 %v1494
    %v5009 = vunpack.c.h.b16 %v1494
    %v5010 = vunpack.c.l.b16 %v1495
    %v5011 = vunpack.c.h.b16 %v1495
    %v5012 = vunpack.c.l.b16 %v1496
    %v5013 = vunpack.c.h.b16 %v1496
    %v5014 = vunpack.c.l.b16 %v1497
    %v5015 = vunpack.c.h.b16 %v1497
    %v5016 = vunpack.c.l.b16 %v1498
    %v5017 = vunpack.c.h.b16 %v1498
    %v5018 = vunpack.c.l.b16 %v1499
    %v5019 = vunpack.c.h.b16 %v1499
    %v5020 = vunpack.c.l.b16 %v1500
    %v5021 = vunpack.c.h.b16 %v1500
    %v5022 = vunpack.c.l.b16 %v1501
    %v5023 = vunpack.c.h.b16 %v1501
    %v5024 = vunpack.c.l.b16 %v1502
    %v5025 = vunpack.c.h.b16 %v1502
    %v5026 = vunpack.c.l.b16 %v1503
    %v5027 = vunpack.c.h.b16 %v1503
    %v5028 = vunpack.c.l.b16 %v1504
    %v5029 = vunpack.c.h.b16 %v1504
    %v5030 = vunpack.c.l.b16 %v1505
    %v5031 = vunpack.c.h.b16 %v1505
    %v5032 = vunpack.c.l.b16 %v1506
    %v5033 = vunpack.c.h.b16 %v1506
    %v5034 = vunpack.c.l.b16 %v1507
    %v5035 = vunpack.c.h.b16 %v1507
    %v5036 = vunpack.c.l.b16 %v1508
    %v5037 = vunpack.c.h.b16 %v1508
    %v5038 = vunpack.c.l.b16 %v1509
    %v5039 = vunpack.c.h.b16 %v1509
    %v5040 = vunpack.c.l.b16 %v1510
    %v5041 = vunpack.c.h.b16 %v1510
    %v5042 = vunpack.c.l.b16 %v1511
    %v5043 = vunpack.c.h.b16 %v1511
    %v5044 = vunpack.c.l.b16 %v1512
    %v5045 = vunpack.c.h.b16 %v1512
    %v5046 = vunpack.c.l.b16 %v1513
    %v5047 = vunpack.c.h.b16 %v1513
    %v5048 = vunpack.c.l.b16 %v1514
    %v5049 = vunpack.c.h.b16 %v1514
    %v5050 = vunpack.c.l.b16 %v1515
    %v5051 = vunpack.c.h.b16 %v1515
    %v5052 = vunpack.c.l.b16 %v1516
    %v5053 = vunpack.c.h.b16 %v1516
    %v5054 = vunpack.c.l.b16 %v1517
    %v5055 = vunpack.c.h.b16 %v1517
    %v5056 = vunpack.c.l.b16 %v1518
    %v5057 = vunpack.c.h.b16 %v1518
    %v5058 = vunpack.c.l.b16 %v1519
    %v5059 = vunpack.c.h.b16 %v1519
    %v5060 = vunpack.c.l.b16 %v1520
    %v5061 = vunpack.c.h.b16 %v1520
    %v5062 = vunpack.c.l.b16 %v1521
    %v5063 = vunpack.c.h.b16 %v1521
    %v5064 = vunpack.c.l.b16 %v1522
    %v5065 = vunpack.c.h.b16 %v1522
    %v5066 = vunpack.c.l.b16 %v1523
    %v5067 = vunpack.c.h.b16 %v1523
    %v5068 = vunpack.c.l.b16 %v1524
    %v5069 = vunpack.c.h.b16 %v1524
    %v5070 = vunpack.c.l.b16 %v1525
    %v5071 = vunpack.c.h.b16 %v1525
    %v5072 = vunpack.c.l.b16 %v1526
    %v5073 = vunpack.c.h.b16 %v1526
    %v5074 = vunpack.c.l.b16 %v1527
    %v5075 = vunpack.c.h.b16 %v1527
    %v5076 = vunpack.c.l.b16 %v1528
    %v5077 = vunpack.c.h.b16 %v1528
    %v5078 = vunpack.c.l.b16 %v1529
    %v5079 = vunpack.c.h.b16 %v1529
    %v5080 = vunpack.c.l.b16 %v1530
    %v5081 = vunpack.c.h.b16 %v1530
    %v5082 = vunpack.c.l.b16 %v1531
    %v5083 = vunpack.c.h.b16 %v1531
    %v5084 = vunpack.c.l.b16 %v1532
    %v5085 = vunpack.c.h.b16 %v1532
    %v5086 = vunpack.c.l.b16 %v1533
    %v5087 = vunpack.c.h.b16 %v1533
    %v5088 = vunpack.c.l.b16 %v1534
    %v5089 = vunpack.c.h.b16 %v1534
    %v5090 = vunpack.c.l.b16 %v1535
    %v5091 = vunpack.c.h.b16 %v1535
    %v5092 = vunpack.c.l.b16 %v1536
    %v5093 = vunpack.c.h.b16 %v1536
    %v5094 = vunpack.c.l.b16 %v1537
    %v5095 = vunpack.c.h.b16 %v1537
    %v5096 = vunpack.c.l.b16 %v1538
    %v5097 = vunpack.c.h.b16 %v1538
    %v5098 = vunpack.c.l.b16 %v1539
    %v5099 = vunpack.c.h.b16 %v1539
    %v5100 = vunpack.c.l.b16 %v1540
    %v5101 = vunpack.c.h.b16 %v1540
    %v5102 = vunpack.c.l.b16 %v1541
    %v5103 = vunpack.c.h.b16 %v1541
    %v5104 = vunpack.c.l.b16 %v1542
    %v5105 = vunpack.c.h.b16 %v1542
    %v5106 = vunpack.c.l.b16 %v1543
    %v5107 = vunpack.c.h.b16 %v1543
    %v5108 = vunpack.c.l.b16 %v1544
    %v5109 = vunpack.c.h.b16 %v1544
    %v5110 = vunpack.c.l.b16 %v1545
    %v5111 = vunpack.c.h.b16 %v1545
    %v5112 = vunpack.c.l.b16 %v1546
    %v5113 = vunpack.c.h.b16 %v1546
    %v5114 = vunpack.c.l.b16 %v1547
    %v5115 = vunpack.c.h.b16 %v1547
    %v5116 = vunpack.c.l.b16 %v1548
    %v5117 = vunpack.c.h.b16 %v1548
    %v5118 = vunpack.c.l.b16 %v1549
    %v5119 = vunpack.c.h.b16 %v1549
    %v5120 = vpack.c.b16 %v2776, %v2768
    %v5121 = vpack.c.b16 %v2777, %v2769
    %v5122 = vpack.c.b16 %v2778, %v2770
    %v5123 = vpack.c.b16 %v2779, %v2771
    %v5124 = vpack.c.b16 %v2780, %v2772
    %v5125 = vpack.c.b16 %v2781, %v2773
    %v5126 = vpack.c.b16 %v2782, %v2774
    %v5127 = vpack.c.b16 %v2783, %v2775
    %v5128 = vpack.c.b16 %v2792, %v2784
    %v5129 = vpack.c.b16 %v2793, %v2785
    %v5130 = vpack.c.b16 %v2794, %v2786
    %v5131 = vpack.c.b16 %v2795, %v2787
    %v5132 = vpack.c.b16 %v2796, %v2788
    %v5133 = vpack.c.b16 %v2797, %v2789
    %v5134 = vpack.c.b16 %v2798, %v2790
    %v5135 = vpack.c.b16 %v2799, %v2791
    %v5136 = vpack.c.b16 %v2808, %v2800
    %v5137 = vpack.c.b16 %v2809, %v2801
    %v5138 = vpack.c.b16 %v2810, %v2802
    %v5139 = vpack.c.b16 %v2811, %v2803
    %v5140 = vpack.c.b16 %v2812, %v2804
    %v5141 = vpack.c.b16 %v2813, %v2805
    %v5142 = vpack.c.b16 %v2814, %v2806
    %v5143 = vpack.c.b16 %v2815, %v2807
    %v5144 = vpack.c.b16 %v2824, %v2816
    %v5145 = vpack.c.b16 %v2825, %v2817
    %v5146 = vpack.c.b16 %v2826, %v2818
    %v5147 = vpack.c.b16 %v2827, %v2819
    %v5148 = vpack.c.b16 %v2828, %v2820
    %v5149 = vpack.c.b16 %v2829, %v2821
    %v5150 = vpack.c.b16 %v2830, %v2822
    %v5151 = vpack.c.b16 %v2831, %v2823
    %v5152 = vpack.c.b16 %v2840, %v2832
    %v5153 = vpack.c.b16 %v2841, %v2833
    %v5154 = vpack.c.b16 %v2842, %v2834
    %v5155 = vpack.c.b16 %v2843, %v2835
    %v5156 = vpack.c.b16 %v2844, %v2836
    %v5157 = vpack.c.b16 %v2845, %v2837
    %v5158 = vpack.c.b16 %v2846, %v2838
    %v5159 = vpack.c.b16 %v2847, %v2839
    %v5160 = vpack.c.b16 %v2856, %v2848
    %v5161 = vpack.c.b16 %v2857, %v2849
    %v5162 = vpack.c.b16 %v2858, %v2850
    %v5163 = vpack.c.b16 %v2859, %v2851
    %v5164 = vpack.c.b16 %v2860, %v2852
    %v5165 = vpack.c.b16 %v2861, %v2853
    %v5166 = vpack.c.b16 %v2862, %v2854
    %v5167 = vpack.c.b16 %v2863, %v2855
    %v5168 = vpack.c.b16 %v2872, %v2864
    %v5169 = vpack.c.b16 %v2873, %v2865
    %v5170 = vpack.c.b16 %v2874, %v2866
    %v5171 = vpack.c.b16 %v2875, %v2867
    %v5172 = vpack.c.b16 %v2876, %v2868
    %v5173 = vpack.c.b16 %v2877, %v2869
    %v5174 = vpack.c.b16 %v2878, %v2870
    %v5175 = vpack.c.b16 %v2879, %v2871
    %v5176 = vpack.c.b16 %v2888, %v2880
    %v5177 = vpack.c.b16 %v2889, %v2881
    %v5178 = vpack.c.b16 %v2890, %v2882
    %v5179 = vpack.c.b16 %v2891, %v2883
    %v5180 = vpack.c.b16 %v2892, %v2884
    %v5181 = vpack.c.b16 %v2893, %v2885
    %v5182 = vpack.c.b16 %v2894, %v2886
    %v5183 = vpack.c.b16 %v2895, %v2887
    %v5184 = vpack.c.b16 %v2904, %v2896
    %v5185 = vpack.c.b16 %v2905, %v2897
    %v5186 = vpack.c.b16 %v2906, %v2898
    %v5187 = vpack.c.b16 %v2907, %v2899
    %v5188 = vpack.c.b16 %v2908, %v2900
    %v5189 = vpack.c.b16 %v2909, %v2901
    %v5190 = vpack.c.b16 %v2910, %v2902
    %v5191 = vpack.c.b16 %v2911, %v2903
    %v5192 = vpack.c.b16 %v2920, %v2912
    %v5193 = vpack.c.b16 %v2921, %v2913
    %v5194 = vpack.c.b16 %v2922, %v2914
    %v5195 = vpack.c.b16 %v2923, %v2915
    %v5196 = vpack.c.b16 %v2924, %v2916
    %v5197 = vpack.c.b16 %v2925, %v2917
    %v5198 = vpack.c.b16 %v2926, %v2918
    %v5199 = vpack.c.b16 %v2927, %v2919
    %v5200 = vpack.c.b16 %v2936, %v2928
    %v5201 = vpack.c.b16 %v2937, %v2929
    %v5202 = vpack.c.b16 %v2938, %v2930
    %v5203 = vpack.c.b16 %v2939, %v2931
    %v5204 = vpack.c.b16 %v2940, %v2932
    %v5205 = vpack.c.b16 %v2941, %v2933
    %v5206 = vpack.c.b16 %v2942, %v2934
    %v5207 = vpack.c.b16 %v2943, %v2935
    %v5208 = vpack.c.b16 %v2952, %v2944
    %v5209 = vpack.c.b16 %v2953, %v2945
    %v5210 = vpack.c.b16 %v2954, %v2946
    %v5211 = vpack.c.b16 %v2955, %v2947
    %v5212 = vpack.c.b16 %v2956, %v2948
    %v5213 = vpack.c.b16 %v2957, %v2949
    %v5214 = vpack.c.b16 %v2958, %v2950
    %v5215 = vpack.c.b16 %v2959, %v2951
    %v5216 = vpack.c.b16 %v2968, %v2960
    %v5217 = vpack.c.b16 %v2969, %v2961
    %v5218 = vpack.c.b16 %v2970, %v2962
    %v5219 = vpack.c.b16 %v2971, %v2963
    %v5220 = vpack.c.b16 %v2972, %v2964
    %v5221 = vpack.c.b16 %v2973, %v2965
    %v5222 = vpack.c.b16 %v2974, %v2966
    %v5223 = vpack.c.b16 %v2975, %v2967
    %v5224 = vpack.c.b16 %v2984, %v2976
    %v5225 = vpack.c.b16 %v2985, %v2977
    %v5226 = vpack.c.b16 %v2986, %v2978
    %v5227 = vpack.c.b16 %v2987, %v2979
    %v5228 = vpack.c.b16 %v2988, %v2980
    %v5229 = vpack.c.b16 %v2989, %v2981
    %v5230 = vpack.c.b16 %v2990, %v2982
    %v5231 = vpack.c.b16 %v2991, %v2983
    %v5232 = vpack.c.b16 %v3000, %v2992
    %v5233 = vpack.c.b16 %v3001, %v2993
    %v5234 = vpack.c.b16 %v3002, %v2994
    %v5235 = vpack.c.b16 %v3003, %v2995
    %v5236 = vpack.c.b16 %v3004, %v2996
    %v5237 = vpack.c.b16 %v3005, %v2997
    %v5238 = vpack.c.b16 %v3006, %v2998
    %v5239 = vpack.c.b16 %v3007, %v2999
    %v5240 = vpack.c.b16 %v3016, %v3008
    %v5241 = vpack.c.b16 %v3017, %v3009
    %v5242 = vpack.c.b16 %v3018, %v3010
    %v5243 = vpack.c.b16 %v3019, %v3011
    %v5244 = vpack.c.b16 %v3020, %v3012
    %v5245 = vpack.c.b16 %v3021, %v3013
    %v5246 = vpack.c.b16 %v3022, %v3014
    %v5247 = vpack.c.b16 %v3023, %v3015
    %v5248 = vpack.c.b16 %v3032, %v3024
    %v5249 = vpack.c.b16 %v3033, %v3025
    %v5250 = vpack.c.b16 %v3034, %v3026
    %v5251 = vpack.c.b16 %v3035, %v3027
    %v5252 = vpack.c.b16 %v3036, %v3028
    %v5253 = vpack.c.b16 %v3037, %v3029
    %v5254 = vpack.c.b16 %v3038, %v3030
    %v5255 = vpack.c.b16 %v3039, %v3031
    %v5256 = vpack.c.b16 %v3048, %v3040
    %v5257 = vpack.c.b16 %v3049, %v3041
    %v5258 = vpack.c.b16 %v3050, %v3042
    %v5259 = vpack.c.b16 %v3051, %v3043
    %v5260 = vpack.c.b16 %v3052, %v3044
    %v5261 = vpack.c.b16 %v3053, %v3045
    %v5262 = vpack.c.b16 %v3054, %v3046
    %v5263 = vpack.c.b16 %v3055, %v3047
    %v5264 = vpack.c.b16 %v3064, %v3056
    %v5265 = vpack.c.b16 %v3065, %v3057
    %v5266 = vpack.c.b16 %v3066, %v3058
    %v5267 = vpack.c.b16 %v3067, %v3059
    %v5268 = vpack.c.b16 %v3068, %v3060
    %v5269 = vpack.c.b16 %v3069, %v3061
    %v5270 = vpack.c.b16 %v3070, %v3062
    %v5271 = vpack.c.b16 %v3071, %v3063
    %v5272 = vpack.c.b16 %v3080, %v3072
    %v5273 = vpack.c.b16 %v3081, %v3073
    %v5274 = vpack.c.b16 %v3082, %v3074
    %v5275 = vpack.c.b16 %v3083, %v3075
    %v5276 = vpack.c.b16 %v3084, %v3076
    %v5277 = vpack.c.b16 %v3085, %v3077
    %v5278 = vpack.c.b16 %v3086, %v3078
    %v5279 = vpack.c.b16 %v3087, %v3079
    %v5280 = vpack.c.b16 %v3096, %v3088
    %v5281 = vpack.c.b16 %v3097, %v3089
    %v5282 = vpack.c.b16 %v3098, %v3090
    %v5283 = vpack.c.b16 %v3099, %v3091
    %v5284 = vpack.c.b16 %v3100, %v3092
    %v5285 = vpack.c.b16 %v3101, %v3093
    %v5286 = vpack.c.b16 %v3102, %v3094
    %v5287 = vpack.c.b16 %v3103, %v3095
    %v5288 = vpack.c.b16 %v3112, %v3104
    %v5289 = vpack.c.b16 %v3113, %v3105
    %v5290 = vpack.c.b16 %v3114, %v3106
    %v5291 = vpack.c.b16 %v3115, %v3107
    %v5292 = vpack.c.b16 %v3116, %v3108
    %v5293 = vpack.c.b16 %v3117, %v3109
    %v5294 = vpack.c.b16 %v3118, %v3110
    %v5295 = vpack.c.b16 %v3119, %v3111
    %v5296 = vpack.c.b16 %v3128, %v3120
    %v5297 = vpack.c.b16 %v3129, %v3121
    %v5298 = vpack.c.b16 %v3130, %v3122
    %v5299 = vpack.c.b16 %v3131, %v3123
    %v5300 = vpack.c.b16 %v3132, %v3124
    %v5301 = vpack.c.b16 %v3133, %v3125
    %v5302 = vpack.c.b16 %v3134, %v3126
    %v5303 = vpack.c.b16 %v3135, %v3127
    %v5304 = vpack.c.b16 %v3144, %v3136
    %v5305 = vpack.c.b16 %v3145, %v3137
    %v5306 = vpack.c.b16 %v3146, %v3138
    %v5307 = vpack.c.b16 %v3147, %v3139
    %v5308 = vpack.c.b16 %v3148, %v3140
    %v5309 = vpack.c.b16 %v3149, %v3141
    %v5310 = vpack.c.b16 %v3150, %v3142
    %v5311 = vpack.c.b16 %v3151, %v3143
    %v5312 = vpack.c.b16 %v3160, %v3152
    %v5313 = vpack.c.b16 %v3161, %v3153
    %v5314 = vpack.c.b16 %v3162, %v3154
    %v5315 = vpack.c.b16 %v3163, %v3155
    %v5316 = vpack.c.b16 %v3164, %v3156
    %v5317 = vpack.c.b16 %v3165, %v3157
    %v5318 = vpack.c.b16 %v3166, %v3158
    %v5319 = vpack.c.b16 %v3167, %v3159
    %v5320 = vpack.c.b16 %v3176, %v3168
    %v5321 = vpack.c.b16 %v3177, %v3169
    %v5322 = vpack.c.b16 %v3178, %v3170
    %v5323 = vpack.c.b16 %v3179, %v3171
    %v5324 = vpack.c.b16 %v3180, %v3172
    %v5325 = vpack.c.b16 %v3181, %v3173
    %v5326 = vpack.c.b16 %v3182, %v3174
    %v5327 = vpack.c.b16 %v3183, %v3175
    %v5328 = vpack.c.b16 %v3192, %v3184
    %v5329 = vpack.c.b16 %v3193, %v3185
    %v5330 = vpack.c.b16 %v3194, %v3186
    %v5331 = vpack.c.b16 %v3195, %v3187
    %v5332 = vpack.c.b16 %v3196, %v3188
    %v5333 = vpack.c.b16 %v3197, %v3189
    %v5334 = vpack.c.b16 %v3198, %v3190
    %v5335 = vpack.c.b16 %v3199, %v3191
    %v5336 = vpack.c.b16 %v3208, %v3200
    %v5337 = vpack.c.b16 %v3209, %v3201
    %v5338 = vpack.c.b16 %v3210, %v3202
    %v5339 = vpack.c.b16 %v3211, %v3203
    %v5340 = vpack.c.b16 %v3212, %v3204
    %v5341 = vpack.c.b16 %v3213, %v3205
    %v5342 = vpack.c.b16 %v3214, %v3206
    %v5343 = vpack.c.b16 %v3215, %v3207
    %v5344 = vpack.c.b16 %v3224, %v3216
    %v5345 = vpack.c.b16 %v3225, %v3217
    %v5346 = vpack.c.b16 %v3226, %v3218
    %v5347 = vpack.c.b16 %v3227, %v3219
    %v5348 = vpack.c.b16 %v3228, %v3220
    %v5349 = vpack.c.b16 %v3229, %v3221
    %v5350 = vpack.c.b16 %v3230, %v3222
    %v5351 = vpack.c.b16 %v3231, %v3223
    %v5352 = vpack.c.b16 %v3240, %v3232
    %v5353 = vpack.c.b16 %v3241, %v3233
    %v5354 = vpack.c.b16 %v3242, %v3234
    %v5355 = vpack.c.b16 %v3243, %v3235
    %v5356 = vpack.c.b16 %v3244, %v3236
    %v5357 = vpack.c.b16 %v3245, %v3237
    %v5358 = vpack.c.b16 %v3246, %v3238
    %v5359 = vpack.c.b16 %v3247, %v3239
    %v5360 = vpack.c.b16 %v3256, %v3248
    %v5361 = vpack.c.b16 %v3257, %v3249
    %v5362 = vpack.c.b16 %v3258, %v3250
    %v5363 = vpack.c.b16 %v3259, %v3251
    %v5364 = vpack.c.b16 %v3260, %v3252
    %v5365 = vpack.c.b16 %v3261, %v3253
    %v5366 = vpack.c.b16 %v3262, %v3254
    %v5367 = vpack.c.b16 %v3263, %v3255
    %v5368 = vpack.c.b16 %v3272, %v3264
    %v5369 = vpack.c.b16 %v3273, %v3265
    %v5370 = vpack.c.b16 %v3274, %v3266
    %v5371 = vpack.c.b16 %v3275, %v3267
    %v5372 = vpack.c.b16 %v3276, %v3268
    %v5373 = vpack.c.b16 %v3277, %v3269
    %v5374 = vpack.c.b16 %v3278, %v3270
    %v5375 = vpack.c.b16 %v3279, %v3271
    %v5376 = vpack.c.b16 %v3288, %v3280
    %v5377 = vpack.c.b16 %v3289, %v3281
    %v5378 = vpack.c.b16 %v3290, %v3282
    %v5379 = vpack.c.b16 %v3291, %v3283
    %v5380 = vpack.c.b16 %v3292, %v3284
    %v5381 = vpack.c.b16 %v3293, %v3285
    %v5382 = vpack.c.b16 %v3294, %v3286
    %v5383 = vpack.c.b16 %v3295, %v3287
    %v5384 = vpack.c.b16 %v3304, %v3296
    %v5385 = vpack.c.b16 %v3305, %v3297
    %v5386 = vpack.c.b16 %v3306, %v3298
    %v5387 = vpack.c.b16 %v3307, %v3299
    %v5388 = vpack.c.b16 %v3308, %v3300
    %v5389 = vpack.c.b16 %v3309, %v3301
    %v5390 = vpack.c.b16 %v3310, %v3302
    %v5391 = vpack.c.b16 %v3311, %v3303
    %v5392 = vpack.c.b16 %v3320, %v3312
    %v5393 = vpack.c.b16 %v3321, %v3313
    %v5394 = vpack.c.b16 %v3322, %v3314
    %v5395 = vpack.c.b16 %v3323, %v3315
    %v5396 = vpack.c.b16 %v3324, %v3316
    %v5397 = vpack.c.b16 %v3325, %v3317
    %v5398 = vpack.c.b16 %v3326, %v3318
    %v5399 = vpack.c.b16 %v3327, %v3319
    %v5400 = vpack.c.b16 %v3336, %v3328
    %v5401 = vpack.c.b16 %v3337, %v3329
    %v5402 = vpack.c.b16 %v3338, %v3330
    %v5403 = vpack.c.b16 %v3339, %v3331
    %v5404 = vpack.c.b16 %v3340, %v3332
    %v5405 = vpack.c.b16 %v3341, %v3333
    %v5406 = vpack.c.b16 %v3342, %v3334
    %v5407 = vpack.c.b16 %v3343, %v3335
    %v5408 = vpack.c.b16 %v3352, %v3344
    %v5409 = vpack.c.b16 %v3353, %v3345
    %v5410 = vpack.c.b16 %v3354, %v3346
    %v5411 = vpack.c.b16 %v3355, %v3347
    %v5412 = vpack.c.b16 %v3356, %v3348
    %v5413 = vpack.c.b16 %v3357, %v3349
    %v5414 = vpack.c.b16 %v3358, %v3350
    %v5415 = vpack.c.b16 %v3359, %v3351
    %v5416 = vpack.c.b16 %v3368, %v3360
    %v5417 = vpack.c.b16 %v3369, %v3361
    %v5418 = vpack.c.b16 %v3370, %v3362
    %v5419 = vpack.c.b16 %v3371, %v3363
    %v5420 = vpack.c.b16 %v3372, %v3364
    %v5421 = vpack.c.b16 %v3373, %v3365
    %v5422 = vpack.c.b16 %v3374, %v3366
    %v5423 = vpack.c.b16 %v3375, %v3367
    %v5424 = vpack.c.b16 %v3384, %v3376
    %v5425 = vpack.c.b16 %v3385, %v3377
    %v5426 = vpack.c.b16 %v3386, %v3378
    %v5427 = vpack.c.b16 %v3387, %v3379
    %v5428 = vpack.c.b16 %v3388, %v3380
    %v5429 = vpack.c.b16 %v3389, %v3381
    %v5430 = vpack.c.b16 %v3390, %v3382
    %v5431 = vpack.c.b16 %v3391, %v3383
    %v5432 = vpack.c.b16 %v3400, %v3392
    %v5433 = vpack.c.b16 %v3401, %v3393
    %v5434 = vpack.c.b16 %v3402, %v3394
    %v5435 = vpack.c.b16 %v3403, %v3395
    %v5436 = vpack.c.b16 %v3404, %v3396
    %v5437 = vpack.c.b16 %v3405, %v3397
    %v5438 = vpack.c.b16 %v3406, %v3398
    %v5439 = vpack.c.b16 %v3407, %v3399
    %v5440 = vpack.c.b16 %v3416, %v3408
    %v5441 = vpack.c.b16 %v3417, %v3409
    %v5442 = vpack.c.b16 %v3418, %v3410
    %v5443 = vpack.c.b16 %v3419, %v3411
    %v5444 = vpack.c.b16 %v3420, %v3412
    %v5445 = vpack.c.b16 %v3421, %v3413
    %v5446 = vpack.c.b16 %v3422, %v3414
    %v5447 = vpack.c.b16 %v3423, %v3415
    %v5448 = vpack.c.b16 %v3432, %v3424
    %v5449 = vpack.c.b16 %v3433, %v3425
    %v5450 = vpack.c.b16 %v3434, %v3426
    %v5451 = vpack.c.b16 %v3435, %v3427
    %v5452 = vpack.c.b16 %v3436, %v3428
    %v5453 = vpack.c.b16 %v3437, %v3429
    %v5454 = vpack.c.b16 %v3438, %v3430
    %v5455 = vpack.c.b16 %v3439, %v3431
    %v5456 = vpack.c.b16 %v3448, %v3440
    %v5457 = vpack.c.b16 %v3449, %v3441
    %v5458 = vpack.c.b16 %v3450, %v3442
    %v5459 = vpack.c.b16 %v3451, %v3443
    %v5460 = vpack.c.b16 %v3452, %v3444
    %v5461 = vpack.c.b16 %v3453, %v3445
    %v5462 = vpack.c.b16 %v3454, %v3446
    %v5463 = vpack.c.b16 %v3455, %v3447
    %v5464 = vpack.c.b16 %v3464, %v3456
    %v5465 = vpack.c.b16 %v3465, %v3457
    %v5466 = vpack.c.b16 %v3466, %v3458
    %v5467 = vpack.c.b16 %v3467, %v3459
    %v5468 = vpack.c.b16 %v3468, %v3460
    %v5469 = vpack.c.b16 %v3469, %v3461
    %v5470 = vpack.c.b16 %v3470, %v3462
    %v5471 = vpack.c.b16 %v3471, %v3463
    %v5472 = vpack.c.b16 %v3480, %v3472
    %v5473 = vpack.c.b16 %v3481, %v3473
    %v5474 = vpack.c.b16 %v3482, %v3474
    %v5475 = vpack.c.b16 %v3483, %v3475
    %v5476 = vpack.c.b16 %v3484, %v3476
    %v5477 = vpack.c.b16 %v3485, %v3477
    %v5478 = vpack.c.b16 %v3486, %v3478
    %v5479 = vpack.c.b16 %v3487, %v3479
    %v5480 = vpack.c.b16 %v3496, %v3488
    %v5481 = vpack.c.b16 %v3497, %v3489
    %v5482 = vpack.c.b16 %v3498, %v3490
    %v5483 = vpack.c.b16 %v3499, %v3491
    %v5484 = vpack.c.b16 %v3500, %v3492
    %v5485 = vpack.c.b16 %v3501, %v3493
    %v5486 = vpack.c.b16 %v3502, %v3494
    %v5487 = vpack.c.b16 %v3503, %v3495
    %v5488 = vpack.c.b16 %v3512, %v3504
    %v5489 = vpack.c.b16 %v3513, %v3505
    %v5490 = vpack.c.b16 %v3514, %v3506
    %v5491 = vpack.c.b16 %v3515, %v3507
    %v5492 = vpack.c.b16 %v3516, %v3508
    %v5493 = vpack.c.b16 %v3517, %v3509
    %v5494 = vpack.c.b16 %v3518, %v3510
    %v5495 = vpack.c.b16 %v3519, %v3511
    %v5496 = vpack.c.b16 %v3528, %v3520
    %v5497 = vpack.c.b16 %v3529, %v3521
    %v5498 = vpack.c.b16 %v3530, %v3522
    %v5499 = vpack.c.b16 %v3531, %v3523
    %v5500 = vpack.c.b16 %v3532, %v3524
    %v5501 = vpack.c.b16 %v3533, %v3525
    %v5502 = vpack.c.b16 %v3534, %v3526
    %v5503 = vpack.c.b16 %v3535, %v3527
    %v5504 = vpack.c.b16 %v3544, %v3536
    %v5505 = vpack.c.b16 %v3545, %v3537
    %v5506 = vpack.c.b16 %v3546, %v3538
    %v5507 = vpack.c.b16 %v3547, %v3539
    %v5508 = vpack.c.b16 %v3548, %v3540
    %v5509 = vpack.c.b16 %v3549, %v3541
    %v5510 = vpack.c.b16 %v3550, %v3542
    %v5511 = vpack.c.b16 %v3551, %v3543
    %v5512 = vpack.c.b16 %v3560, %v3552
    %v5513 = vpack.c.b16 %v3561, %v3553
    %v5514 = vpack.c.b16 %v3562, %v3554
    %v5515 = vpack.c.b16 %v3563, %v3555
    %v5516 = vpack.c.b16 %v3564, %v3556
    %v5517 = vpack.c.b16 %v3565, %v3557
    %v5518 = vpack.c.b16 %v3566, %v3558
    %v5519 = vpack.c.b16 %v3567, %v3559
    %v5520 = vpack.c.b16 %v3576, %v3568
    %v5521 = vpack.c.b16 %v3577, %v3569
    %v5522 = vpack.c.b16 %v3578, %v3570
    %v5523 = vpack.c.b16 %v3579, %v3571
    %v5524 = vpack.c.b16 %v3580, %v3572
    %v5525 = vpack.c.b16 %v3581, %v3573
    %v5526 = vpack.c.b16 %v3582, %v3574
    %v5527 = vpack.c.b16 %v3583, %v3575
    %v5528 = vpack.c.b16 %v3592, %v3584
    %v5529 = vpack.c.b16 %v3593, %v3585
    %v5530 = vpack.c.b16 %v3594, %v3586
    %v5531 = vpack.c.b16 %v3595, %v3587
    %v5532 = vpack.c.b16 %v3596, %v3588
    %v5533 = vpack.c.b16 %v3597, %v3589
    %v5534 = vpack.c.b16 %v3598, %v3590
    %v5535 = vpack.c.b16 %v3599, %v3591
    %v5536 = vpack.c.b16 %v3608, %v3600
    %v5537 = vpack.c.b16 %v3609, %v3601
    %v5538 = vpack.c.b16 %v3610, %v3602
    %v5539 = vpack.c.b16 %v3611, %v3603
    %v5540 = vpack.c.b16 %v3612, %v3604
    %v5541 = vpack.c.b16 %v3613, %v3605
    %v5542 = vpack.c.b16 %v3614, %v3606
    %v5543 = vpack.c.b16 %v3615, %v3607
    %v5544 = vpack.c.b16 %v3624, %v3616
    %v5545 = vpack.c.b16 %v3625, %v3617
    %v5546 = vpack.c.b16 %v3626, %v3618
    %v5547 = vpack.c.b16 %v3627, %v3619
    %v5548 = vpack.c.b16 %v3628, %v3620
    %v5549 = vpack.c.b16 %v3629, %v3621
    %v5550 = vpack.c.b16 %v3630, %v3622
    %v5551 = vpack.c.b16 %v3631, %v3623
    %v5552 = vpack.c.b16 %v3640, %v3632
    %v5553 = vpack.c.b16 %v3641, %v3633
    %v5554 = vpack.c.b16 %v3642, %v3634
    %v5555 = vpack.c.b16 %v3643, %v3635
    %v5556 = vpack.c.b16 %v3644, %v3636
    %v5557 = vpack.c.b16 %v3645, %v3637
    %v5558 = vpack.c.b16 %v3646, %v3638
    %v5559 = vpack.c.b16 %v3647, %v3639
    %v5560 = vpack.c.b16 %v3656, %v3648
    %v5561 = vpack.c.b16 %v3657, %v3649
    %v5562 = vpack.c.b16 %v3658, %v3650
    %v5563 = vpack.c.b16 %v3659, %v3651
    %v5564 = vpack.c.b16 %v3660, %v3652
    %v5565 = vpack.c.b16 %v3661, %v3653
    %v5566 = vpack.c.b16 %v3662, %v3654
    %v5567 = vpack.c.b16 %v3663, %v3655
    %v5568 = vpack.c.b16 %v3672, %v3664
    %v5569 = vpack.c.b16 %v3673, %v3665
    %v5570 = vpack.c.b16 %v3674, %v3666
    %v5571 = vpack.c.b16 %v3675, %v3667
    %v5572 = vpack.c.b16 %v3676, %v3668
    %v5573 = vpack.c.b16 %v3677, %v3669
    %v5574 = vpack.c.b16 %v3678, %v3670
    %v5575 = vpack.c.b16 %v3679, %v3671
    %v5576 = vpack.c.b16 %v3688, %v3680
    %v5577 = vpack.c.b16 %v3689, %v3681
    %v5578 = vpack.c.b16 %v3690, %v3682
    %v5579 = vpack.c.b16 %v3691, %v3683
    %v5580 = vpack.c.b16 %v3692, %v3684
    %v5581 = vpack.c.b16 %v3693, %v3685
    %v5582 = vpack.c.b16 %v3694, %v3686
    %v5583 = vpack.c.b16 %v3695, %v3687
    %v5584 = vpack.c.b16 %v3704, %v3696
    %v5585 = vpack.c.b16 %v3705, %v3697
    %v5586 = vpack.c.b16 %v3706, %v3698
    %v5587 = vpack.c.b16 %v3707, %v3699
    %v5588 = vpack.c.b16 %v3708, %v3700
    %v5589 = vpack.c.b16 %v3709, %v3701
    %v5590 = vpack.c.b16 %v3710, %v3702
    %v5591 = vpack.c.b16 %v3711, %v3703
    %v5592 = vpack.c.b16 %v3720, %v3712
    %v5593 = vpack.c.b16 %v3721, %v3713
    %v5594 = vpack.c.b16 %v3722, %v3714
    %v5595 = vpack.c.b16 %v3723, %v3715
    %v5596 = vpack.c.b16 %v3724, %v3716
    %v5597 = vpack.c.b16 %v3725, %v3717
    %v5598 = vpack.c.b16 %v3726, %v3718
    %v5599 = vpack.c.b16 %v3727, %v3719
    %v5600 = vpack.c.b16 %v3736, %v3728
    %v5601 = vpack.c.b16 %v3737, %v3729
    %v5602 = vpack.c.b16 %v3738, %v3730
    %v5603 = vpack.c.b16 %v3739, %v3731
    %v5604 = vpack.c.b16 %v3740, %v3732
    %v5605 = vpack.c.b16 %v3741, %v3733
    %v5606 = vpack.c.b16 %v3742, %v3734
    %v5607 = vpack.c.b16 %v3743, %v3735
    %v5608 = vpack.c.b16 %v3752, %v3744
    %v5609 = vpack.c.b16 %v3753, %v3745
    %v5610 = vpack.c.b16 %v3754, %v3746
    %v5611 = vpack.c.b16 %v3755, %v3747
    %v5612 = vpack.c.b16 %v3756, %v3748
    %v5613 = vpack.c.b16 %v3757, %v3749
    %v5614 = vpack.c.b16 %v3758, %v3750
    %v5615 = vpack.c.b16 %v3759, %v3751
    %v5616 = vpack.c.b16 %v3768, %v3760
    %v5617 = vpack.c.b16 %v3769, %v3761
    %v5618 = vpack.c.b16 %v3770, %v3762
    %v5619 = vpack.c.b16 %v3771, %v3763
    %v5620 = vpack.c.b16 %v3772, %v3764
    %v5621 = vpack.c.b16 %v3773, %v3765
    %v5622 = vpack.c.b16 %v3774, %v3766
    %v5623 = vpack.c.b16 %v3775, %v3767
    %v5624 = vpack.c.b16 %v3784, %v3776
    %v5625 = vpack.c.b16 %v3785, %v3777
    %v5626 = vpack.c.b16 %v3786, %v3778
    %v5627 = vpack.c.b16 %v3787, %v3779
    %v5628 = vpack.c.b16 %v3788, %v3780
    %v5629 = vpack.c.b16 %v3789, %v3781
    %v5630 = vpack.c.b16 %v3790, %v3782
    %v5631 = vpack.c.b16 %v3791, %v3783
    %v5632 = vpack.c.b16 %v3800, %v3792
    %v5633 = vpack.c.b16 %v3801, %v3793
    %v5634 = vpack.c.b16 %v3802, %v3794
    %v5635 = vpack.c.b16 %v3803, %v3795
    %v5636 = vpack.c.b16 %v3804, %v3796
    %v5637 = vpack.c.b16 %v3805, %v3797
    %v5638 = vpack.c.b16 %v3806, %v3798
    %v5639 = vpack.c.b16 %v3807, %v3799
    %v5640 = vpack.c.b16 %v3816, %v3808
    %v5641 = vpack.c.b16 %v3817, %v3809
    %v5642 = vpack.c.b16 %v3818, %v3810
    %v5643 = vpack.c.b16 %v3819, %v3811
    %v5644 = vpack.c.b16 %v3820, %v3812
    %v5645 = vpack.c.b16 %v3821, %v3813
    %v5646 = vpack.c.b16 %v3822, %v3814
    %v5647 = vpack.c.b16 %v3823, %v3815
    %v5648 = vpack.c.b16 %v3832, %v3824
    %v5649 = vpack.c.b16 %v3833, %v3825
    %v5650 = vpack.c.b16 %v3834, %v3826
    %v5651 = vpack.c.b16 %v3835, %v3827
    %v5652 = vpack.c.b16 %v3836, %v3828
    %v5653 = vpack.c.b16 %v3837, %v3829
    %v5654 = vpack.c.b16 %v3838, %v3830
    %v5655 = vpack.c.b16 %v3839, %v3831
    %v5656 = vpack.c.b16 %v3848, %v3840
    %v5657 = vpack.c.b16 %v3849, %v3841
    %v5658 = vpack.c.b16 %v3850, %v3842
    %v5659 = vpack.c.b16 %v3851, %v3843
    %v5660 = vpack.c.b16 %v3852, %v3844
    %v5661 = vpack.c.b16 %v3853, %v3845
    %v5662 = vpack.c.b16 %v3854, %v3846
    %v5663 = vpack.c.b16 %v3855, %v3847
    %v5664 = vpack.c.b16 %v3864, %v3856
    %v5665 = vpack.c.b16 %v3865, %v3857
    %v5666 = vpack.c.b16 %v3866, %v3858
    %v5667 = vpack.c.b16 %v3867, %v3859
    %v5668 = vpack.c.b16 %v3868, %v3860
    %v5669 = vpack.c.b16 %v3869, %v3861
    %v5670 = vpack.c.b16 %v3870, %v3862
    %v5671 = vpack.c.b16 %v3871, %v3863
    %v5672 = vpack.c.b16 %v3880, %v3872
    %v5673 = vpack.c.b16 %v3881, %v3873
    %v5674 = vpack.c.b16 %v3882, %v3874
    %v5675 = vpack.c.b16 %v3883, %v3875
    %v5676 = vpack.c.b16 %v3884, %v3876
    %v5677 = vpack.c.b16 %v3885, %v3877
    %v5678 = vpack.c.b16 %v3886, %v3878
    %v5679 = vpack.c.b16 %v3887, %v3879
    %v5680 = vpack.c.b16 %v3896, %v3888
    %v5681 = vpack.c.b16 %v3897, %v3889
    %v5682 = vpack.c.b16 %v3898, %v3890
    %v5683 = vpack.c.b16 %v3899, %v3891
    %v5684 = vpack.c.b16 %v3900, %v3892
    %v5685 = vpack.c.b16 %v3901, %v3893
    %v5686 = vpack.c.b16 %v3902, %v3894
    %v5687 = vpack.c.b16 %v3903, %v3895
    %v5688 = vpack.c.b16 %v3912, %v3904
    %v5689 = vpack.c.b16 %v3913, %v3905
    %v5690 = vpack.c.b16 %v3914, %v3906
    %v5691 = vpack.c.b16 %v3915, %v3907
    %v5692 = vpack.c.b16 %v3916, %v3908
    %v5693 = vpack.c.b16 %v3917, %v3909
    %v5694 = vpack.c.b16 %v3918, %v3910
    %v5695 = vpack.c.b16 %v3919, %v3911
    %v5696 = vpack.c.b16 %v3928, %v3920
    %v5697 = vpack.c.b16 %v3929, %v3921
    %v5698 = vpack.c.b16 %v3930, %v3922
    %v5699 = vpack.c.b16 %v3931, %v3923
    %v5700 = vpack.c.b16 %v3932, %v3924
    %v5701 = vpack.c.b16 %v3933, %v3925
    %v5702 = vpack.c.b16 %v3934, %v3926
    %v5703 = vpack.c.b16 %v3935, %v3927
    %v5704 = vpack.c.b16 %v3944, %v3936
    %v5705 = vpack.c.b16 %v3945, %v3937
    %v5706 = vpack.c.b16 %v3946, %v3938
    %v5707 = vpack.c.b16 %v3947, %v3939
    %v5708 = vpack.c.b16 %v3948, %v3940
    %v5709 = vpack.c.b16 %v3949, %v3941
    %v5710 = vpack.c.b16 %v3950, %v3942
    %v5711 = vpack.c.b16 %v3951, %v3943
    %v5712 = vpack.c.b16 %v3960, %v3952
    %v5713 = vpack.c.b16 %v3961, %v3953
    %v5714 = vpack.c.b16 %v3962, %v3954
    %v5715 = vpack.c.b16 %v3963, %v3955
    %v5716 = vpack.c.b16 %v3964, %v3956
    %v5717 = vpack.c.b16 %v3965, %v3957
    %v5718 = vpack.c.b16 %v3966, %v3958
    %v5719 = vpack.c.b16 %v3967, %v3959
    %v5720 = vpack.c.b16 %v3976, %v3968
    %v5721 = vpack.c.b16 %v3977, %v3969
    %v5722 = vpack.c.b16 %v3978, %v3970
    %v5723 = vpack.c.b16 %v3979, %v3971
    %v5724 = vpack.c.b16 %v3980, %v3972
    %v5725 = vpack.c.b16 %v3981, %v3973
    %v5726 = vpack.c.b16 %v3982, %v3974
    %v5727 = vpack.c.b16 %v3983, %v3975
    %v5728 = vpack.c.b16 %v3992, %v3984
    %v5729 = vpack.c.b16 %v3993, %v3985
    %v5730 = vpack.c.b16 %v3994, %v3986
    %v5731 = vpack.c.b16 %v3995, %v3987
    %v5732 = vpack.c.b16 %v3996, %v3988
    %v5733 = vpack.c.b16 %v3997, %v3989
    %v5734 = vpack.c.b16 %v3998, %v3990
    %v5735 = vpack.c.b16 %v3999, %v3991
    %v5736 = vpack.c.b16 %v4008, %v4000
    %v5737 = vpack.c.b16 %v4009, %v4001
    %v5738 = vpack.c.b16 %v4010, %v4002
    %v5739 = vpack.c.b16 %v4011, %v4003
    %v5740 = vpack.c.b16 %v4012, %v4004
    %v5741 = vpack.c.b16 %v4013, %v4005
    %v5742 = vpack.c.b16 %v4014, %v4006
    %v5743 = vpack.c.b16 %v4015, %v4007
    %v5744 = vpack.c.b16 %v4024, %v4016
    %v5745 = vpack.c.b16 %v4025, %v4017
    %v5746 = vpack.c.b16 %v4026, %v4018
    %v5747 = vpack.c.b16 %v4027, %v4019
    %v5748 = vpack.c.b16 %v4028, %v4020
    %v5749 = vpack.c.b16 %v4029, %v4021
    %v5750 = vpack.c.b16 %v4030, %v4022
    %v5751 = vpack.c.b16 %v4031, %v4023
    %v5752 = vpack.c.b16 %v4040, %v4032
    %v5753 = vpack.c.b16 %v4041, %v4033
    %v5754 = vpack.c.b16 %v4042, %v4034
    %v5755 = vpack.c.b16 %v4043, %v4035
    %v5756 = vpack.c.b16 %v4044, %v4036
    %v5757 = vpack.c.b16 %v4045, %v4037
    %v5758 = vpack.c.b16 %v4046, %v4038
    %v5759 = vpack.c.b16 %v4047, %v4039
    %v5760 = vpack.c.b16 %v4056, %v4048
    %v5761 = vpack.c.b16 %v4057, %v4049
    %v5762 = vpack.c.b16 %v4058, %v4050
    %v5763 = vpack.c.b16 %v4059, %v4051
    %v5764 = vpack.c.b16 %v4060, %v4052
    %v5765 = vpack.c.b16 %v4061, %v4053
    %v5766 = vpack.c.b16 %v4062, %v4054
    %v5767 = vpack.c.b16 %v4063, %v4055
    %v5768 = vpack.c.b16 %v4072, %v4064
    %v5769 = vpack.c.b16 %v4073, %v4065
    %v5770 = vpack.c.b16 %v4074, %v4066
    %v5771 = vpack.c.b16 %v4075, %v4067
    %v5772 = vpack.c.b16 %v4076, %v4068
    %v5773 = vpack.c.b16 %v4077, %v4069
    %v5774 = vpack.c.b16 %v4078, %v4070
    %v5775 = vpack.c.b16 %v4079, %v4071
    %v5776 = vpack.c.b16 %v4088, %v4080
    %v5777 = vpack.c.b16 %v4089, %v4081
    %v5778 = vpack.c.b16 %v4090, %v4082
    %v5779 = vpack.c.b16 %v4091, %v4083
    %v5780 = vpack.c.b16 %v4092, %v4084
    %v5781 = vpack.c.b16 %v4093, %v4085
    %v5782 = vpack.c.b16 %v4094, %v4086
    %v5783 = vpack.c.b16 %v4095, %v4087
    %v5784 = vpack.c.b16 %v4104, %v4096
    %v5785 = vpack.c.b16 %v4105, %v4097
    %v5786 = vpack.c.b16 %v4106, %v4098
    %v5787 = vpack.c.b16 %v4107, %v4099
    %v5788 = vpack.c.b16 %v4108, %v4100
    %v5789 = vpack.c.b16 %v4109, %v4101
    %v5790 = vpack.c.b16 %v4110, %v4102
    %v5791 = vpack.c.b16 %v4111, %v4103
    %v5792 = vpack.c.b16 %v4120, %v4112
    %v5793 = vpack.c.b16 %v4121, %v4113
    %v5794 = vpack.c.b16 %v4122, %v4114
    %v5795 = vpack.c.b16 %v4123, %v4115
    %v5796 = vpack.c.b16 %v4124, %v4116
    %v5797 = vpack.c.b16 %v4125, %v4117
    %v5798 = vpack.c.b16 %v4126, %v4118
    %v5799 = vpack.c.b16 %v4127, %v4119
    %v5800 = vpack.c.b16 %v4136, %v4128
    %v5801 = vpack.c.b16 %v4137, %v4129
    %v5802 = vpack.c.b16 %v4138, %v4130
    %v5803 = vpack.c.b16 %v4139, %v4131
    %v5804 = vpack.c.b16 %v4140, %v4132
    %v5805 = vpack.c.b16 %v4141, %v4133
    %v5806 = vpack.c.b16 %v4142, %v4134
    %v5807 = vpack.c.b16 %v4143, %v4135
    %v5808 = vpack.c.b16 %v4152, %v4144
    %v5809 = vpack.c.b16 %v4153, %v4145
    %v5810 = vpack.c.b16 %v4154, %v4146
    %v5811 = vpack.c.b16 %v4155, %v4147
    %v5812 = vpack.c.b16 %v4156, %v4148
    %v5813 = vpack.c.b16 %v4157, %v4149
    %v5814 = vpack.c.b16 %v4158, %v4150
    %v5815 = vpack.c.b16 %v4159, %v4151
    %v5816 = vpack.c.b16 %v4168, %v4160
    %v5817 = vpack.c.b16 %v4169, %v4161
    %v5818 = vpack.c.b16 %v4170, %v4162
    %v5819 = vpack.c.b16 %v4171, %v4163
    %v5820 = vpack.c.b16 %v4172, %v4164
    %v5821 = vpack.c.b16 %v4173, %v4165
    %v5822 = vpack.c.b16 %v4174, %v4166
    %v5823 = vpack.c.b16 %v4175, %v4167
    %v5824 = vpack.c.b16 %v4184, %v4176
    %v5825 = vpack.c.b16 %v4185, %v4177
    %v5826 = vpack.c.b16 %v4186, %v4178
    %v5827 = vpack.c.b16 %v4187, %v4179
    %v5828 = vpack.c.b16 %v4188, %v4180
    %v5829 = vpack.c.b16 %v4189, %v4181
    %v5830 = vpack.c.b16 %v4190, %v4182
    %v5831 = vpack.c.b16 %v4191, %v4183
    %v5832 = vpack.c.b16 %v4200, %v4192
    %v5833 = vpack.c.b16 %v4201, %v4193
    %v5834 = vpack.c.b16 %v4202, %v4194
    %v5835 = vpack.c.b16 %v4203, %v4195
    %v5836 = vpack.c.b16 %v4204, %v4196
    %v5837 = vpack.c.b16 %v4205, %v4197
    %v5838 = vpack.c.b16 %v4206, %v4198
    %v5839 = vpack.c.b16 %v4207, %v4199
    %v5840 = vpack.c.b16 %v4216, %v4208
    %v5841 = vpack.c.b16 %v4217, %v4209
    %v5842 = vpack.c.b16 %v4218, %v4210
    %v5843 = vpack.c.b16 %v4219, %v4211
    %v5844 = vpack.c.b16 %v4220, %v4212
    %v5845 = vpack.c.b16 %v4221, %v4213
    %v5846 = vpack.c.b16 %v4222, %v4214
    %v5847 = vpack.c.b16 %v4223, %v4215
    %v5848 = vpack.c.b16 %v4232, %v4224
    %v5849 = vpack.c.b16 %v4233, %v4225
    %v5850 = vpack.c.b16 %v4234, %v4226
    %v5851 = vpack.c.b16 %v4235, %v4227
    %v5852 = vpack.c.b16 %v4236, %v4228
    %v5853 = vpack.c.b16 %v4237, %v4229
    %v5854 = vpack.c.b16 %v4238, %v4230
    %v5855 = vpack.c.b16 %v4239, %v4231
    %v5856 = vpack.c.b16 %v4248, %v4240
    %v5857 = vpack.c.b16 %v4249, %v4241
    %v5858 = vpack.c.b16 %v4250, %v4242
    %v5859 = vpack.c.b16 %v4251, %v4243
    %v5860 = vpack.c.b16 %v4252, %v4244
    %v5861 = vpack.c.b16 %v4253, %v4245
    %v5862 = vpack.c.b16 %v4254, %v4246
    %v5863 = vpack.c.b16 %v4255, %v4247
    %v5864 = vpack.c.b16 %v4264, %v4256
    %v5865 = vpack.c.b16 %v4265, %v4257
    %v5866 = vpack.c.b16 %v4266, %v4258
    %v5867 = vpack.c.b16 %v4267, %v4259
    %v5868 = vpack.c.b16 %v4268, %v4260
    %v5869 = vpack.c.b16 %v4269, %v4261
    %v5870 = vpack.c.b16 %v4270, %v4262
    %v5871 = vpack.c.b16 %v4271, %v4263
    %v5872 = vpack.c.b16 %v4280, %v4272
    %v5873 = vpack.c.b16 %v4281, %v4273
    %v5874 = vpack.c.b16 %v4282, %v4274
    %v5875 = vpack.c.b16 %v4283, %v4275
    %v5876 = vpack.c.b16 %v4284, %v4276
    %v5877 = vpack.c.b16 %v4285, %v4277
    %v5878 = vpack.c.b16 %v4286, %v4278
    %v5879 = vpack.c.b16 %v4287, %v4279
    %v5880 = vpack.c.b16 %v4296, %v4288
    %v5881 = vpack.c.b16 %v4297, %v4289
    %v5882 = vpack.c.b16 %v4298, %v4290
    %v5883 = vpack.c.b16 %v4299, %v4291
    %v5884 = vpack.c.b16 %v4300, %v4292
    %v5885 = vpack.c.b16 %v4301, %v4293
    %v5886 = vpack.c.b16 %v4302, %v4294
    %v5887 = vpack.c.b16 %v4303, %v4295
    %v5888 = vpack.c.b16 %v4312, %v4304
    %v5889 = vpack.c.b16 %v4313, %v4305
    %v5890 = vpack.c.b16 %v4314, %v4306
    %v5891 = vpack.c.b16 %v4315, %v4307
    %v5892 = vpack.c.b16 %v4316, %v4308
    %v5893 = vpack.c.b16 %v4317, %v4309
    %v5894 = vpack.c.b16 %v4318, %v4310
    %v5895 = vpack.c.b16 %v4319, %v4311
    %v5896 = vpack.c.b16 %v4328, %v4320
    %v5897 = vpack.c.b16 %v4329, %v4321
    %v5898 = vpack.c.b16 %v4330, %v4322
    %v5899 = vpack.c.b16 %v4331, %v4323
    %v5900 = vpack.c.b16 %v4332, %v4324
    %v5901 = vpack.c.b16 %v4333, %v4325
    %v5902 = vpack.c.b16 %v4334, %v4326
    %v5903 = vpack.c.b16 %v4335, %v4327
    %v5904 = vpack.c.b16 %v4344, %v4336
    %v5905 = vpack.c.b16 %v4345, %v4337
    %v5906 = vpack.c.b16 %v4346, %v4338
    %v5907 = vpack.c.b16 %v4347, %v4339
    %v5908 = vpack.c.b16 %v4348, %v4340
    %v5909 = vpack.c.b16 %v4349, %v4341
    %v5910 = vpack.c.b16 %v4350, %v4342
    %v5911 = vpack.c.b16 %v4351, %v4343
    %v5912 = vpack.c.b16 %v4360, %v4352
    %v5913 = vpack.c.b16 %v4361, %v4353
    %v5914 = vpack.c.b16 %v4362, %v4354
    %v5915 = vpack.c.b16 %v4363, %v4355
    %v5916 = vpack.c.b16 %v4364, %v4356
    %v5917 = vpack.c.b16 %v4365, %v4357
    %v5918 = vpack.c.b16 %v4366, %v4358
    %v5919 = vpack.c.b16 %v4367, %v4359
    %v5920 = vpack.c.b16 %v4376, %v4368
    %v5921 = vpack.c.b16 %v4377, %v4369
    %v5922 = vpack.c.b16 %v4378, %v4370
    %v5923 = vpack.c.b16 %v4379, %v4371
    %v5924 = vpack.c.b16 %v4380, %v4372
    %v5925 = vpack.c.b16 %v4381, %v4373
    %v5926 = vpack.c.b16 %v4382, %v4374
    %v5927 = vpack.c.b16 %v4383, %v4375
    %v5928 = vpack.c.b16 %v4392, %v4384
    %v5929 = vpack.c.b16 %v4393, %v4385
    %v5930 = vpack.c.b16 %v4394, %v4386
    %v5931 = vpack.c.b16 %v4395, %v4387
    %v5932 = vpack.c.b16 %v4396, %v4388
    %v5933 = vpack.c.b16 %v4397, %v4389
    %v5934 = vpack.c.b16 %v4398, %v4390
    %v5935 = vpack.c.b16 %v4399, %v4391
    %v5936 = vpack.c.b16 %v4408, %v4400
    %v5937 = vpack.c.b16 %v4409, %v4401
    %v5938 = vpack.c.b16 %v4410, %v4402
    %v5939 = vpack.c.b16 %v4411, %v4403
    %v5940 = vpack.c.b16 %v4412, %v4404
    %v5941 = vpack.c.b16 %v4413, %v4405
    %v5942 = vpack.c.b16 %v4414, %v4406
    %v5943 = vpack.c.b16 %v4415, %v4407
    %v5944 = vpack.c.b16 %v4424, %v4416
    %v5945 = vpack.c.b16 %v4425, %v4417
    %v5946 = vpack.c.b16 %v4426, %v4418
    %v5947 = vpack.c.b16 %v4427, %v4419
    %v5948 = vpack.c.b16 %v4428, %v4420
    %v5949 = vpack.c.b16 %v4429, %v4421
    %v5950 = vpack.c.b16 %v4430, %v4422
    %v5951 = vpack.c.b16 %v4431, %v4423
    %v5952 = vpack.c.b16 %v4440, %v4432
    %v5953 = vpack.c.b16 %v4441, %v4433
    %v5954 = vpack.c.b16 %v4442, %v4434
    %v5955 = vpack.c.b16 %v4443, %v4435
    %v5956 = vpack.c.b16 %v4444, %v4436
    %v5957 = vpack.c.b16 %v4445, %v4437
    %v5958 = vpack.c.b16 %v4446, %v4438
    %v5959 = vpack.c.b16 %v4447, %v4439
    %v5960 = vpack.c.b16 %v4456, %v4448
    %v5961 = vpack.c.b16 %v4457, %v4449
    %v5962 = vpack.c.b16 %v4458, %v4450
    %v5963 = vpack.c.b16 %v4459, %v4451
    %v5964 = vpack.c.b16 %v4460, %v4452
    %v5965 = vpack.c.b16 %v4461, %v4453
    %v5966 = vpack.c.b16 %v4462, %v4454
    %v5967 = vpack.c.b16 %v4463, %v4455
    %v5968 = vpack.c.b16 %v4472, %v4464
    %v5969 = vpack.c.b16 %v4473, %v4465
    %v5970 = vpack.c.b16 %v4474, %v4466
    %v5971 = vpack.c.b16 %v4475, %v4467
    %v5972 = vpack.c.b16 %v4476, %v4468
    %v5973 = vpack.c.b16 %v4477, %v4469
    %v5974 = vpack.c.b16 %v4478, %v4470
    %v5975 = vpack.c.b16 %v4479, %v4471
    %v5976 = vpack.c.b16 %v4488, %v4480
    %v5977 = vpack.c.b16 %v4489, %v4481
    %v5978 = vpack.c.b16 %v4490, %v4482
    %v5979 = vpack.c.b16 %v4491, %v4483
    %v5980 = vpack.c.b16 %v4492, %v4484
    %v5981 = vpack.c.b16 %v4493, %v4485
    %v5982 = vpack.c.b16 %v4494, %v4486
    %v5983 = vpack.c.b16 %v4495, %v4487
    %v5984 = vpack.c.b16 %v4504, %v4496
    %v5985 = vpack.c.b16 %v4505, %v4497
    %v5986 = vpack.c.b16 %v4506, %v4498
    %v5987 = vpack.c.b16 %v4507, %v4499
    %v5988 = vpack.c.b16 %v4508, %v4500
    %v5989 = vpack.c.b16 %v4509, %v4501
    %v5990 = vpack.c.b16 %v4510, %v4502
    %v5991 = vpack.c.b16 %v4511, %v4503
    %v5992 = vpack.c.b16 %v4520, %v4512
    %v5993 = vpack.c.b16 %v4521, %v4513
    %v5994 = vpack.c.b16 %v4522, %v4514
    %v5995 = vpack.c.b16 %v4523, %v4515
    %v5996 = vpack.c.b16 %v4524, %v4516
    %v5997 = vpack.c.b16 %v4525, %v4517
    %v5998 = vpack.c.b16 %v4526, %v4518
    %v5999 = vpack.c.b16 %v4527, %v4519
    %v6000 = vpack.c.b16 %v4536, %v4528
    %v6001 = vpack.c.b16 %v4537, %v4529
    %v6002 = vpack.c.b16 %v4538, %v4530
    %v6003 = vpack.c.b16 %v4539, %v4531
    %v6004 = vpack.c.b16 %v4540, %v4532
    %v6005 = vpack.c.b16 %v4541, %v4533
    %v6006 = vpack.c.b16 %v4542, %v4534
    %v6007 = vpack.c.b16 %v4543, %v4535
    %v6008 = vpack.c.b16 %v4552, %v4544
    %v6009 = vpack.c.b16 %v4553, %v4545
    %v6010 = vpack.c.b16 %v4554, %v4546
    %v6011 = vpack.c.b16 %v4555, %v4547
    %v6012 = vpack.c.b16 %v4556, %v4548
    %v6013 = vpack.c.b16 %v4557, %v4549
    %v6014 = vpack.c.b16 %v4558, %v4550
    %v6015 = vpack.c.b16 %v4559, %v4551
    %v6016 = vpack.c.b16 %v4568, %v4560
    %v6017 = vpack.c.b16 %v4569, %v4561
    %v6018 = vpack.c.b16 %v4570, %v4562
    %v6019 = vpack.c.b16 %v4571, %v4563
    %v6020 = vpack.c.b16 %v4572, %v4564
    %v6021 = vpack.c.b16 %v4573, %v4565
    %v6022 = vpack.c.b16 %v4574, %v4566
    %v6023 = vpack.c.b16 %v4575, %v4567
    %v6024 = vpack.c.b16 %v4584, %v4576
    %v6025 = vpack.c.b16 %v4585, %v4577
    %v6026 = vpack.c.b16 %v4586, %v4578
    %v6027 = vpack.c.b16 %v4587, %v4579
    %v6028 = vpack.c.b16 %v4588, %v4580
    %v6029 = vpack.c.b16 %v4589, %v4581
    %v6030 = vpack.c.b16 %v4590, %v4582
    %v6031 = vpack.c.b16 %v4591, %v4583
    %v6032 = vpack.c.b16 %v4600, %v4592
    %v6033 = vpack.c.b16 %v4601, %v4593
    %v6034 = vpack.c.b16 %v4602, %v4594
    %v6035 = vpack.c.b16 %v4603, %v4595
    %v6036 = vpack.c.b16 %v4604, %v4596
    %v6037 = vpack.c.b16 %v4605, %v4597
    %v6038 = vpack.c.b16 %v4606, %v4598
    %v6039 = vpack.c.b16 %v4607, %v4599
    %v6040 = vpack.c.b16 %v4616, %v4608
    %v6041 = vpack.c.b16 %v4617, %v4609
    %v6042 = vpack.c.b16 %v4618, %v4610
    %v6043 = vpack.c.b16 %v4619, %v4611
    %v6044 = vpack.c.b16 %v4620, %v4612
    %v6045 = vpack.c.b16 %v4621, %v4613
    %v6046 = vpack.c.b16 %v4622, %v4614
    %v6047 = vpack.c.b16 %v4623, %v4615
    %v6048 = vpack.c.b16 %v4632, %v4624
    %v6049 = vpack.c.b16 %v4633, %v4625
    %v6050 = vpack.c.b16 %v4634, %v4626
    %v6051 = vpack.c.b16 %v4635, %v4627
    %v6052 = vpack.c.b16 %v4636, %v4628
    %v6053 = vpack.c.b16 %v4637, %v4629
    %v6054 = vpack.c.b16 %v4638, %v4630
    %v6055 = vpack.c.b16 %v4639, %v4631
    %v6056 = vpack.c.b16 %v4648, %v4640
    %v6057 = vpack.c.b16 %v4649, %v4641
    %v6058 = vpack.c.b16 %v4650, %v4642
    %v6059 = vpack.c.b16 %v4651, %v4643
    %v6060 = vpack.c.b16 %v4652, %v4644
    %v6061 = vpack.c.b16 %v4653, %v4645
    %v6062 = vpack.c.b16 %v4654, %v4646
    %v6063 = vpack.c.b16 %v4655, %v4647
    %v6064 = vpack.c.b16 %v4664, %v4656
    %v6065 = vpack.c.b16 %v4665, %v4657
    %v6066 = vpack.c.b16 %v4666, %v4658
    %v6067 = vpack.c.b16 %v4667, %v4659
    %v6068 = vpack.c.b16 %v4668, %v4660
    %v6069 = vpack.c.b16 %v4669, %v4661
    %v6070 = vpack.c.b16 %v4670, %v4662
    %v6071 = vpack.c.b16 %v4671, %v4663
    %v6072 = vpack.c.b16 %v4680, %v4672
    %v6073 = vpack.c.b16 %v4681, %v4673
    %v6074 = vpack.c.b16 %v4682, %v4674
    %v6075 = vpack.c.b16 %v4683, %v4675
    %v6076 = vpack.c.b16 %v4684, %v4676
    %v6077 = vpack.c.b16 %v4685, %v4677
    %v6078 = vpack.c.b16 %v4686, %v4678
    %v6079 = vpack.c.b16 %v4687, %v4679
    %v6080 = vpack.c.b16 %v4696, %v4688
    %v6081 = vpack.c.b16 %v4697, %v4689
    %v6082 = vpack.c.b16 %v4698, %v4690
    %v6083 = vpack.c.b16 %v4699, %v4691
    %v6084 = vpack.c.b16 %v4700, %v4692
    %v6085 = vpack.c.b16 %v4701, %v4693
    %v6086 = vpack.c.b16 %v4702, %v4694
    %v6087 = vpack.c.b16 %v4703, %v4695
    %v6088 = vpack.c.b16 %v4712, %v4704
    %v6089 = vpack.c.b16 %v4713, %v4705
    %v6090 = vpack.c.b16 %v4714, %v4706
    %v6091 = vpack.c.b16 %v4715, %v4707
    %v6092 = vpack.c.b16 %v4716, %v4708
    %v6093 = vpack.c.b16 %v4717, %v4709
    %v6094 = vpack.c.b16 %v4718, %v4710
    %v6095 = vpack.c.b16 %v4719, %v4711
    %v6096 = vpack.c.b16 %v4728, %v4720
    %v6097 = vpack.c.b16 %v4729, %v4721
    %v6098 = vpack.c.b16 %v4730, %v4722
    %v6099 = vpack.c.b16 %v4731, %v4723
    %v6100 = vpack.c.b16 %v4732, %v4724
    %v6101 = vpack.c.b16 %v4733, %v4725
    %v6102 = vpack.c.b16 %v4734, %v4726
    %v6103 = vpack.c.b16 %v4735, %v4727
    %v6104 = vpack.c.b16 %v4744, %v4736
    %v6105 = vpack.c.b16 %v4745, %v4737
    %v6106 = vpack.c.b16 %v4746, %v4738
    %v6107 = vpack.c.b16 %v4747, %v4739
    %v6108 = vpack.c.b16 %v4748, %v4740
    %v6109 = vpack.c.b16 %v4749, %v4741
    %v6110 = vpack.c.b16 %v4750, %v4742
    %v6111 = vpack.c.b16 %v4751, %v4743
    %v6112 = vpack.c.b16 %v4760, %v4752
    %v6113 = vpack.c.b16 %v4761, %v4753
    %v6114 = vpack.c.b16 %v4762, %v4754
    %v6115 = vpack.c.b16 %v4763, %v4755
    %v6116 = vpack.c.b16 %v4764, %v4756
    %v6117 = vpack.c.b16 %v4765, %v4757
    %v6118 = vpack.c.b16 %v4766, %v4758
    %v6119 = vpack.c.b16 %v4767, %v4759
    %v6120 = vpack.c.b16 %v4776, %v4768
    %v6121 = vpack.c.b16 %v4777, %v4769
    %v6122 = vpack.c.b16 %v4778, %v4770
    %v6123 = vpack.c.b16 %v4779, %v4771
    %v6124 = vpack.c.b16 %v4780, %v4772
    %v6125 = vpack.c.b16 %v4781, %v4773
    %v6126 = vpack.c.b16 %v4782, %v4774
    %v6127 = vpack.c.b16 %v4783, %v4775
    %v6128 = vpack.c.b16 %v4792, %v4784
    %v6129 = vpack.c.b16 %v4793, %v4785
    %v6130 = vpack.c.b16 %v4794, %v4786
    %v6131 = vpack.c.b16 %v4795, %v4787
    %v6132 = vpack.c.b16 %v4796, %v4788
    %v6133 = vpack.c.b16 %v4797, %v4789
    %v6134 = vpack.c.b16 %v4798, %v4790
    %v6135 = vpack.c.b16 %v4799, %v4791
    %v6136 = vpack.c.b16 %v4808, %v4800
    %v6137 = vpack.c.b16 %v4809, %v4801
    %v6138 = vpack.c.b16 %v4810, %v4802
    %v6139 = vpack.c.b16 %v4811, %v4803
    %v6140 = vpack.c.b16 %v4812, %v4804
    %v6141 = vpack.c.b16 %v4813, %v4805
    %v6142 = vpack.c.b16 %v4814, %v4806
    %v6143 = vpack.c.b16 %v4815, %v4807
    %v6144 = vpack.c.b16 %v4824, %v4816
    %v6145 = vpack.c.b16 %v4825, %v4817
    %v6146 = vpack.c.b16 %v4826, %v4818
    %v6147 = vpack.c.b16 %v4827, %v4819
    %v6148 = vpack.c.b16 %v4828, %v4820
    %v6149 = vpack.c.b16 %v4829, %v4821
    %v6150 = vpack.c.b16 %v4830, %v4822
    %v6151 = vpack.c.b16 %v4831, %v4823
    %v6152 = vpack.c.b16 %v4840, %v4832
    %v6153 = vpack.c.b16 %v4841, %v4833
    %v6154 = vpack.c.b16 %v4842, %v4834
    %v6155 = vpack.c.b16 %v4843, %v4835
    %v6156 = vpack.c.b16 %v4844, %v4836
    %v6157 = vpack.c.b16 %v4845, %v4837
    %v6158 = vpack.c.b16 %v4846, %v4838
    %v6159 = vpack.c.b16 %v4847, %v4839
    %v6160 = vpack.c.b16 %v4856, %v4848
    %v6161 = vpack.c.b16 %v4857, %v4849
    %v6162 = vpack.c.b16 %v4858, %v4850
    %v6163 = vpack.c.b16 %v4859, %v4851
    %v6164 = vpack.c.b16 %v4860, %v4852
    %v6165 = vpack.c.b16 %v4861, %v4853
    %v6166 = vpack.c.b16 %v4862, %v4854
    %v6167 = vpack.c.b16 %v4863, %v4855
    %v6168 = vpack.c.b16 %v4872, %v4864
    %v6169 = vpack.c.b16 %v4873, %v4865
    %v6170 = vpack.c.b16 %v4874, %v4866
    %v6171 = vpack.c.b16 %v4875, %v4867
    %v6172 = vpack.c.b16 %v4876, %v4868
    %v6173 = vpack.c.b16 %v4877, %v4869
    %v6174 = vpack.c.b16 %v4878, %v4870
    %v6175 = vpack.c.b16 %v4879, %v4871
    %v6176 = vpack.c.b16 %v4888, %v4880
    %v6177 = vpack.c.b16 %v4889, %v4881
    %v6178 = vpack.c.b16 %v4890, %v4882
    %v6179 = vpack.c.b16 %v4891, %v4883
    %v6180 = vpack.c.b16 %v4892, %v4884
    %v6181 = vpack.c.b16 %v4893, %v4885
    %v6182 = vpack.c.b16 %v4894, %v4886
    %v6183 = vpack.c.b16 %v4895, %v4887
    %v6184 = vpack.c.b16 %v4904, %v4896
    %v6185 = vpack.c.b16 %v4905, %v4897
    %v6186 = vpack.c.b16 %v4906, %v4898
    %v6187 = vpack.c.b16 %v4907, %v4899
    %v6188 = vpack.c.b16 %v4908, %v4900
    %v6189 = vpack.c.b16 %v4909, %v4901
    %v6190 = vpack.c.b16 %v4910, %v4902
    %v6191 = vpack.c.b16 %v4911, %v4903
    %v6192 = vpack.c.b16 %v4920, %v4912
    %v6193 = vpack.c.b16 %v4921, %v4913
    %v6194 = vpack.c.b16 %v4922, %v4914
    %v6195 = vpack.c.b16 %v4923, %v4915
    %v6196 = vpack.c.b16 %v4924, %v4916
    %v6197 = vpack.c.b16 %v4925, %v4917
    %v6198 = vpack.c.b16 %v4926, %v4918
    %v6199 = vpack.c.b16 %v4927, %v4919
    %v6200 = vpack.c.b16 %v4936, %v4928
    %v6201 = vpack.c.b16 %v4937, %v4929
    %v6202 = vpack.c.b16 %v4938, %v4930
    %v6203 = vpack.c.b16 %v4939, %v4931
    %v6204 = vpack.c.b16 %v4940, %v4932
    %v6205 = vpack.c.b16 %v4941, %v4933
    %v6206 = vpack.c.b16 %v4942, %v4934
    %v6207 = vpack.c.b16 %v4943, %v4935
    %v6208 = vpack.c.b16 %v4952, %v4944
    %v6209 = vpack.c.b16 %v4953, %v4945
    %v6210 = vpack.c.b16 %v4954, %v4946
    %v6211 = vpack.c.b16 %v4955, %v4947
    %v6212 = vpack.c.b16 %v4956, %v4948
    %v6213 = vpack.c.b16 %v4957, %v4949
    %v6214 = vpack.c.b16 %v4958, %v4950
    %v6215 = vpack.c.b16 %v4959, %v4951
    %v6216 = vpack.c.b16 %v4968, %v4960
    %v6217 = vpack.c.b16 %v4969, %v4961
    %v6218 = vpack.c.b16 %v4970, %v4962
    %v6219 = vpack.c.b16 %v4971, %v4963
    %v6220 = vpack.c.b16 %v4972, %v4964
    %v6221 = vpack.c.b16 %v4973, %v4965
    %v6222 = vpack.c.b16 %v4974, %v4966
    %v6223 = vpack.c.b16 %v4975, %v4967
    %v6224 = vpack.c.b16 %v4984, %v4976
    %v6225 = vpack.c.b16 %v4985, %v4977
    %v6226 = vpack.c.b16 %v4986, %v4978
    %v6227 = vpack.c.b16 %v4987, %v4979
    %v6228 = vpack.c.b16 %v4988, %v4980
    %v6229 = vpack.c.b16 %v4989, %v4981
    %v6230 = vpack.c.b16 %v4990, %v4982
    %v6231 = vpack.c.b16 %v4991, %v4983
    %v6232 = vpack.c.b16 %v5000, %v4992
    %v6233 = vpack.c.b16 %v5001, %v4993
    %v6234 = vpack.c.b16 %v5002, %v4994
    %v6235 = vpack.c.b16 %v5003, %v4995
    %v6236 = vpack.c.b16 %v5004, %v4996
    %v6237 = vpack.c.b16 %v5005, %v4997
    %v6238 = vpack.c.b16 %v5006, %v4998
    %v6239 = vpack.c.b16 %v5007, %v4999
    %v6240 = vpack.c.b16 %v5016, %v5008
    %v6241 = vpack.c.b16 %v5017, %v5009
    %v6242 = vpack.c.b16 %v5018, %v5010
    %v6243 = vpack.c.b16 %v5019, %v5011
    %v6244 = vpack.c.b16 %v5020, %v5012
    %v6245 = vpack.c.b16 %v5021, %v5013
    %v6246 = vpack.c.b16 %v5022, %v5014
    %v6247 = vpack.c.b16 %v5023, %v5015
    %v6248 = vpack.c.b16 %v5032, %v5024
    %v6249 = vpack.c.b16 %v5033, %v5025
    %v6250 = vpack.c.b16 %v5034, %v5026
    %v6251 = vpack.c.b16 %v5035, %v5027
    %v6252 = vpack.c.b16 %v5036, %v5028
    %v6253 = vpack.c.b16 %v5037, %v5029
    %v6254 = vpack.c.b16 %v5038, %v5030
    %v6255 = vpack.c.b16 %v5039, %v5031
    %v6256 = vpack.c.b16 %v5048, %v5040
    %v6257 = vpack.c.b16 %v5049, %v5041
    %v6258 = vpack.c.b16 %v5050, %v5042
    %v6259 = vpack.c.b16 %v5051, %v5043
    %v6260 = vpack.c.b16 %v5052, %v5044
    %v6261 = vpack.c.b16 %v5053, %v5045
    %v6262 = vpack.c.b16 %v5054, %v5046
    %v6263 = vpack.c.b16 %v5055, %v5047
    %v6264 = vpack.c.b16 %v5064, %v5056
    %v6265 = vpack.c.b16 %v5065, %v5057
    %v6266 = vpack.c.b16 %v5066, %v5058
    %v6267 = vpack.c.b16 %v5067, %v5059
    %v6268 = vpack.c.b16 %v5068, %v5060
    %v6269 = vpack.c.b16 %v5069, %v5061
    %v6270 = vpack.c.b16 %v5070, %v5062
    %v6271 = vpack.c.b16 %v5071, %v5063
    %v6272 = vpack.c.b16 %v5080, %v5072
    %v6273 = vpack.c.b16 %v5081, %v5073
    %v6274 = vpack.c.b16 %v5082, %v5074
    %v6275 = vpack.c.b16 %v5083, %v5075
    %v6276 = vpack.c.b16 %v5084, %v5076
    %v6277 = vpack.c.b16 %v5085, %v5077
    %v6278 = vpack.c.b16 %v5086, %v5078
    %v6279 = vpack.c.b16 %v5087, %v5079
    %v6280 = vpack.c.b16 %v5096, %v5088
    %v6281 = vpack.c.b16 %v5097, %v5089
    %v6282 = vpack.c.b16 %v5098, %v5090
    %v6283 = vpack.c.b16 %v5099, %v5091
    %v6284 = vpack.c.b16 %v5100, %v5092
    %v6285 = vpack.c.b16 %v5101, %v5093
    %v6286 = vpack.c.b16 %v5102, %v5094
    %v6287 = vpack.c.b16 %v5103, %v5095
    %v6288 = vpack.c.b16 %v5112, %v5104
    %v6289 = vpack.c.b16 %v5113, %v5105
    %v6290 = vpack.c.b16 %v5114, %v5106
    %v6291 = vpack.c.b16 %v5115, %v5107
    %v6292 = vpack.c.b16 %v5116, %v5108
    %v6293 = vpack.c.b16 %v5117, %v5109
    %v6294 = vpack.c.b16 %v5118, %v5110
    %v6295 = vpack.c.b16 %v5119, %v5111
    %vm7472 = vcmask 392192
    %v7474 = vsel %vm7472, %v373, 0
    %7476 = vmatprep.subr.bf16.mxu0 %v5121
    %7477 = vmatpush1.bf16.msra.mxu0 %v5120
    %7478 = vmatprep.subr.bf16.mxu0 %v5129
    %7479 = vmatpush1.bf16.msra.mxu0 %v5128
    %7480 = vmatprep.subr.bf16.mxu0 %v5137
    %7481 = vmatpush1.bf16.msra.mxu0 %v5136
    %7482 = vmatprep.subr.bf16.mxu0 %v5145
    %7483 = vmatpush1.bf16.msra.mxu0 %v5144
    %7484 = vmatprep.subr.bf16.mxu0 %v5153
    %7485 = vmatpush1.bf16.msra.mxu0 %v5152
    %7486 = vmatprep.subr.bf16.mxu0 %v5161
    %7487 = vmatpush1.bf16.msra.mxu0 %v5160
    %7488 = vmatprep.subr.bf16.mxu0 %v5169
    %7489 = vmatpush1.bf16.msra.mxu0 %v5168
    %7490 = vmatprep.subr.bf16.mxu0 %v5177
    %7491 = vmatpush1.bf16.msra.mxu0 %v5176
    %7492 = vmatprep.subr.bf16.mxu0 %v5185
    %7493 = vmatpush1.bf16.msra.mxu0 %v5184
    %7494 = vmatprep.subr.bf16.mxu0 %v5193
    %7495 = vmatpush1.bf16.msra.mxu0 %v5192
    %7496 = vmatprep.subr.bf16.mxu0 %v5201
    %7497 = vmatpush1.bf16.msra.mxu0 %v5200
    %7498 = vmatprep.subr.bf16.mxu0 %v5209
    %7499 = vmatpush1.bf16.msra.mxu0 %v5208
    %7500 = vmatprep.subr.bf16.mxu0 %v5217
    %7501 = vmatpush1.bf16.msra.mxu0 %v5216
    %7502 = vmatprep.subr.bf16.mxu0 %v5225
    %7503 = vmatpush1.bf16.msra.mxu0 %v5224
    %7504 = vmatprep.subr.bf16.mxu0 %v5233
    %7505 = vmatpush1.bf16.msra.mxu0 %v5232
    %7506 = vmatprep.subr.bf16.mxu0 %v5241
    %7507 = vmatpush1.bf16.msra.mxu0 %v5240
    %7508 = vmatprep.mubr.bf16.mxu0 %v356
    %7509 = vmatmul.mubr.bf16.gmra.mrb[0].mxu0 %v355
    %v7510 = vpop.f32.mrb[0].mxu0
    %v7511 = vadd.f32 %v1555, %v7510
    %v7512 = vpop.f32.mrb[0].mxu0
    %v7513 = vadd.f32 %v1559, %v7512
    %v7514 = vpop.f32.mrb[0].mxu0
    %v7515 = vpop.f32.mrb[0].mxu0
    %7516 = vdwg.mxu0
    %7517 = vmatprep.subr.bf16.mxu0 %v5249
    %7518 = vmatpush1.bf16.msra.mxu0 %v5248
    %7519 = vmatprep.subr.bf16.mxu0 %v5257
    %7520 = vmatpush1.bf16.msra.mxu0 %v5256
    %7521 = vmatprep.subr.bf16.mxu0 %v5265
    %7522 = vmatpush1.bf16.msra.mxu0 %v5264
    %7523 = vmatprep.subr.bf16.mxu0 %v5273
    %7524 = vmatpush1.bf16.msra.mxu0 %v5272
    %7525 = vmatprep.subr.bf16.mxu0 %v5281
    %7526 = vmatpush1.bf16.msra.mxu0 %v5280
    %7527 = vmatprep.subr.bf16.mxu0 %v5289
    %7528 = vmatpush1.bf16.msra.mxu0 %v5288
    %7529 = vmatprep.subr.bf16.mxu0 %v5297
    %7530 = vmatpush1.bf16.msra.mxu0 %v5296
    %7531 = vmatprep.subr.bf16.mxu0 %v5305
    %7532 = vmatpush1.bf16.msra.mxu0 %v5304
    %7533 = vmatprep.subr.bf16.mxu0 %v5313
    %7534 = vmatpush1.bf16.msra.mxu0 %v5312
    %7535 = vmatprep.subr.bf16.mxu0 %v5321
    %7536 = vmatpush1.bf16.msra.mxu0 %v5320
    %7537 = vmatprep.subr.bf16.mxu0 %v5329
    %7538 = vmatpush1.bf16.msra.mxu0 %v5328
    %7539 = vmatprep.subr.bf16.mxu0 %v5337
    %7540 = vmatpush1.bf16.msra.mxu0 %v5336
    %7541 = vmatprep.subr.bf16.mxu0 %v5345
    %7542 = vmatpush1.bf16.msra.mxu0 %v5344
    %7543 = vmatprep.subr.bf16.mxu0 %v5353
    %7544 = vmatpush1.bf16.msra.mxu0 %v5352
    %7545 = vmatprep.subr.bf16.mxu0 %v5361
    %7546 = vmatpush1.bf16.msra.mxu0 %v5360
    %7547 = vmatprep.subr.bf16.mxu0 %v5369
    %7548 = vmatpush1.bf16.msra.mxu0 %v5368
    %7549 = vmatprep.mubr.bf16.mxu0 %v358
    %7550 = vmatmul.mubr.bf16.gmra.mrb[0].mxu0 %v357
    %v7551 = vpop.f32.mrb[0].mxu0
    %v7552 = vadd.f32 %v7511, %v7551
    %v7553 = vpop.f32.mrb[0].mxu0
    %v7554 = vadd.f32 %v7513, %v7553
    %v7555 = vpop.f32.mrb[0].mxu0
    %v7556 = vpop.f32.mrb[0].mxu0
    %7557 = vdwg.mxu0
    %7558 = vmatprep.subr.bf16.mxu0 %v5377
    %7559 = vmatpush1.bf16.msra.mxu0 %v5376
    %7560 = vmatprep.subr.bf16.mxu0 %v5385
    %7561 = vmatpush1.bf16.msra.mxu0 %v5384
    %7562 = vmatprep.subr.bf16.mxu0 %v5393
    %7563 = vmatpush1.bf16.msra.mxu0 %v5392
    %7564 = vmatprep.subr.bf16.mxu0 %v5401
    %7565 = vmatpush1.bf16.msra.mxu0 %v5400
    %7566 = vmatprep.subr.bf16.mxu0 %v5409
    %7567 = vmatpush1.bf16.msra.mxu0 %v5408
    %7568 = vmatprep.subr.bf16.mxu0 %v5417
    %7569 = vmatpush1.bf16.msra.mxu0 %v5416
    %7570 = vmatprep.subr.bf16.mxu0 %v5425
    %7571 = vmatpush1.bf16.msra.mxu0 %v5424
    %7572 = vmatprep.subr.bf16.mxu0 %v5433
    %7573 = vmatpush1.bf16.msra.mxu0 %v5432
    %7574 = vmatprep.subr.bf16.mxu0 %v5441
    %7575 = vmatpush1.bf16.msra.mxu0 %v5440
    %7576 = vmatprep.subr.bf16.mxu0 %v5449
    %7577 = vmatpush1.bf16.msra.mxu0 %v5448
    %7578 = vmatprep.subr.bf16.mxu0 %v5457
    %7579 = vmatpush1.bf16.msra.mxu0 %v5456
    %7580 = vmatprep.subr.bf16.mxu0 %v5465
    %7581 = vmatpush1.bf16.msra.mxu0 %v5464
    %7582 = vmatprep.subr.bf16.mxu0 %v5473
    %7583 = vmatpush1.bf16.msra.mxu0 %v5472
    %7584 = vmatprep.subr.bf16.mxu0 %v5481
    %7585 = vmatpush1.bf16.msra.mxu0 %v5480
    %7586 = vmatprep.subr.bf16.mxu0 %v5489
    %7587 = vmatpush1.bf16.msra.mxu0 %v5488
    %7588 = vmatprep.subr.bf16.mxu0 %v5497
    %7589 = vmatpush1.bf16.msra.mxu0 %v5496
    %7590 = vmatprep.mubr.bf16.mxu0 %v360
    %7591 = vmatmul.mubr.bf16.gmra.mrb[0].mxu0 %v359
    %v7592 = vpop.f32.mrb[0].mxu0
    %v7593 = vadd.f32 %v7552, %v7592
    %v7594 = vpop.f32.mrb[0].mxu0
    %v7595 = vadd.f32 %v7554, %v7594
    %v7596 = vpop.f32.mrb[0].mxu0
    %v7597 = vpop.f32.mrb[0].mxu0
    %7598 = vdwg.mxu0
    %7599 = vmatprep.subr.bf16.mxu0 %v5505
    %7600 = vmatpush1.bf16.msra.mxu0 %v5504
    %7601 = vmatprep.subr.bf16.mxu0 %v5513
    %7602 = vmatpush1.bf16.msra.mxu0 %v5512
    %7603 = vmatprep.subr.bf16.mxu0 %v5521
    %7604 = vmatpush1.bf16.msra.mxu0 %v5520
    %7605 = vmatprep.subr.bf16.mxu0 %v5529
    %7606 = vmatpush1.bf16.msra.mxu0 %v5528
    %7607 = vmatprep.subr.bf16.mxu0 %v5537
    %7608 = vmatpush1.bf16.msra.mxu0 %v5536
    %7609 = vmatprep.subr.bf16.mxu0 %v5545
    %7610 = vmatpush1.bf16.msra.mxu0 %v5544
    %7611 = vmatprep.subr.bf16.mxu0 %v5553
    %7612 = vmatpush1.bf16.msra.mxu0 %v5552
    %7613 = vmatprep.subr.bf16.mxu0 %v5561
    %7614 = vmatpush1.bf16.msra.mxu0 %v5560
    %7615 = vmatprep.subr.bf16.mxu0 %v5569
    %7616 = vmatpush1.bf16.msra.mxu0 %v5568
    %7617 = vmatprep.subr.bf16.mxu0 %v5577
    %7618 = vmatpush1.bf16.msra.mxu0 %v5576
    %7619 = vmatprep.subr.bf16.mxu0 %v5585
    %7620 = vmatpush1.bf16.msra.mxu0 %v5584
    %7621 = vmatprep.subr.bf16.mxu0 %v5593
    %7622 = vmatpush1.bf16.msra.mxu0 %v5592
    %7623 = vmatprep.subr.bf16.mxu0 %v5601
    %7624 = vmatpush1.bf16.msra.mxu0 %v5600
    %7625 = vmatprep.subr.bf16.mxu0 %v5609
    %7626 = vmatpush1.bf16.msra.mxu0 %v5608
    %7627 = vmatprep.subr.bf16.mxu0 %v5617
    %7628 = vmatpush1.bf16.msra.mxu0 %v5616
    %7629 = vmatprep.subr.bf16.mxu0 %v5625
    %7630 = vmatpush1.bf16.msra.mxu0 %v5624
    %7631 = vmatprep.mubr.bf16.mxu0 %v362
    %7632 = vmatmul.mubr.bf16.gmra.mrb[0].mxu0 %v361
    %v7633 = vpop.f32.mrb[0].mxu0
    %v7634 = vadd.f32 %v7593, %v7633
    %v7635 = vpop.f32.mrb[0].mxu0
    %v7636 = vadd.f32 %v7595, %v7635
    %v7637 = vpop.f32.mrb[0].mxu0
    %v7638 = vpop.f32.mrb[0].mxu0
    %7639 = vdwg.mxu0
    %7640 = vmatprep.subr.bf16.mxu0 %v5633
    %7641 = vmatpush1.bf16.msra.mxu0 %v5632
    %7642 = vmatprep.subr.bf16.mxu0 %v5641
    %7643 = vmatpush1.bf16.msra.mxu0 %v5640
    %7644 = vmatprep.subr.bf16.mxu0 %v5649
    %7645 = vmatpush1.bf16.msra.mxu0 %v5648
    %7646 = vmatprep.subr.bf16.mxu0 %v5657
    %7647 = vmatpush1.bf16.msra.mxu0 %v5656
    %7648 = vmatprep.subr.bf16.mxu0 %v5665
    %7649 = vmatpush1.bf16.msra.mxu0 %v5664
    %7650 = vmatprep.subr.bf16.mxu0 %v5673
    %7651 = vmatpush1.bf16.msra.mxu0 %v5672
    %7652 = vmatprep.subr.bf16.mxu0 %v5681
    %7653 = vmatpush1.bf16.msra.mxu0 %v5680
    %7654 = vmatprep.subr.bf16.mxu0 %v5689
    %7655 = vmatpush1.bf16.msra.mxu0 %v5688
    %7656 = vmatprep.subr.bf16.mxu0 %v5697
    %7657 = vmatpush1.bf16.msra.mxu0 %v5696
    %7658 = vmatprep.subr.bf16.mxu0 %v5705
    %7659 = vmatpush1.bf16.msra.mxu0 %v5704
    %7660 = vmatprep.subr.bf16.mxu0 %v5713
    %7661 = vmatpush1.bf16.msra.mxu0 %v5712
    %7662 = vmatprep.subr.bf16.mxu0 %v5721
    %7663 = vmatpush1.bf16.msra.mxu0 %v5720
    %7664 = vmatprep.subr.bf16.mxu0 %v5729
    %7665 = vmatpush1.bf16.msra.mxu0 %v5728
    %7666 = vmatprep.subr.bf16.mxu0 %v5737
    %7667 = vmatpush1.bf16.msra.mxu0 %v5736
    %7668 = vmatprep.subr.bf16.mxu0 %v5745
    %7669 = vmatpush1.bf16.msra.mxu0 %v5744
    %7670 = vmatprep.subr.bf16.mxu0 %v5753
    %7671 = vmatpush1.bf16.msra.mxu0 %v5752
    %7672 = vmatprep.mubr.bf16.mxu0 %v364
    %7673 = vmatmul.mubr.bf16.gmra.mrb[0].mxu0 %v363
    %v7674 = vpop.f32.mrb[0].mxu0
    %v7675 = vadd.f32 %v7634, %v7674
    %v7676 = vpop.f32.mrb[0].mxu0
    %v7677 = vadd.f32 %v7636, %v7676
    %v7678 = vpop.f32.mrb[0].mxu0
    %v7679 = vpop.f32.mrb[0].mxu0
    %7680 = vdwg.mxu0
    %7681 = vmatprep.subr.bf16.mxu0 %v5761
    %7682 = vmatpush1.bf16.msra.mxu0 %v5760
    %7683 = vmatprep.subr.bf16.mxu0 %v5769
    %7684 = vmatpush1.bf16.msra.mxu0 %v5768
    %7685 = vmatprep.subr.bf16.mxu0 %v5777
    %7686 = vmatpush1.bf16.msra.mxu0 %v5776
    %7687 = vmatprep.subr.bf16.mxu0 %v5785
    %7688 = vmatpush1.bf16.msra.mxu0 %v5784
    %7689 = vmatprep.subr.bf16.mxu0 %v5793
    %7690 = vmatpush1.bf16.msra.mxu0 %v5792
    %7691 = vmatprep.subr.bf16.mxu0 %v5801
    %7692 = vmatpush1.bf16.msra.mxu0 %v5800
    %7693 = vmatprep.subr.bf16.mxu0 %v5809
    %7694 = vmatpush1.bf16.msra.mxu0 %v5808
    %7695 = vmatprep.subr.bf16.mxu0 %v5817
    %7696 = vmatpush1.bf16.msra.mxu0 %v5816
    %7697 = vmatprep.subr.bf16.mxu0 %v5825
    %7698 = vmatpush1.bf16.msra.mxu0 %v5824
    %7699 = vmatprep.subr.bf16.mxu0 %v5833
    %7700 = vmatpush1.bf16.msra.mxu0 %v5832
    %7701 = vmatprep.subr.bf16.mxu0 %v5841
    %7702 = vmatpush1.bf16.msra.mxu0 %v5840
    %7703 = vmatprep.subr.bf16.mxu0 %v5849
    %7704 = vmatpush1.bf16.msra.mxu0 %v5848
    %7705 = vmatprep.subr.bf16.mxu0 %v5857
    %7706 = vmatpush1.bf16.msra.mxu0 %v5856
    %7707 = vmatprep.subr.bf16.mxu0 %v5865
    %7708 = vmatpush1.bf16.msra.mxu0 %v5864
    %7709 = vmatprep.subr.bf16.mxu0 %v5873
    %7710 = vmatpush1.bf16.msra.mxu0 %v5872
    %7711 = vmatprep.subr.bf16.mxu0 %v5881
    %7712 = vmatpush1.bf16.msra.mxu0 %v5880
    %7713 = vmatprep.mubr.bf16.mxu0 %v366
    %7714 = vmatmul.mubr.bf16.gmra.mrb[0].mxu0 %v365
    %v7715 = vpop.f32.mrb[0].mxu0
    %v7716 = vadd.f32 %v7675, %v7715
    %v7717 = vpop.f32.mrb[0].mxu0
    %v7718 = vadd.f32 %v7677, %v7717
    %v7719 = vpop.f32.mrb[0].mxu0
    %v7720 = vpop.f32.mrb[0].mxu0
    %7721 = vdwg.mxu0
    %7722 = vmatprep.subr.bf16.mxu0 %v5889
    %7723 = vmatpush1.bf16.msra.mxu0 %v5888
    %7724 = vmatprep.subr.bf16.mxu0 %v5897
    %7725 = vmatpush1.bf16.msra.mxu0 %v5896
    %7726 = vmatprep.subr.bf16.mxu0 %v5905
    %7727 = vmatpush1.bf16.msra.mxu0 %v5904
    %7728 = vmatprep.subr.bf16.mxu0 %v5913
    %7729 = vmatpush1.bf16.msra.mxu0 %v5912
    %7730 = vmatprep.subr.bf16.mxu0 %v5921
    %7731 = vmatpush1.bf16.msra.mxu0 %v5920
    %7732 = vmatprep.subr.bf16.mxu0 %v5929
    %7733 = vmatpush1.bf16.msra.mxu0 %v5928
    %7734 = vmatprep.subr.bf16.mxu0 %v5937
    %7735 = vmatpush1.bf16.msra.mxu0 %v5936
    %7736 = vmatprep.subr.bf16.mxu0 %v5945
    %7737 = vmatpush1.bf16.msra.mxu0 %v5944
    %7738 = vmatprep.subr.bf16.mxu0 %v5953
    %7739 = vmatpush1.bf16.msra.mxu0 %v5952
    %7740 = vmatprep.subr.bf16.mxu0 %v5961
    %7741 = vmatpush1.bf16.msra.mxu0 %v5960
    %7742 = vmatprep.subr.bf16.mxu0 %v5969
    %7743 = vmatpush1.bf16.msra.mxu0 %v5968
    %7744 = vmatprep.subr.bf16.mxu0 %v5977
    %7745 = vmatpush1.bf16.msra.mxu0 %v5976
    %7746 = vmatprep.subr.bf16.mxu0 %v5985
    %7747 = vmatpush1.bf16.msra.mxu0 %v5984
    %7748 = vmatprep.subr.bf16.mxu0 %v5993
    %7749 = vmatpush1.bf16.msra.mxu0 %v5992
    %7750 = vmatprep.subr.bf16.mxu0 %v6001
    %7751 = vmatpush1.bf16.msra.mxu0 %v6000
    %7752 = vmatprep.subr.bf16.mxu0 %v6009
    %7753 = vmatpush1.bf16.msra.mxu0 %v6008
    %7754 = vmatprep.mubr.bf16.mxu0 %v368
    %7755 = vmatmul.mubr.bf16.gmra.mrb[0].mxu0 %v367
    %v7756 = vpop.f32.mrb[0].mxu0
    %v7757 = vadd.f32 %v7716, %v7756
    %v7758 = vpop.f32.mrb[0].mxu0
    %v7759 = vadd.f32 %v7718, %v7758
    %v7760 = vpop.f32.mrb[0].mxu0
    %v7761 = vpop.f32.mrb[0].mxu0
    %7762 = vdwg.mxu0
    %7763 = vmatprep.subr.bf16.mxu0 %v6017
    %7764 = vmatpush1.bf16.msra.mxu0 %v6016
    %7765 = vmatprep.subr.bf16.mxu0 %v6025
    %7766 = vmatpush1.bf16.msra.mxu0 %v6024
    %7767 = vmatprep.subr.bf16.mxu0 %v6033
    %7768 = vmatpush1.bf16.msra.mxu0 %v6032
    %7769 = vmatprep.subr.bf16.mxu0 %v6041
    %7770 = vmatpush1.bf16.msra.mxu0 %v6040
    %7771 = vmatprep.subr.bf16.mxu0 %v6049
    %7772 = vmatpush1.bf16.msra.mxu0 %v6048
    %7773 = vmatprep.subr.bf16.mxu0 %v6057
    %7774 = vmatpush1.bf16.msra.mxu0 %v6056
    %7775 = vmatprep.subr.bf16.mxu0 %v6065
    %7776 = vmatpush1.bf16.msra.mxu0 %v6064
    %7777 = vmatprep.subr.bf16.mxu0 %v6073
    %7778 = vmatpush1.bf16.msra.mxu0 %v6072
    %7779 = vmatprep.subr.bf16.mxu0 %v6081
    %7780 = vmatpush1.bf16.msra.mxu0 %v6080
    %7781 = vmatprep.subr.bf16.mxu0 %v6089
    %7782 = vmatpush1.bf16.msra.mxu0 %v6088
    %7783 = vmatprep.subr.bf16.mxu0 %v6097
    %7784 = vmatpush1.bf16.msra.mxu0 %v6096
    %7785 = vmatprep.subr.bf16.mxu0 %v6105
    %7786 = vmatpush1.bf16.msra.mxu0 %v6104
    %7787 = vmatprep.subr.bf16.mxu0 %v6113
    %7788 = vmatpush1.bf16.msra.mxu0 %v6112
    %7789 = vmatprep.subr.bf16.mxu0 %v6121
    %7790 = vmatpush1.bf16.msra.mxu0 %v6120
    %7791 = vmatprep.subr.bf16.mxu0 %v6129
    %7792 = vmatpush1.bf16.msra.mxu0 %v6128
    %7793 = vmatprep.subr.bf16.mxu0 %v6137
    %7794 = vmatpush1.bf16.msra.mxu0 %v6136
    %7795 = vmatprep.mubr.bf16.mxu0 %v370
    %7796 = vmatmul.mubr.bf16.gmra.mrb[0].mxu0 %v369
    %v7797 = vpop.f32.mrb[0].mxu0
    %v7798 = vadd.f32 %v7757, %v7797
    %v7799 = vpop.f32.mrb[0].mxu0
    %v7800 = vadd.f32 %v7759, %v7799
    %v7801 = vpop.f32.mrb[0].mxu0
    %v7802 = vpop.f32.mrb[0].mxu0
    %7803 = vdwg.mxu0
    %7804 = vmatprep.subr.bf16.mxu0 %v6145
    %7805 = vmatpush1.bf16.msra.mxu0 %v6144
    %7806 = vmatprep.subr.bf16.mxu0 %v6153
    %7807 = vmatpush1.bf16.msra.mxu0 %v6152
    %7808 = vmatprep.subr.bf16.mxu0 %v6161
    %7809 = vmatpush1.bf16.msra.mxu0 %v6160
    %7810 = vmatprep.subr.bf16.mxu0 %v6169
    %7811 = vmatpush1.bf16.msra.mxu0 %v6168
    %7812 = vmatprep.subr.bf16.mxu0 %v6177
    %7813 = vmatpush1.bf16.msra.mxu0 %v6176
    %7814 = vmatprep.subr.bf16.mxu0 %v6185
    %7815 = vmatpush1.bf16.msra.mxu0 %v6184
    %7816 = vmatprep.subr.bf16.mxu0 %v6193
    %7817 = vmatpush1.bf16.msra.mxu0 %v6192
    %7818 = vmatprep.subr.bf16.mxu0 %v6201
    %7819 = vmatpush1.bf16.msra.mxu0 %v6200
    %7820 = vmatprep.subr.bf16.mxu0 %v6209
    %7821 = vmatpush1.bf16.msra.mxu0 %v6208
    %7822 = vmatprep.subr.bf16.mxu0 %v6217
    %7823 = vmatpush1.bf16.msra.mxu0 %v6216
    %7824 = vmatprep.subr.bf16.mxu0 %v6225
    %7825 = vmatpush1.bf16.msra.mxu0 %v6224
    %7826 = vmatprep.subr.bf16.mxu0 %v6233
    %7827 = vmatpush1.bf16.msra.mxu0 %v6232
    %7828 = vmatprep.subr.bf16.mxu0 %v6241
    %7829 = vmatpush1.bf16.msra.mxu0 %v6240
    %7830 = vmatprep.subr.bf16.mxu0 %v6249
    %7831 = vmatpush1.bf16.msra.mxu0 %v6248
    %7832 = vmatprep.subr.bf16.mxu0 %v6257
    %7833 = vmatpush1.bf16.msra.mxu0 %v6256
    %7834 = vmatprep.subr.bf16.mxu0 %v6265
    %7835 = vmatpush1.bf16.msra.mxu0 %v6264
    %7836 = vmatprep.mubr.bf16.mxu0 %v372
    %7837 = vmatmul.mubr.bf16.gmra.mrb[0].mxu0 %v371
    %v7838 = vpop.f32.mrb[0].mxu0
    %v7839 = vadd.f32 %v7798, %v7838
    %v7840 = vpop.f32.mrb[0].mxu0
    %v7841 = vadd.f32 %v7800, %v7840
    %v7842 = vpop.f32.mrb[0].mxu0
    %v7843 = vpop.f32.mrb[0].mxu0
    %7844 = vdwg.mxu0
    %7845 = vmatprep.subr.bf16.mxu0 %v6273
    %7846 = vmatpush1.bf16.msra.mxu0 %v6272
    %7847 = vmatprep.subr.bf16.mxu0 %v6281
    %7848 = vmatpush1.bf16.msra.mxu0 %v6280
    %7849 = vmatprep.subr.bf16.mxu0 %v6289
    %7850 = vmatpush1.bf16.msra.mxu0 %v6288
    %7851 = vmatprep.subr.bf16.mxu0 0
    %7852 = vmatpush1.bf16.msra.mxu0 0
    %7853 = vmatprep.subr.bf16.mxu0 0
    %7854 = vmatpush1.bf16.msra.mxu0 0
    %7855 = vmatprep.subr.bf16.mxu0 0
    %7856 = vmatpush1.bf16.msra.mxu0 0
    %7857 = vmatprep.subr.bf16.mxu0 0
    %7858 = vmatpush1.bf16.msra.mxu0 0
    %7859 = vmatprep.subr.bf16.mxu0 0
    %7860 = vmatpush1.bf16.msra.mxu0 0
    %7861 = vmatprep.subr.bf16.mxu0 0
    %7862 = vmatpush1.bf16.msra.mxu0 0
    %7863 = vmatprep.subr.bf16.mxu0 0
    %7864 = vmatpush1.bf16.msra.mxu0 0
    %7865 = vmatprep.subr.bf16.mxu0 0
    %7866 = vmatpush1.bf16.msra.mxu0 0
    %7867 = vmatprep.subr.bf16.mxu0 0
    %7868 = vmatpush1.bf16.msra.mxu0 0
    %7869 = vmatprep.subr.bf16.mxu0 0
    %7870 = vmatpush1.bf16.msra.mxu0 0
    %7871 = vmatprep.subr.bf16.mxu0 0
    %7872 = vmatpush1.bf16.msra.mxu0 0
    %7873 = vmatprep.subr.bf16.mxu0 0
    %7874 = vmatpush1.bf16.msra.mxu0 0
    %7875 = vmatprep.subr.bf16.mxu0 0
    %7876 = vmatpush1.bf16.msra.mxu0 0
    %7877 = vmatprep.mubr.bf16.mxu0 0
    %7878 = vmatmul.mubr.bf16.gmra.mrb[0].mxu0 %v7474
    %v7879 = vpop.f32.mrb[0].mxu0
    %v7880 = vadd.f32 %v7839, %v7879
    %v7881 = vpop.f32.mrb[0].mxu0
    %v7882 = vadd.f32 %v7841, %v7881
    %v7883 = vpop.f32.mrb[0].mxu0
    %v7884 = vpop.f32.mrb[0].mxu0
    %7885 = vdwg.mxu0
    %7886 = vmatprep.subr.bf16.mxu0 %v5123
    %7887 = vmatpush1.bf16.msra.mxu0 %v5122
    %7888 = vmatprep.subr.bf16.mxu0 %v5131
    %7889 = vmatpush1.bf16.msra.mxu0 %v5130
    %7890 = vmatprep.subr.bf16.mxu0 %v5139
    %7891 = vmatpush1.bf16.msra.mxu0 %v5138
    %7892 = vmatprep.subr.bf16.mxu0 %v5147
    %7893 = vmatpush1.bf16.msra.mxu0 %v5146
    %7894 = vmatprep.subr.bf16.mxu0 %v5155
    %7895 = vmatpush1.bf16.msra.mxu0 %v5154
    %7896 = vmatprep.subr.bf16.mxu0 %v5163
    %7897 = vmatpush1.bf16.msra.mxu0 %v5162
    %7898 = vmatprep.subr.bf16.mxu0 %v5171
    %7899 = vmatpush1.bf16.msra.mxu0 %v5170
    %7900 = vmatprep.subr.bf16.mxu0 %v5179
    %7901 = vmatpush1.bf16.msra.mxu0 %v5178
    %7902 = vmatprep.subr.bf16.mxu0 %v5187
    %7903 = vmatpush1.bf16.msra.mxu0 %v5186
    %7904 = vmatprep.subr.bf16.mxu0 %v5195
    %7905 = vmatpush1.bf16.msra.mxu0 %v5194
    %7906 = vmatprep.subr.bf16.mxu0 %v5203
    %7907 = vmatpush1.bf16.msra.mxu0 %v5202
    %7908 = vmatprep.subr.bf16.mxu0 %v5211
    %7909 = vmatpush1.bf16.msra.mxu0 %v5210
    %7910 = vmatprep.subr.bf16.mxu0 %v5219
    %7911 = vmatpush1.bf16.msra.mxu0 %v5218
    %7912 = vmatprep.subr.bf16.mxu0 %v5227
    %7913 = vmatpush1.bf16.msra.mxu0 %v5226
    %7914 = vmatprep.subr.bf16.mxu0 %v5235
    %7915 = vmatpush1.bf16.msra.mxu0 %v5234
    %7916 = vmatprep.subr.bf16.mxu0 %v5243
    %7917 = vmatpush1.bf16.msra.mxu0 %v5242
    %7918 = vmatprep.mubr.bf16.mxu0 %v356
    %7919 = vmatmul.mubr.bf16.gmra.mrb[0].mxu0 %v355
    %v7920 = vpop.f32.mrb[0].mxu0
    %v7921 = vadd.f32 %v1563, %v7920
    %v7922 = vpop.f32.mrb[0].mxu0
    %v7923 = vadd.f32 %v1567, %v7922
    %v7924 = vpop.f32.mrb[0].mxu0
    %v7925 = vpop.f32.mrb[0].mxu0
    %7926 = vdwg.mxu0
    %7927 = vmatprep.subr.bf16.mxu0 %v5251
    %7928 = vmatpush1.bf16.msra.mxu0 %v5250
    %7929 = vmatprep.subr.bf16.mxu0 %v5259
    %7930 = vmatpush1.bf16.msra.mxu0 %v5258
    %7931 = vmatprep.subr.bf16.mxu0 %v5267
    %7932 = vmatpush1.bf16.msra.mxu0 %v5266
    %7933 = vmatprep.subr.bf16.mxu0 %v5275
    %7934 = vmatpush1.bf16.msra.mxu0 %v5274
    %7935 = vmatprep.subr.bf16.mxu0 %v5283
    %7936 = vmatpush1.bf16.msra.mxu0 %v5282
    %7937 = vmatprep.subr.bf16.mxu0 %v5291
    %7938 = vmatpush1.bf16.msra.mxu0 %v5290
    %7939 = vmatprep.subr.bf16.mxu0 %v5299
    %7940 = vmatpush1.bf16.msra.mxu0 %v5298
    %7941 = vmatprep.subr.bf16.mxu0 %v5307
    %7942 = vmatpush1.bf16.msra.mxu0 %v5306
    %7943 = vmatprep.subr.bf16.mxu0 %v5315
    %7944 = vmatpush1.bf16.msra.mxu0 %v5314
    %7945 = vmatprep.subr.bf16.mxu0 %v5323
    %7946 = vmatpush1.bf16.msra.mxu0 %v5322
    %7947 = vmatprep.subr.bf16.mxu0 %v5331
    %7948 = vmatpush1.bf16.msra.mxu0 %v5330
    %7949 = vmatprep.subr.bf16.mxu0 %v5339
    %7950 = vmatpush1.bf16.msra.mxu0 %v5338
    %7951 = vmatprep.subr.bf16.mxu0 %v5347
    %7952 = vmatpush1.bf16.msra.mxu0 %v5346
    %7953 = vmatprep.subr.bf16.mxu0 %v5355
    %7954 = vmatpush1.bf16.msra.mxu0 %v5354
    %7955 = vmatprep.subr.bf16.mxu0 %v5363
    %7956 = vmatpush1.bf16.msra.mxu0 %v5362
    %7957 = vmatprep.subr.bf16.mxu0 %v5371
    %7958 = vmatpush1.bf16.msra.mxu0 %v5370
    %7959 = vmatprep.mubr.bf16.mxu0 %v358
    %7960 = vmatmul.mubr.bf16.gmra.mrb[0].mxu0 %v357
    %v7961 = vpop.f32.mrb[0].mxu0
    %v7962 = vadd.f32 %v7921, %v7961
    %v7963 = vpop.f32.mrb[0].mxu0
    %v7964 = vadd.f32 %v7923, %v7963
    %v7965 = vpop.f32.mrb[0].mxu0
    %v7966 = vpop.f32.mrb[0].mxu0
    %7967 = vdwg.mxu0
    %7968 = vmatprep.subr.bf16.mxu0 %v5379
    %7969 = vmatpush1.bf16.msra.mxu0 %v5378
    %7970 = vmatprep.subr.bf16.mxu0 %v5387
    %7971 = vmatpush1.bf16.msra.mxu0 %v5386
    %7972 = vmatprep.subr.bf16.mxu0 %v5395
    %7973 = vmatpush1.bf16.msra.mxu0 %v5394
    %7974 = vmatprep.subr.bf16.mxu0 %v5403
    %7975 = vmatpush1.bf16.msra.mxu0 %v5402
    %7976 = vmatprep.subr.bf16.mxu0 %v5411
    %7977 = vmatpush1.bf16.msra.mxu0 %v5410
    %7978 = vmatprep.subr.bf16.mxu0 %v5419
    %7979 = vmatpush1.bf16.msra.mxu0 %v5418
    %7980 = vmatprep.subr.bf16.mxu0 %v5427
    %7981 = vmatpush1.bf16.msra.mxu0 %v5426
    %7982 = vmatprep.subr.bf16.mxu0 %v5435
    %7983 = vmatpush1.bf16.msra.mxu0 %v5434
    %7984 = vmatprep.subr.bf16.mxu0 %v5443
    %7985 = vmatpush1.bf16.msra.mxu0 %v5442
    %7986 = vmatprep.subr.bf16.mxu0 %v5451
    %7987 = vmatpush1.bf16.msra.mxu0 %v5450
    %7988 = vmatprep.subr.bf16.mxu0 %v5459
    %7989 = vmatpush1.bf16.msra.mxu0 %v5458
    %7990 = vmatprep.subr.bf16.mxu0 %v5467
    %7991 = vmatpush1.bf16.msra.mxu0 %v5466
    %7992 = vmatprep.subr.bf16.mxu0 %v5475
    %7993 = vmatpush1.bf16.msra.mxu0 %v5474
    %7994 = vmatprep.subr.bf16.mxu0 %v5483
    %7995 = vmatpush1.bf16.msra.mxu0 %v5482
    %7996 = vmatprep.subr.bf16.mxu0 %v5491
    %7997 = vmatpush1.bf16.msra.mxu0 %v5490
    %7998 = vmatprep.subr.bf16.mxu0 %v5499
    %7999 = vmatpush1.bf16.msra.mxu0 %v5498
    %8000 = vmatprep.mubr.bf16.mxu0 %v360
    %8001 = vmatmul.mubr.bf16.gmra.mrb[0].mxu0 %v359
    %v8002 = vpop.f32.mrb[0].mxu0
    %v8003 = vadd.f32 %v7962, %v8002
    %v8004 = vpop.f32.mrb[0].mxu0
    %v8005 = vadd.f32 %v7964, %v8004
    %v8006 = vpop.f32.mrb[0].mxu0
    %v8007 = vpop.f32.mrb[0].mxu0
    %8008 = vdwg.mxu0
    %8009 = vmatprep.subr.bf16.mxu0 %v5507
    %8010 = vmatpush1.bf16.msra.mxu0 %v5506
    %8011 = vmatprep.subr.bf16.mxu0 %v5515
    %8012 = vmatpush1.bf16.msra.mxu0 %v5514
    %8013 = vmatprep.subr.bf16.mxu0 %v5523
    %8014 = vmatpush1.bf16.msra.mxu0 %v5522
    %8015 = vmatprep.subr.bf16.mxu0 %v5531
    %8016 = vmatpush1.bf16.msra.mxu0 %v5530
    %8017 = vmatprep.subr.bf16.mxu0 %v5539
    %8018 = vmatpush1.bf16.msra.mxu0 %v5538
    %8019 = vmatprep.subr.bf16.mxu0 %v5547
    %8020 = vmatpush1.bf16.msra.mxu0 %v5546
    %8021 = vmatprep.subr.bf16.mxu0 %v5555
    %8022 = vmatpush1.bf16.msra.mxu0 %v5554
    %8023 = vmatprep.subr.bf16.mxu0 %v5563
    %8024 = vmatpush1.bf16.msra.mxu0 %v5562
    %8025 = vmatprep.subr.bf16.mxu0 %v5571
    %8026 = vmatpush1.bf16.msra.mxu0 %v5570
    %8027 = vmatprep.subr.bf16.mxu0 %v5579
    %8028 = vmatpush1.bf16.msra.mxu0 %v5578
    %8029 = vmatprep.subr.bf16.mxu0 %v5587
    %8030 = vmatpush1.bf16.msra.mxu0 %v5586
    %8031 = vmatprep.subr.bf16.mxu0 %v5595
    %8032 = vmatpush1.bf16.msra.mxu0 %v5594
    %8033 = vmatprep.subr.bf16.mxu0 %v5603
    %8034 = vmatpush1.bf16.msra.mxu0 %v5602
    %8035 = vmatprep.subr.bf16.mxu0 %v5611
    %8036 = vmatpush1.bf16.msra.mxu0 %v5610
    %8037 = vmatprep.subr.bf16.mxu0 %v5619
    %8038 = vmatpush1.bf16.msra.mxu0 %v5618
    %8039 = vmatprep.subr.bf16.mxu0 %v5627
    %8040 = vmatpush1.bf16.msra.mxu0 %v5626
    %8041 = vmatprep.mubr.bf16.mxu0 %v362
    %8042 = vmatmul.mubr.bf16.gmra.mrb[0].mxu0 %v361
    %v8043 = vpop.f32.mrb[0].mxu0
    %v8044 = vadd.f32 %v8003, %v8043
    %v8045 = vpop.f32.mrb[0].mxu0
    %v8046 = vadd.f32 %v8005, %v8045
    %v8047 = vpop.f32.mrb[0].mxu0
    %v8048 = vpop.f32.mrb[0].mxu0
    %8049 = vdwg.mxu0
    %8050 = vmatprep.subr.bf16.mxu0 %v5635
    %8051 = vmatpush1.bf16.msra.mxu0 %v5634
    %8052 = vmatprep.subr.bf16.mxu0 %v5643
    %8053 = vmatpush1.bf16.msra.mxu0 %v5642
    %8054 = vmatprep.subr.bf16.mxu0 %v5651
    %8055 = vmatpush1.bf16.msra.mxu0 %v5650
    %8056 = vmatprep.subr.bf16.mxu0 %v5659
    %8057 = vmatpush1.bf16.msra.mxu0 %v5658
    %8058 = vmatprep.subr.bf16.mxu0 %v5667
    %8059 = vmatpush1.bf16.msra.mxu0 %v5666
    %8060 = vmatprep.subr.bf16.mxu0 %v5675
    %8061 = vmatpush1.bf16.msra.mxu0 %v5674
    %8062 = vmatprep.subr.bf16.mxu0 %v5683
    %8063 = vmatpush1.bf16.msra.mxu0 %v5682
    %8064 = vmatprep.subr.bf16.mxu0 %v5691
    %8065 = vmatpush1.bf16.msra.mxu0 %v5690
    %8066 = vmatprep.subr.bf16.mxu0 %v5699
    %8067 = vmatpush1.bf16.msra.mxu0 %v5698
    %8068 = vmatprep.subr.bf16.mxu0 %v5707
    %8069 = vmatpush1.bf16.msra.mxu0 %v5706
    %8070 = vmatprep.subr.bf16.mxu0 %v5715
    %8071 = vmatpush1.bf16.msra.mxu0 %v5714
    %8072 = vmatprep.subr.bf16.mxu0 %v5723
    %8073 = vmatpush1.bf16.msra.mxu0 %v5722
    %8074 = vmatprep.subr.bf16.mxu0 %v5731
    %8075 = vmatpush1.bf16.msra.mxu0 %v5730
    %8076 = vmatprep.subr.bf16.mxu0 %v5739
    %8077 = vmatpush1.bf16.msra.mxu0 %v5738
    %8078 = vmatprep.subr.bf16.mxu0 %v5747
    %8079 = vmatpush1.bf16.msra.mxu0 %v5746
    %8080 = vmatprep.subr.bf16.mxu0 %v5755
    %8081 = vmatpush1.bf16.msra.mxu0 %v5754
    %8082 = vmatprep.mubr.bf16.mxu0 %v364
    %8083 = vmatmul.mubr.bf16.gmra.mrb[0].mxu0 %v363
    %v8084 = vpop.f32.mrb[0].mxu0
    %v8085 = vadd.f32 %v8044, %v8084
    %v8086 = vpop.f32.mrb[0].mxu0
    %v8087 = vadd.f32 %v8046, %v8086
    %v8088 = vpop.f32.mrb[0].mxu0
    %v8089 = vpop.f32.mrb[0].mxu0
    %8090 = vdwg.mxu0
    %8091 = vmatprep.subr.bf16.mxu0 %v5763
    %8092 = vmatpush1.bf16.msra.mxu0 %v5762
    %8093 = vmatprep.subr.bf16.mxu0 %v5771
    %8094 = vmatpush1.bf16.msra.mxu0 %v5770
    %8095 = vmatprep.subr.bf16.mxu0 %v5779
    %8096 = vmatpush1.bf16.msra.mxu0 %v5778
    %8097 = vmatprep.subr.bf16.mxu0 %v5787
    %8098 = vmatpush1.bf16.msra.mxu0 %v5786
    %8099 = vmatprep.subr.bf16.mxu0 %v5795
    %8100 = vmatpush1.bf16.msra.mxu0 %v5794
    %8101 = vmatprep.subr.bf16.mxu0 %v5803
    %8102 = vmatpush1.bf16.msra.mxu0 %v5802
    %8103 = vmatprep.subr.bf16.mxu0 %v5811
    %8104 = vmatpush1.bf16.msra.mxu0 %v5810
    %8105 = vmatprep.subr.bf16.mxu0 %v5819
    %8106 = vmatpush1.bf16.msra.mxu0 %v5818
    %8107 = vmatprep.subr.bf16.mxu0 %v5827
    %8108 = vmatpush1.bf16.msra.mxu0 %v5826
    %8109 = vmatprep.subr.bf16.mxu0 %v5835
    %8110 = vmatpush1.bf16.msra.mxu0 %v5834
    %8111 = vmatprep.subr.bf16.mxu0 %v5843
    %8112 = vmatpush1.bf16.msra.mxu0 %v5842
    %8113 = vmatprep.subr.bf16.mxu0 %v5851
    %8114 = vmatpush1.bf16.msra.mxu0 %v5850
    %8115 = vmatprep.subr.bf16.mxu0 %v5859
    %8116 = vmatpush1.bf16.msra.mxu0 %v5858
    %8117 = vmatprep.subr.bf16.mxu0 %v5867
    %8118 = vmatpush1.bf16.msra.mxu0 %v5866
    %8119 = vmatprep.subr.bf16.mxu0 %v5875
    %8120 = vmatpush1.bf16.msra.mxu0 %v5874
    %8121 = vmatprep.subr.bf16.mxu0 %v5883
    %8122 = vmatpush1.bf16.msra.mxu0 %v5882
    %8123 = vmatprep.mubr.bf16.mxu0 %v366
    %8124 = vmatmul.mubr.bf16.gmra.mrb[0].mxu0 %v365
    %v8125 = vpop.f32.mrb[0].mxu0
    %v8126 = vadd.f32 %v8085, %v8125
    %v8127 = vpop.f32.mrb[0].mxu0
    %v8128 = vadd.f32 %v8087, %v8127
    %v8129 = vpop.f32.mrb[0].mxu0
    %v8130 = vpop.f32.mrb[0].mxu0
    %8131 = vdwg.mxu0
    %8132 = vmatprep.subr.bf16.mxu0 %v5891
    %8133 = vmatpush1.bf16.msra.mxu0 %v5890
    %8134 = vmatprep.subr.bf16.mxu0 %v5899
    %8135 = vmatpush1.bf16.msra.mxu0 %v5898
    %8136 = vmatprep.subr.bf16.mxu0 %v5907
    %8137 = vmatpush1.bf16.msra.mxu0 %v5906
    %8138 = vmatprep.subr.bf16.mxu0 %v5915
    %8139 = vmatpush1.bf16.msra.mxu0 %v5914
    %8140 = vmatprep.subr.bf16.mxu0 %v5923
    %8141 = vmatpush1.bf16.msra.mxu0 %v5922
    %8142 = vmatprep.subr.bf16.mxu0 %v5931
    %8143 = vmatpush1.bf16.msra.mxu0 %v5930
    %8144 = vmatprep.subr.bf16.mxu0 %v5939
    %8145 = vmatpush1.bf16.msra.mxu0 %v5938
    %8146 = vmatprep.subr.bf16.mxu0 %v5947
    %8147 = vmatpush1.bf16.msra.mxu0 %v5946
    %8148 = vmatprep.subr.bf16.mxu0 %v5955
    %8149 = vmatpush1.bf16.msra.mxu0 %v5954
    %8150 = vmatprep.subr.bf16.mxu0 %v5963
    %8151 = vmatpush1.bf16.msra.mxu0 %v5962
    %8152 = vmatprep.subr.bf16.mxu0 %v5971
    %8153 = vmatpush1.bf16.msra.mxu0 %v5970
    %8154 = vmatprep.subr.bf16.mxu0 %v5979
    %8155 = vmatpush1.bf16.msra.mxu0 %v5978
    %8156 = vmatprep.subr.bf16.mxu0 %v5987
    %8157 = vmatpush1.bf16.msra.mxu0 %v5986
    %8158 = vmatprep.subr.bf16.mxu0 %v5995
    %8159 = vmatpush1.bf16.msra.mxu0 %v5994
    %8160 = vmatprep.subr.bf16.mxu0 %v6003
    %8161 = vmatpush1.bf16.msra.mxu0 %v6002
    %8162 = vmatprep.subr.bf16.mxu0 %v6011
    %8163 = vmatpush1.bf16.msra.mxu0 %v6010
    %8164 = vmatprep.mubr.bf16.mxu0 %v368
    %8165 = vmatmul.mubr.bf16.gmra.mrb[0].mxu0 %v367
    %v8166 = vpop.f32.mrb[0].mxu0
    %v8167 = vadd.f32 %v8126, %v8166
    %v8168 = vpop.f32.mrb[0].mxu0
    %v8169 = vadd.f32 %v8128, %v8168
    %v8170 = vpop.f32.mrb[0].mxu0
    %v8171 = vpop.f32.mrb[0].mxu0
    %8172 = vdwg.mxu0
    %8173 = vmatprep.subr.bf16.mxu0 %v6019
    %8174 = vmatpush1.bf16.msra.mxu0 %v6018
    %8175 = vmatprep.subr.bf16.mxu0 %v6027
    %8176 = vmatpush1.bf16.msra.mxu0 %v6026
    %8177 = vmatprep.subr.bf16.mxu0 %v6035
    %8178 = vmatpush1.bf16.msra.mxu0 %v6034
    %8179 = vmatprep.subr.bf16.mxu0 %v6043
    %8180 = vmatpush1.bf16.msra.mxu0 %v6042
    %8181 = vmatprep.subr.bf16.mxu0 %v6051
    %8182 = vmatpush1.bf16.msra.mxu0 %v6050
    %8183 = vmatprep.subr.bf16.mxu0 %v6059
    %8184 = vmatpush1.bf16.msra.mxu0 %v6058
    %8185 = vmatprep.subr.bf16.mxu0 %v6067
    %8186 = vmatpush1.bf16.msra.mxu0 %v6066
    %8187 = vmatprep.subr.bf16.mxu0 %v6075
    %8188 = vmatpush1.bf16.msra.mxu0 %v6074
    %8189 = vmatprep.subr.bf16.mxu0 %v6083
    %8190 = vmatpush1.bf16.msra.mxu0 %v6082
    %8191 = vmatprep.subr.bf16.mxu0 %v6091
    %8192 = vmatpush1.bf16.msra.mxu0 %v6090
    %8193 = vmatprep.subr.bf16.mxu0 %v6099
    %8194 = vmatpush1.bf16.msra.mxu0 %v6098
    %8195 = vmatprep.subr.bf16.mxu0 %v6107
    %8196 = vmatpush1.bf16.msra.mxu0 %v6106
    %8197 = vmatprep.subr.bf16.mxu0 %v6115
    %8198 = vmatpush1.bf16.msra.mxu0 %v6114
    %8199 = vmatprep.subr.bf16.mxu0 %v6123
    %8200 = vmatpush1.bf16.msra.mxu0 %v6122
    %8201 = vmatprep.subr.bf16.mxu0 %v6131
    %8202 = vmatpush1.bf16.msra.mxu0 %v6130
    %8203 = vmatprep.subr.bf16.mxu0 %v6139
    %8204 = vmatpush1.bf16.msra.mxu0 %v6138
    %8205 = vmatprep.mubr.bf16.mxu0 %v370
    %8206 = vmatmul.mubr.bf16.gmra.mrb[0].mxu0 %v369
    %v8207 = vpop.f32.mrb[0].mxu0
    %v8208 = vadd.f32 %v8167, %v8207
    %v8209 = vpop.f32.mrb[0].mxu0
    %v8210 = vadd.f32 %v8169, %v8209
    %v8211 = vpop.f32.mrb[0].mxu0
    %v8212 = vpop.f32.mrb[0].mxu0
    %8213 = vdwg.mxu0
    %8214 = vmatprep.subr.bf16.mxu0 %v6147
    %8215 = vmatpush1.bf16.msra.mxu0 %v6146
    %8216 = vmatprep.subr.bf16.mxu0 %v6155
    %8217 = vmatpush1.bf16.msra.mxu0 %v6154
    %8218 = vmatprep.subr.bf16.mxu0 %v6163
    %8219 = vmatpush1.bf16.msra.mxu0 %v6162
    %8220 = vmatprep.subr.bf16.mxu0 %v6171
    %8221 = vmatpush1.bf16.msra.mxu0 %v6170
    %8222 = vmatprep.subr.bf16.mxu0 %v6179
    %8223 = vmatpush1.bf16.msra.mxu0 %v6178
    %8224 = vmatprep.subr.bf16.mxu0 %v6187
    %8225 = vmatpush1.bf16.msra.mxu0 %v6186
    %8226 = vmatprep.subr.bf16.mxu0 %v6195
    %8227 = vmatpush1.bf16.msra.mxu0 %v6194
    %8228 = vmatprep.subr.bf16.mxu0 %v6203
    %8229 = vmatpush1.bf16.msra.mxu0 %v6202
    %8230 = vmatprep.subr.bf16.mxu0 %v6211
    %8231 = vmatpush1.bf16.msra.mxu0 %v6210
    %8232 = vmatprep.subr.bf16.mxu0 %v6219
    %8233 = vmatpush1.bf16.msra.mxu0 %v6218
    %8234 = vmatprep.subr.bf16.mxu0 %v6227
    %8235 = vmatpush1.bf16.msra.mxu0 %v6226
    %8236 = vmatprep.subr.bf16.mxu0 %v6235
    %8237 = vmatpush1.bf16.msra.mxu0 %v6234
    %8238 = vmatprep.subr.bf16.mxu0 %v6243
    %8239 = vmatpush1.bf16.msra.mxu0 %v6242
    %8240 = vmatprep.subr.bf16.mxu0 %v6251
    %8241 = vmatpush1.bf16.msra.mxu0 %v6250
    %8242 = vmatprep.subr.bf16.mxu0 %v6259
    %8243 = vmatpush1.bf16.msra.mxu0 %v6258
    %8244 = vmatprep.subr.bf16.mxu0 %v6267
    %8245 = vmatpush1.bf16.msra.mxu0 %v6266
    %8246 = vmatprep.mubr.bf16.mxu0 %v372
    %8247 = vmatmul.mubr.bf16.gmra.mrb[0].mxu0 %v371
    %v8248 = vpop.f32.mrb[0].mxu0
    %v8249 = vadd.f32 %v8208, %v8248
    %v8250 = vpop.f32.mrb[0].mxu0
    %v8251 = vadd.f32 %v8210, %v8250
    %v8252 = vpop.f32.mrb[0].mxu0
    %v8253 = vpop.f32.mrb[0].mxu0
    %8254 = vdwg.mxu0
    %8255 = vmatprep.subr.bf16.mxu0 %v6275
    %8256 = vmatpush1.bf16.msra.mxu0 %v6274
    %8257 = vmatprep.subr.bf16.mxu0 %v6283
    %8258 = vmatpush1.bf16.msra.mxu0 %v6282
    %8259 = vmatprep.subr.bf16.mxu0 %v6291
    %8260 = vmatpush1.bf16.msra.mxu0 %v6290
    %8261 = vmatprep.subr.bf16.mxu0 0
    %8262 = vmatpush1.bf16.msra.mxu0 0
    %8263 = vmatprep.subr.bf16.mxu0 0
    %8264 = vmatpush1.bf16.msra.mxu0 0
    %8265 = vmatprep.subr.bf16.mxu0 0
    %8266 = vmatpush1.bf16.msra.mxu0 0
    %8267 = vmatprep.subr.bf16.mxu0 0
    %8268 = vmatpush1.bf16.msra.mxu0 0
    %8269 = vmatprep.subr.bf16.mxu0 0
    %8270 = vmatpush1.bf16.msra.mxu0 0
    %8271 = vmatprep.subr.bf16.mxu0 0
    %8272 = vmatpush1.bf16.msra.mxu0 0
    %8273 = vmatprep.subr.bf16.mxu0 0
    %8274 = vmatpush1.bf16.msra.mxu0 0
    %8275 = vmatprep.subr.bf16.mxu0 0
    %8276 = vmatpush1.bf16.msra.mxu0 0
    %8277 = vmatprep.subr.bf16.mxu0 0
    %8278 = vmatpush1.bf16.msra.mxu0 0
    %8279 = vmatprep.subr.bf16.mxu0 0
    %8280 = vmatpush1.bf16.msra.mxu0 0
    %8281 = vmatprep.subr.bf16.mxu0 0
    %8282 = vmatpush1.bf16.msra.mxu0 0
    %8283 = vmatprep.subr.bf16.mxu0 0
    %8284 = vmatpush1.bf16.msra.mxu0 0
    %8285 = vmatprep.subr.bf16.mxu0 0
    %8286 = vmatpush1.bf16.msra.mxu0 0
    %8287 = vmatprep.mubr.bf16.mxu0 0
    %8288 = vmatmul.mubr.bf16.gmra.mrb[0].mxu0 %v7474
    %v8289 = vpop.f32.mrb[0].mxu0
    %v8290 = vadd.f32 %v8249, %v8289
    %v8291 = vpop.f32.mrb[0].mxu0
    %v8292 = vadd.f32 %v8251, %v8291
    %v8293 = vpop.f32.mrb[0].mxu0
    %v8294 = vpop.f32.mrb[0].mxu0
    %8295 = vdwg.mxu0
    %8296 = vmatprep.subr.bf16.mxu0 %v5125
    %8297 = vmatpush1.bf16.msra.mxu0 %v5124
    %8298 = vmatprep.subr.bf16.mxu0 %v5133
    %8299 = vmatpush1.bf16.msra.mxu0 %v5132
    %8300 = vmatprep.subr.bf16.mxu0 %v5141
    %8301 = vmatpush1.bf16.msra.mxu0 %v5140
    %8302 = vmatprep.subr.bf16.mxu0 %v5149
    %8303 = vmatpush1.bf16.msra.mxu0 %v5148
    %8304 = vmatprep.subr.bf16.mxu0 %v5157
    %8305 = vmatpush1.bf16.msra.mxu0 %v5156
    %8306 = vmatprep.subr.bf16.mxu0 %v5165
    %8307 = vmatpush1.bf16.msra.mxu0 %v5164
    %8308 = vmatprep.subr.bf16.mxu0 %v5173
    %8309 = vmatpush1.bf16.msra.mxu0 %v5172
    %8310 = vmatprep.subr.bf16.mxu0 %v5181
    %8311 = vmatpush1.bf16.msra.mxu0 %v5180
    %8312 = vmatprep.subr.bf16.mxu0 %v5189
    %8313 = vmatpush1.bf16.msra.mxu0 %v5188
    %8314 = vmatprep.subr.bf16.mxu0 %v5197
    %8315 = vmatpush1.bf16.msra.mxu0 %v5196
    %8316 = vmatprep.subr.bf16.mxu0 %v5205
    %8317 = vmatpush1.bf16.msra.mxu0 %v5204
    %8318 = vmatprep.subr.bf16.mxu0 %v5213
    %8319 = vmatpush1.bf16.msra.mxu0 %v5212
    %8320 = vmatprep.subr.bf16.mxu0 %v5221
    %8321 = vmatpush1.bf16.msra.mxu0 %v5220
    %8322 = vmatprep.subr.bf16.mxu0 %v5229
    %8323 = vmatpush1.bf16.msra.mxu0 %v5228
    %8324 = vmatprep.subr.bf16.mxu0 %v5237
    %8325 = vmatpush1.bf16.msra.mxu0 %v5236
    %8326 = vmatprep.subr.bf16.mxu0 %v5245
    %8327 = vmatpush1.bf16.msra.mxu0 %v5244
    %8328 = vmatprep.mubr.bf16.mxu0 %v356
    %8329 = vmatmul.mubr.bf16.gmra.mrb[0].mxu0 %v355
    %v8330 = vpop.f32.mrb[0].mxu0
    %v8331 = vadd.f32 %v1571, %v8330
    %v8332 = vpop.f32.mrb[0].mxu0
    %v8333 = vadd.f32 %v1575, %v8332
    %v8334 = vpop.f32.mrb[0].mxu0
    %v8335 = vpop.f32.mrb[0].mxu0
    %8336 = vdwg.mxu0
    %8337 = vmatprep.subr.bf16.mxu0 %v5253
    %8338 = vmatpush1.bf16.msra.mxu0 %v5252
    %8339 = vmatprep.subr.bf16.mxu0 %v5261
    %8340 = vmatpush1.bf16.msra.mxu0 %v5260
    %8341 = vmatprep.subr.bf16.mxu0 %v5269
    %8342 = vmatpush1.bf16.msra.mxu0 %v5268
    %8343 = vmatprep.subr.bf16.mxu0 %v5277
    %8344 = vmatpush1.bf16.msra.mxu0 %v5276
    %8345 = vmatprep.subr.bf16.mxu0 %v5285
    %8346 = vmatpush1.bf16.msra.mxu0 %v5284
    %8347 = vmatprep.subr.bf16.mxu0 %v5293
    %8348 = vmatpush1.bf16.msra.mxu0 %v5292
    %8349 = vmatprep.subr.bf16.mxu0 %v5301
    %8350 = vmatpush1.bf16.msra.mxu0 %v5300
    %8351 = vmatprep.subr.bf16.mxu0 %v5309
    %8352 = vmatpush1.bf16.msra.mxu0 %v5308
    %8353 = vmatprep.subr.bf16.mxu0 %v5317
    %8354 = vmatpush1.bf16.msra.mxu0 %v5316
    %8355 = vmatprep.subr.bf16.mxu0 %v5325
    %8356 = vmatpush1.bf16.msra.mxu0 %v5324
    %8357 = vmatprep.subr.bf16.mxu0 %v5333
    %8358 = vmatpush1.bf16.msra.mxu0 %v5332
    %8359 = vmatprep.subr.bf16.mxu0 %v5341
    %8360 = vmatpush1.bf16.msra.mxu0 %v5340
    %8361 = vmatprep.subr.bf16.mxu0 %v5349
    %8362 = vmatpush1.bf16.msra.mxu0 %v5348
    %8363 = vmatprep.subr.bf16.mxu0 %v5357
    %8364 = vmatpush1.bf16.msra.mxu0 %v5356
    %8365 = vmatprep.subr.bf16.mxu0 %v5365
    %8366 = vmatpush1.bf16.msra.mxu0 %v5364
    %8367 = vmatprep.subr.bf16.mxu0 %v5373
    %8368 = vmatpush1.bf16.msra.mxu0 %v5372
    %8369 = vmatprep.mubr.bf16.mxu0 %v358
    %8370 = vmatmul.mubr.bf16.gmra.mrb[0].mxu0 %v357
    %v8371 = vpop.f32.mrb[0].mxu0
    %v8372 = vadd.f32 %v8331, %v8371
    %v8373 = vpop.f32.mrb[0].mxu0
    %v8374 = vadd.f32 %v8333, %v8373
    %v8375 = vpop.f32.mrb[0].mxu0
    %v8376 = vpop.f32.mrb[0].mxu0
    %8377 = vdwg.mxu0
    %8378 = vmatprep.subr.bf16.mxu0 %v5381
    %8379 = vmatpush1.bf16.msra.mxu0 %v5380
    %8380 = vmatprep.subr.bf16.mxu0 %v5389
    %8381 = vmatpush1.bf16.msra.mxu0 %v5388
    %8382 = vmatprep.subr.bf16.mxu0 %v5397
    %8383 = vmatpush1.bf16.msra.mxu0 %v5396
    %8384 = vmatprep.subr.bf16.mxu0 %v5405
    %8385 = vmatpush1.bf16.msra.mxu0 %v5404
    %8386 = vmatprep.subr.bf16.mxu0 %v5413
    %8387 = vmatpush1.bf16.msra.mxu0 %v5412
    %8388 = vmatprep.subr.bf16.mxu0 %v5421
    %8389 = vmatpush1.bf16.msra.mxu0 %v5420
    %8390 = vmatprep.subr.bf16.mxu0 %v5429
    %8391 = vmatpush1.bf16.msra.mxu0 %v5428
    %8392 = vmatprep.subr.bf16.mxu0 %v5437
    %8393 = vmatpush1.bf16.msra.mxu0 %v5436
    %8394 = vmatprep.subr.bf16.mxu0 %v5445
    %8395 = vmatpush1.bf16.msra.mxu0 %v5444
    %8396 = vmatprep.subr.bf16.mxu0 %v5453
    %8397 = vmatpush1.bf16.msra.mxu0 %v5452
    %8398 = vmatprep.subr.bf16.mxu0 %v5461
    %8399 = vmatpush1.bf16.msra.mxu0 %v5460
    %8400 = vmatprep.subr.bf16.mxu0 %v5469
    %8401 = vmatpush1.bf16.msra.mxu0 %v5468
    %8402 = vmatprep.subr.bf16.mxu0 %v5477
    %8403 = vmatpush1.bf16.msra.mxu0 %v5476
    %8404 = vmatprep.subr.bf16.mxu0 %v5485
    %8405 = vmatpush1.bf16.msra.mxu0 %v5484
    %8406 = vmatprep.subr.bf16.mxu0 %v5493
    %8407 = vmatpush1.bf16.msra.mxu0 %v5492
    %8408 = vmatprep.subr.bf16.mxu0 %v5501
    %8409 = vmatpush1.bf16.msra.mxu0 %v5500
    %8410 = vmatprep.mubr.bf16.mxu0 %v360
    %8411 = vmatmul.mubr.bf16.gmra.mrb[0].mxu0 %v359
    %v8412 = vpop.f32.mrb[0].mxu0
    %v8413 = vadd.f32 %v8372, %v8412
    %v8414 = vpop.f32.mrb[0].mxu0
    %v8415 = vadd.f32 %v8374, %v8414
    %v8416 = vpop.f32.mrb[0].mxu0
    %v8417 = vpop.f32.mrb[0].mxu0
    %8418 = vdwg.mxu0
    %8419 = vmatprep.subr.bf16.mxu0 %v5509
    %8420 = vmatpush1.bf16.msra.mxu0 %v5508
    %8421 = vmatprep.subr.bf16.mxu0 %v5517
    %8422 = vmatpush1.bf16.msra.mxu0 %v5516
    %8423 = vmatprep.subr.bf16.mxu0 %v5525
    %8424 = vmatpush1.bf16.msra.mxu0 %v5524
    %8425 = vmatprep.subr.bf16.mxu0 %v5533
    %8426 = vmatpush1.bf16.msra.mxu0 %v5532
    %8427 = vmatprep.subr.bf16.mxu0 %v5541
    %8428 = vmatpush1.bf16.msra.mxu0 %v5540
    %8429 = vmatprep.subr.bf16.mxu0 %v5549
    %8430 = vmatpush1.bf16.msra.mxu0 %v5548
    %8431 = vmatprep.subr.bf16.mxu0 %v5557
    %8432 = vmatpush1.bf16.msra.mxu0 %v5556
    %8433 = vmatprep.subr.bf16.mxu0 %v5565
    %8434 = vmatpush1.bf16.msra.mxu0 %v5564
    %8435 = vmatprep.subr.bf16.mxu0 %v5573
    %8436 = vmatpush1.bf16.msra.mxu0 %v5572
    %8437 = vmatprep.subr.bf16.mxu0 %v5581
    %8438 = vmatpush1.bf16.msra.mxu0 %v5580
    %8439 = vmatprep.subr.bf16.mxu0 %v5589
    %8440 = vmatpush1.bf16.msra.mxu0 %v5588
    %8441 = vmatprep.subr.bf16.mxu0 %v5597
    %8442 = vmatpush1.bf16.msra.mxu0 %v5596
    %8443 = vmatprep.subr.bf16.mxu0 %v5605
    %8444 = vmatpush1.bf16.msra.mxu0 %v5604
    %8445 = vmatprep.subr.bf16.mxu0 %v5613
    %8446 = vmatpush1.bf16.msra.mxu0 %v5612
    %8447 = vmatprep.subr.bf16.mxu0 %v5621
    %8448 = vmatpush1.bf16.msra.mxu0 %v5620
    %8449 = vmatprep.subr.bf16.mxu0 %v5629
    %8450 = vmatpush1.bf16.msra.mxu0 %v5628
    %8451 = vmatprep.mubr.bf16.mxu0 %v362
    %8452 = vmatmul.mubr.bf16.gmra.mrb[0].mxu0 %v361
    %v8453 = vpop.f32.mrb[0].mxu0
    %v8454 = vadd.f32 %v8413, %v8453
    %v8455 = vpop.f32.mrb[0].mxu0
    %v8456 = vadd.f32 %v8415, %v8455
    %v8457 = vpop.f32.mrb[0].mxu0
    %v8458 = vpop.f32.mrb[0].mxu0
    %8459 = vdwg.mxu0
    %8460 = vmatprep.subr.bf16.mxu0 %v5637
    %8461 = vmatpush1.bf16.msra.mxu0 %v5636
    %8462 = vmatprep.subr.bf16.mxu0 %v5645
    %8463 = vmatpush1.bf16.msra.mxu0 %v5644
    %8464 = vmatprep.subr.bf16.mxu0 %v5653
    %8465 = vmatpush1.bf16.msra.mxu0 %v5652
    %8466 = vmatprep.subr.bf16.mxu0 %v5661
    %8467 = vmatpush1.bf16.msra.mxu0 %v5660
    %8468 = vmatprep.subr.bf16.mxu0 %v5669
    %8469 = vmatpush1.bf16.msra.mxu0 %v5668
    %8470 = vmatprep.subr.bf16.mxu0 %v5677
    %8471 = vmatpush1.bf16.msra.mxu0 %v5676
    %8472 = vmatprep.subr.bf16.mxu0 %v5685
    %8473 = vmatpush1.bf16.msra.mxu0 %v5684
    %8474 = vmatprep.subr.bf16.mxu0 %v5693
    %8475 = vmatpush1.bf16.msra.mxu0 %v5692
    %8476 = vmatprep.subr.bf16.mxu0 %v5701
    %8477 = vmatpush1.bf16.msra.mxu0 %v5700
    %8478 = vmatprep.subr.bf16.mxu0 %v5709
    %8479 = vmatpush1.bf16.msra.mxu0 %v5708
    %8480 = vmatprep.subr.bf16.mxu0 %v5717
    %8481 = vmatpush1.bf16.msra.mxu0 %v5716
    %8482 = vmatprep.subr.bf16.mxu0 %v5725
    %8483 = vmatpush1.bf16.msra.mxu0 %v5724
    %8484 = vmatprep.subr.bf16.mxu0 %v5733
    %8485 = vmatpush1.bf16.msra.mxu0 %v5732
    %8486 = vmatprep.subr.bf16.mxu0 %v5741
    %8487 = vmatpush1.bf16.msra.mxu0 %v5740
    %8488 = vmatprep.subr.bf16.mxu0 %v5749
    %8489 = vmatpush1.bf16.msra.mxu0 %v5748
    %8490 = vmatprep.subr.bf16.mxu0 %v5757
    %8491 = vmatpush1.bf16.msra.mxu0 %v5756
    %8492 = vmatprep.mubr.bf16.mxu0 %v364
    %8493 = vmatmul.mubr.bf16.gmra.mrb[0].mxu0 %v363
    %v8494 = vpop.f32.mrb[0].mxu0
    %v8495 = vadd.f32 %v8454, %v8494
    %v8496 = vpop.f32.mrb[0].mxu0
    %v8497 = vadd.f32 %v8456, %v8496
    %v8498 = vpop.f32.mrb[0].mxu0
    %v8499 = vpop.f32.mrb[0].mxu0
    %8500 = vdwg.mxu0
    %8501 = vmatprep.subr.bf16.mxu0 %v5765
    %8502 = vmatpush1.bf16.msra.mxu0 %v5764
    %8503 = vmatprep.subr.bf16.mxu0 %v5773
    %8504 = vmatpush1.bf16.msra.mxu0 %v5772
    %8505 = vmatprep.subr.bf16.mxu0 %v5781
    %8506 = vmatpush1.bf16.msra.mxu0 %v5780
    %8507 = vmatprep.subr.bf16.mxu0 %v5789
    %8508 = vmatpush1.bf16.msra.mxu0 %v5788
    %8509 = vmatprep.subr.bf16.mxu0 %v5797
    %8510 = vmatpush1.bf16.msra.mxu0 %v5796
    %8511 = vmatprep.subr.bf16.mxu0 %v5805
    %8512 = vmatpush1.bf16.msra.mxu0 %v5804
    %8513 = vmatprep.subr.bf16.mxu0 %v5813
    %8514 = vmatpush1.bf16.msra.mxu0 %v5812
    %8515 = vmatprep.subr.bf16.mxu0 %v5821
    %8516 = vmatpush1.bf16.msra.mxu0 %v5820
    %8517 = vmatprep.subr.bf16.mxu0 %v5829
    %8518 = vmatpush1.bf16.msra.mxu0 %v5828
    %8519 = vmatprep.subr.bf16.mxu0 %v5837
    %8520 = vmatpush1.bf16.msra.mxu0 %v5836
    %8521 = vmatprep.subr.bf16.mxu0 %v5845
    %8522 = vmatpush1.bf16.msra.mxu0 %v5844
    %8523 = vmatprep.subr.bf16.mxu0 %v5853
    %8524 = vmatpush1.bf16.msra.mxu0 %v5852
    %8525 = vmatprep.subr.bf16.mxu0 %v5861
    %8526 = vmatpush1.bf16.msra.mxu0 %v5860
    %8527 = vmatprep.subr.bf16.mxu0 %v5869
    %8528 = vmatpush1.bf16.msra.mxu0 %v5868
    %8529 = vmatprep.subr.bf16.mxu0 %v5877
    %8530 = vmatpush1.bf16.msra.mxu0 %v5876
    %8531 = vmatprep.subr.bf16.mxu0 %v5885
    %8532 = vmatpush1.bf16.msra.mxu0 %v5884
    %8533 = vmatprep.mubr.bf16.mxu0 %v366
    %8534 = vmatmul.mubr.bf16.gmra.mrb[0].mxu0 %v365
    %v8535 = vpop.f32.mrb[0].mxu0
    %v8536 = vadd.f32 %v8495, %v8535
    %v8537 = vpop.f32.mrb[0].mxu0
    %v8538 = vadd.f32 %v8497, %v8537
    %v8539 = vpop.f32.mrb[0].mxu0
    %v8540 = vpop.f32.mrb[0].mxu0
    %8541 = vdwg.mxu0
    %8542 = vmatprep.subr.bf16.mxu0 %v5893
    %8543 = vmatpush1.bf16.msra.mxu0 %v5892
    %8544 = vmatprep.subr.bf16.mxu0 %v5901
    %8545 = vmatpush1.bf16.msra.mxu0 %v5900
    %8546 = vmatprep.subr.bf16.mxu0 %v5909
    %8547 = vmatpush1.bf16.msra.mxu0 %v5908
    %8548 = vmatprep.subr.bf16.mxu0 %v5917
    %8549 = vmatpush1.bf16.msra.mxu0 %v5916
    %8550 = vmatprep.subr.bf16.mxu0 %v5925
    %8551 = vmatpush1.bf16.msra.mxu0 %v5924
    %8552 = vmatprep.subr.bf16.mxu0 %v5933
    %8553 = vmatpush1.bf16.msra.mxu0 %v5932
    %8554 = vmatprep.subr.bf16.mxu0 %v5941
    %8555 = vmatpush1.bf16.msra.mxu0 %v5940
    %8556 = vmatprep.subr.bf16.mxu0 %v5949
    %8557 = vmatpush1.bf16.msra.mxu0 %v5948
    %8558 = vmatprep.subr.bf16.mxu0 %v5957
    %8559 = vmatpush1.bf16.msra.mxu0 %v5956
    %8560 = vmatprep.subr.bf16.mxu0 %v5965
    %8561 = vmatpush1.bf16.msra.mxu0 %v5964
    %8562 = vmatprep.subr.bf16.mxu0 %v5973
    %8563 = vmatpush1.bf16.msra.mxu0 %v5972
    %8564 = vmatprep.subr.bf16.mxu0 %v5981
    %8565 = vmatpush1.bf16.msra.mxu0 %v5980
    %8566 = vmatprep.subr.bf16.mxu0 %v5989
    %8567 = vmatpush1.bf16.msra.mxu0 %v5988
    %8568 = vmatprep.subr.bf16.mxu0 %v5997
    %8569 = vmatpush1.bf16.msra.mxu0 %v5996
    %8570 = vmatprep.subr.bf16.mxu0 %v6005
    %8571 = vmatpush1.bf16.msra.mxu0 %v6004
    %8572 = vmatprep.subr.bf16.mxu0 %v6013
    %8573 = vmatpush1.bf16.msra.mxu0 %v6012
    %8574 = vmatprep.mubr.bf16.mxu0 %v368
    %8575 = vmatmul.mubr.bf16.gmra.mrb[0].mxu0 %v367
    %v8576 = vpop.f32.mrb[0].mxu0
    %v8577 = vadd.f32 %v8536, %v8576
    %v8578 = vpop.f32.mrb[0].mxu0
    %v8579 = vadd.f32 %v8538, %v8578
    %v8580 = vpop.f32.mrb[0].mxu0
    %v8581 = vpop.f32.mrb[0].mxu0
    %8582 = vdwg.mxu0
    %8583 = vmatprep.subr.bf16.mxu0 %v6021
    %8584 = vmatpush1.bf16.msra.mxu0 %v6020
    %8585 = vmatprep.subr.bf16.mxu0 %v6029
    %8586 = vmatpush1.bf16.msra.mxu0 %v6028
    %8587 = vmatprep.subr.bf16.mxu0 %v6037
    %8588 = vmatpush1.bf16.msra.mxu0 %v6036
    %8589 = vmatprep.subr.bf16.mxu0 %v6045
    %8590 = vmatpush1.bf16.msra.mxu0 %v6044
    %8591 = vmatprep.subr.bf16.mxu0 %v6053
    %8592 = vmatpush1.bf16.msra.mxu0 %v6052
    %8593 = vmatprep.subr.bf16.mxu0 %v6061
    %8594 = vmatpush1.bf16.msra.mxu0 %v6060
    %8595 = vmatprep.subr.bf16.mxu0 %v6069
    %8596 = vmatpush1.bf16.msra.mxu0 %v6068
    %8597 = vmatprep.subr.bf16.mxu0 %v6077
    %8598 = vmatpush1.bf16.msra.mxu0 %v6076
    %8599 = vmatprep.subr.bf16.mxu0 %v6085
    %8600 = vmatpush1.bf16.msra.mxu0 %v6084
    %8601 = vmatprep.subr.bf16.mxu0 %v6093
    %8602 = vmatpush1.bf16.msra.mxu0 %v6092
    %8603 = vmatprep.subr.bf16.mxu0 %v6101
    %8604 = vmatpush1.bf16.msra.mxu0 %v6100
    %8605 = vmatprep.subr.bf16.mxu0 %v6109
    %8606 = vmatpush1.bf16.msra.mxu0 %v6108
    %8607 = vmatprep.subr.bf16.mxu0 %v6117
    %8608 = vmatpush1.bf16.msra.mxu0 %v6116
    %8609 = vmatprep.subr.bf16.mxu0 %v6125
    %8610 = vmatpush1.bf16.msra.mxu0 %v6124
    %8611 = vmatprep.subr.bf16.mxu0 %v6133
    %8612 = vmatpush1.bf16.msra.mxu0 %v6132
    %8613 = vmatprep.subr.bf16.mxu0 %v6141
    %8614 = vmatpush1.bf16.msra.mxu0 %v6140
    %8615 = vmatprep.mubr.bf16.mxu0 %v370
    %8616 = vmatmul.mubr.bf16.gmra.mrb[0].mxu0 %v369
    %v8617 = vpop.f32.mrb[0].mxu0
    %v8618 = vadd.f32 %v8577, %v8617
    %v8619 = vpop.f32.mrb[0].mxu0
    %v8620 = vadd.f32 %v8579, %v8619
    %v8621 = vpop.f32.mrb[0].mxu0
    %v8622 = vpop.f32.mrb[0].mxu0
    %8623 = vdwg.mxu0
    %8624 = vmatprep.subr.bf16.mxu0 %v6149
    %8625 = vmatpush1.bf16.msra.mxu0 %v6148
    %8626 = vmatprep.subr.bf16.mxu0 %v6157
    %8627 = vmatpush1.bf16.msra.mxu0 %v6156
    %8628 = vmatprep.subr.bf16.mxu0 %v6165
    %8629 = vmatpush1.bf16.msra.mxu0 %v6164
    %8630 = vmatprep.subr.bf16.mxu0 %v6173
    %8631 = vmatpush1.bf16.msra.mxu0 %v6172
    %8632 = vmatprep.subr.bf16.mxu0 %v6181
    %8633 = vmatpush1.bf16.msra.mxu0 %v6180
    %8634 = vmatprep.subr.bf16.mxu0 %v6189
    %8635 = vmatpush1.bf16.msra.mxu0 %v6188
    %8636 = vmatprep.subr.bf16.mxu0 %v6197
    %8637 = vmatpush1.bf16.msra.mxu0 %v6196
    %8638 = vmatprep.subr.bf16.mxu0 %v6205
    %8639 = vmatpush1.bf16.msra.mxu0 %v6204
    %8640 = vmatprep.subr.bf16.mxu0 %v6213
    %8641 = vmatpush1.bf16.msra.mxu0 %v6212
    %8642 = vmatprep.subr.bf16.mxu0 %v6221
    %8643 = vmatpush1.bf16.msra.mxu0 %v6220
    %8644 = vmatprep.subr.bf16.mxu0 %v6229
    %8645 = vmatpush1.bf16.msra.mxu0 %v6228
    %8646 = vmatprep.subr.bf16.mxu0 %v6237
    %8647 = vmatpush1.bf16.msra.mxu0 %v6236
    %8648 = vmatprep.subr.bf16.mxu0 %v6245
    %8649 = vmatpush1.bf16.msra.mxu0 %v6244
    %8650 = vmatprep.subr.bf16.mxu0 %v6253
    %8651 = vmatpush1.bf16.msra.mxu0 %v6252
    %8652 = vmatprep.subr.bf16.mxu0 %v6261
    %8653 = vmatpush1.bf16.msra.mxu0 %v6260
    %8654 = vmatprep.subr.bf16.mxu0 %v6269
    %8655 = vmatpush1.bf16.msra.mxu0 %v6268
    %8656 = vmatprep.mubr.bf16.mxu0 %v372
    %8657 = vmatmul.mubr.bf16.gmra.mrb[0].mxu0 %v371
    %v8658 = vpop.f32.mrb[0].mxu0
    %v8659 = vadd.f32 %v8618, %v8658
    %v8660 = vpop.f32.mrb[0].mxu0
    %v8661 = vadd.f32 %v8620, %v8660
    %v8662 = vpop.f32.mrb[0].mxu0
    %v8663 = vpop.f32.mrb[0].mxu0
    %8664 = vdwg.mxu0
    %8665 = vmatprep.subr.bf16.mxu0 %v6277
    %8666 = vmatpush1.bf16.msra.mxu0 %v6276
    %8667 = vmatprep.subr.bf16.mxu0 %v6285
    %8668 = vmatpush1.bf16.msra.mxu0 %v6284
    %8669 = vmatprep.subr.bf16.mxu0 %v6293
    %8670 = vmatpush1.bf16.msra.mxu0 %v6292
    %8671 = vmatprep.subr.bf16.mxu0 0
    %8672 = vmatpush1.bf16.msra.mxu0 0
    %8673 = vmatprep.subr.bf16.mxu0 0
    %8674 = vmatpush1.bf16.msra.mxu0 0
    %8675 = vmatprep.subr.bf16.mxu0 0
    %8676 = vmatpush1.bf16.msra.mxu0 0
    %8677 = vmatprep.subr.bf16.mxu0 0
    %8678 = vmatpush1.bf16.msra.mxu0 0
    %8679 = vmatprep.subr.bf16.mxu0 0
    %8680 = vmatpush1.bf16.msra.mxu0 0
    %8681 = vmatprep.subr.bf16.mxu0 0
    %8682 = vmatpush1.bf16.msra.mxu0 0
    %8683 = vmatprep.subr.bf16.mxu0 0
    %8684 = vmatpush1.bf16.msra.mxu0 0
    %8685 = vmatprep.subr.bf16.mxu0 0
    %8686 = vmatpush1.bf16.msra.mxu0 0
    %8687 = vmatprep.subr.bf16.mxu0 0
    %8688 = vmatpush1.bf16.msra.mxu0 0
    %8689 = vmatprep.subr.bf16.mxu0 0
    %8690 = vmatpush1.bf16.msra.mxu0 0
    %8691 = vmatprep.subr.bf16.mxu0 0
    %8692 = vmatpush1.bf16.msra.mxu0 0
    %8693 = vmatprep.subr.bf16.mxu0 0
    %8694 = vmatpush1.bf16.msra.mxu0 0
    %8695 = vmatprep.subr.bf16.mxu0 0
    %8696 = vmatpush1.bf16.msra.mxu0 0
    %8697 = vmatprep.mubr.bf16.mxu0 0
    %8698 = vmatmul.mubr.bf16.gmra.mrb[0].mxu0 %v7474
    %v8699 = vpop.f32.mrb[0].mxu0
    %v8700 = vadd.f32 %v8659, %v8699
    %v8701 = vpop.f32.mrb[0].mxu0
    %v8702 = vadd.f32 %v8661, %v8701
    %v8703 = vpop.f32.mrb[0].mxu0
    %v8704 = vpop.f32.mrb[0].mxu0
    %8705 = vdwg.mxu0
    %8706 = vmatprep.subr.bf16.mxu0 %v5127
    %8707 = vmatpush1.bf16.msra.mxu0 %v5126
    %8708 = vmatprep.subr.bf16.mxu0 %v5135
    %8709 = vmatpush1.bf16.msra.mxu0 %v5134
    %8710 = vmatprep.subr.bf16.mxu0 %v5143
    %8711 = vmatpush1.bf16.msra.mxu0 %v5142
    %8712 = vmatprep.subr.bf16.mxu0 %v5151
    %8713 = vmatpush1.bf16.msra.mxu0 %v5150
    %8714 = vmatprep.subr.bf16.mxu0 %v5159
    %8715 = vmatpush1.bf16.msra.mxu0 %v5158
    %8716 = vmatprep.subr.bf16.mxu0 %v5167
    %8717 = vmatpush1.bf16.msra.mxu0 %v5166
    %8718 = vmatprep.subr.bf16.mxu0 %v5175
    %8719 = vmatpush1.bf16.msra.mxu0 %v5174
    %8720 = vmatprep.subr.bf16.mxu0 %v5183
    %8721 = vmatpush1.bf16.msra.mxu0 %v5182
    %8722 = vmatprep.subr.bf16.mxu0 %v5191
    %8723 = vmatpush1.bf16.msra.mxu0 %v5190
    %8724 = vmatprep.subr.bf16.mxu0 %v5199
    %8725 = vmatpush1.bf16.msra.mxu0 %v5198
    %8726 = vmatprep.subr.bf16.mxu0 %v5207
    %8727 = vmatpush1.bf16.msra.mxu0 %v5206
    %8728 = vmatprep.subr.bf16.mxu0 %v5215
    %8729 = vmatpush1.bf16.msra.mxu0 %v5214
    %8730 = vmatprep.subr.bf16.mxu0 %v5223
    %8731 = vmatpush1.bf16.msra.mxu0 %v5222
    %8732 = vmatprep.subr.bf16.mxu0 %v5231
    %8733 = vmatpush1.bf16.msra.mxu0 %v5230
    %8734 = vmatprep.subr.bf16.mxu0 %v5239
    %8735 = vmatpush1.bf16.msra.mxu0 %v5238
    %8736 = vmatprep.subr.bf16.mxu0 %v5247
    %8737 = vmatpush1.bf16.msra.mxu0 %v5246
    %8738 = vmatprep.mubr.bf16.mxu0 %v356
    %8739 = vmatmul.mubr.bf16.gmra.mrb[0].mxu0 %v355
    %v8740 = vpop.f32.mrb[0].mxu0
    %v8741 = vadd.f32 %v1579, %v8740
    %v8742 = vpop.f32.mrb[0].mxu0
    %v8743 = vadd.f32 %v1583, %v8742
    %v8744 = vpop.f32.mrb[0].mxu0
    %v8745 = vpop.f32.mrb[0].mxu0
    %8746 = vdwg.mxu0
    %8747 = vmatprep.subr.bf16.mxu0 %v5255
    %8748 = vmatpush1.bf16.msra.mxu0 %v5254
    %8749 = vmatprep.subr.bf16.mxu0 %v5263
    %8750 = vmatpush1.bf16.msra.mxu0 %v5262
    %8751 = vmatprep.subr.bf16.mxu0 %v5271
    %8752 = vmatpush1.bf16.msra.mxu0 %v5270
    %8753 = vmatprep.subr.bf16.mxu0 %v5279
    %8754 = vmatpush1.bf16.msra.mxu0 %v5278
    %8755 = vmatprep.subr.bf16.mxu0 %v5287
    %8756 = vmatpush1.bf16.msra.mxu0 %v5286
    %8757 = vmatprep.subr.bf16.mxu0 %v5295
    %8758 = vmatpush1.bf16.msra.mxu0 %v5294
    %8759 = vmatprep.subr.bf16.mxu0 %v5303
    %8760 = vmatpush1.bf16.msra.mxu0 %v5302
    %8761 = vmatprep.subr.bf16.mxu0 %v5311
    %8762 = vmatpush1.bf16.msra.mxu0 %v5310
    %8763 = vmatprep.subr.bf16.mxu0 %v5319
    %8764 = vmatpush1.bf16.msra.mxu0 %v5318
    %8765 = vmatprep.subr.bf16.mxu0 %v5327
    %8766 = vmatpush1.bf16.msra.mxu0 %v5326
    %8767 = vmatprep.subr.bf16.mxu0 %v5335
    %8768 = vmatpush1.bf16.msra.mxu0 %v5334
    %8769 = vmatprep.subr.bf16.mxu0 %v5343
    %8770 = vmatpush1.bf16.msra.mxu0 %v5342
    %8771 = vmatprep.subr.bf16.mxu0 %v5351
    %8772 = vmatpush1.bf16.msra.mxu0 %v5350
    %8773 = vmatprep.subr.bf16.mxu0 %v5359
    %8774 = vmatpush1.bf16.msra.mxu0 %v5358
    %8775 = vmatprep.subr.bf16.mxu0 %v5367
    %8776 = vmatpush1.bf16.msra.mxu0 %v5366
    %8777 = vmatprep.subr.bf16.mxu0 %v5375
    %8778 = vmatpush1.bf16.msra.mxu0 %v5374
    %8779 = vmatprep.mubr.bf16.mxu0 %v358
    %8780 = vmatmul.mubr.bf16.gmra.mrb[0].mxu0 %v357
    %v8781 = vpop.f32.mrb[0].mxu0
    %v8782 = vadd.f32 %v8741, %v8781
    %v8783 = vpop.f32.mrb[0].mxu0
    %v8784 = vadd.f32 %v8743, %v8783
    %v8785 = vpop.f32.mrb[0].mxu0
    %v8786 = vpop.f32.mrb[0].mxu0
    %8787 = vdwg.mxu0
    %8788 = vmatprep.subr.bf16.mxu0 %v5383
    %8789 = vmatpush1.bf16.msra.mxu0 %v5382
    %8790 = vmatprep.subr.bf16.mxu0 %v5391
    %8791 = vmatpush1.bf16.msra.mxu0 %v5390
    %8792 = vmatprep.subr.bf16.mxu0 %v5399
    %8793 = vmatpush1.bf16.msra.mxu0 %v5398
    %8794 = vmatprep.subr.bf16.mxu0 %v5407
    %8795 = vmatpush1.bf16.msra.mxu0 %v5406
    %8796 = vmatprep.subr.bf16.mxu0 %v5415
    %8797 = vmatpush1.bf16.msra.mxu0 %v5414
    %8798 = vmatprep.subr.bf16.mxu0 %v5423
    %8799 = vmatpush1.bf16.msra.mxu0 %v5422
    %8800 = vmatprep.subr.bf16.mxu0 %v5431
    %8801 = vmatpush1.bf16.msra.mxu0 %v5430
    %8802 = vmatprep.subr.bf16.mxu0 %v5439
    %8803 = vmatpush1.bf16.msra.mxu0 %v5438
    %8804 = vmatprep.subr.bf16.mxu0 %v5447
    %8805 = vmatpush1.bf16.msra.mxu0 %v5446
    %8806 = vmatprep.subr.bf16.mxu0 %v5455
    %8807 = vmatpush1.bf16.msra.mxu0 %v5454
    %8808 = vmatprep.subr.bf16.mxu0 %v5463
    %8809 = vmatpush1.bf16.msra.mxu0 %v5462
    %8810 = vmatprep.subr.bf16.mxu0 %v5471
    %8811 = vmatpush1.bf16.msra.mxu0 %v5470
    %8812 = vmatprep.subr.bf16.mxu0 %v5479
    %8813 = vmatpush1.bf16.msra.mxu0 %v5478
    %8814 = vmatprep.subr.bf16.mxu0 %v5487
    %8815 = vmatpush1.bf16.msra.mxu0 %v5486
    %8816 = vmatprep.subr.bf16.mxu0 %v5495
    %8817 = vmatpush1.bf16.msra.mxu0 %v5494
    %8818 = vmatprep.subr.bf16.mxu0 %v5503
    %8819 = vmatpush1.bf16.msra.mxu0 %v5502
    %8820 = vmatprep.mubr.bf16.mxu0 %v360
    %8821 = vmatmul.mubr.bf16.gmra.mrb[0].mxu0 %v359
    %v8822 = vpop.f32.mrb[0].mxu0
    %v8823 = vadd.f32 %v8782, %v8822
    %v8824 = vpop.f32.mrb[0].mxu0
    %v8825 = vadd.f32 %v8784, %v8824
    %v8826 = vpop.f32.mrb[0].mxu0
    %v8827 = vpop.f32.mrb[0].mxu0
    %8828 = vdwg.mxu0
    %8829 = vmatprep.subr.bf16.mxu0 %v5511
    %8830 = vmatpush1.bf16.msra.mxu0 %v5510
    %8831 = vmatprep.subr.bf16.mxu0 %v5519
    %8832 = vmatpush1.bf16.msra.mxu0 %v5518
    %8833 = vmatprep.subr.bf16.mxu0 %v5527
    %8834 = vmatpush1.bf16.msra.mxu0 %v5526
    %8835 = vmatprep.subr.bf16.mxu0 %v5535
    %8836 = vmatpush1.bf16.msra.mxu0 %v5534
    %8837 = vmatprep.subr.bf16.mxu0 %v5543
    %8838 = vmatpush1.bf16.msra.mxu0 %v5542
    %8839 = vmatprep.subr.bf16.mxu0 %v5551
    %8840 = vmatpush1.bf16.msra.mxu0 %v5550
    %8841 = vmatprep.subr.bf16.mxu0 %v5559
    %8842 = vmatpush1.bf16.msra.mxu0 %v5558
    %8843 = vmatprep.subr.bf16.mxu0 %v5567
    %8844 = vmatpush1.bf16.msra.mxu0 %v5566
    %8845 = vmatprep.subr.bf16.mxu0 %v5575
    %8846 = vmatpush1.bf16.msra.mxu0 %v5574
    %8847 = vmatprep.subr.bf16.mxu0 %v5583
    %8848 = vmatpush1.bf16.msra.mxu0 %v5582
    %8849 = vmatprep.subr.bf16.mxu0 %v5591
    %8850 = vmatpush1.bf16.msra.mxu0 %v5590
    %8851 = vmatprep.subr.bf16.mxu0 %v5599
    %8852 = vmatpush1.bf16.msra.mxu0 %v5598
    %8853 = vmatprep.subr.bf16.mxu0 %v5607
    %8854 = vmatpush1.bf16.msra.mxu0 %v5606
    %8855 = vmatprep.subr.bf16.mxu0 %v5615
    %8856 = vmatpush1.bf16.msra.mxu0 %v5614
    %8857 = vmatprep.subr.bf16.mxu0 %v5623
    %8858 = vmatpush1.bf16.msra.mxu0 %v5622
    %8859 = vmatprep.subr.bf16.mxu0 %v5631
    %8860 = vmatpush1.bf16.msra.mxu0 %v5630
    %8861 = vmatprep.mubr.bf16.mxu0 %v362
    %8862 = vmatmul.mubr.bf16.gmra.mrb[0].mxu0 %v361
    %v8863 = vpop.f32.mrb[0].mxu0
    %v8864 = vadd.f32 %v8823, %v8863
    %v8865 = vpop.f32.mrb[0].mxu0
    %v8866 = vadd.f32 %v8825, %v8865
    %v8867 = vpop.f32.mrb[0].mxu0
    %v8868 = vpop.f32.mrb[0].mxu0
    %8869 = vdwg.mxu0
    %8870 = vmatprep.subr.bf16.mxu0 %v5639
    %8871 = vmatpush1.bf16.msra.mxu0 %v5638
    %8872 = vmatprep.subr.bf16.mxu0 %v5647
    %8873 = vmatpush1.bf16.msra.mxu0 %v5646
    %8874 = vmatprep.subr.bf16.mxu0 %v5655
    %8875 = vmatpush1.bf16.msra.mxu0 %v5654
    %8876 = vmatprep.subr.bf16.mxu0 %v5663
    %8877 = vmatpush1.bf16.msra.mxu0 %v5662
    %8878 = vmatprep.subr.bf16.mxu0 %v5671
    %8879 = vmatpush1.bf16.msra.mxu0 %v5670
    %8880 = vmatprep.subr.bf16.mxu0 %v5679
    %8881 = vmatpush1.bf16.msra.mxu0 %v5678
    %8882 = vmatprep.subr.bf16.mxu0 %v5687
    %8883 = vmatpush1.bf16.msra.mxu0 %v5686
    %8884 = vmatprep.subr.bf16.mxu0 %v5695
    %8885 = vmatpush1.bf16.msra.mxu0 %v5694
    %8886 = vmatprep.subr.bf16.mxu0 %v5703
    %8887 = vmatpush1.bf16.msra.mxu0 %v5702
    %8888 = vmatprep.subr.bf16.mxu0 %v5711
    %8889 = vmatpush1.bf16.msra.mxu0 %v5710
    %8890 = vmatprep.subr.bf16.mxu0 %v5719
    %8891 = vmatpush1.bf16.msra.mxu0 %v5718
    %8892 = vmatprep.subr.bf16.mxu0 %v5727
    %8893 = vmatpush1.bf16.msra.mxu0 %v5726
    %8894 = vmatprep.subr.bf16.mxu0 %v5735
    %8895 = vmatpush1.bf16.msra.mxu0 %v5734
    %8896 = vmatprep.subr.bf16.mxu0 %v5743
    %8897 = vmatpush1.bf16.msra.mxu0 %v5742
    %8898 = vmatprep.subr.bf16.mxu0 %v5751
    %8899 = vmatpush1.bf16.msra.mxu0 %v5750
    %8900 = vmatprep.subr.bf16.mxu0 %v5759
    %8901 = vmatpush1.bf16.msra.mxu0 %v5758
    %8902 = vmatprep.mubr.bf16.mxu0 %v364
    %8903 = vmatmul.mubr.bf16.gmra.mrb[0].mxu0 %v363
    %v8904 = vpop.f32.mrb[0].mxu0
    %v8905 = vadd.f32 %v8864, %v8904
    %v8906 = vpop.f32.mrb[0].mxu0
    %v8907 = vadd.f32 %v8866, %v8906
    %v8908 = vpop.f32.mrb[0].mxu0
    %v8909 = vpop.f32.mrb[0].mxu0
    %8910 = vdwg.mxu0
    %8911 = vmatprep.subr.bf16.mxu0 %v5767
    %8912 = vmatpush1.bf16.msra.mxu0 %v5766
    %8913 = vmatprep.subr.bf16.mxu0 %v5775
    %8914 = vmatpush1.bf16.msra.mxu0 %v5774
    %8915 = vmatprep.subr.bf16.mxu0 %v5783
    %8916 = vmatpush1.bf16.msra.mxu0 %v5782
    %8917 = vmatprep.subr.bf16.mxu0 %v5791
    %8918 = vmatpush1.bf16.msra.mxu0 %v5790
    %8919 = vmatprep.subr.bf16.mxu0 %v5799
    %8920 = vmatpush1.bf16.msra.mxu0 %v5798
    %8921 = vmatprep.subr.bf16.mxu0 %v5807
    %8922 = vmatpush1.bf16.msra.mxu0 %v5806
    %8923 = vmatprep.subr.bf16.mxu0 %v5815
    %8924 = vmatpush1.bf16.msra.mxu0 %v5814
    %8925 = vmatprep.subr.bf16.mxu0 %v5823
    %8926 = vmatpush1.bf16.msra.mxu0 %v5822
    %8927 = vmatprep.subr.bf16.mxu0 %v5831
    %8928 = vmatpush1.bf16.msra.mxu0 %v5830
    %8929 = vmatprep.subr.bf16.mxu0 %v5839
    %8930 = vmatpush1.bf16.msra.mxu0 %v5838
    %8931 = vmatprep.subr.bf16.mxu0 %v5847
    %8932 = vmatpush1.bf16.msra.mxu0 %v5846
    %8933 = vmatprep.subr.bf16.mxu0 %v5855
    %8934 = vmatpush1.bf16.msra.mxu0 %v5854
    %8935 = vmatprep.subr.bf16.mxu0 %v5863
    %8936 = vmatpush1.bf16.msra.mxu0 %v5862
    %8937 = vmatprep.subr.bf16.mxu0 %v5871
    %8938 = vmatpush1.bf16.msra.mxu0 %v5870
    %8939 = vmatprep.subr.bf16.mxu0 %v5879
    %8940 = vmatpush1.bf16.msra.mxu0 %v5878
    %8941 = vmatprep.subr.bf16.mxu0 %v5887
    %8942 = vmatpush1.bf16.msra.mxu0 %v5886
    %8943 = vmatprep.mubr.bf16.mxu0 %v366
    %8944 = vmatmul.mubr.bf16.gmra.mrb[0].mxu0 %v365
    %v8945 = vpop.f32.mrb[0].mxu0
    %v8946 = vadd.f32 %v8905, %v8945
    %v8947 = vpop.f32.mrb[0].mxu0
    %v8948 = vadd.f32 %v8907, %v8947
    %v8949 = vpop.f32.mrb[0].mxu0
    %v8950 = vpop.f32.mrb[0].mxu0
    %8951 = vdwg.mxu0
    %8952 = vmatprep.subr.bf16.mxu0 %v5895
    %8953 = vmatpush1.bf16.msra.mxu0 %v5894
    %8954 = vmatprep.subr.bf16.mxu0 %v5903
    %8955 = vmatpush1.bf16.msra.mxu0 %v5902
    %8956 = vmatprep.subr.bf16.mxu0 %v5911
    %8957 = vmatpush1.bf16.msra.mxu0 %v5910
    %8958 = vmatprep.subr.bf16.mxu0 %v5919
    %8959 = vmatpush1.bf16.msra.mxu0 %v5918
    %8960 = vmatprep.subr.bf16.mxu0 %v5927
    %8961 = vmatpush1.bf16.msra.mxu0 %v5926
    %8962 = vmatprep.subr.bf16.mxu0 %v5935
    %8963 = vmatpush1.bf16.msra.mxu0 %v5934
    %8964 = vmatprep.subr.bf16.mxu0 %v5943
    %8965 = vmatpush1.bf16.msra.mxu0 %v5942
    %8966 = vmatprep.subr.bf16.mxu0 %v5951
    %8967 = vmatpush1.bf16.msra.mxu0 %v5950
    %8968 = vmatprep.subr.bf16.mxu0 %v5959
    %8969 = vmatpush1.bf16.msra.mxu0 %v5958
    %8970 = vmatprep.subr.bf16.mxu0 %v5967
    %8971 = vmatpush1.bf16.msra.mxu0 %v5966
    %8972 = vmatprep.subr.bf16.mxu0 %v5975
    %8973 = vmatpush1.bf16.msra.mxu0 %v5974
    %8974 = vmatprep.subr.bf16.mxu0 %v5983
    %8975 = vmatpush1.bf16.msra.mxu0 %v5982
    %8976 = vmatprep.subr.bf16.mxu0 %v5991
    %8977 = vmatpush1.bf16.msra.mxu0 %v5990
    %8978 = vmatprep.subr.bf16.mxu0 %v5999
    %8979 = vmatpush1.bf16.msra.mxu0 %v5998
    %8980 = vmatprep.subr.bf16.mxu0 %v6007
    %8981 = vmatpush1.bf16.msra.mxu0 %v6006
    %8982 = vmatprep.subr.bf16.mxu0 %v6015
    %8983 = vmatpush1.bf16.msra.mxu0 %v6014
    %8984 = vmatprep.mubr.bf16.mxu0 %v368
    %8985 = vmatmul.mubr.bf16.gmra.mrb[0].mxu0 %v367
    %v8986 = vpop.f32.mrb[0].mxu0
    %v8987 = vadd.f32 %v8946, %v8986
    %v8988 = vpop.f32.mrb[0].mxu0
    %v8989 = vadd.f32 %v8948, %v8988
    %v8990 = vpop.f32.mrb[0].mxu0
    %v8991 = vpop.f32.mrb[0].mxu0
    %8992 = vdwg.mxu0
    %8993 = vmatprep.subr.bf16.mxu0 %v6023
    %8994 = vmatpush1.bf16.msra.mxu0 %v6022
    %8995 = vmatprep.subr.bf16.mxu0 %v6031
    %8996 = vmatpush1.bf16.msra.mxu0 %v6030
    %8997 = vmatprep.subr.bf16.mxu0 %v6039
    %8998 = vmatpush1.bf16.msra.mxu0 %v6038
    %8999 = vmatprep.subr.bf16.mxu0 %v6047
    %9000 = vmatpush1.bf16.msra.mxu0 %v6046
    %9001 = vmatprep.subr.bf16.mxu0 %v6055
    %9002 = vmatpush1.bf16.msra.mxu0 %v6054
    %9003 = vmatprep.subr.bf16.mxu0 %v6063
    %9004 = vmatpush1.bf16.msra.mxu0 %v6062
    %9005 = vmatprep.subr.bf16.mxu0 %v6071
    %9006 = vmatpush1.bf16.msra.mxu0 %v6070
    %9007 = vmatprep.subr.bf16.mxu0 %v6079
    %9008 = vmatpush1.bf16.msra.mxu0 %v6078
    %9009 = vmatprep.subr.bf16.mxu0 %v6087
    %9010 = vmatpush1.bf16.msra.mxu0 %v6086
    %9011 = vmatprep.subr.bf16.mxu0 %v6095
    %9012 = vmatpush1.bf16.msra.mxu0 %v6094
    %9013 = vmatprep.subr.bf16.mxu0 %v6103
    %9014 = vmatpush1.bf16.msra.mxu0 %v6102
    %9015 = vmatprep.subr.bf16.mxu0 %v6111
    %9016 = vmatpush1.bf16.msra.mxu0 %v6110
    %9017 = vmatprep.subr.bf16.mxu0 %v6119
    %9018 = vmatpush1.bf16.msra.mxu0 %v6118
    %9019 = vmatprep.subr.bf16.mxu0 %v6127
    %9020 = vmatpush1.bf16.msra.mxu0 %v6126
    %9021 = vmatprep.subr.bf16.mxu0 %v6135
    %9022 = vmatpush1.bf16.msra.mxu0 %v6134
    %9023 = vmatprep.subr.bf16.mxu0 %v6143
    %9024 = vmatpush1.bf16.msra.mxu0 %v6142
    %9025 = vmatprep.mubr.bf16.mxu0 %v370
    %9026 = vmatmul.mubr.bf16.gmra.mrb[0].mxu0 %v369
    %v9027 = vpop.f32.mrb[0].mxu0
    %v9028 = vadd.f32 %v8987, %v9027
    %v9029 = vpop.f32.mrb[0].mxu0
    %v9030 = vadd.f32 %v8989, %v9029
    %v9031 = vpop.f32.mrb[0].mxu0
    %v9032 = vpop.f32.mrb[0].mxu0
    %9033 = vdwg.mxu0
    %9034 = vmatprep.subr.bf16.mxu0 %v6151
    %9035 = vmatpush1.bf16.msra.mxu0 %v6150
    %9036 = vmatprep.subr.bf16.mxu0 %v6159
    %9037 = vmatpush1.bf16.msra.mxu0 %v6158
    %9038 = vmatprep.subr.bf16.mxu0 %v6167
    %9039 = vmatpush1.bf16.msra.mxu0 %v6166
    %9040 = vmatprep.subr.bf16.mxu0 %v6175
    %9041 = vmatpush1.bf16.msra.mxu0 %v6174
    %9042 = vmatprep.subr.bf16.mxu0 %v6183
    %9043 = vmatpush1.bf16.msra.mxu0 %v6182
    %9044 = vmatprep.subr.bf16.mxu0 %v6191
    %9045 = vmatpush1.bf16.msra.mxu0 %v6190
    %9046 = vmatprep.subr.bf16.mxu0 %v6199
    %9047 = vmatpush1.bf16.msra.mxu0 %v6198
    %9048 = vmatprep.subr.bf16.mxu0 %v6207
    %9049 = vmatpush1.bf16.msra.mxu0 %v6206
    %9050 = vmatprep.subr.bf16.mxu0 %v6215
    %9051 = vmatpush1.bf16.msra.mxu0 %v6214
    %9052 = vmatprep.subr.bf16.mxu0 %v6223
    %9053 = vmatpush1.bf16.msra.mxu0 %v6222
    %9054 = vmatprep.subr.bf16.mxu0 %v6231
    %9055 = vmatpush1.bf16.msra.mxu0 %v6230
    %9056 = vmatprep.subr.bf16.mxu0 %v6239
    %9057 = vmatpush1.bf16.msra.mxu0 %v6238
    %9058 = vmatprep.subr.bf16.mxu0 %v6247
    %9059 = vmatpush1.bf16.msra.mxu0 %v6246
    %9060 = vmatprep.subr.bf16.mxu0 %v6255
    %9061 = vmatpush1.bf16.msra.mxu0 %v6254
    %9062 = vmatprep.subr.bf16.mxu0 %v6263
    %9063 = vmatpush1.bf16.msra.mxu0 %v6262
    %9064 = vmatprep.subr.bf16.mxu0 %v6271
    %9065 = vmatpush1.bf16.msra.mxu0 %v6270
    %9066 = vmatprep.mubr.bf16.mxu0 %v372
    %9067 = vmatmul.mubr.bf16.gmra.mrb[0].mxu0 %v371
    %v9068 = vpop.f32.mrb[0].mxu0
    %v9069 = vadd.f32 %v9028, %v9068
    %v9070 = vpop.f32.mrb[0].mxu0
    %v9071 = vadd.f32 %v9030, %v9070
    %v9072 = vpop.f32.mrb[0].mxu0
    %v9073 = vpop.f32.mrb[0].mxu0
    %9074 = vdwg.mxu0
    %9075 = vmatprep.subr.bf16.mxu0 %v6279
    %9076 = vmatpush1.bf16.msra.mxu0 %v6278
    %9077 = vmatprep.subr.bf16.mxu0 %v6287
    %9078 = vmatpush1.bf16.msra.mxu0 %v6286
    %9079 = vmatprep.subr.bf16.mxu0 %v6295
    %9080 = vmatpush1.bf16.msra.mxu0 %v6294
    %9081 = vmatprep.subr.bf16.mxu0 0
    %9082 = vmatpush1.bf16.msra.mxu0 0
    %9083 = vmatprep.subr.bf16.mxu0 0
    %9084 = vmatpush1.bf16.msra.mxu0 0
    %9085 = vmatprep.subr.bf16.mxu0 0
    %9086 = vmatpush1.bf16.msra.mxu0 0
    %9087 = vmatprep.subr.bf16.mxu0 0
    %9088 = vmatpush1.bf16.msra.mxu0 0
    %9089 = vmatprep.subr.bf16.mxu0 0
    %9090 = vmatpush1.bf16.msra.mxu0 0
    %9091 = vmatprep.subr.bf16.mxu0 0
    %9092 = vmatpush1.bf16.msra.mxu0 0
    %9093 = vmatprep.subr.bf16.mxu0 0
    %9094 = vmatpush1.bf16.msra.mxu0 0
    %9095 = vmatprep.subr.bf16.mxu0 0
    %9096 = vmatpush1.bf16.msra.mxu0 0
    %9097 = vmatprep.subr.bf16.mxu0 0
    %9098 = vmatpush1.bf16.msra.mxu0 0
    %9099 = vmatprep.subr.bf16.mxu0 0
    %9100 = vmatpush1.bf16.msra.mxu0 0
    %9101 = vmatprep.subr.bf16.mxu0 0
    %9102 = vmatpush1.bf16.msra.mxu0 0
    %9103 = vmatprep.subr.bf16.mxu0 0
    %9104 = vmatpush1.bf16.msra.mxu0 0
    %9105 = vmatprep.subr.bf16.mxu0 0
    %9106 = vmatpush1.bf16.msra.mxu0 0
    %9107 = vmatprep.mubr.bf16.mxu0 0
    %9108 = vmatmul.mubr.bf16.gmra.mrb[0].mxu0 %v7474
    %v9109 = vpop.f32.mrb[0].mxu0
    %v9110 = vadd.f32 %v9069, %v9109
    %v9111 = vpop.f32.mrb[0].mxu0
    %v9112 = vadd.f32 %v9071, %v9111
    %v9113 = vpop.f32.mrb[0].mxu0
    %v9114 = vpop.f32.mrb[0].mxu0
    %9115 = vdwg.mxu0
    %v9116 = vmax.f32 %v7880, 0.0
    %v9117 = vmax.f32 %v7882, 0.0
    %v9118 = vmax.f32 %v8290, 0.0
    %v9119 = vmax.f32 %v8292, 0.0
    %v9120 = vmax.f32 %v8700, 0.0
    %v9121 = vmax.f32 %v8702, 0.0
    %v9122 = vmax.f32 %v9110, 0.0
    %v9123 = vmax.f32 %v9112, 0.0
    %v9124 = vpack.c.bf16 %v9116, %v9116
    %v9125 = vpack.c.bf16 %v9117, %v9117
    %v9126 = vpack.c.bf16 %v9118, %v9118
    %v9127 = vpack.c.bf16 %v9119, %v9119
    %v9128 = vpack.c.bf16 %v9120, %v9120
    %v9129 = vpack.c.bf16 %v9121, %v9121
    %v9130 = vpack.c.bf16 %v9122, %v9122
    %v9131 = vpack.c.bf16 %v9123, %v9123
    %v9132 = vld [vmem:[#allocation8] sm:$0xf]
    %v9133 = vld [vmem:[#allocation8 + $0x4] sm:$0xf]
    %v9134 = vld [vmem:[#allocation8 + $0x8] sm:$0xf]
    %v9135 = vld [vmem:[#allocation8 + $0xc] sm:$0xf]
    %v9136 = vld [vmem:[#allocation8 + $0x10] sm:$0xf]
    %v9137 = vld [vmem:[#allocation8 + $0x14] sm:$0xf]
    %v9138 = vld [vmem:[#allocation8 + $0x18] sm:$0xf]
    %v9139 = vld [vmem:[#allocation8 + $0x1c] sm:$0xf]
    %v9140 = vld [vmem:[#allocation8 + $0x20] sm:$0xf]
    %v9141 = vld [vmem:[#allocation8 + $0x24] sm:$0xf]
    %v9142 = vld [vmem:[#allocation8 + $0x28] sm:$0xf]
    %v9143 = vld [vmem:[#allocation8 + $0x2c] sm:$0xf]
    %v9144 = vld [vmem:[#allocation8 + $0x30] sm:$0xf]
    %v9145 = vld [vmem:[#allocation8 + $0x34] sm:$0xf]
    %v9146 = vld [vmem:[#allocation8 + $0x38] sm:$0xf]
    %v9147 = vld [vmem:[#allocation8 + $0x3c] sm:$0xf]
    %v9148 = vld [vmem:[#allocation8 + $0x40] sm:$0xf]
    %v9149 = vld [vmem:[#allocation8 + $0x44] sm:$0xf]
    %v9150 = vld [vmem:[#allocation8 + $0x48] sm:$0xf]
    %v9151 = vld [vmem:[#allocation8 + $0x4c] sm:$0xf]
    %v9152 = vld [vmem:[#allocation8 + $0x50] sm:$0xf]
    %v9153 = vld [vmem:[#allocation8 + $0x54] sm:$0xf]
    %v9154 = vld [vmem:[#allocation8 + $0x58] sm:$0xf]
    %v9155 = vld [vmem:[#allocation8 + $0x5c] sm:$0xf]
    %v9156 = vld [vmem:[#allocation8 + $0x60] sm:$0xf]
    %v9157 = vld [vmem:[#allocation8 + $0x64] sm:$0xf]
    %v9158 = vld [vmem:[#allocation8 + $0x68] sm:$0xf]
    %v9159 = vld [vmem:[#allocation8 + $0x6c] sm:$0xf]
    %v9160 = vld [vmem:[#allocation8 + $0x70] sm:$0xf]
    %v9161 = vld [vmem:[#allocation8 + $0x74] sm:$0xf]
    %v9162 = vld [vmem:[#allocation8 + $0x78] sm:$0xf]
    %v9163 = vld [vmem:[#allocation8 + $0x7c] sm:$0xf]
    %v9164 = vld [vmem:[#allocation8 + $0x80] sm:$0xf]
    %v9165 = vld [vmem:[#allocation8 + $0x84] sm:$0xf]
    %v9166 = vld [vmem:[#allocation8 + $0x88] sm:$0xf]
    %v9167 = vld [vmem:[#allocation8 + $0x8c] sm:$0xf]
    %v9168 = vld [vmem:[#allocation8 + $0x90] sm:$0xf]
    %v9169 = vld [vmem:[#allocation8 + $0x94] sm:$0xf]
    %v9170 = vld [vmem:[#allocation8 + $0x98] sm:$0xf]
    %v9171 = vld [vmem:[#allocation8 + $0x9c] sm:$0xf]
    %v9172 = vld [vmem:[#allocation8 + $0xa0] sm:$0xf]
    %v9173 = vld [vmem:[#allocation8 + $0xa4] sm:$0xf]
    %v9174 = vld [vmem:[#allocation8 + $0xa8] sm:$0xf]
    %v9175 = vld [vmem:[#allocation8 + $0xac] sm:$0xf]
    %v9176 = vld [vmem:[#allocation8 + $0xb0] sm:$0xf]
    %v9177 = vld [vmem:[#allocation8 + $0xb4] sm:$0xf]
    %v9178 = vld [vmem:[#allocation8 + $0xb8] sm:$0xf]
    %v9179 = vld [vmem:[#allocation8 + $0xbc] sm:$0xf]
    %v9180 = vld [vmem:[#allocation8 + $0xc0] sm:$0xf]
    %v9181 = vld [vmem:[#allocation8 + $0xc4] sm:$0xf]
    %v9182 = vld [vmem:[#allocation8 + $0xc8] sm:$0xf]
    %v9183 = vld [vmem:[#allocation8 + $0xcc] sm:$0xf]
    %v9184 = vld [vmem:[#allocation8 + $0xd0] sm:$0xf]
    %v9185 = vld [vmem:[#allocation8 + $0xd4] sm:$0xf]
    %v9186 = vld [vmem:[#allocation8 + $0xd8] sm:$0xf]
    %v9187 = vld [vmem:[#allocation8 + $0xdc] sm:$0xf]
    %v9188 = vld [vmem:[#allocation8 + $0xe0] sm:$0xf]
    %v9189 = vld [vmem:[#allocation8 + $0xe4] sm:$0xf]
    %v9190 = vld [vmem:[#allocation8 + $0xe8] sm:$0xf]
    %v9191 = vld [vmem:[#allocation8 + $0xec] sm:$0xf]
    %v9192 = vld [vmem:[#allocation8 + $0xf0] sm:$0xf]
    %v9193 = vld [vmem:[#allocation8 + $0xf4] sm:$0xf]
    %v9194 = vld [vmem:[#allocation8 + $0xf8] sm:$0xf]
    %v9195 = vld [vmem:[#allocation8 + $0xfc] sm:$0xf]
    %v9196 = vld [vmem:[#allocation8 + $0x100] sm:$0xf]
    %v9197 = vld [vmem:[#allocation8 + $0x104] sm:$0xf]
    %v9198 = vld [vmem:[#allocation8 + $0x108] sm:$0xf]
    %v9199 = vld [vmem:[#allocation8 + $0x10c] sm:$0xf]
    %v9200 = vld [vmem:[#allocation8 + $0x110] sm:$0xf]
    %v9201 = vld [vmem:[#allocation8 + $0x114] sm:$0xf]
    %v9202 = vld [vmem:[#allocation8 + $0x118] sm:$0xf]
    %v9203 = vld [vmem:[#allocation8 + $0x11c] sm:$0xf]
    %v9204 = vld [vmem:[#allocation8 + $0x120] sm:$0xf]
    %v9205 = vld [vmem:[#allocation8 + $0x124] sm:$0xf]
    %v9206 = vld [vmem:[#allocation8 + $0x128] sm:$0xf]
    %v9207 = vld [vmem:[#allocation8 + $0x12c] sm:$0xf]
    %v9208 = vld [vmem:[#allocation8 + $0x130] sm:$0xf]
    %v9209 = vld [vmem:[#allocation8 + $0x134] sm:$0xf]
    %v9210 = vld [vmem:[#allocation8 + $0x138] sm:$0xf]
    %v9211 = vld [vmem:[#allocation8 + $0x13c] sm:$0xf]
    %v9212 = vld [vmem:[#allocation8 + $0x140] sm:$0xf]
    %v9213 = vld [vmem:[#allocation8 + $0x144] sm:$0xf]
    %v9214 = vld [vmem:[#allocation8 + $0x148] sm:$0xf]
    %v9215 = vld [vmem:[#allocation8 + $0x14c] sm:$0xf]
    %v9216 = vld [vmem:[#allocation8 + $0x150] sm:$0xf]
    %v9217 = vld [vmem:[#allocation8 + $0x154] sm:$0xf]
    %v9218 = vld [vmem:[#allocation8 + $0x158] sm:$0xf]
    %v9219 = vld [vmem:[#allocation8 + $0x15c] sm:$0xf]
    %v9220 = vld [vmem:[#allocation8 + $0x160] sm:$0xf]
    %v9221 = vld [vmem:[#allocation8 + $0x164] sm:$0xf]
    %v9222 = vld [vmem:[#allocation8 + $0x168] sm:$0xf]
    %v9223 = vld [vmem:[#allocation8 + $0x16c] sm:$0xf]
    %v9224 = vld [vmem:[#allocation8 + $0x170] sm:$0xf]
    %v9225 = vld [vmem:[#allocation8 + $0x174] sm:$0xf]
    %v9226 = vld [vmem:[#allocation8 + $0x178] sm:$0xf]
    %v9227 = vld [vmem:[#allocation8 + $0x17c] sm:$0xf]
    %v9228 = vld [vmem:[#allocation8 + $0x180] sm:$0xf]
    %v9229 = vld [vmem:[#allocation8 + $0x184] sm:$0xf]
    %v9230 = vld [vmem:[#allocation8 + $0x188] sm:$0xf]
    %v9231 = vld [vmem:[#allocation8 + $0x18c] sm:$0xf]
    %v9232 = vld [vmem:[#allocation8 + $0x190] sm:$0xf]
    %v9233 = vld [vmem:[#allocation8 + $0x194] sm:$0xf]
    %v9234 = vld [vmem:[#allocation8 + $0x198] sm:$0xf]
    %v9235 = vld [vmem:[#allocation8 + $0x19c] sm:$0xf]
    %v9236 = vld [vmem:[#allocation8 + $0x1a0] sm:$0xf]
    %v9237 = vld [vmem:[#allocation8 + $0x1a4] sm:$0xf]
    %v9238 = vld [vmem:[#allocation8 + $0x1a8] sm:$0xf]
    %v9239 = vld [vmem:[#allocation8 + $0x1ac] sm:$0xf]
    %v9240 = vld [vmem:[#allocation8 + $0x1b0] sm:$0xf]
    %v9241 = vld [vmem:[#allocation8 + $0x1b4] sm:$0xf]
    %v9242 = vld [vmem:[#allocation8 + $0x1b8] sm:$0xf]
    %v9243 = vld [vmem:[#allocation8 + $0x1bc] sm:$0xf]
    %v9244 = vld [vmem:[#allocation8 + $0x1c0] sm:$0xf]
    %v9245 = vld [vmem:[#allocation8 + $0x1c4] sm:$0xf]
    %v9246 = vld [vmem:[#allocation8 + $0x1c8] sm:$0xf]
    %v9247 = vld [vmem:[#allocation8 + $0x1cc] sm:$0xf]
    %v9248 = vld [vmem:[#allocation8 + $0x1d0] sm:$0xf]
    %v9249 = vld [vmem:[#allocation8 + $0x1d4] sm:$0xf]
    %v9250 = vld [vmem:[#allocation8 + $0x1d8] sm:$0xf]
    %v9251 = vld [vmem:[#allocation8 + $0x1dc] sm:$0xf]
    %v9252 = vld [vmem:[#allocation8 + $0x1e0] sm:$0xf]
    %v9253 = vld [vmem:[#allocation8 + $0x1e4] sm:$0xf]
    %v9254 = vld [vmem:[#allocation8 + $0x1e8] sm:$0xf]
    %v9255 = vld [vmem:[#allocation8 + $0x1ec] sm:$0xf]
    %v9256 = vld [vmem:[#allocation8 + $0x1f0] sm:$0xf]
    %v9257 = vld [vmem:[#allocation8 + $0x1f4] sm:$0xf]
    %v9258 = vld [vmem:[#allocation8 + $0x1f8] sm:$0xf]
    %v9259 = vld [vmem:[#allocation8 + $0x1fc] sm:$0xf]
    %v9260 = vld [vmem:[#allocation10] sm:$0x1]
    %v9262 = vlaneseq
    %v9263 = vshrl.u32 %v9262, 7
    %v9264 = vsub.s32 0, %v9263
    %v9265 = vrot.slane %v9260, %v9264
    %v9395 = vunpack.c.l.b16 %v9132
    %v9396 = vunpack.c.l.b16 %v9133
    %v9397 = vunpack.c.l.b16 %v9134
    %v9398 = vunpack.c.l.b16 %v9135
    %v9399 = vunpack.c.l.b16 %v9136
    %v9400 = vunpack.c.l.b16 %v9137
    %v9401 = vunpack.c.l.b16 %v9138
    %v9402 = vunpack.c.l.b16 %v9139
    %v9403 = vunpack.c.l.b16 %v9140
    %v9404 = vunpack.c.l.b16 %v9141
    %v9405 = vunpack.c.l.b16 %v9142
    %v9406 = vunpack.c.l.b16 %v9143
    %v9407 = vunpack.c.l.b16 %v9144
    %v9408 = vunpack.c.l.b16 %v9145
    %v9409 = vunpack.c.l.b16 %v9146
    %v9410 = vunpack.c.l.b16 %v9147
    %v9411 = vunpack.c.l.b16 %v9148
    %v9412 = vunpack.c.l.b16 %v9149
    %v9413 = vunpack.c.l.b16 %v9150
    %v9414 = vunpack.c.l.b16 %v9151
    %v9415 = vunpack.c.l.b16 %v9152
    %v9416 = vunpack.c.l.b16 %v9153
    %v9417 = vunpack.c.l.b16 %v9154
    %v9418 = vunpack.c.l.b16 %v9155
    %v9419 = vunpack.c.l.b16 %v9156
    %v9420 = vunpack.c.l.b16 %v9157
    %v9421 = vunpack.c.l.b16 %v9158
    %v9422 = vunpack.c.l.b16 %v9159
    %v9423 = vunpack.c.l.b16 %v9160
    %v9424 = vunpack.c.l.b16 %v9161
    %v9425 = vunpack.c.l.b16 %v9162
    %v9426 = vunpack.c.l.b16 %v9163
    %v9427 = vunpack.c.l.b16 %v9164
    %v9428 = vunpack.c.l.b16 %v9165
    %v9429 = vunpack.c.l.b16 %v9166
    %v9430 = vunpack.c.l.b16 %v9167
    %v9431 = vunpack.c.l.b16 %v9168
    %v9432 = vunpack.c.l.b16 %v9169
    %v9433 = vunpack.c.l.b16 %v9170
    %v9434 = vunpack.c.l.b16 %v9171
    %v9435 = vunpack.c.l.b16 %v9172
    %v9436 = vunpack.c.l.b16 %v9173
    %v9437 = vunpack.c.l.b16 %v9174
    %v9438 = vunpack.c.l.b16 %v9175
    %v9439 = vunpack.c.l.b16 %v9176
    %v9440 = vunpack.c.l.b16 %v9177
    %v9441 = vunpack.c.l.b16 %v9178
    %v9442 = vunpack.c.l.b16 %v9179
    %v9443 = vunpack.c.l.b16 %v9180
    %v9444 = vunpack.c.l.b16 %v9181
    %v9445 = vunpack.c.l.b16 %v9182
    %v9446 = vunpack.c.l.b16 %v9183
    %v9447 = vunpack.c.l.b16 %v9184
    %v9448 = vunpack.c.l.b16 %v9185
    %v9449 = vunpack.c.l.b16 %v9186
    %v9450 = vunpack.c.l.b16 %v9187
    %v9451 = vunpack.c.l.b16 %v9188
    %v9452 = vunpack.c.l.b16 %v9189
    %v9453 = vunpack.c.l.b16 %v9190
    %v9454 = vunpack.c.l.b16 %v9191
    %v9455 = vunpack.c.l.b16 %v9192
    %v9456 = vunpack.c.l.b16 %v9193
    %v9457 = vunpack.c.l.b16 %v9194
    %v9458 = vunpack.c.l.b16 %v9195
    %v9459 = vunpack.c.l.b16 %v9196
    %v9460 = vunpack.c.l.b16 %v9197
    %v9461 = vunpack.c.l.b16 %v9198
    %v9462 = vunpack.c.l.b16 %v9199
    %v9463 = vunpack.c.l.b16 %v9200
    %v9464 = vunpack.c.l.b16 %v9201
    %v9465 = vunpack.c.l.b16 %v9202
    %v9466 = vunpack.c.l.b16 %v9203
    %v9467 = vunpack.c.l.b16 %v9204
    %v9468 = vunpack.c.l.b16 %v9205
    %v9469 = vunpack.c.l.b16 %v9206
    %v9470 = vunpack.c.l.b16 %v9207
    %v9471 = vunpack.c.l.b16 %v9208
    %v9472 = vunpack.c.l.b16 %v9209
    %v9473 = vunpack.c.l.b16 %v9210
    %v9474 = vunpack.c.l.b16 %v9211
    %v9475 = vunpack.c.l.b16 %v9212
    %v9476 = vunpack.c.l.b16 %v9213
    %v9477 = vunpack.c.l.b16 %v9214
    %v9478 = vunpack.c.l.b16 %v9215
    %v9479 = vunpack.c.l.b16 %v9216
    %v9480 = vunpack.c.l.b16 %v9217
    %v9481 = vunpack.c.l.b16 %v9218
    %v9482 = vunpack.c.l.b16 %v9219
    %v9483 = vunpack.c.l.b16 %v9220
    %v9484 = vunpack.c.l.b16 %v9221
    %v9485 = vunpack.c.l.b16 %v9222
    %v9486 = vunpack.c.l.b16 %v9223
    %v9487 = vunpack.c.l.b16 %v9224
    %v9488 = vunpack.c.l.b16 %v9225
    %v9489 = vunpack.c.l.b16 %v9226
    %v9490 = vunpack.c.l.b16 %v9227
    %v9491 = vunpack.c.l.b16 %v9228
    %v9492 = vunpack.c.l.b16 %v9229
    %v9493 = vunpack.c.l.b16 %v9230
    %v9494 = vunpack.c.l.b16 %v9231
    %v9495 = vunpack.c.l.b16 %v9232
    %v9496 = vunpack.c.l.b16 %v9233
    %v9497 = vunpack.c.l.b16 %v9234
    %v9498 = vunpack.c.l.b16 %v9235
    %v9499 = vunpack.c.l.b16 %v9236
    %v9500 = vunpack.c.l.b16 %v9237
    %v9501 = vunpack.c.l.b16 %v9238
    %v9502 = vunpack.c.l.b16 %v9239
    %v9503 = vunpack.c.l.b16 %v9240
    %v9504 = vunpack.c.l.b16 %v9241
    %v9505 = vunpack.c.l.b16 %v9242
    %v9506 = vunpack.c.l.b16 %v9243
    %v9507 = vunpack.c.l.b16 %v9244
    %v9508 = vunpack.c.l.b16 %v9245
    %v9509 = vunpack.c.l.b16 %v9246
    %v9510 = vunpack.c.l.b16 %v9247
    %v9511 = vunpack.c.l.b16 %v9248
    %v9512 = vunpack.c.l.b16 %v9249
    %v9513 = vunpack.c.l.b16 %v9250
    %v9514 = vunpack.c.l.b16 %v9251
    %v9515 = vunpack.c.l.b16 %v9252
    %v9516 = vunpack.c.l.b16 %v9253
    %v9517 = vunpack.c.l.b16 %v9254
    %v9518 = vunpack.c.l.b16 %v9255
    %v9519 = vunpack.c.l.b16 %v9256
    %v9520 = vunpack.c.l.b16 %v9257
    %v9521 = vunpack.c.l.b16 %v9258
    %v9522 = vunpack.c.l.b16 %v9259
    %v9523 = vpack.c.b16 %v9396, %v9395
    %v9524 = vpack.c.b16 %v9398, %v9397
    %v9525 = vpack.c.b16 %v9400, %v9399
    %v9526 = vpack.c.b16 %v9402, %v9401
    %v9527 = vpack.c.b16 %v9404, %v9403
    %v9528 = vpack.c.b16 %v9406, %v9405
    %v9529 = vpack.c.b16 %v9408, %v9407
    %v9530 = vpack.c.b16 %v9410, %v9409
    %v9531 = vpack.c.b16 %v9412, %v9411
    %v9532 = vpack.c.b16 %v9414, %v9413
    %v9533 = vpack.c.b16 %v9416, %v9415
    %v9534 = vpack.c.b16 %v9418, %v9417
    %v9535 = vpack.c.b16 %v9420, %v9419
    %v9536 = vpack.c.b16 %v9422, %v9421
    %v9537 = vpack.c.b16 %v9424, %v9423
    %v9538 = vpack.c.b16 %v9426, %v9425
    %v9539 = vpack.c.b16 %v9428, %v9427
    %v9540 = vpack.c.b16 %v9430, %v9429
    %v9541 = vpack.c.b16 %v9432, %v9431
    %v9542 = vpack.c.b16 %v9434, %v9433
    %v9543 = vpack.c.b16 %v9436, %v9435
    %v9544 = vpack.c.b16 %v9438, %v9437
    %v9545 = vpack.c.b16 %v9440, %v9439
    %v9546 = vpack.c.b16 %v9442, %v9441
    %v9547 = vpack.c.b16 %v9444, %v9443
    %v9548 = vpack.c.b16 %v9446, %v9445
    %v9549 = vpack.c.b16 %v9448, %v9447
    %v9550 = vpack.c.b16 %v9450, %v9449
    %v9551 = vpack.c.b16 %v9452, %v9451
    %v9552 = vpack.c.b16 %v9454, %v9453
    %v9553 = vpack.c.b16 %v9456, %v9455
    %v9554 = vpack.c.b16 %v9458, %v9457
    %v9555 = vpack.c.b16 %v9460, %v9459
    %v9556 = vpack.c.b16 %v9462, %v9461
    %v9557 = vpack.c.b16 %v9464, %v9463
    %v9558 = vpack.c.b16 %v9466, %v9465
    %v9559 = vpack.c.b16 %v9468, %v9467
    %v9560 = vpack.c.b16 %v9470, %v9469
    %v9561 = vpack.c.b16 %v9472, %v9471
    %v9562 = vpack.c.b16 %v9474, %v9473
    %v9563 = vpack.c.b16 %v9476, %v9475
    %v9564 = vpack.c.b16 %v9478, %v9477
    %v9565 = vpack.c.b16 %v9480, %v9479
    %v9566 = vpack.c.b16 %v9482, %v9481
    %v9567 = vpack.c.b16 %v9484, %v9483
    %v9568 = vpack.c.b16 %v9486, %v9485
    %v9569 = vpack.c.b16 %v9488, %v9487
    %v9570 = vpack.c.b16 %v9490, %v9489
    %v9571 = vpack.c.b16 %v9492, %v9491
    %v9572 = vpack.c.b16 %v9494, %v9493
    %v9573 = vpack.c.b16 %v9496, %v9495
    %v9574 = vpack.c.b16 %v9498, %v9497
    %v9575 = vpack.c.b16 %v9500, %v9499
    %v9576 = vpack.c.b16 %v9502, %v9501
    %v9577 = vpack.c.b16 %v9504, %v9503
    %v9578 = vpack.c.b16 %v9506, %v9505
    %v9579 = vpack.c.b16 %v9508, %v9507
    %v9580 = vpack.c.b16 %v9510, %v9509
    %v9581 = vpack.c.b16 %v9512, %v9511
    %v9582 = vpack.c.b16 %v9514, %v9513
    %v9583 = vpack.c.b16 %v9516, %v9515
    %v9584 = vpack.c.b16 %v9518, %v9517
    %v9585 = vpack.c.b16 %v9520, %v9519
    %v9586 = vpack.c.b16 %v9522, %v9521
    %9651 = vmatprep.subr.bf16.mxu0 0
    %9652 = vmatpush1.bf16.msra.mxu0 %v9523
    %9653 = vmatprep.subr.bf16.mxu0 0
    %9654 = vmatpush1.bf16.msra.mxu0 %v9524
    %9655 = vmatprep.subr.bf16.mxu0 0
    %9656 = vmatpush1.bf16.msra.mxu0 %v9525
    %9657 = vmatprep.subr.bf16.mxu0 0
    %9658 = vmatpush1.bf16.msra.mxu0 %v9526
    %9659 = vmatprep.subr.bf16.mxu0 0
    %9660 = vmatpush1.bf16.msra.mxu0 %v9527
    %9661 = vmatprep.subr.bf16.mxu0 0
    %9662 = vmatpush1.bf16.msra.mxu0 %v9528
    %9663 = vmatprep.subr.bf16.mxu0 0
    %9664 = vmatpush1.bf16.msra.mxu0 %v9529
    %9665 = vmatprep.subr.bf16.mxu0 0
    %9666 = vmatpush1.bf16.msra.mxu0 %v9530
    %9667 = vmatprep.subr.bf16.mxu0 0
    %9668 = vmatpush1.bf16.msra.mxu0 %v9531
    %9669 = vmatprep.subr.bf16.mxu0 0
    %9670 = vmatpush1.bf16.msra.mxu0 %v9532
    %9671 = vmatprep.subr.bf16.mxu0 0
    %9672 = vmatpush1.bf16.msra.mxu0 %v9533
    %9673 = vmatprep.subr.bf16.mxu0 0
    %9674 = vmatpush1.bf16.msra.mxu0 %v9534
    %9675 = vmatprep.subr.bf16.mxu0 0
    %9676 = vmatpush1.bf16.msra.mxu0 %v9535
    %9677 = vmatprep.subr.bf16.mxu0 0
    %9678 = vmatpush1.bf16.msra.mxu0 %v9536
    %9679 = vmatprep.subr.bf16.mxu0 0
    %9680 = vmatpush1.bf16.msra.mxu0 %v9537
    %9681 = vmatprep.subr.bf16.mxu0 0
    %9682 = vmatpush1.bf16.msra.mxu0 %v9538
    %9683 = vmatprep.mubr.bf16.mxu0 %v9125
    %9684 = vmatmul.mubr.bf16.gmra.mrb[0].mxu0 %v9124
    %v9685 = vpop.f32.mrb[0].mxu0
    %v9686 = vadd.f32 %v9265, %v9685
    %v9687 = vpop.f32.mrb[0].mxu0
    %v9688 = vpop.f32.mrb[0].mxu0
    %v9689 = vpop.f32.mrb[0].mxu0
    %9690 = vdwg.mxu0
    %9691 = vmatprep.subr.bf16.mxu0 0
    %9692 = vmatpush1.bf16.msra.mxu0 %v9539
    %9693 = vmatprep.subr.bf16.mxu0 0
    %9694 = vmatpush1.bf16.msra.mxu0 %v9540
    %9695 = vmatprep.subr.bf16.mxu0 0
    %9696 = vmatpush1.bf16.msra.mxu0 %v9541
    %9697 = vmatprep.subr.bf16.mxu0 0
    %9698 = vmatpush1.bf16.msra.mxu0 %v9542
    %9699 = vmatprep.subr.bf16.mxu0 0
    %9700 = vmatpush1.bf16.msra.mxu0 %v9543
    %9701 = vmatprep.subr.bf16.mxu0 0
    %9702 = vmatpush1.bf16.msra.mxu0 %v9544
    %9703 = vmatprep.subr.bf16.mxu0 0
    %9704 = vmatpush1.bf16.msra.mxu0 %v9545
    %9705 = vmatprep.subr.bf16.mxu0 0
    %9706 = vmatpush1.bf16.msra.mxu0 %v9546
    %9707 = vmatprep.subr.bf16.mxu0 0
    %9708 = vmatpush1.bf16.msra.mxu0 %v9547
    %9709 = vmatprep.subr.bf16.mxu0 0
    %9710 = vmatpush1.bf16.msra.mxu0 %v9548
    %9711 = vmatprep.subr.bf16.mxu0 0
    %9712 = vmatpush1.bf16.msra.mxu0 %v9549
    %9713 = vmatprep.subr.bf16.mxu0 0
    %9714 = vmatpush1.bf16.msra.mxu0 %v9550
    %9715 = vmatprep.subr.bf16.mxu0 0
    %9716 = vmatpush1.bf16.msra.mxu0 %v9551
    %9717 = vmatprep.subr.bf16.mxu0 0
    %9718 = vmatpush1.bf16.msra.mxu0 %v9552
    %9719 = vmatprep.subr.bf16.mxu0 0
    %9720 = vmatpush1.bf16.msra.mxu0 %v9553
    %9721 = vmatprep.subr.bf16.mxu0 0
    %9722 = vmatpush1.bf16.msra.mxu0 %v9554
    %9723 = vmatprep.mubr.bf16.mxu0 %v9127
    %9724 = vmatmul.mubr.bf16.gmra.mrb[0].mxu0 %v9126
    %v9725 = vpop.f32.mrb[0].mxu0
    %v9726 = vadd.f32 %v9686, %v9725
    %v9727 = vpop.f32.mrb[0].mxu0
    %v9728 = vpop.f32.mrb[0].mxu0
    %v9729 = vpop.f32.mrb[0].mxu0
    %9730 = vdwg.mxu0
    %9731 = vmatprep.subr.bf16.mxu0 0
    %9732 = vmatpush1.bf16.msra.mxu0 %v9555
    %9733 = vmatprep.subr.bf16.mxu0 0
    %9734 = vmatpush1.bf16.msra.mxu0 %v9556
    %9735 = vmatprep.subr.bf16.mxu0 0
    %9736 = vmatpush1.bf16.msra.mxu0 %v9557
    %9737 = vmatprep.subr.bf16.mxu0 0
    %9738 = vmatpush1.bf16.msra.mxu0 %v9558
    %9739 = vmatprep.subr.bf16.mxu0 0
    %9740 = vmatpush1.bf16.msra.mxu0 %v9559
    %9741 = vmatprep.subr.bf16.mxu0 0
    %9742 = vmatpush1.bf16.msra.mxu0 %v9560
    %9743 = vmatprep.subr.bf16.mxu0 0
    %9744 = vmatpush1.bf16.msra.mxu0 %v9561
    %9745 = vmatprep.subr.bf16.mxu0 0
    %9746 = vmatpush1.bf16.msra.mxu0 %v9562
    %9747 = vmatprep.subr.bf16.mxu0 0
    %9748 = vmatpush1.bf16.msra.mxu0 %v9563
    %9749 = vmatprep.subr.bf16.mxu0 0
    %9750 = vmatpush1.bf16.msra.mxu0 %v9564
    %9751 = vmatprep.subr.bf16.mxu0 0
    %9752 = vmatpush1.bf16.msra.mxu0 %v9565
    %9753 = vmatprep.subr.bf16.mxu0 0
    %9754 = vmatpush1.bf16.msra.mxu0 %v9566
    %9755 = vmatprep.subr.bf16.mxu0 0
    %9756 = vmatpush1.bf16.msra.mxu0 %v9567
    %9757 = vmatprep.subr.bf16.mxu0 0
    %9758 = vmatpush1.bf16.msra.mxu0 %v9568
    %9759 = vmatprep.subr.bf16.mxu0 0
    %9760 = vmatpush1.bf16.msra.mxu0 %v9569
    %9761 = vmatprep.subr.bf16.mxu0 0
    %9762 = vmatpush1.bf16.msra.mxu0 %v9570
    %9763 = vmatprep.mubr.bf16.mxu0 %v9129
    %9764 = vmatmul.mubr.bf16.gmra.mrb[0].mxu0 %v9128
    %v9765 = vpop.f32.mrb[0].mxu0
    %v9766 = vadd.f32 %v9726, %v9765
    %v9767 = vpop.f32.mrb[0].mxu0
    %v9768 = vpop.f32.mrb[0].mxu0
    %v9769 = vpop.f32.mrb[0].mxu0
    %9770 = vdwg.mxu0
    %9771 = vmatprep.subr.bf16.mxu0 0
    %9772 = vmatpush1.bf16.msra.mxu0 %v9571
    %9773 = vmatprep.subr.bf16.mxu0 0
    %9774 = vmatpush1.bf16.msra.mxu0 %v9572
    %9775 = vmatprep.subr.bf16.mxu0 0
    %9776 = vmatpush1.bf16.msra.mxu0 %v9573
    %9777 = vmatprep.subr.bf16.mxu0 0
    %9778 = vmatpush1.bf16.msra.mxu0 %v9574
    %9779 = vmatprep.subr.bf16.mxu0 0
    %9780 = vmatpush1.bf16.msra.mxu0 %v9575
    %9781 = vmatprep.subr.bf16.mxu0 0
    %9782 = vmatpush1.bf16.msra.mxu0 %v9576
    %9783 = vmatprep.subr.bf16.mxu0 0
    %9784 = vmatpush1.bf16.msra.mxu0 %v9577
    %9785 = vmatprep.subr.bf16.mxu0 0
    %9786 = vmatpush1.bf16.msra.mxu0 %v9578
    %9787 = vmatprep.subr.bf16.mxu0 0
    %9788 = vmatpush1.bf16.msra.mxu0 %v9579
    %9789 = vmatprep.subr.bf16.mxu0 0
    %9790 = vmatpush1.bf16.msra.mxu0 %v9580
    %9791 = vmatprep.subr.bf16.mxu0 0
    %9792 = vmatpush1.bf16.msra.mxu0 %v9581
    %9793 = vmatprep.subr.bf16.mxu0 0
    %9794 = vmatpush1.bf16.msra.mxu0 %v9582
    %9795 = vmatprep.subr.bf16.mxu0 0
    %9796 = vmatpush1.bf16.msra.mxu0 %v9583
    %9797 = vmatprep.subr.bf16.mxu0 0
    %9798 = vmatpush1.bf16.msra.mxu0 %v9584
    %9799 = vmatprep.subr.bf16.mxu0 0
    %9800 = vmatpush1.bf16.msra.mxu0 %v9585
    %9801 = vmatprep.subr.bf16.mxu0 0
    %9802 = vmatpush1.bf16.msra.mxu0 %v9586
    %9803 = vmatprep.mubr.bf16.mxu0 %v9131
    %9804 = vmatmul.mubr.bf16.gmra.mrb[0].mxu0 %v9130
    %v9805 = vpop.f32.mrb[0].mxu0
    %v9806 = vadd.f32 %v9766, %v9805
    %v9807 = vpop.f32.mrb[0].mxu0
    %v9808 = vpop.f32.mrb[0].mxu0
    %v9809 = vpop.f32.mrb[0].mxu0
    %9810 = vdwg.mxu0
    %v9811 = vmax.f32 %v9806, 0.0
    %v9812 = vld [vmem:[#allocation11] sm:$0xff]
    %v9813 = vld [vmem:[#allocation11 + $0x8] sm:$0xff]
    %v9814 = vld [vmem:[#allocation11 + $0x10] sm:$0xff]
    %v9815 = vld [vmem:[#allocation11 + $0x18] sm:$0xff]
    %v9816 = vld [vmem:[#allocation11 + $0x20] sm:$0xff]
    %v9817 = vld [vmem:[#allocation11 + $0x28] sm:$0xff]
    %v9818 = vld [vmem:[#allocation11 + $0x30] sm:$0xff]
    %v9819 = vld [vmem:[#allocation11 + $0x38] sm:$0xff]
    %v9820 = vld [vmem:[#allocation11 + $0x40] sm:$0xff]
    %v9821 = vld [vmem:[#allocation11 + $0x48] sm:$0xff]
    %v9822 = vld [vmem:[#allocation11 + $0x50] sm:$0xff]
    %v9823 = vld [vmem:[#allocation11 + $0x58] sm:$0xff]
    %v9824 = vld [vmem:[#allocation11 + $0x60] sm:$0xff]
    %v9825 = vld [vmem:[#allocation11 + $0x68] sm:$0xff]
    %v9826 = vld [vmem:[#allocation11 + $0x70] sm:$0xff]
    %v9827 = vld [vmem:[#allocation11 + $0x78] sm:$0xff]
    %v9828 = vld [vmem:[#allocation13] sm:$0x1]
    %v9830 = vlaneseq
    %v9831 = vshrl.u32 %v9830, 7
    %v9832 = vsub.s32 0, %v9831
    %v9833 = vrot.slane %v9828, %v9832
    %9835 = vmatprep.subr.mxu0 0.0
    %9836 = vmatpush1.msra.mxu0 %v9812
    %9837 = vmatprep.subr.mxu0 0.0
    %9838 = vmatpush1.msra.mxu0 %v9813
    %9839 = vmatprep.subr.mxu0 0.0
    %9840 = vmatpush1.msra.mxu0 %v9814
    %9841 = vmatprep.subr.mxu0 0.0
    %9842 = vmatpush1.msra.mxu0 %v9815
    %9843 = vmatprep.subr.mxu0 0.0
    %9844 = vmatpush1.msra.mxu0 %v9816
    %9845 = vmatprep.subr.mxu0 0.0
    %9846 = vmatpush1.msra.mxu0 %v9817
    %9847 = vmatprep.subr.mxu0 0.0
    %9848 = vmatpush1.msra.mxu0 %v9818
    %9849 = vmatprep.subr.mxu0 0.0
    %9850 = vmatpush1.msra.mxu0 %v9819
    %9851 = vmatprep.subr.mxu0 0.0
    %9852 = vmatpush1.msra.mxu0 %v9820
    %9853 = vmatprep.subr.mxu0 0.0
    %9854 = vmatpush1.msra.mxu0 %v9821
    %9855 = vmatprep.subr.mxu0 0.0
    %9856 = vmatpush1.msra.mxu0 %v9822
    %9857 = vmatprep.subr.mxu0 0.0
    %9858 = vmatpush1.msra.mxu0 %v9823
    %9859 = vmatprep.subr.mxu0 0.0
    %9860 = vmatpush1.msra.mxu0 %v9824
    %9861 = vmatprep.subr.mxu0 0.0
    %9862 = vmatpush1.msra.mxu0 %v9825
    %9863 = vmatprep.subr.mxu0 0.0
    %9864 = vmatpush1.msra.mxu0 %v9826
    %9865 = vmatprep.subr.mxu0 0.0
    %9866 = vmatpush1.msra.mxu0 %v9827
    %9867 = vmatprep.subr.mxu0 0.0
    %9868 = vmatpush1.msra.mxu0 0.0
    %9869 = vmatprep.subr.mxu0 0.0
    %9870 = vmatpush1.msra.mxu0 0.0
    %9871 = vmatprep.subr.mxu0 0.0
    %9872 = vmatpush1.msra.mxu0 0.0
    %9873 = vmatprep.subr.mxu0 0.0
    %9874 = vmatpush1.msra.mxu0 0.0
    %9875 = vmatprep.subr.mxu0 0.0
    %9876 = vmatpush1.msra.mxu0 0.0
    %9877 = vmatprep.subr.mxu0 0.0
    %9878 = vmatpush1.msra.mxu0 0.0
    %9879 = vmatprep.subr.mxu0 0.0
    %9880 = vmatpush1.msra.mxu0 0.0
    %9881 = vmatprep.subr.mxu0 0.0
    %9882 = vmatpush1.msra.mxu0 0.0
    %9883 = vmatprep.subr.mxu0 0.0
    %9884 = vmatpush1.msra.mxu0 0.0
    %9885 = vmatprep.subr.mxu0 0.0
    %9886 = vmatpush1.msra.mxu0 0.0
    %9887 = vmatprep.subr.mxu0 0.0
    %9888 = vmatpush1.msra.mxu0 0.0
    %9889 = vmatprep.subr.mxu0 0.0
    %9890 = vmatpush1.msra.mxu0 0.0
    %9891 = vmatprep.subr.mxu0 0.0
    %9892 = vmatpush1.msra.mxu0 0.0
    %9893 = vmatprep.subr.mxu0 0.0
    %9894 = vmatpush1.msra.mxu0 0.0
    %9895 = vmatprep.subr.mxu0 0.0
    %9896 = vmatpush1.msra.mxu0 0.0
    %9897 = vmatprep.subr.mxu0 0.0
    %9898 = vmatpush1.msra.mxu0 0.0
    %9899 = vmatprep.mubr.f32.mxu0 0.0
    %9900 = vmatmul.mubr.f32.gmra.mrb[0].mxu0 %v9811
    %v9901 = vpop.f32.mrb[0].mxu0
    %v9902 = vadd.f32 %v9833, %v9901
    %v9903 = vpop.f32.mrb[0].mxu0
    %9904 = vdwg.mxu0
    %v9905 = vlaneseq
    %v9906 = vand.u32 %v9905, 127
    %vm9907 = vcmp.lt.s32.totalorder %v9906, 10
    %v9908 = vsel %vm9907, %v9902, -inf
    %9909 = vmax.xlane.f32.xlu0 %v9908
    %v9910 = vpop.xlane.xlu0 %9909
    %v9911 = vsub.f32 %v9908, %v9910
    %v9912 = vmul.f32 %v9911, 1.442695
    %v9913 = vpow.pop %v9912
    %9914 = vadd.xlane.f32.xlu0 %v9913
    %v9915 = vpop.xlane.xlu0 %9914
    %v9916 = vlog2.pop %v9915
    %v9917 = vmul.f32 %v9916, 0.6931472
    %v9918 = vsub.f32 %v9911, %v9917
    %9919 = vst [vmem:[#allocation14] sm:$0xff] %v9918
    // Predicated region
    $region58: #{fully_connected_net.1} parent=1 // pred_check
      _
    $region59: #{fully_connected_net.1} parent=1 // pred_check_branch
      %9921 = sbr.rel (0) target = $region61
    $region60: #{fully_connected_net.1} parent=1 // pred_region
      %s9923 = ssub.s32 128, 32
      %9924 = vsyncadd [#allocation4], %s9923
      %s9925 = sshll.u32 [#allocation14], 4
      %s9926 = int_to_ptr.vmem [resolvable:$true] %s9925
      %9931 = dma.vmem_to_hbm [thread:$0]  %s9926, 32, %s7, [#allocation4], 32, 32, 2
    $region61: #{fully_connected_net.1} parent=1 // pred_fallthru
      _
    // Predicated region
    $region62: #{fully_connected_net.1} parent=1 // pred_check
      _
    $region63: #{fully_connected_net.1} parent=1 // pred_check_branch
      %9933 = sbr.rel (0) target = $region65
    $region64: #{fully_connected_net.1} parent=1 // pred_region
      %9934 = dma.done [#allocation4], 128
    $region65: #{fully_connected_net.1} parent=1 // pred_fallthru
      _
    %9935 = vsyncpa [#allocation3], 1
    %9936 = vsyncpa [#allocation6], 1
    %9937 = vsyncpa [#allocation9], 1
    %9938 = vsyncpa [#allocation12], 1
    %9939 = vsyncpa [#allocation4], 1

</llo_original>
